<compile_context>
chip_gen: v5e
topology: v5e:2x2
jax: 0.10.0
libtpu: 0.0.40
codegen_flags: <defaults>
</compile_context>

<pallas_src>
import functools

import jax
import jax.numpy as jnp
from jax.experimental import pallas as pl
from jax.experimental.pallas import tpu as pltpu


def _build_band_weights(w_oihw, W, include_identity):
    """Fold the 3x3 conv's width taps (and optionally the identity shortcut)
    into a banded matrix per kernel row ky:

      M[ky, w_in*Cin + ci, w_out*Cout + co] = weight[co, ci, ky, w_in - w_out + 1]

    for w_in - w_out in {-1, 0, 1}, zero otherwise (implicit W zero-padding),
    plus an identity band on the ky=1 / dx=0 diagonal when include_identity.
    """
    Cout, Cin, KH, KW = w_oihw.shape
    assert (KH, KW) == (3, 3), "kernel only implements the 3x3 conv case"
    if include_identity:
        assert Cin == Cout, "identity shortcut requires Cin == Cout"

    w_t = jnp.transpose(w_oihw, (2, 3, 1, 0))          # [ky, kx, Cin, Cout]
    w_in = jnp.arange(W)[:, None]                      # [W, 1]
    w_out = jnp.arange(W)[None, :]                     # [1, W]
    kx = w_in - w_out + 1                              # [W, W]
    valid = (kx >= 0) & (kx <= 2)
    kx_c = jnp.clip(kx, 0, 2)

    m = w_t[:, kx_c]                                   # [3, W, W, Cin, Cout]
    m = jnp.where(valid[None, :, :, None, None], m, 0)
    m = jnp.transpose(m, (0, 1, 3, 2, 4))              # [3, w_in, ci, w_out, co]

    if include_identity:
        eye = (jnp.eye(W, dtype=m.dtype)[:, None, :, None]
               * jnp.eye(Cin, Cout, dtype=m.dtype)[None, :, None, :])
        m = m.at[1].add(eye)                           # centre tap += identity

    return m.reshape(3, W * Cin, W * Cout)


def _residual_conv_kernel(xpad_ref, m_ref, b_ref, out_ref):
    """One packed group of P images per grid step.

    xpad_ref : [1, H+2, P*W*Cin]      H-zero-padded, (p, w, ci)-flattened input
    m_ref    : [3, P*W*Cin, P*W*Cout] block-diag banded conv (+identity) weights
    b_ref    : [1, P*W*Cout]          bias tiled along (p, w)
    out_ref  : [1, H, P*W*Cout]
    """
    H = out_ref.shape[1]
    n = out_ref.shape[2]

    # Initialise the accumulator with the bias (no epilogue add pass).
    acc = jnp.broadcast_to(b_ref[...], (H, n)).astype(jnp.float32)

    # 3 lane-dense MXU matmuls; dx taps, channels, the W padding, the batch
    # packing and the residual are all folded into m_ref.
    for ky in range(3):  # static unroll
        acc = acc + jnp.dot(
            xpad_ref[0, ky:ky + H, :], m_ref[ky],
            preferred_element_type=jnp.float32)

    out_ref[0] = acc.astype(out_ref.dtype)


@functools.partial(jax.jit, static_argnames=("has_conv", "has_shortcut"))
def residual_block(x_nchw, w_oihw, bias, *, has_conv=True, has_shortcut=True):
    """Pallas implementation of ResidualBlock.forward.

    x_nchw : [B, C, H, W]  (PyTorch layout)
    w_oihw : [Cout, Cin, 3, 3]
    bias   : [Cout]
    """
    if not has_conv:                        # self.conv is None -> identity
        return x_nchw

    B, C, H, W = x_nchw.shape
    Cout = w_oihw.shape[0]
    WC, WCo = W * C, W * Cout

    # Lane-packing factor: stack P images on the lane axis so loads and
    # (critically) stores are >= 128 lanes wide.
    P = 1
    if WC < 128:
        P = max(1, min(-(-128 // WC), max(B, 1)))
    Bp = -(-B // P) * P                     # pad batch to a multiple of P
    G = Bp // P

    # NCHW -> [B, H, W*C] (channels fastest on the lane axis), pack P images
    # per lane row, then pad only H (W padding is implicit in the band matrix).
    xt = jnp.transpose(x_nchw, (0, 2, 3, 1)).reshape(B, H, WC)
    if Bp != B:
        xt = jnp.pad(xt, ((0, Bp - B), (0, 0), (0, 0)))
    xg = xt.reshape(G, P, H, WC).transpose(0, 2, 1, 3).reshape(G, H, P * WC)
    xpad = jnp.pad(xg, ((0, 0), (1, 1), (0, 0)))

    m = _build_band_weights(w_oihw, W, include_identity=has_shortcut)
    if P > 1:                               # block-diag over packed images
        eye_p = jnp.eye(P, dtype=m.dtype)
        m = (eye_p[None, :, None, :, None]
             * m[:, None, :, None, :]).reshape(3, P * WC, P * WCo)
    b_row = jnp.tile(bias, P * W).reshape(1, P * WCo)

    out_flat = pl.pallas_call(
        _residual_conv_kernel,
        out_shape=jax.ShapeDtypeStruct((G, H, P * WCo), x_nchw.dtype),
        grid=(G,),
        in_specs=[
            pl.BlockSpec((1, H + 2, P * WC), lambda g: (g, 0, 0)),
            pl.BlockSpec((3, P * WC, P * WCo), lambda g: (0, 0, 0)),
            pl.BlockSpec((1, P * WCo), lambda g: (0, 0)),
        ],
        out_specs=pl.BlockSpec((1, H, P * WCo), lambda g: (g, 0, 0)),
        compiler_params=pltpu.CompilerParams(
            dimension_semantics=("parallel",),
            vmem_limit_bytes=32 * 1024 * 1024,
        ),
    )(xpad, m, b_row)

    # Unpack lanes -> batch, drop batch padding, back to NCHW.
    out = (out_flat.reshape(G, H, P, W, Cout)
           .transpose(0, 2, 1, 3, 4)
           .reshape(Bp, H, W, Cout)[:B])
    return jnp.transpose(out, (0, 3, 1, 2))


if __name__ == "__main__":
    key = jax.random.PRNGKey(0)
    kx, kw, kb = jax.random.split(key, 3)

    B, C, H, W = 2, 4, 16, 16
    x = jax.random.normal(kx, (B, C, H, W), dtype=jnp.float32)
    w = jax.random.normal(kw, (C, C, 3, 3), dtype=jnp.float32) * 0.1   # OIHW
    b = jax.random.normal(kb, (C,), dtype=jnp.float32) * 0.1

    out = residual_block(x, w, b)
    out = jax.block_until_ready(out)

    # plain-JAX reference: conv(x) + bias + x
    ref = jax.lax.conv_general_dilated(
        x, w, window_strides=(1, 1), padding="SAME",
        dimension_numbers=("NCHW", "OIHW", "NCHW"),
        precision=jax.lax.Precision.HIGHEST)
    ref = ref + b[None, :, None, None] + x

    assert out.shape == (B, C, H, W)
    err = float(jnp.max(jnp.abs(out - ref)))
    assert jnp.allclose(out, ref, atol=1e-4, rtol=1e-4), err
    print("KERNEL_OK")
</pallas_src>

<mosaic_0001>
module attributes {stable_mosaic.version = 11 : i64} {
  func.func @_residual_conv_kernel(%arg0: i32, %arg1: memref<1x18x128xf32, #tpu.memory_space<vmem>>, %arg2: memref<3x128x128xf32, #tpu.memory_space<vmem>>, %arg3: memref<1x128xf32, #tpu.memory_space<vmem>>, %arg4: memref<1x16x128xf32, #tpu.memory_space<vmem>>) attributes {dimension_semantics = [#tpu.dimension_semantics<parallel>], iteration_bounds = array<i64: 1>, scalar_prefetch = 0 : i64, scratch_operands = 0 : i64, tpu.core_type = #tpu.core_type<tc>, window_params = [{transform_indices = @transform_0, window_bounds = array<i64: 1, 18, 128>}, {pipeline_mode = #tpu.pipeline_mode<synchronous>, transform_indices = @transform_1, window_bounds = array<i64: 3, 128, 128>}, {pipeline_mode = #tpu.pipeline_mode<synchronous>, transform_indices = @transform_2, window_bounds = array<i64: 1, 128>}, {transform_indices = @transform_3, window_bounds = array<i64: 1, 16, 128>}]} {
    %c0 = arith.constant 0 : index
    %c0_0 = arith.constant 0 : index
    %0 = vector.load %arg3[%c0, %c0_0] : memref<1x128xf32, #tpu.memory_space<vmem>>, vector<1x128xf32>
    %1 = vector.shape_cast %0 : vector<1x128xf32> to vector<1x128xf32>
    %2 = vector.broadcast %1 : vector<1x128xf32> to vector<16x128xf32>
    %c0_1 = arith.constant 0 : index
    %c0_2 = arith.constant 0 : index
    %c0_3 = arith.constant 0 : index
    %3 = vector.load %arg1[%c0_1, %c0_2, %c0_3] : memref<1x18x128xf32, #tpu.memory_space<vmem>>, vector<1x16x128xf32>
    %4 = vector.shape_cast %3 : vector<1x16x128xf32> to vector<16x128xf32>
    %c0_4 = arith.constant 0 : index
    %c0_5 = arith.constant 0 : index
    %c0_6 = arith.constant 0 : index
    %5 = vector.load %arg2[%c0_4, %c0_5, %c0_6] : memref<3x128x128xf32, #tpu.memory_space<vmem>>, vector<1x128x128xf32>
    %6 = vector.shape_cast %5 : vector<1x128x128xf32> to vector<128x128xf32>
    %cst = arith.constant dense<0.000000e+00> : vector<16x128xf32>
    %7 = tpu.matmul %4, %6, %cst {dimension_numbers = #tpu.dot_dimension_numbers<[1], [0], [0], [1], [0, 0, 1, 1], [], []>} : vector<16x128xf32>, vector<128x128xf32>, vector<16x128xf32> -> vector<16x128xf32>
    %8 = arith.addf %2, %7 : vector<16x128xf32>
    %c0_7 = arith.constant 0 : index
    %c1 = arith.constant 1 : index
    %c0_8 = arith.constant 0 : index
    %9 = vector.load %arg1[%c0_7, %c1, %c0_8] : memref<1x18x128xf32, #tpu.memory_space<vmem>>, vector<1x16x128xf32>
    %10 = vector.shape_cast %9 : vector<1x16x128xf32> to vector<16x128xf32>
    %c1_9 = arith.constant 1 : index
    %c0_10 = arith.constant 0 : index
    %c0_11 = arith.constant 0 : index
    %11 = vector.load %arg2[%c1_9, %c0_10, %c0_11] : memref<3x128x128xf32, #tpu.memory_space<vmem>>, vector<1x128x128xf32>
    %12 = vector.shape_cast %11 : vector<1x128x128xf32> to vector<128x128xf32>
    %cst_12 = arith.constant dense<0.000000e+00> : vector<16x128xf32>
    %13 = tpu.matmul %10, %12, %cst_12 {dimension_numbers = #tpu.dot_dimension_numbers<[1], [0], [0], [1], [0, 0, 1, 1], [], []>} : vector<16x128xf32>, vector<128x128xf32>, vector<16x128xf32> -> vector<16x128xf32>
    %14 = arith.addf %8, %13 : vector<16x128xf32>
    %c0_13 = arith.constant 0 : index
    %c2 = arith.constant 2 : index
    %c0_14 = arith.constant 0 : index
    %15 = vector.load %arg1[%c0_13, %c2, %c0_14] : memref<1x18x128xf32, #tpu.memory_space<vmem>>, vector<1x16x128xf32>
    %16 = vector.shape_cast %15 : vector<1x16x128xf32> to vector<16x128xf32>
    %c2_15 = arith.constant 2 : index
    %c0_16 = arith.constant 0 : index
    %c0_17 = arith.constant 0 : index
    %17 = vector.load %arg2[%c2_15, %c0_16, %c0_17] : memref<3x128x128xf32, #tpu.memory_space<vmem>>, vector<1x128x128xf32>
    %18 = vector.shape_cast %17 : vector<1x128x128xf32> to vector<128x128xf32>
    %cst_18 = arith.constant dense<0.000000e+00> : vector<16x128xf32>
    %19 = tpu.matmul %16, %18, %cst_18 {dimension_numbers = #tpu.dot_dimension_numbers<[1], [0], [0], [1], [0, 0, 1, 1], [], []>} : vector<16x128xf32>, vector<128x128xf32>, vector<16x128xf32> -> vector<16x128xf32>
    %20 = arith.addf %14, %19 : vector<16x128xf32>
    %c0_19 = arith.constant 0 : index
    %c0_20 = arith.constant 0 : index
    %c0_21 = arith.constant 0 : index
    %21 = vector.load %arg4[%c0_19, %c0_20, %c0_21] : memref<1x16x128xf32, #tpu.memory_space<vmem>>, vector<1x16x128xf32>
    %22 = vector.shape_cast %21 : vector<1x16x128xf32> to vector<16x128xf32>
    %23 = vector.shape_cast %20 : vector<16x128xf32> to vector<1x16x128xf32>
    tpu.vector_store %arg4[%c0_19, %c0_20, %c0_21], %23 {strides = array<i32>} : memref<1x16x128xf32, #tpu.memory_space<vmem>>, vector<1x16x128xf32>,
    return
  }
  func.func @transform_0(%arg0: i32) -> (i32, i32, i32) {
    %c0_i32 = arith.constant 0 : i32
    %c0_i32_0 = arith.constant 0 : i32
    %c0_i32_1 = arith.constant 0 : i32
    return %arg0, %c0_i32, %c0_i32_0 : i32, i32, i32
  }
  func.func @transform_1(%arg0: i32) -> (i32, i32, i32) {
    %c0_i32 = arith.constant 0 : i32
    %c0_i32_0 = arith.constant 0 : i32
    %c0_i32_1 = arith.constant 0 : i32
    %c0_i32_2 = arith.constant 0 : i32
    return %c0_i32, %c0_i32_0, %c0_i32_1 : i32, i32, i32
  }
  func.func @transform_2(%arg0: i32) -> (i32, i32) {
    %c0_i32 = arith.constant 0 : i32
    %c0_i32_0 = arith.constant 0 : i32
    %c0_i32_1 = arith.constant 0 : i32
    return %c0_i32, %c0_i32_0 : i32, i32
  }
  func.func @transform_3(%arg0: i32) -> (i32, i32, i32) {
    %c0_i32 = arith.constant 0 : i32
    %c0_i32_0 = arith.constant 0 : i32
    %c0_i32_1 = arith.constant 0 : i32
    return %arg0, %c0_i32, %c0_i32_0 : i32, i32, i32
  }
}

</mosaic_0001>

<llo_original>
// kernel: mul.25
$region0: #{mul.25}
  %s0 = inlined_call_operand.vmem [shape: f32[3,16,4,16,4], index: 0, kind: input, shape index: {}]
  %s1 = inlined_call_operand.vmem [shape: f32[3,64,64], index: 1, kind: output, shape index: {}]
  %s2 = smov 3
  %v3 = vld [vmem:[%s0] ss:$16 sm:%s2]
  %s4 = smov 12
  %v5 = vld [vmem:[%s0] ss:$16 sm:%s4]
  %vm6 = vcmask 1043458
  %v7 = vsel %vm6, %v5, %v3
  %s8 = smov 48
  %v9 = vld [vmem:[%s0] ss:$16 sm:%s8]
  %vm10 = vcmask 1045508
  %v11 = vsel %vm10, %v9, %v7
  %s12 = smov 192
  %v13 = vld [vmem:[%s0] ss:$16 sm:%s12]
  %vm14 = vcmask 1047558
  %v15 = vsel %vm14, %v13, %v11
  %vm16 = vcmask 31744
  %17 = vst.msk [vmem:[%s1] sm:$0xff] %vm16, %v15
  %s18 = scalar_lea.vmem %s0, 128
  %s19 = smov 3
  %v20 = vld [vmem:[%s18] ss:$16 sm:%s19]
  %s21 = scalar_lea.vmem %s0, 128
  %s22 = smov 12
  %v23 = vld [vmem:[%s21] ss:$16 sm:%s22]
  %vm24 = vcmask 1043458
  %v25 = vsel %vm24, %v23, %v20
  %s26 = scalar_lea.vmem %s0, 128
  %s27 = smov 48
  %v28 = vld [vmem:[%s26] ss:$16 sm:%s27]
  %vm29 = vcmask 1045508
  %v30 = vsel %vm29, %v28, %v25
  %s31 = scalar_lea.vmem %s0, 128
  %s32 = smov 192
  %v33 = vld [vmem:[%s31] ss:$16 sm:%s32]
  %vm34 = vcmask 1047558
  %v35 = vsel %vm34, %v33, %v30
  %vm36 = vcmask 31744
  %s37 = scalar_lea.vmem %s1, 8
  %38 = vst.msk [vmem:[%s37] sm:$0xff] %vm36, %v35
  %s39 = scalar_lea.vmem %s0, 256
  %s40 = smov 3
  %v41 = vld [vmem:[%s39] ss:$16 sm:%s40]
  %s42 = scalar_lea.vmem %s0, 256
  %s43 = smov 12
  %v44 = vld [vmem:[%s42] ss:$16 sm:%s43]
  %vm45 = vcmask 1043458
  %v46 = vsel %vm45, %v44, %v41
  %s47 = scalar_lea.vmem %s0, 256
  %s48 = smov 48
  %v49 = vld [vmem:[%s47] ss:$16 sm:%s48]
  %vm50 = vcmask 1045508
  %v51 = vsel %vm50, %v49, %v46
  %s52 = scalar_lea.vmem %s0, 256
  %s53 = smov 192
  %v54 = vld [vmem:[%s52] ss:$16 sm:%s53]
  %vm55 = vcmask 1047558
  %v56 = vsel %vm55, %v54, %v51
  %vm57 = vcmask 31744
  %s58 = scalar_lea.vmem %s1, 16
  %59 = vst.msk [vmem:[%s58] sm:$0xff] %vm57, %v56
  %s60 = scalar_lea.vmem %s0, 384
  %s61 = smov 3
  %v62 = vld [vmem:[%s60] ss:$16 sm:%s61]
  %s63 = scalar_lea.vmem %s0, 384
  %s64 = smov 12
  %v65 = vld [vmem:[%s63] ss:$16 sm:%s64]
  %vm66 = vcmask 1043458
  %v67 = vsel %vm66, %v65, %v62
  %s68 = scalar_lea.vmem %s0, 384
  %s69 = smov 48
  %v70 = vld [vmem:[%s68] ss:$16 sm:%s69]
  %vm71 = vcmask 1045508
  %v72 = vsel %vm71, %v70, %v67
  %s73 = scalar_lea.vmem %s0, 384
  %s74 = smov 192
  %v75 = vld [vmem:[%s73] ss:$16 sm:%s74]
  %vm76 = vcmask 1047558
  %v77 = vsel %vm76, %v75, %v72
  %vm78 = vcmask 31744
  %s79 = scalar_lea.vmem %s1, 24
  %80 = vst.msk [vmem:[%s79] sm:$0xff] %vm78, %v77
  %s81 = scalar_lea.vmem %s0, 512
  %s82 = smov 3
  %v83 = vld [vmem:[%s81] ss:$16 sm:%s82]
  %s84 = scalar_lea.vmem %s0, 512
  %s85 = smov 12
  %v86 = vld [vmem:[%s84] ss:$16 sm:%s85]
  %vm87 = vcmask 1043458
  %v88 = vsel %vm87, %v86, %v83
  %s89 = scalar_lea.vmem %s0, 512
  %s90 = smov 48
  %v91 = vld [vmem:[%s89] ss:$16 sm:%s90]
  %vm92 = vcmask 1045508
  %v93 = vsel %vm92, %v91, %v88
  %s94 = scalar_lea.vmem %s0, 512
  %s95 = smov 192
  %v96 = vld [vmem:[%s94] ss:$16 sm:%s95]
  %vm97 = vcmask 1047558
  %v98 = vsel %vm97, %v96, %v93
  %vm99 = vcmask 31744
  %s100 = scalar_lea.vmem %s1, 32
  %101 = vst.msk [vmem:[%s100] sm:$0xff] %vm99, %v98
  %s102 = scalar_lea.vmem %s0, 640
  %s103 = smov 3
  %v104 = vld [vmem:[%s102] ss:$16 sm:%s103]
  %s105 = scalar_lea.vmem %s0, 640
  %s106 = smov 12
  %v107 = vld [vmem:[%s105] ss:$16 sm:%s106]
  %vm108 = vcmask 1043458
  %v109 = vsel %vm108, %v107, %v104
  %s110 = scalar_lea.vmem %s0, 640
  %s111 = smov 48
  %v112 = vld [vmem:[%s110] ss:$16 sm:%s111]
  %vm113 = vcmask 1045508
  %v114 = vsel %vm113, %v112, %v109
  %s115 = scalar_lea.vmem %s0, 640
  %s116 = smov 192
  %v117 = vld [vmem:[%s115] ss:$16 sm:%s116]
  %vm118 = vcmask 1047558
  %v119 = vsel %vm118, %v117, %v114
  %vm120 = vcmask 31744
  %s121 = scalar_lea.vmem %s1, 40
  %122 = vst.msk [vmem:[%s121] sm:$0xff] %vm120, %v119
  %s123 = scalar_lea.vmem %s0, 768
  %s124 = smov 3
  %v125 = vld [vmem:[%s123] ss:$16 sm:%s124]
  %s126 = scalar_lea.vmem %s0, 768
  %s127 = smov 12
  %v128 = vld [vmem:[%s126] ss:$16 sm:%s127]
  %vm129 = vcmask 1043458
  %v130 = vsel %vm129, %v128, %v125
  %s131 = scalar_lea.vmem %s0, 768
  %s132 = smov 48
  %v133 = vld [vmem:[%s131] ss:$16 sm:%s132]
  %vm134 = vcmask 1045508
  %v135 = vsel %vm134, %v133, %v130
  %s136 = scalar_lea.vmem %s0, 768
  %s137 = smov 192
  %v138 = vld [vmem:[%s136] ss:$16 sm:%s137]
  %vm139 = vcmask 1047558
  %v140 = vsel %vm139, %v138, %v135
  %vm141 = vcmask 31744
  %s142 = scalar_lea.vmem %s1, 48
  %143 = vst.msk [vmem:[%s142] sm:$0xff] %vm141, %v140
  %s144 = scalar_lea.vmem %s0, 896
  %s145 = smov 3
  %v146 = vld [vmem:[%s144] ss:$16 sm:%s145]
  %s147 = scalar_lea.vmem %s0, 896
  %s148 = smov 12
  %v149 = vld [vmem:[%s147] ss:$16 sm:%s148]
  %vm150 = vcmask 1043458
  %v151 = vsel %vm150, %v149, %v146
  %s152 = scalar_lea.vmem %s0, 896
  %s153 = smov 48
  %v154 = vld [vmem:[%s152] ss:$16 sm:%s153]
  %vm155 = vcmask 1045508
  %v156 = vsel %vm155, %v154, %v151
  %s157 = scalar_lea.vmem %s0, 896
  %s158 = smov 192
  %v159 = vld [vmem:[%s157] ss:$16 sm:%s158]
  %vm160 = vcmask 1047558
  %v161 = vsel %vm160, %v159, %v156
  %vm162 = vcmask 31744
  %s163 = scalar_lea.vmem %s1, 56
  %164 = vst.msk [vmem:[%s163] sm:$0xff] %vm162, %v161
  %s165 = scalar_lea.vmem %s0, 1024
  %s166 = smov 3
  %v167 = vld [vmem:[%s165] ss:$16 sm:%s166]
  %s168 = scalar_lea.vmem %s0, 1024
  %s169 = smov 12
  %v170 = vld [vmem:[%s168] ss:$16 sm:%s169]
  %vm171 = vcmask 1043458
  %v172 = vsel %vm171, %v170, %v167
  %s173 = scalar_lea.vmem %s0, 1024
  %s174 = smov 48
  %v175 = vld [vmem:[%s173] ss:$16 sm:%s174]
  %vm176 = vcmask 1045508
  %v177 = vsel %vm176, %v175, %v172
  %s178 = scalar_lea.vmem %s0, 1024
  %s179 = smov 192
  %v180 = vld [vmem:[%s178] ss:$16 sm:%s179]
  %vm181 = vcmask 1047558
  %v182 = vsel %vm181, %v180, %v177
  %vm183 = vcmask 31744
  %s184 = scalar_lea.vmem %s1, 64
  %185 = vst.msk [vmem:[%s184] sm:$0xff] %vm183, %v182
  %s186 = scalar_lea.vmem %s0, 1152
  %s187 = smov 3
  %v188 = vld [vmem:[%s186] ss:$16 sm:%s187]
  %s189 = scalar_lea.vmem %s0, 1152
  %s190 = smov 12
  %v191 = vld [vmem:[%s189] ss:$16 sm:%s190]
  %vm192 = vcmask 1043458
  %v193 = vsel %vm192, %v191, %v188
  %s194 = scalar_lea.vmem %s0, 1152
  %s195 = smov 48
  %v196 = vld [vmem:[%s194] ss:$16 sm:%s195]
  %vm197 = vcmask 1045508
  %v198 = vsel %vm197, %v196, %v193
  %s199 = scalar_lea.vmem %s0, 1152
  %s200 = smov 192
  %v201 = vld [vmem:[%s199] ss:$16 sm:%s200]
  %vm202 = vcmask 1047558
  %v203 = vsel %vm202, %v201, %v198
  %vm204 = vcmask 31744
  %s205 = scalar_lea.vmem %s1, 72
  %206 = vst.msk [vmem:[%s205] sm:$0xff] %vm204, %v203
  %s207 = scalar_lea.vmem %s0, 1280
  %s208 = smov 3
  %v209 = vld [vmem:[%s207] ss:$16 sm:%s208]
  %s210 = scalar_lea.vmem %s0, 1280
  %s211 = smov 12
  %v212 = vld [vmem:[%s210] ss:$16 sm:%s211]
  %vm213 = vcmask 1043458
  %v214 = vsel %vm213, %v212, %v209
  %s215 = scalar_lea.vmem %s0, 1280
  %s216 = smov 48
  %v217 = vld [vmem:[%s215] ss:$16 sm:%s216]
  %vm218 = vcmask 1045508
  %v219 = vsel %vm218, %v217, %v214
  %s220 = scalar_lea.vmem %s0, 1280
  %s221 = smov 192
  %v222 = vld [vmem:[%s220] ss:$16 sm:%s221]
  %vm223 = vcmask 1047558
  %v224 = vsel %vm223, %v222, %v219
  %vm225 = vcmask 31744
  %s226 = scalar_lea.vmem %s1, 80
  %227 = vst.msk [vmem:[%s226] sm:$0xff] %vm225, %v224
  %s228 = scalar_lea.vmem %s0, 1408
  %s229 = smov 3
  %v230 = vld [vmem:[%s228] ss:$16 sm:%s229]
  %s231 = scalar_lea.vmem %s0, 1408
  %s232 = smov 12
  %v233 = vld [vmem:[%s231] ss:$16 sm:%s232]
  %vm234 = vcmask 1043458
  %v235 = vsel %vm234, %v233, %v230
  %s236 = scalar_lea.vmem %s0, 1408
  %s237 = smov 48
  %v238 = vld [vmem:[%s236] ss:$16 sm:%s237]
  %vm239 = vcmask 1045508
  %v240 = vsel %vm239, %v238, %v235
  %s241 = scalar_lea.vmem %s0, 1408
  %s242 = smov 192
  %v243 = vld [vmem:[%s241] ss:$16 sm:%s242]
  %vm244 = vcmask 1047558
  %v245 = vsel %vm244, %v243, %v240
  %vm246 = vcmask 31744
  %s247 = scalar_lea.vmem %s1, 88
  %248 = vst.msk [vmem:[%s247] sm:$0xff] %vm246, %v245
  %s249 = scalar_lea.vmem %s0, 1536
  %s250 = smov 3
  %v251 = vld [vmem:[%s249] ss:$16 sm:%s250]
  %s252 = scalar_lea.vmem %s0, 1536
  %s253 = smov 12
  %v254 = vld [vmem:[%s252] ss:$16 sm:%s253]
  %vm255 = vcmask 1043458
  %v256 = vsel %vm255, %v254, %v251
  %s257 = scalar_lea.vmem %s0, 1536
  %s258 = smov 48
  %v259 = vld [vmem:[%s257] ss:$16 sm:%s258]
  %vm260 = vcmask 1045508
  %v261 = vsel %vm260, %v259, %v256
  %s262 = scalar_lea.vmem %s0, 1536
  %s263 = smov 192
  %v264 = vld [vmem:[%s262] ss:$16 sm:%s263]
  %vm265 = vcmask 1047558
  %v266 = vsel %vm265, %v264, %v261
  %vm267 = vcmask 31744
  %s268 = scalar_lea.vmem %s1, 96
  %269 = vst.msk [vmem:[%s268] sm:$0xff] %vm267, %v266
  %s270 = scalar_lea.vmem %s0, 1664
  %s271 = smov 3
  %v272 = vld [vmem:[%s270] ss:$16 sm:%s271]
  %s273 = scalar_lea.vmem %s0, 1664
  %s274 = smov 12
  %v275 = vld [vmem:[%s273] ss:$16 sm:%s274]
  %vm276 = vcmask 1043458
  %v277 = vsel %vm276, %v275, %v272
  %s278 = scalar_lea.vmem %s0, 1664
  %s279 = smov 48
  %v280 = vld [vmem:[%s278] ss:$16 sm:%s279]
  %vm281 = vcmask 1045508
  %v282 = vsel %vm281, %v280, %v277
  %s283 = scalar_lea.vmem %s0, 1664
  %s284 = smov 192
  %v285 = vld [vmem:[%s283] ss:$16 sm:%s284]
  %vm286 = vcmask 1047558
  %v287 = vsel %vm286, %v285, %v282
  %vm288 = vcmask 31744
  %s289 = scalar_lea.vmem %s1, 104
  %290 = vst.msk [vmem:[%s289] sm:$0xff] %vm288, %v287
  %s291 = scalar_lea.vmem %s0, 1792
  %s292 = smov 3
  %v293 = vld [vmem:[%s291] ss:$16 sm:%s292]
  %s294 = scalar_lea.vmem %s0, 1792
  %s295 = smov 12
  %v296 = vld [vmem:[%s294] ss:$16 sm:%s295]
  %vm297 = vcmask 1043458
  %v298 = vsel %vm297, %v296, %v293
  %s299 = scalar_lea.vmem %s0, 1792
  %s300 = smov 48
  %v301 = vld [vmem:[%s299] ss:$16 sm:%s300]
  %vm302 = vcmask 1045508
  %v303 = vsel %vm302, %v301, %v298
  %s304 = scalar_lea.vmem %s0, 1792
  %s305 = smov 192
  %v306 = vld [vmem:[%s304] ss:$16 sm:%s305]
  %vm307 = vcmask 1047558
  %v308 = vsel %vm307, %v306, %v303
  %vm309 = vcmask 31744
  %s310 = scalar_lea.vmem %s1, 112
  %311 = vst.msk [vmem:[%s310] sm:$0xff] %vm309, %v308
  %s312 = scalar_lea.vmem %s0, 1920
  %s313 = smov 3
  %v314 = vld [vmem:[%s312] ss:$16 sm:%s313]
  %s315 = scalar_lea.vmem %s0, 1920
  %s316 = smov 12
  %v317 = vld [vmem:[%s315] ss:$16 sm:%s316]
  %vm318 = vcmask 1043458
  %v319 = vsel %vm318, %v317, %v314
  %s320 = scalar_lea.vmem %s0, 1920
  %s321 = smov 48
  %v322 = vld [vmem:[%s320] ss:$16 sm:%s321]
  %vm323 = vcmask 1045508
  %v324 = vsel %vm323, %v322, %v319
  %s325 = scalar_lea.vmem %s0, 1920
  %s326 = smov 192
  %v327 = vld [vmem:[%s325] ss:$16 sm:%s326]
  %vm328 = vcmask 1047558
  %v329 = vsel %vm328, %v327, %v324
  %vm330 = vcmask 31744
  %s331 = scalar_lea.vmem %s1, 120
  %332 = vst.msk [vmem:[%s331] sm:$0xff] %vm330, %v329
  %s333 = scalar_lea.vmem %s0, 2048
  %s334 = smov 3
  %v335 = vld [vmem:[%s333] ss:$16 sm:%s334]
  %s336 = scalar_lea.vmem %s0, 2048
  %s337 = smov 12
  %v338 = vld [vmem:[%s336] ss:$16 sm:%s337]
  %vm339 = vcmask 1043458
  %v340 = vsel %vm339, %v338, %v335
  %s341 = scalar_lea.vmem %s0, 2048
  %s342 = smov 48
  %v343 = vld [vmem:[%s341] ss:$16 sm:%s342]
  %vm344 = vcmask 1045508
  %v345 = vsel %vm344, %v343, %v340
  %s346 = scalar_lea.vmem %s0, 2048
  %s347 = smov 192
  %v348 = vld [vmem:[%s346] ss:$16 sm:%s347]
  %vm349 = vcmask 1047558
  %v350 = vsel %vm349, %v348, %v345
  %vm351 = vcmask 31744
  %s352 = scalar_lea.vmem %s1, 128
  %353 = vst.msk [vmem:[%s352] sm:$0xff] %vm351, %v350
  %s354 = scalar_lea.vmem %s0, 2176
  %s355 = smov 3
  %v356 = vld [vmem:[%s354] ss:$16 sm:%s355]
  %s357 = scalar_lea.vmem %s0, 2176
  %s358 = smov 12
  %v359 = vld [vmem:[%s357] ss:$16 sm:%s358]
  %vm360 = vcmask 1043458
  %v361 = vsel %vm360, %v359, %v356
  %s362 = scalar_lea.vmem %s0, 2176
  %s363 = smov 48
  %v364 = vld [vmem:[%s362] ss:$16 sm:%s363]
  %vm365 = vcmask 1045508
  %v366 = vsel %vm365, %v364, %v361
  %s367 = scalar_lea.vmem %s0, 2176
  %s368 = smov 192
  %v369 = vld [vmem:[%s367] ss:$16 sm:%s368]
  %vm370 = vcmask 1047558
  %v371 = vsel %vm370, %v369, %v366
  %vm372 = vcmask 31744
  %s373 = scalar_lea.vmem %s1, 136
  %374 = vst.msk [vmem:[%s373] sm:$0xff] %vm372, %v371
  %s375 = scalar_lea.vmem %s0, 2304
  %s376 = smov 3
  %v377 = vld [vmem:[%s375] ss:$16 sm:%s376]
  %s378 = scalar_lea.vmem %s0, 2304
  %s379 = smov 12
  %v380 = vld [vmem:[%s378] ss:$16 sm:%s379]
  %vm381 = vcmask 1043458
  %v382 = vsel %vm381, %v380, %v377
  %s383 = scalar_lea.vmem %s0, 2304
  %s384 = smov 48
  %v385 = vld [vmem:[%s383] ss:$16 sm:%s384]
  %vm386 = vcmask 1045508
  %v387 = vsel %vm386, %v385, %v382
  %s388 = scalar_lea.vmem %s0, 2304
  %s389 = smov 192
  %v390 = vld [vmem:[%s388] ss:$16 sm:%s389]
  %vm391 = vcmask 1047558
  %v392 = vsel %vm391, %v390, %v387
  %vm393 = vcmask 31744
  %s394 = scalar_lea.vmem %s1, 144
  %395 = vst.msk [vmem:[%s394] sm:$0xff] %vm393, %v392
  %s396 = scalar_lea.vmem %s0, 2432
  %s397 = smov 3
  %v398 = vld [vmem:[%s396] ss:$16 sm:%s397]
  %s399 = scalar_lea.vmem %s0, 2432
  %s400 = smov 12
  %v401 = vld [vmem:[%s399] ss:$16 sm:%s400]
  %vm402 = vcmask 1043458
  %v403 = vsel %vm402, %v401, %v398
  %s404 = scalar_lea.vmem %s0, 2432
  %s405 = smov 48
  %v406 = vld [vmem:[%s404] ss:$16 sm:%s405]
  %vm407 = vcmask 1045508
  %v408 = vsel %vm407, %v406, %v403
  %s409 = scalar_lea.vmem %s0, 2432
  %s410 = smov 192
  %v411 = vld [vmem:[%s409] ss:$16 sm:%s410]
  %vm412 = vcmask 1047558
  %v413 = vsel %vm412, %v411, %v408
  %vm414 = vcmask 31744
  %s415 = scalar_lea.vmem %s1, 152
  %416 = vst.msk [vmem:[%s415] sm:$0xff] %vm414, %v413
  %s417 = scalar_lea.vmem %s0, 2560
  %s418 = smov 3
  %v419 = vld [vmem:[%s417] ss:$16 sm:%s418]
  %s420 = scalar_lea.vmem %s0, 2560
  %s421 = smov 12
  %v422 = vld [vmem:[%s420] ss:$16 sm:%s421]
  %vm423 = vcmask 1043458
  %v424 = vsel %vm423, %v422, %v419
  %s425 = scalar_lea.vmem %s0, 2560
  %s426 = smov 48
  %v427 = vld [vmem:[%s425] ss:$16 sm:%s426]
  %vm428 = vcmask 1045508
  %v429 = vsel %vm428, %v427, %v424
  %s430 = scalar_lea.vmem %s0, 2560
  %s431 = smov 192
  %v432 = vld [vmem:[%s430] ss:$16 sm:%s431]
  %vm433 = vcmask 1047558
  %v434 = vsel %vm433, %v432, %v429
  %vm435 = vcmask 31744
  %s436 = scalar_lea.vmem %s1, 160
  %437 = vst.msk [vmem:[%s436] sm:$0xff] %vm435, %v434
  %s438 = scalar_lea.vmem %s0, 2688
  %s439 = smov 3
  %v440 = vld [vmem:[%s438] ss:$16 sm:%s439]
  %s441 = scalar_lea.vmem %s0, 2688
  %s442 = smov 12
  %v443 = vld [vmem:[%s441] ss:$16 sm:%s442]
  %vm444 = vcmask 1043458
  %v445 = vsel %vm444, %v443, %v440
  %s446 = scalar_lea.vmem %s0, 2688
  %s447 = smov 48
  %v448 = vld [vmem:[%s446] ss:$16 sm:%s447]
  %vm449 = vcmask 1045508
  %v450 = vsel %vm449, %v448, %v445
  %s451 = scalar_lea.vmem %s0, 2688
  %s452 = smov 192
  %v453 = vld [vmem:[%s451] ss:$16 sm:%s452]
  %vm454 = vcmask 1047558
  %v455 = vsel %vm454, %v453, %v450
  %vm456 = vcmask 31744
  %s457 = scalar_lea.vmem %s1, 168
  %458 = vst.msk [vmem:[%s457] sm:$0xff] %vm456, %v455
  %s459 = scalar_lea.vmem %s0, 2816
  %s460 = smov 3
  %v461 = vld [vmem:[%s459] ss:$16 sm:%s460]
  %s462 = scalar_lea.vmem %s0, 2816
  %s463 = smov 12
  %v464 = vld [vmem:[%s462] ss:$16 sm:%s463]
  %vm465 = vcmask 1043458
  %v466 = vsel %vm465, %v464, %v461
  %s467 = scalar_lea.vmem %s0, 2816
  %s468 = smov 48
  %v469 = vld [vmem:[%s467] ss:$16 sm:%s468]
  %vm470 = vcmask 1045508
  %v471 = vsel %vm470, %v469, %v466
  %s472 = scalar_lea.vmem %s0, 2816
  %s473 = smov 192
  %v474 = vld [vmem:[%s472] ss:$16 sm:%s473]
  %vm475 = vcmask 1047558
  %v476 = vsel %vm475, %v474, %v471
  %vm477 = vcmask 31744
  %s478 = scalar_lea.vmem %s1, 176
  %479 = vst.msk [vmem:[%s478] sm:$0xff] %vm477, %v476
  %s480 = scalar_lea.vmem %s0, 2944
  %s481 = smov 3
  %v482 = vld [vmem:[%s480] ss:$16 sm:%s481]
  %s483 = scalar_lea.vmem %s0, 2944
  %s484 = smov 12
  %v485 = vld [vmem:[%s483] ss:$16 sm:%s484]
  %vm486 = vcmask 1043458
  %v487 = vsel %vm486, %v485, %v482
  %s488 = scalar_lea.vmem %s0, 2944
  %s489 = smov 48
  %v490 = vld [vmem:[%s488] ss:$16 sm:%s489]
  %vm491 = vcmask 1045508
  %v492 = vsel %vm491, %v490, %v487
  %s493 = scalar_lea.vmem %s0, 2944
  %s494 = smov 192
  %v495 = vld [vmem:[%s493] ss:$16 sm:%s494]
  %vm496 = vcmask 1047558
  %v497 = vsel %vm496, %v495, %v492
  %vm498 = vcmask 31744
  %s499 = scalar_lea.vmem %s1, 184
  %500 = vst.msk [vmem:[%s499] sm:$0xff] %vm498, %v497
  %s501 = scalar_lea.vmem %s0, 15
  %s502 = smov 3
  %v503 = vld [vmem:[%s501] ss:$16 sm:%s502]
  %s504 = scalar_lea.vmem %s0, 15
  %s505 = smov 12
  %v506 = vld [vmem:[%s504] ss:$16 sm:%s505]
  %vm507 = vcmask 1043458
  %v508 = vsel %vm507, %v506, %v503
  %s509 = scalar_lea.vmem %s0, 15
  %s510 = smov 48
  %v511 = vld [vmem:[%s509] ss:$16 sm:%s510]
  %vm512 = vcmask 1045508
  %v513 = vsel %vm512, %v511, %v508
  %s514 = scalar_lea.vmem %s0, 15
  %s515 = smov 192
  %v516 = vld [vmem:[%s514] ss:$16 sm:%s515]
  %vm517 = vcmask 1047558
  %v518 = vsel %vm517, %v516, %v513
  %519 = vrot.lane.b32.xlu0 %v518, 60
  %v520 = vpop.permute.xlu0 %519
  %vm521 = vcmask 523744
  %522 = vst.msk [vmem:[%s1] sm:$0xff] %vm521, %v520
  %s523 = scalar_lea.vmem %s0, 527
  %s524 = smov 3
  %v525 = vld [vmem:[%s523] ss:$16 sm:%s524]
  %s526 = scalar_lea.vmem %s0, 527
  %s527 = smov 12
  %v528 = vld [vmem:[%s526] ss:$16 sm:%s527]
  %vm529 = vcmask 1043458
  %v530 = vsel %vm529, %v528, %v525
  %s531 = scalar_lea.vmem %s0, 527
  %s532 = smov 48
  %v533 = vld [vmem:[%s531] ss:$16 sm:%s532]
  %vm534 = vcmask 1045508
  %v535 = vsel %vm534, %v533, %v530
  %s536 = scalar_lea.vmem %s0, 527
  %s537 = smov 192
  %v538 = vld [vmem:[%s536] ss:$16 sm:%s537]
  %vm539 = vcmask 1047558
  %v540 = vsel %vm539, %v538, %v535
  %541 = vrot.lane.b32.xlu0 %v540, 60
  %v542 = vpop.permute.xlu0 %541
  %vm543 = vcmask 523744
  %s544 = scalar_lea.vmem %s1, 32
  %545 = vst.msk [vmem:[%s544] sm:$0xff] %vm543, %v542
  %s546 = scalar_lea.vmem %s0, 1039
  %s547 = smov 3
  %v548 = vld [vmem:[%s546] ss:$16 sm:%s547]
  %s549 = scalar_lea.vmem %s0, 1039
  %s550 = smov 12
  %v551 = vld [vmem:[%s549] ss:$16 sm:%s550]
  %vm552 = vcmask 1043458
  %v553 = vsel %vm552, %v551, %v548
  %s554 = scalar_lea.vmem %s0, 1039
  %s555 = smov 48
  %v556 = vld [vmem:[%s554] ss:$16 sm:%s555]
  %vm557 = vcmask 1045508
  %v558 = vsel %vm557, %v556, %v553
  %s559 = scalar_lea.vmem %s0, 1039
  %s560 = smov 192
  %v561 = vld [vmem:[%s559] ss:$16 sm:%s560]
  %vm562 = vcmask 1047558
  %v563 = vsel %vm562, %v561, %v558
  %564 = vrot.lane.b32.xlu0 %v563, 60
  %v565 = vpop.permute.xlu0 %564
  %vm566 = vcmask 523744
  %s567 = scalar_lea.vmem %s1, 64
  %568 = vst.msk [vmem:[%s567] sm:$0xff] %vm566, %v565
  %s569 = scalar_lea.vmem %s0, 1551
  %s570 = smov 3
  %v571 = vld [vmem:[%s569] ss:$16 sm:%s570]
  %s572 = scalar_lea.vmem %s0, 1551
  %s573 = smov 12
  %v574 = vld [vmem:[%s572] ss:$16 sm:%s573]
  %vm575 = vcmask 1043458
  %v576 = vsel %vm575, %v574, %v571
  %s577 = scalar_lea.vmem %s0, 1551
  %s578 = smov 48
  %v579 = vld [vmem:[%s577] ss:$16 sm:%s578]
  %vm580 = vcmask 1045508
  %v581 = vsel %vm580, %v579, %v576
  %s582 = scalar_lea.vmem %s0, 1551
  %s583 = smov 192
  %v584 = vld [vmem:[%s582] ss:$16 sm:%s583]
  %vm585 = vcmask 1047558
  %v586 = vsel %vm585, %v584, %v581
  %587 = vrot.lane.b32.xlu0 %v586, 60
  %v588 = vpop.permute.xlu0 %587
  %vm589 = vcmask 523744
  %s590 = scalar_lea.vmem %s1, 96
  %591 = vst.msk [vmem:[%s590] sm:$0xff] %vm589, %v588
  %s592 = scalar_lea.vmem %s0, 2063
  %s593 = smov 3
  %v594 = vld [vmem:[%s592] ss:$16 sm:%s593]
  %s595 = scalar_lea.vmem %s0, 2063
  %s596 = smov 12
  %v597 = vld [vmem:[%s595] ss:$16 sm:%s596]
  %vm598 = vcmask 1043458
  %v599 = vsel %vm598, %v597, %v594
  %s600 = scalar_lea.vmem %s0, 2063
  %s601 = smov 48
  %v602 = vld [vmem:[%s600] ss:$16 sm:%s601]
  %vm603 = vcmask 1045508
  %v604 = vsel %vm603, %v602, %v599
  %s605 = scalar_lea.vmem %s0, 2063
  %s606 = smov 192
  %v607 = vld [vmem:[%s605] ss:$16 sm:%s606]
  %vm608 = vcmask 1047558
  %v609 = vsel %vm608, %v607, %v604
  %610 = vrot.lane.b32.xlu0 %v609, 60
  %v611 = vpop.permute.xlu0 %610
  %vm612 = vcmask 523744
  %s613 = scalar_lea.vmem %s1, 128
  %614 = vst.msk [vmem:[%s613] sm:$0xff] %vm612, %v611
  %s615 = scalar_lea.vmem %s0, 2575
  %s616 = smov 3
  %v617 = vld [vmem:[%s615] ss:$16 sm:%s616]
  %s618 = scalar_lea.vmem %s0, 2575
  %s619 = smov 12
  %v620 = vld [vmem:[%s618] ss:$16 sm:%s619]
  %vm621 = vcmask 1043458
  %v622 = vsel %vm621, %v620, %v617
  %s623 = scalar_lea.vmem %s0, 2575
  %s624 = smov 48
  %v625 = vld [vmem:[%s623] ss:$16 sm:%s624]
  %vm626 = vcmask 1045508
  %v627 = vsel %vm626, %v625, %v622
  %s628 = scalar_lea.vmem %s0, 2575
  %s629 = smov 192
  %v630 = vld [vmem:[%s628] ss:$16 sm:%s629]
  %vm631 = vcmask 1047558
  %v632 = vsel %vm631, %v630, %v627
  %633 = vrot.lane.b32.xlu0 %v632, 60
  %v634 = vpop.permute.xlu0 %633
  %vm635 = vcmask 523744
  %s636 = scalar_lea.vmem %s1, 160
  %637 = vst.msk [vmem:[%s636] sm:$0xff] %vm635, %v634
  %s638 = scalar_lea.vmem %s0, 143
  %s639 = smov 3
  %v640 = vld [vmem:[%s638] ss:$16 sm:%s639]
  %s641 = scalar_lea.vmem %s0, 143
  %s642 = smov 12
  %v643 = vld [vmem:[%s641] ss:$16 sm:%s642]
  %vm644 = vcmask 1043458
  %v645 = vsel %vm644, %v643, %v640
  %s646 = scalar_lea.vmem %s0, 143
  %s647 = smov 48
  %v648 = vld [vmem:[%s646] ss:$16 sm:%s647]
  %vm649 = vcmask 1045508
  %v650 = vsel %vm649, %v648, %v645
  %s651 = scalar_lea.vmem %s0, 143
  %s652 = smov 192
  %v653 = vld [vmem:[%s651] ss:$16 sm:%s652]
  %vm654 = vcmask 1047558
  %v655 = vsel %vm654, %v653, %v650
  %656 = vrot.lane.b32.xlu0 %v655, 60
  %v657 = vpop.permute.xlu0 %656
  %vm658 = vcmask 523744
  %s659 = scalar_lea.vmem %s1, 8
  %660 = vst.msk [vmem:[%s659] sm:$0xff] %vm658, %v657
  %s661 = scalar_lea.vmem %s0, 655
  %s662 = smov 3
  %v663 = vld [vmem:[%s661] ss:$16 sm:%s662]
  %s664 = scalar_lea.vmem %s0, 655
  %s665 = smov 12
  %v666 = vld [vmem:[%s664] ss:$16 sm:%s665]
  %vm667 = vcmask 1043458
  %v668 = vsel %vm667, %v666, %v663
  %s669 = scalar_lea.vmem %s0, 655
  %s670 = smov 48
  %v671 = vld [vmem:[%s669] ss:$16 sm:%s670]
  %vm672 = vcmask 1045508
  %v673 = vsel %vm672, %v671, %v668
  %s674 = scalar_lea.vmem %s0, 655
  %s675 = smov 192
  %v676 = vld [vmem:[%s674] ss:$16 sm:%s675]
  %vm677 = vcmask 1047558
  %v678 = vsel %vm677, %v676, %v673
  %679 = vrot.lane.b32.xlu0 %v678, 60
  %v680 = vpop.permute.xlu0 %679
  %vm681 = vcmask 523744
  %s682 = scalar_lea.vmem %s1, 40
  %683 = vst.msk [vmem:[%s682] sm:$0xff] %vm681, %v680
  %s684 = scalar_lea.vmem %s0, 1167
  %s685 = smov 3
  %v686 = vld [vmem:[%s684] ss:$16 sm:%s685]
  %s687 = scalar_lea.vmem %s0, 1167
  %s688 = smov 12
  %v689 = vld [vmem:[%s687] ss:$16 sm:%s688]
  %vm690 = vcmask 1043458
  %v691 = vsel %vm690, %v689, %v686
  %s692 = scalar_lea.vmem %s0, 1167
  %s693 = smov 48
  %v694 = vld [vmem:[%s692] ss:$16 sm:%s693]
  %vm695 = vcmask 1045508
  %v696 = vsel %vm695, %v694, %v691
  %s697 = scalar_lea.vmem %s0, 1167
  %s698 = smov 192
  %v699 = vld [vmem:[%s697] ss:$16 sm:%s698]
  %vm700 = vcmask 1047558
  %v701 = vsel %vm700, %v699, %v696
  %702 = vrot.lane.b32.xlu0 %v701, 60
  %v703 = vpop.permute.xlu0 %702
  %vm704 = vcmask 523744
  %s705 = scalar_lea.vmem %s1, 72
  %706 = vst.msk [vmem:[%s705] sm:$0xff] %vm704, %v703
  %s707 = scalar_lea.vmem %s0, 1679
  %s708 = smov 3
  %v709 = vld [vmem:[%s707] ss:$16 sm:%s708]
  %s710 = scalar_lea.vmem %s0, 1679
  %s711 = smov 12
  %v712 = vld [vmem:[%s710] ss:$16 sm:%s711]
  %vm713 = vcmask 1043458
  %v714 = vsel %vm713, %v712, %v709
  %s715 = scalar_lea.vmem %s0, 1679
  %s716 = smov 48
  %v717 = vld [vmem:[%s715] ss:$16 sm:%s716]
  %vm718 = vcmask 1045508
  %v719 = vsel %vm718, %v717, %v714
  %s720 = scalar_lea.vmem %s0, 1679
  %s721 = smov 192
  %v722 = vld [vmem:[%s720] ss:$16 sm:%s721]
  %vm723 = vcmask 1047558
  %v724 = vsel %vm723, %v722, %v719
  %725 = vrot.lane.b32.xlu0 %v724, 60
  %v726 = vpop.permute.xlu0 %725
  %vm727 = vcmask 523744
  %s728 = scalar_lea.vmem %s1, 104
  %729 = vst.msk [vmem:[%s728] sm:$0xff] %vm727, %v726
  %s730 = scalar_lea.vmem %s0, 2191
  %s731 = smov 3
  %v732 = vld [vmem:[%s730] ss:$16 sm:%s731]
  %s733 = scalar_lea.vmem %s0, 2191
  %s734 = smov 12
  %v735 = vld [vmem:[%s733] ss:$16 sm:%s734]
  %vm736 = vcmask 1043458
  %v737 = vsel %vm736, %v735, %v732
  %s738 = scalar_lea.vmem %s0, 2191
  %s739 = smov 48
  %v740 = vld [vmem:[%s738] ss:$16 sm:%s739]
  %vm741 = vcmask 1045508
  %v742 = vsel %vm741, %v740, %v737
  %s743 = scalar_lea.vmem %s0, 2191
  %s744 = smov 192
  %v745 = vld [vmem:[%s743] ss:$16 sm:%s744]
  %vm746 = vcmask 1047558
  %v747 = vsel %vm746, %v745, %v742
  %748 = vrot.lane.b32.xlu0 %v747, 60
  %v749 = vpop.permute.xlu0 %748
  %vm750 = vcmask 523744
  %s751 = scalar_lea.vmem %s1, 136
  %752 = vst.msk [vmem:[%s751] sm:$0xff] %vm750, %v749
  %s753 = scalar_lea.vmem %s0, 2703
  %s754 = smov 3
  %v755 = vld [vmem:[%s753] ss:$16 sm:%s754]
  %s756 = scalar_lea.vmem %s0, 2703
  %s757 = smov 12
  %v758 = vld [vmem:[%s756] ss:$16 sm:%s757]
  %vm759 = vcmask 1043458
  %v760 = vsel %vm759, %v758, %v755
  %s761 = scalar_lea.vmem %s0, 2703
  %s762 = smov 48
  %v763 = vld [vmem:[%s761] ss:$16 sm:%s762]
  %vm764 = vcmask 1045508
  %v765 = vsel %vm764, %v763, %v760
  %s766 = scalar_lea.vmem %s0, 2703
  %s767 = smov 192
  %v768 = vld [vmem:[%s766] ss:$16 sm:%s767]
  %vm769 = vcmask 1047558
  %v770 = vsel %vm769, %v768, %v765
  %771 = vrot.lane.b32.xlu0 %v770, 60
  %v772 = vpop.permute.xlu0 %771
  %vm773 = vcmask 523744
  %s774 = scalar_lea.vmem %s1, 168
  %775 = vst.msk [vmem:[%s774] sm:$0xff] %vm773, %v772
  %s776 = scalar_lea.vmem %s0, 271
  %s777 = smov 3
  %v778 = vld [vmem:[%s776] ss:$16 sm:%s777]
  %s779 = scalar_lea.vmem %s0, 271
  %s780 = smov 12
  %v781 = vld [vmem:[%s779] ss:$16 sm:%s780]
  %vm782 = vcmask 1043458
  %v783 = vsel %vm782, %v781, %v778
  %s784 = scalar_lea.vmem %s0, 271
  %s785 = smov 48
  %v786 = vld [vmem:[%s784] ss:$16 sm:%s785]
  %vm787 = vcmask 1045508
  %v788 = vsel %vm787, %v786, %v783
  %s789 = scalar_lea.vmem %s0, 271
  %s790 = smov 192
  %v791 = vld [vmem:[%s789] ss:$16 sm:%s790]
  %vm792 = vcmask 1047558
  %v793 = vsel %vm792, %v791, %v788
  %794 = vrot.lane.b32.xlu0 %v793, 60
  %v795 = vpop.permute.xlu0 %794
  %vm796 = vcmask 523744
  %s797 = scalar_lea.vmem %s1, 16
  %798 = vst.msk [vmem:[%s797] sm:$0xff] %vm796, %v795
  %s799 = scalar_lea.vmem %s0, 783
  %s800 = smov 3
  %v801 = vld [vmem:[%s799] ss:$16 sm:%s800]
  %s802 = scalar_lea.vmem %s0, 783
  %s803 = smov 12
  %v804 = vld [vmem:[%s802] ss:$16 sm:%s803]
  %vm805 = vcmask 1043458
  %v806 = vsel %vm805, %v804, %v801
  %s807 = scalar_lea.vmem %s0, 783
  %s808 = smov 48
  %v809 = vld [vmem:[%s807] ss:$16 sm:%s808]
  %vm810 = vcmask 1045508
  %v811 = vsel %vm810, %v809, %v806
  %s812 = scalar_lea.vmem %s0, 783
  %s813 = smov 192
  %v814 = vld [vmem:[%s812] ss:$16 sm:%s813]
  %vm815 = vcmask 1047558
  %v816 = vsel %vm815, %v814, %v811
  %817 = vrot.lane.b32.xlu0 %v816, 60
  %v818 = vpop.permute.xlu0 %817
  %vm819 = vcmask 523744
  %s820 = scalar_lea.vmem %s1, 48
  %821 = vst.msk [vmem:[%s820] sm:$0xff] %vm819, %v818
  %s822 = scalar_lea.vmem %s0, 1295
  %s823 = smov 3
  %v824 = vld [vmem:[%s822] ss:$16 sm:%s823]
  %s825 = scalar_lea.vmem %s0, 1295
  %s826 = smov 12
  %v827 = vld [vmem:[%s825] ss:$16 sm:%s826]
  %vm828 = vcmask 1043458
  %v829 = vsel %vm828, %v827, %v824
  %s830 = scalar_lea.vmem %s0, 1295
  %s831 = smov 48
  %v832 = vld [vmem:[%s830] ss:$16 sm:%s831]
  %vm833 = vcmask 1045508
  %v834 = vsel %vm833, %v832, %v829
  %s835 = scalar_lea.vmem %s0, 1295
  %s836 = smov 192
  %v837 = vld [vmem:[%s835] ss:$16 sm:%s836]
  %vm838 = vcmask 1047558
  %v839 = vsel %vm838, %v837, %v834
  %840 = vrot.lane.b32.xlu0 %v839, 60
  %v841 = vpop.permute.xlu0 %840
  %vm842 = vcmask 523744
  %s843 = scalar_lea.vmem %s1, 80
  %844 = vst.msk [vmem:[%s843] sm:$0xff] %vm842, %v841
  %s845 = scalar_lea.vmem %s0, 1807
  %s846 = smov 3
  %v847 = vld [vmem:[%s845] ss:$16 sm:%s846]
  %s848 = scalar_lea.vmem %s0, 1807
  %s849 = smov 12
  %v850 = vld [vmem:[%s848] ss:$16 sm:%s849]
  %vm851 = vcmask 1043458
  %v852 = vsel %vm851, %v850, %v847
  %s853 = scalar_lea.vmem %s0, 1807
  %s854 = smov 48
  %v855 = vld [vmem:[%s853] ss:$16 sm:%s854]
  %vm856 = vcmask 1045508
  %v857 = vsel %vm856, %v855, %v852
  %s858 = scalar_lea.vmem %s0, 1807
  %s859 = smov 192
  %v860 = vld [vmem:[%s858] ss:$16 sm:%s859]
  %vm861 = vcmask 1047558
  %v862 = vsel %vm861, %v860, %v857
  %863 = vrot.lane.b32.xlu0 %v862, 60
  %v864 = vpop.permute.xlu0 %863
  %vm865 = vcmask 523744
  %s866 = scalar_lea.vmem %s1, 112
  %867 = vst.msk [vmem:[%s866] sm:$0xff] %vm865, %v864
  %s868 = scalar_lea.vmem %s0, 2319
  %s869 = smov 3
  %v870 = vld [vmem:[%s868] ss:$16 sm:%s869]
  %s871 = scalar_lea.vmem %s0, 2319
  %s872 = smov 12
  %v873 = vld [vmem:[%s871] ss:$16 sm:%s872]
  %vm874 = vcmask 1043458
  %v875 = vsel %vm874, %v873, %v870
  %s876 = scalar_lea.vmem %s0, 2319
  %s877 = smov 48
  %v878 = vld [vmem:[%s876] ss:$16 sm:%s877]
  %vm879 = vcmask 1045508
  %v880 = vsel %vm879, %v878, %v875
  %s881 = scalar_lea.vmem %s0, 2319
  %s882 = smov 192
  %v883 = vld [vmem:[%s881] ss:$16 sm:%s882]
  %vm884 = vcmask 1047558
  %v885 = vsel %vm884, %v883, %v880
  %886 = vrot.lane.b32.xlu0 %v885, 60
  %v887 = vpop.permute.xlu0 %886
  %vm888 = vcmask 523744
  %s889 = scalar_lea.vmem %s1, 144
  %890 = vst.msk [vmem:[%s889] sm:$0xff] %vm888, %v887
  %s891 = scalar_lea.vmem %s0, 2831
  %s892 = smov 3
  %v893 = vld [vmem:[%s891] ss:$16 sm:%s892]
  %s894 = scalar_lea.vmem %s0, 2831
  %s895 = smov 12
  %v896 = vld [vmem:[%s894] ss:$16 sm:%s895]
  %vm897 = vcmask 1043458
  %v898 = vsel %vm897, %v896, %v893
  %s899 = scalar_lea.vmem %s0, 2831
  %s900 = smov 48
  %v901 = vld [vmem:[%s899] ss:$16 sm:%s900]
  %vm902 = vcmask 1045508
  %v903 = vsel %vm902, %v901, %v898
  %s904 = scalar_lea.vmem %s0, 2831
  %s905 = smov 192
  %v906 = vld [vmem:[%s904] ss:$16 sm:%s905]
  %vm907 = vcmask 1047558
  %v908 = vsel %vm907, %v906, %v903
  %909 = vrot.lane.b32.xlu0 %v908, 60
  %v910 = vpop.permute.xlu0 %909
  %vm911 = vcmask 523744
  %s912 = scalar_lea.vmem %s1, 176
  %913 = vst.msk [vmem:[%s912] sm:$0xff] %vm911, %v910
  %s914 = scalar_lea.vmem %s0, 399
  %s915 = smov 3
  %v916 = vld [vmem:[%s914] ss:$16 sm:%s915]
  %s917 = scalar_lea.vmem %s0, 399
  %s918 = smov 12
  %v919 = vld [vmem:[%s917] ss:$16 sm:%s918]
  %vm920 = vcmask 1043458
  %v921 = vsel %vm920, %v919, %v916
  %s922 = scalar_lea.vmem %s0, 399
  %s923 = smov 48
  %v924 = vld [vmem:[%s922] ss:$16 sm:%s923]
  %vm925 = vcmask 1045508
  %v926 = vsel %vm925, %v924, %v921
  %s927 = scalar_lea.vmem %s0, 399
  %s928 = smov 192
  %v929 = vld [vmem:[%s927] ss:$16 sm:%s928]
  %vm930 = vcmask 1047558
  %v931 = vsel %vm930, %v929, %v926
  %932 = vrot.lane.b32.xlu0 %v931, 60
  %v933 = vpop.permute.xlu0 %932
  %vm934 = vcmask 523744
  %s935 = scalar_lea.vmem %s1, 24
  %936 = vst.msk [vmem:[%s935] sm:$0xff] %vm934, %v933
  %s937 = scalar_lea.vmem %s0, 911
  %s938 = smov 3
  %v939 = vld [vmem:[%s937] ss:$16 sm:%s938]
  %s940 = scalar_lea.vmem %s0, 911
  %s941 = smov 12
  %v942 = vld [vmem:[%s940] ss:$16 sm:%s941]
  %vm943 = vcmask 1043458
  %v944 = vsel %vm943, %v942, %v939
  %s945 = scalar_lea.vmem %s0, 911
  %s946 = smov 48
  %v947 = vld [vmem:[%s945] ss:$16 sm:%s946]
  %vm948 = vcmask 1045508
  %v949 = vsel %vm948, %v947, %v944
  %s950 = scalar_lea.vmem %s0, 911
  %s951 = smov 192
  %v952 = vld [vmem:[%s950] ss:$16 sm:%s951]
  %vm953 = vcmask 1047558
  %v954 = vsel %vm953, %v952, %v949
  %955 = vrot.lane.b32.xlu0 %v954, 60
  %v956 = vpop.permute.xlu0 %955
  %vm957 = vcmask 523744
  %s958 = scalar_lea.vmem %s1, 56
  %959 = vst.msk [vmem:[%s958] sm:$0xff] %vm957, %v956
  %s960 = scalar_lea.vmem %s0, 1423
  %s961 = smov 3
  %v962 = vld [vmem:[%s960] ss:$16 sm:%s961]
  %s963 = scalar_lea.vmem %s0, 1423
  %s964 = smov 12
  %v965 = vld [vmem:[%s963] ss:$16 sm:%s964]
  %vm966 = vcmask 1043458
  %v967 = vsel %vm966, %v965, %v962
  %s968 = scalar_lea.vmem %s0, 1423
  %s969 = smov 48
  %v970 = vld [vmem:[%s968] ss:$16 sm:%s969]
  %vm971 = vcmask 1045508
  %v972 = vsel %vm971, %v970, %v967
  %s973 = scalar_lea.vmem %s0, 1423
  %s974 = smov 192
  %v975 = vld [vmem:[%s973] ss:$16 sm:%s974]
  %vm976 = vcmask 1047558
  %v977 = vsel %vm976, %v975, %v972
  %978 = vrot.lane.b32.xlu0 %v977, 60
  %v979 = vpop.permute.xlu0 %978
  %vm980 = vcmask 523744
  %s981 = scalar_lea.vmem %s1, 88
  %982 = vst.msk [vmem:[%s981] sm:$0xff] %vm980, %v979
  %s983 = scalar_lea.vmem %s0, 1935
  %s984 = smov 3
  %v985 = vld [vmem:[%s983] ss:$16 sm:%s984]
  %s986 = scalar_lea.vmem %s0, 1935
  %s987 = smov 12
  %v988 = vld [vmem:[%s986] ss:$16 sm:%s987]
  %vm989 = vcmask 1043458
  %v990 = vsel %vm989, %v988, %v985
  %s991 = scalar_lea.vmem %s0, 1935
  %s992 = smov 48
  %v993 = vld [vmem:[%s991] ss:$16 sm:%s992]
  %vm994 = vcmask 1045508
  %v995 = vsel %vm994, %v993, %v990
  %s996 = scalar_lea.vmem %s0, 1935
  %s997 = smov 192
  %v998 = vld [vmem:[%s996] ss:$16 sm:%s997]
  %vm999 = vcmask 1047558
  %v1000 = vsel %vm999, %v998, %v995
  %1001 = vrot.lane.b32.xlu0 %v1000, 60
  %v1002 = vpop.permute.xlu0 %1001
  %vm1003 = vcmask 523744
  %s1004 = scalar_lea.vmem %s1, 120
  %1005 = vst.msk [vmem:[%s1004] sm:$0xff] %vm1003, %v1002
  %s1006 = scalar_lea.vmem %s0, 2447
  %s1007 = smov 3
  %v1008 = vld [vmem:[%s1006] ss:$16 sm:%s1007]
  %s1009 = scalar_lea.vmem %s0, 2447
  %s1010 = smov 12
  %v1011 = vld [vmem:[%s1009] ss:$16 sm:%s1010]
  %vm1012 = vcmask 1043458
  %v1013 = vsel %vm1012, %v1011, %v1008
  %s1014 = scalar_lea.vmem %s0, 2447
  %s1015 = smov 48
  %v1016 = vld [vmem:[%s1014] ss:$16 sm:%s1015]
  %vm1017 = vcmask 1045508
  %v1018 = vsel %vm1017, %v1016, %v1013
  %s1019 = scalar_lea.vmem %s0, 2447
  %s1020 = smov 192
  %v1021 = vld [vmem:[%s1019] ss:$16 sm:%s1020]
  %vm1022 = vcmask 1047558
  %v1023 = vsel %vm1022, %v1021, %v1018
  %1024 = vrot.lane.b32.xlu0 %v1023, 60
  %v1025 = vpop.permute.xlu0 %1024
  %vm1026 = vcmask 523744
  %s1027 = scalar_lea.vmem %s1, 152
  %1028 = vst.msk [vmem:[%s1027] sm:$0xff] %vm1026, %v1025
  %s1029 = scalar_lea.vmem %s0, 2959
  %s1030 = smov 3
  %v1031 = vld [vmem:[%s1029] ss:$16 sm:%s1030]
  %s1032 = scalar_lea.vmem %s0, 2959
  %s1033 = smov 12
  %v1034 = vld [vmem:[%s1032] ss:$16 sm:%s1033]
  %vm1035 = vcmask 1043458
  %v1036 = vsel %vm1035, %v1034, %v1031
  %s1037 = scalar_lea.vmem %s0, 2959
  %s1038 = smov 48
  %v1039 = vld [vmem:[%s1037] ss:$16 sm:%s1038]
  %vm1040 = vcmask 1045508
  %v1041 = vsel %vm1040, %v1039, %v1036
  %s1042 = scalar_lea.vmem %s0, 2959
  %s1043 = smov 192
  %v1044 = vld [vmem:[%s1042] ss:$16 sm:%s1043]
  %vm1045 = vcmask 1047558
  %v1046 = vsel %vm1045, %v1044, %v1041
  %1047 = vrot.lane.b32.xlu0 %v1046, 60
  %v1048 = vpop.permute.xlu0 %1047
  %vm1049 = vcmask 523744
  %s1050 = scalar_lea.vmem %s1, 184
  %1051 = vst.msk [vmem:[%s1050] sm:$0xff] %vm1049, %v1048
  %s1052 = scalar_lea.vmem %s0, 14
  %s1053 = smov 3
  %v1054 = vld [vmem:[%s1052] ss:$16 sm:%s1053]
  %s1055 = scalar_lea.vmem %s0, 14
  %s1056 = smov 12
  %v1057 = vld [vmem:[%s1055] ss:$16 sm:%s1056]
  %vm1058 = vcmask 1043458
  %v1059 = vsel %vm1058, %v1057, %v1054
  %s1060 = scalar_lea.vmem %s0, 14
  %s1061 = smov 48
  %v1062 = vld [vmem:[%s1060] ss:$16 sm:%s1061]
  %vm1063 = vcmask 1045508
  %v1064 = vsel %vm1063, %v1062, %v1059
  %s1065 = scalar_lea.vmem %s0, 14
  %s1066 = smov 192
  %v1067 = vld [vmem:[%s1065] ss:$16 sm:%s1066]
  %vm1068 = vcmask 1047558
  %v1069 = vsel %vm1068, %v1067, %v1064
  %1070 = vrot.lane.b32.xlu0 %v1069, 56
  %v1071 = vpop.permute.xlu0 %1070
  %vm1072 = vcmask 490944
  %1073 = vst.msk [vmem:[%s1] sm:$0xff] %vm1072, %v1071
  %s1074 = scalar_lea.vmem %s0, 526
  %s1075 = smov 3
  %v1076 = vld [vmem:[%s1074] ss:$16 sm:%s1075]
  %s1077 = scalar_lea.vmem %s0, 526
  %s1078 = smov 12
  %v1079 = vld [vmem:[%s1077] ss:$16 sm:%s1078]
  %vm1080 = vcmask 1043458
  %v1081 = vsel %vm1080, %v1079, %v1076
  %s1082 = scalar_lea.vmem %s0, 526
  %s1083 = smov 48
  %v1084 = vld [vmem:[%s1082] ss:$16 sm:%s1083]
  %vm1085 = vcmask 1045508
  %v1086 = vsel %vm1085, %v1084, %v1081
  %s1087 = scalar_lea.vmem %s0, 526
  %s1088 = smov 192
  %v1089 = vld [vmem:[%s1087] ss:$16 sm:%s1088]
  %vm1090 = vcmask 1047558
  %v1091 = vsel %vm1090, %v1089, %v1086
  %1092 = vrot.lane.b32.xlu0 %v1091, 56
  %v1093 = vpop.permute.xlu0 %1092
  %vm1094 = vcmask 490944
  %s1095 = scalar_lea.vmem %s1, 32
  %1096 = vst.msk [vmem:[%s1095] sm:$0xff] %vm1094, %v1093
  %s1097 = scalar_lea.vmem %s0, 1038
  %s1098 = smov 3
  %v1099 = vld [vmem:[%s1097] ss:$16 sm:%s1098]
  %s1100 = scalar_lea.vmem %s0, 1038
  %s1101 = smov 12
  %v1102 = vld [vmem:[%s1100] ss:$16 sm:%s1101]
  %vm1103 = vcmask 1043458
  %v1104 = vsel %vm1103, %v1102, %v1099
  %s1105 = scalar_lea.vmem %s0, 1038
  %s1106 = smov 48
  %v1107 = vld [vmem:[%s1105] ss:$16 sm:%s1106]
  %vm1108 = vcmask 1045508
  %v1109 = vsel %vm1108, %v1107, %v1104
  %s1110 = scalar_lea.vmem %s0, 1038
  %s1111 = smov 192
  %v1112 = vld [vmem:[%s1110] ss:$16 sm:%s1111]
  %vm1113 = vcmask 1047558
  %v1114 = vsel %vm1113, %v1112, %v1109
  %1115 = vrot.lane.b32.xlu0 %v1114, 56
  %v1116 = vpop.permute.xlu0 %1115
  %vm1117 = vcmask 490944
  %s1118 = scalar_lea.vmem %s1, 64
  %1119 = vst.msk [vmem:[%s1118] sm:$0xff] %vm1117, %v1116
  %s1120 = scalar_lea.vmem %s0, 1550
  %s1121 = smov 3
  %v1122 = vld [vmem:[%s1120] ss:$16 sm:%s1121]
  %s1123 = scalar_lea.vmem %s0, 1550
  %s1124 = smov 12
  %v1125 = vld [vmem:[%s1123] ss:$16 sm:%s1124]
  %vm1126 = vcmask 1043458
  %v1127 = vsel %vm1126, %v1125, %v1122
  %s1128 = scalar_lea.vmem %s0, 1550
  %s1129 = smov 48
  %v1130 = vld [vmem:[%s1128] ss:$16 sm:%s1129]
  %vm1131 = vcmask 1045508
  %v1132 = vsel %vm1131, %v1130, %v1127
  %s1133 = scalar_lea.vmem %s0, 1550
  %s1134 = smov 192
  %v1135 = vld [vmem:[%s1133] ss:$16 sm:%s1134]
  %vm1136 = vcmask 1047558
  %v1137 = vsel %vm1136, %v1135, %v1132
  %1138 = vrot.lane.b32.xlu0 %v1137, 56
  %v1139 = vpop.permute.xlu0 %1138
  %vm1140 = vcmask 490944
  %s1141 = scalar_lea.vmem %s1, 96
  %1142 = vst.msk [vmem:[%s1141] sm:$0xff] %vm1140, %v1139
  %s1143 = scalar_lea.vmem %s0, 2062
  %s1144 = smov 3
  %v1145 = vld [vmem:[%s1143] ss:$16 sm:%s1144]
  %s1146 = scalar_lea.vmem %s0, 2062
  %s1147 = smov 12
  %v1148 = vld [vmem:[%s1146] ss:$16 sm:%s1147]
  %vm1149 = vcmask 1043458
  %v1150 = vsel %vm1149, %v1148, %v1145
  %s1151 = scalar_lea.vmem %s0, 2062
  %s1152 = smov 48
  %v1153 = vld [vmem:[%s1151] ss:$16 sm:%s1152]
  %vm1154 = vcmask 1045508
  %v1155 = vsel %vm1154, %v1153, %v1150
  %s1156 = scalar_lea.vmem %s0, 2062
  %s1157 = smov 192
  %v1158 = vld [vmem:[%s1156] ss:$16 sm:%s1157]
  %vm1159 = vcmask 1047558
  %v1160 = vsel %vm1159, %v1158, %v1155
  %1161 = vrot.lane.b32.xlu0 %v1160, 56
  %v1162 = vpop.permute.xlu0 %1161
  %vm1163 = vcmask 490944
  %s1164 = scalar_lea.vmem %s1, 128
  %1165 = vst.msk [vmem:[%s1164] sm:$0xff] %vm1163, %v1162
  %s1166 = scalar_lea.vmem %s0, 2574
  %s1167 = smov 3
  %v1168 = vld [vmem:[%s1166] ss:$16 sm:%s1167]
  %s1169 = scalar_lea.vmem %s0, 2574
  %s1170 = smov 12
  %v1171 = vld [vmem:[%s1169] ss:$16 sm:%s1170]
  %vm1172 = vcmask 1043458
  %v1173 = vsel %vm1172, %v1171, %v1168
  %s1174 = scalar_lea.vmem %s0, 2574
  %s1175 = smov 48
  %v1176 = vld [vmem:[%s1174] ss:$16 sm:%s1175]
  %vm1177 = vcmask 1045508
  %v1178 = vsel %vm1177, %v1176, %v1173
  %s1179 = scalar_lea.vmem %s0, 2574
  %s1180 = smov 192
  %v1181 = vld [vmem:[%s1179] ss:$16 sm:%s1180]
  %vm1182 = vcmask 1047558
  %v1183 = vsel %vm1182, %v1181, %v1178
  %1184 = vrot.lane.b32.xlu0 %v1183, 56
  %v1185 = vpop.permute.xlu0 %1184
  %vm1186 = vcmask 490944
  %s1187 = scalar_lea.vmem %s1, 160
  %1188 = vst.msk [vmem:[%s1187] sm:$0xff] %vm1186, %v1185
  %s1189 = scalar_lea.vmem %s0, 142
  %s1190 = smov 3
  %v1191 = vld [vmem:[%s1189] ss:$16 sm:%s1190]
  %s1192 = scalar_lea.vmem %s0, 142
  %s1193 = smov 12
  %v1194 = vld [vmem:[%s1192] ss:$16 sm:%s1193]
  %vm1195 = vcmask 1043458
  %v1196 = vsel %vm1195, %v1194, %v1191
  %s1197 = scalar_lea.vmem %s0, 142
  %s1198 = smov 48
  %v1199 = vld [vmem:[%s1197] ss:$16 sm:%s1198]
  %vm1200 = vcmask 1045508
  %v1201 = vsel %vm1200, %v1199, %v1196
  %s1202 = scalar_lea.vmem %s0, 142
  %s1203 = smov 192
  %v1204 = vld [vmem:[%s1202] ss:$16 sm:%s1203]
  %vm1205 = vcmask 1047558
  %v1206 = vsel %vm1205, %v1204, %v1201
  %1207 = vrot.lane.b32.xlu0 %v1206, 56
  %v1208 = vpop.permute.xlu0 %1207
  %vm1209 = vcmask 490944
  %s1210 = scalar_lea.vmem %s1, 8
  %1211 = vst.msk [vmem:[%s1210] sm:$0xff] %vm1209, %v1208
  %s1212 = scalar_lea.vmem %s0, 654
  %s1213 = smov 3
  %v1214 = vld [vmem:[%s1212] ss:$16 sm:%s1213]
  %s1215 = scalar_lea.vmem %s0, 654
  %s1216 = smov 12
  %v1217 = vld [vmem:[%s1215] ss:$16 sm:%s1216]
  %vm1218 = vcmask 1043458
  %v1219 = vsel %vm1218, %v1217, %v1214
  %s1220 = scalar_lea.vmem %s0, 654
  %s1221 = smov 48
  %v1222 = vld [vmem:[%s1220] ss:$16 sm:%s1221]
  %vm1223 = vcmask 1045508
  %v1224 = vsel %vm1223, %v1222, %v1219
  %s1225 = scalar_lea.vmem %s0, 654
  %s1226 = smov 192
  %v1227 = vld [vmem:[%s1225] ss:$16 sm:%s1226]
  %vm1228 = vcmask 1047558
  %v1229 = vsel %vm1228, %v1227, %v1224
  %1230 = vrot.lane.b32.xlu0 %v1229, 56
  %v1231 = vpop.permute.xlu0 %1230
  %vm1232 = vcmask 490944
  %s1233 = scalar_lea.vmem %s1, 40
  %1234 = vst.msk [vmem:[%s1233] sm:$0xff] %vm1232, %v1231
  %s1235 = scalar_lea.vmem %s0, 1166
  %s1236 = smov 3
  %v1237 = vld [vmem:[%s1235] ss:$16 sm:%s1236]
  %s1238 = scalar_lea.vmem %s0, 1166
  %s1239 = smov 12
  %v1240 = vld [vmem:[%s1238] ss:$16 sm:%s1239]
  %vm1241 = vcmask 1043458
  %v1242 = vsel %vm1241, %v1240, %v1237
  %s1243 = scalar_lea.vmem %s0, 1166
  %s1244 = smov 48
  %v1245 = vld [vmem:[%s1243] ss:$16 sm:%s1244]
  %vm1246 = vcmask 1045508
  %v1247 = vsel %vm1246, %v1245, %v1242
  %s1248 = scalar_lea.vmem %s0, 1166
  %s1249 = smov 192
  %v1250 = vld [vmem:[%s1248] ss:$16 sm:%s1249]
  %vm1251 = vcmask 1047558
  %v1252 = vsel %vm1251, %v1250, %v1247
  %1253 = vrot.lane.b32.xlu0 %v1252, 56
  %v1254 = vpop.permute.xlu0 %1253
  %vm1255 = vcmask 490944
  %s1256 = scalar_lea.vmem %s1, 72
  %1257 = vst.msk [vmem:[%s1256] sm:$0xff] %vm1255, %v1254
  %s1258 = scalar_lea.vmem %s0, 1678
  %s1259 = smov 3
  %v1260 = vld [vmem:[%s1258] ss:$16 sm:%s1259]
  %s1261 = scalar_lea.vmem %s0, 1678
  %s1262 = smov 12
  %v1263 = vld [vmem:[%s1261] ss:$16 sm:%s1262]
  %vm1264 = vcmask 1043458
  %v1265 = vsel %vm1264, %v1263, %v1260
  %s1266 = scalar_lea.vmem %s0, 1678
  %s1267 = smov 48
  %v1268 = vld [vmem:[%s1266] ss:$16 sm:%s1267]
  %vm1269 = vcmask 1045508
  %v1270 = vsel %vm1269, %v1268, %v1265
  %s1271 = scalar_lea.vmem %s0, 1678
  %s1272 = smov 192
  %v1273 = vld [vmem:[%s1271] ss:$16 sm:%s1272]
  %vm1274 = vcmask 1047558
  %v1275 = vsel %vm1274, %v1273, %v1270
  %1276 = vrot.lane.b32.xlu0 %v1275, 56
  %v1277 = vpop.permute.xlu0 %1276
  %vm1278 = vcmask 490944
  %s1279 = scalar_lea.vmem %s1, 104
  %1280 = vst.msk [vmem:[%s1279] sm:$0xff] %vm1278, %v1277
  %s1281 = scalar_lea.vmem %s0, 2190
  %s1282 = smov 3
  %v1283 = vld [vmem:[%s1281] ss:$16 sm:%s1282]
  %s1284 = scalar_lea.vmem %s0, 2190
  %s1285 = smov 12
  %v1286 = vld [vmem:[%s1284] ss:$16 sm:%s1285]
  %vm1287 = vcmask 1043458
  %v1288 = vsel %vm1287, %v1286, %v1283
  %s1289 = scalar_lea.vmem %s0, 2190
  %s1290 = smov 48
  %v1291 = vld [vmem:[%s1289] ss:$16 sm:%s1290]
  %vm1292 = vcmask 1045508
  %v1293 = vsel %vm1292, %v1291, %v1288
  %s1294 = scalar_lea.vmem %s0, 2190
  %s1295 = smov 192
  %v1296 = vld [vmem:[%s1294] ss:$16 sm:%s1295]
  %vm1297 = vcmask 1047558
  %v1298 = vsel %vm1297, %v1296, %v1293
  %1299 = vrot.lane.b32.xlu0 %v1298, 56
  %v1300 = vpop.permute.xlu0 %1299
  %vm1301 = vcmask 490944
  %s1302 = scalar_lea.vmem %s1, 136
  %1303 = vst.msk [vmem:[%s1302] sm:$0xff] %vm1301, %v1300
  %s1304 = scalar_lea.vmem %s0, 2702
  %s1305 = smov 3
  %v1306 = vld [vmem:[%s1304] ss:$16 sm:%s1305]
  %s1307 = scalar_lea.vmem %s0, 2702
  %s1308 = smov 12
  %v1309 = vld [vmem:[%s1307] ss:$16 sm:%s1308]
  %vm1310 = vcmask 1043458
  %v1311 = vsel %vm1310, %v1309, %v1306
  %s1312 = scalar_lea.vmem %s0, 2702
  %s1313 = smov 48
  %v1314 = vld [vmem:[%s1312] ss:$16 sm:%s1313]
  %vm1315 = vcmask 1045508
  %v1316 = vsel %vm1315, %v1314, %v1311
  %s1317 = scalar_lea.vmem %s0, 2702
  %s1318 = smov 192
  %v1319 = vld [vmem:[%s1317] ss:$16 sm:%s1318]
  %vm1320 = vcmask 1047558
  %v1321 = vsel %vm1320, %v1319, %v1316
  %1322 = vrot.lane.b32.xlu0 %v1321, 56
  %v1323 = vpop.permute.xlu0 %1322
  %vm1324 = vcmask 490944
  %s1325 = scalar_lea.vmem %s1, 168
  %1326 = vst.msk [vmem:[%s1325] sm:$0xff] %vm1324, %v1323
  %s1327 = scalar_lea.vmem %s0, 270
  %s1328 = smov 3
  %v1329 = vld [vmem:[%s1327] ss:$16 sm:%s1328]
  %s1330 = scalar_lea.vmem %s0, 270
  %s1331 = smov 12
  %v1332 = vld [vmem:[%s1330] ss:$16 sm:%s1331]
  %vm1333 = vcmask 1043458
  %v1334 = vsel %vm1333, %v1332, %v1329
  %s1335 = scalar_lea.vmem %s0, 270
  %s1336 = smov 48
  %v1337 = vld [vmem:[%s1335] ss:$16 sm:%s1336]
  %vm1338 = vcmask 1045508
  %v1339 = vsel %vm1338, %v1337, %v1334
  %s1340 = scalar_lea.vmem %s0, 270
  %s1341 = smov 192
  %v1342 = vld [vmem:[%s1340] ss:$16 sm:%s1341]
  %vm1343 = vcmask 1047558
  %v1344 = vsel %vm1343, %v1342, %v1339
  %1345 = vrot.lane.b32.xlu0 %v1344, 56
  %v1346 = vpop.permute.xlu0 %1345
  %vm1347 = vcmask 490944
  %s1348 = scalar_lea.vmem %s1, 16
  %1349 = vst.msk [vmem:[%s1348] sm:$0xff] %vm1347, %v1346
  %s1350 = scalar_lea.vmem %s0, 782
  %s1351 = smov 3
  %v1352 = vld [vmem:[%s1350] ss:$16 sm:%s1351]
  %s1353 = scalar_lea.vmem %s0, 782
  %s1354 = smov 12
  %v1355 = vld [vmem:[%s1353] ss:$16 sm:%s1354]
  %vm1356 = vcmask 1043458
  %v1357 = vsel %vm1356, %v1355, %v1352
  %s1358 = scalar_lea.vmem %s0, 782
  %s1359 = smov 48
  %v1360 = vld [vmem:[%s1358] ss:$16 sm:%s1359]
  %vm1361 = vcmask 1045508
  %v1362 = vsel %vm1361, %v1360, %v1357
  %s1363 = scalar_lea.vmem %s0, 782
  %s1364 = smov 192
  %v1365 = vld [vmem:[%s1363] ss:$16 sm:%s1364]
  %vm1366 = vcmask 1047558
  %v1367 = vsel %vm1366, %v1365, %v1362
  %1368 = vrot.lane.b32.xlu0 %v1367, 56
  %v1369 = vpop.permute.xlu0 %1368
  %vm1370 = vcmask 490944
  %s1371 = scalar_lea.vmem %s1, 48
  %1372 = vst.msk [vmem:[%s1371] sm:$0xff] %vm1370, %v1369
  %s1373 = scalar_lea.vmem %s0, 1294
  %s1374 = smov 3
  %v1375 = vld [vmem:[%s1373] ss:$16 sm:%s1374]
  %s1376 = scalar_lea.vmem %s0, 1294
  %s1377 = smov 12
  %v1378 = vld [vmem:[%s1376] ss:$16 sm:%s1377]
  %vm1379 = vcmask 1043458
  %v1380 = vsel %vm1379, %v1378, %v1375
  %s1381 = scalar_lea.vmem %s0, 1294
  %s1382 = smov 48
  %v1383 = vld [vmem:[%s1381] ss:$16 sm:%s1382]
  %vm1384 = vcmask 1045508
  %v1385 = vsel %vm1384, %v1383, %v1380
  %s1386 = scalar_lea.vmem %s0, 1294
  %s1387 = smov 192
  %v1388 = vld [vmem:[%s1386] ss:$16 sm:%s1387]
  %vm1389 = vcmask 1047558
  %v1390 = vsel %vm1389, %v1388, %v1385
  %1391 = vrot.lane.b32.xlu0 %v1390, 56
  %v1392 = vpop.permute.xlu0 %1391
  %vm1393 = vcmask 490944
  %s1394 = scalar_lea.vmem %s1, 80
  %1395 = vst.msk [vmem:[%s1394] sm:$0xff] %vm1393, %v1392
  %s1396 = scalar_lea.vmem %s0, 1806
  %s1397 = smov 3
  %v1398 = vld [vmem:[%s1396] ss:$16 sm:%s1397]
  %s1399 = scalar_lea.vmem %s0, 1806
  %s1400 = smov 12
  %v1401 = vld [vmem:[%s1399] ss:$16 sm:%s1400]
  %vm1402 = vcmask 1043458
  %v1403 = vsel %vm1402, %v1401, %v1398
  %s1404 = scalar_lea.vmem %s0, 1806
  %s1405 = smov 48
  %v1406 = vld [vmem:[%s1404] ss:$16 sm:%s1405]
  %vm1407 = vcmask 1045508
  %v1408 = vsel %vm1407, %v1406, %v1403
  %s1409 = scalar_lea.vmem %s0, 1806
  %s1410 = smov 192
  %v1411 = vld [vmem:[%s1409] ss:$16 sm:%s1410]
  %vm1412 = vcmask 1047558
  %v1413 = vsel %vm1412, %v1411, %v1408
  %1414 = vrot.lane.b32.xlu0 %v1413, 56
  %v1415 = vpop.permute.xlu0 %1414
  %vm1416 = vcmask 490944
  %s1417 = scalar_lea.vmem %s1, 112
  %1418 = vst.msk [vmem:[%s1417] sm:$0xff] %vm1416, %v1415
  %s1419 = scalar_lea.vmem %s0, 2318
  %s1420 = smov 3
  %v1421 = vld [vmem:[%s1419] ss:$16 sm:%s1420]
  %s1422 = scalar_lea.vmem %s0, 2318
  %s1423 = smov 12
  %v1424 = vld [vmem:[%s1422] ss:$16 sm:%s1423]
  %vm1425 = vcmask 1043458
  %v1426 = vsel %vm1425, %v1424, %v1421
  %s1427 = scalar_lea.vmem %s0, 2318
  %s1428 = smov 48
  %v1429 = vld [vmem:[%s1427] ss:$16 sm:%s1428]
  %vm1430 = vcmask 1045508
  %v1431 = vsel %vm1430, %v1429, %v1426
  %s1432 = scalar_lea.vmem %s0, 2318
  %s1433 = smov 192
  %v1434 = vld [vmem:[%s1432] ss:$16 sm:%s1433]
  %vm1435 = vcmask 1047558
  %v1436 = vsel %vm1435, %v1434, %v1431
  %1437 = vrot.lane.b32.xlu0 %v1436, 56
  %v1438 = vpop.permute.xlu0 %1437
  %vm1439 = vcmask 490944
  %s1440 = scalar_lea.vmem %s1, 144
  %1441 = vst.msk [vmem:[%s1440] sm:$0xff] %vm1439, %v1438
  %s1442 = scalar_lea.vmem %s0, 2830
  %s1443 = smov 3
  %v1444 = vld [vmem:[%s1442] ss:$16 sm:%s1443]
  %s1445 = scalar_lea.vmem %s0, 2830
  %s1446 = smov 12
  %v1447 = vld [vmem:[%s1445] ss:$16 sm:%s1446]
  %vm1448 = vcmask 1043458
  %v1449 = vsel %vm1448, %v1447, %v1444
  %s1450 = scalar_lea.vmem %s0, 2830
  %s1451 = smov 48
  %v1452 = vld [vmem:[%s1450] ss:$16 sm:%s1451]
  %vm1453 = vcmask 1045508
  %v1454 = vsel %vm1453, %v1452, %v1449
  %s1455 = scalar_lea.vmem %s0, 2830
  %s1456 = smov 192
  %v1457 = vld [vmem:[%s1455] ss:$16 sm:%s1456]
  %vm1458 = vcmask 1047558
  %v1459 = vsel %vm1458, %v1457, %v1454
  %1460 = vrot.lane.b32.xlu0 %v1459, 56
  %v1461 = vpop.permute.xlu0 %1460
  %vm1462 = vcmask 490944
  %s1463 = scalar_lea.vmem %s1, 176
  %1464 = vst.msk [vmem:[%s1463] sm:$0xff] %vm1462, %v1461
  %s1465 = scalar_lea.vmem %s0, 398
  %s1466 = smov 3
  %v1467 = vld [vmem:[%s1465] ss:$16 sm:%s1466]
  %s1468 = scalar_lea.vmem %s0, 398
  %s1469 = smov 12
  %v1470 = vld [vmem:[%s1468] ss:$16 sm:%s1469]
  %vm1471 = vcmask 1043458
  %v1472 = vsel %vm1471, %v1470, %v1467
  %s1473 = scalar_lea.vmem %s0, 398
  %s1474 = smov 48
  %v1475 = vld [vmem:[%s1473] ss:$16 sm:%s1474]
  %vm1476 = vcmask 1045508
  %v1477 = vsel %vm1476, %v1475, %v1472
  %s1478 = scalar_lea.vmem %s0, 398
  %s1479 = smov 192
  %v1480 = vld [vmem:[%s1478] ss:$16 sm:%s1479]
  %vm1481 = vcmask 1047558
  %v1482 = vsel %vm1481, %v1480, %v1477
  %1483 = vrot.lane.b32.xlu0 %v1482, 56
  %v1484 = vpop.permute.xlu0 %1483
  %vm1485 = vcmask 490944
  %s1486 = scalar_lea.vmem %s1, 24
  %1487 = vst.msk [vmem:[%s1486] sm:$0xff] %vm1485, %v1484
  %s1488 = scalar_lea.vmem %s0, 910
  %s1489 = smov 3
  %v1490 = vld [vmem:[%s1488] ss:$16 sm:%s1489]
  %s1491 = scalar_lea.vmem %s0, 910
  %s1492 = smov 12
  %v1493 = vld [vmem:[%s1491] ss:$16 sm:%s1492]
  %vm1494 = vcmask 1043458
  %v1495 = vsel %vm1494, %v1493, %v1490
  %s1496 = scalar_lea.vmem %s0, 910
  %s1497 = smov 48
  %v1498 = vld [vmem:[%s1496] ss:$16 sm:%s1497]
  %vm1499 = vcmask 1045508
  %v1500 = vsel %vm1499, %v1498, %v1495
  %s1501 = scalar_lea.vmem %s0, 910
  %s1502 = smov 192
  %v1503 = vld [vmem:[%s1501] ss:$16 sm:%s1502]
  %vm1504 = vcmask 1047558
  %v1505 = vsel %vm1504, %v1503, %v1500
  %1506 = vrot.lane.b32.xlu0 %v1505, 56
  %v1507 = vpop.permute.xlu0 %1506
  %vm1508 = vcmask 490944
  %s1509 = scalar_lea.vmem %s1, 56
  %1510 = vst.msk [vmem:[%s1509] sm:$0xff] %vm1508, %v1507
  %s1511 = scalar_lea.vmem %s0, 1422
  %s1512 = smov 3
  %v1513 = vld [vmem:[%s1511] ss:$16 sm:%s1512]
  %s1514 = scalar_lea.vmem %s0, 1422
  %s1515 = smov 12
  %v1516 = vld [vmem:[%s1514] ss:$16 sm:%s1515]
  %vm1517 = vcmask 1043458
  %v1518 = vsel %vm1517, %v1516, %v1513
  %s1519 = scalar_lea.vmem %s0, 1422
  %s1520 = smov 48
  %v1521 = vld [vmem:[%s1519] ss:$16 sm:%s1520]
  %vm1522 = vcmask 1045508
  %v1523 = vsel %vm1522, %v1521, %v1518
  %s1524 = scalar_lea.vmem %s0, 1422
  %s1525 = smov 192
  %v1526 = vld [vmem:[%s1524] ss:$16 sm:%s1525]
  %vm1527 = vcmask 1047558
  %v1528 = vsel %vm1527, %v1526, %v1523
  %1529 = vrot.lane.b32.xlu0 %v1528, 56
  %v1530 = vpop.permute.xlu0 %1529
  %vm1531 = vcmask 490944
  %s1532 = scalar_lea.vmem %s1, 88
  %1533 = vst.msk [vmem:[%s1532] sm:$0xff] %vm1531, %v1530
  %s1534 = scalar_lea.vmem %s0, 1934
  %s1535 = smov 3
  %v1536 = vld [vmem:[%s1534] ss:$16 sm:%s1535]
  %s1537 = scalar_lea.vmem %s0, 1934
  %s1538 = smov 12
  %v1539 = vld [vmem:[%s1537] ss:$16 sm:%s1538]
  %vm1540 = vcmask 1043458
  %v1541 = vsel %vm1540, %v1539, %v1536
  %s1542 = scalar_lea.vmem %s0, 1934
  %s1543 = smov 48
  %v1544 = vld [vmem:[%s1542] ss:$16 sm:%s1543]
  %vm1545 = vcmask 1045508
  %v1546 = vsel %vm1545, %v1544, %v1541
  %s1547 = scalar_lea.vmem %s0, 1934
  %s1548 = smov 192
  %v1549 = vld [vmem:[%s1547] ss:$16 sm:%s1548]
  %vm1550 = vcmask 1047558
  %v1551 = vsel %vm1550, %v1549, %v1546
  %1552 = vrot.lane.b32.xlu0 %v1551, 56
  %v1553 = vpop.permute.xlu0 %1552
  %vm1554 = vcmask 490944
  %s1555 = scalar_lea.vmem %s1, 120
  %1556 = vst.msk [vmem:[%s1555] sm:$0xff] %vm1554, %v1553
  %s1557 = scalar_lea.vmem %s0, 2446
  %s1558 = smov 3
  %v1559 = vld [vmem:[%s1557] ss:$16 sm:%s1558]
  %s1560 = scalar_lea.vmem %s0, 2446
  %s1561 = smov 12
  %v1562 = vld [vmem:[%s1560] ss:$16 sm:%s1561]
  %vm1563 = vcmask 1043458
  %v1564 = vsel %vm1563, %v1562, %v1559
  %s1565 = scalar_lea.vmem %s0, 2446
  %s1566 = smov 48
  %v1567 = vld [vmem:[%s1565] ss:$16 sm:%s1566]
  %vm1568 = vcmask 1045508
  %v1569 = vsel %vm1568, %v1567, %v1564
  %s1570 = scalar_lea.vmem %s0, 2446
  %s1571 = smov 192
  %v1572 = vld [vmem:[%s1570] ss:$16 sm:%s1571]
  %vm1573 = vcmask 1047558
  %v1574 = vsel %vm1573, %v1572, %v1569
  %1575 = vrot.lane.b32.xlu0 %v1574, 56
  %v1576 = vpop.permute.xlu0 %1575
  %vm1577 = vcmask 490944
  %s1578 = scalar_lea.vmem %s1, 152
  %1579 = vst.msk [vmem:[%s1578] sm:$0xff] %vm1577, %v1576
  %s1580 = scalar_lea.vmem %s0, 2958
  %s1581 = smov 3
  %v1582 = vld [vmem:[%s1580] ss:$16 sm:%s1581]
  %s1583 = scalar_lea.vmem %s0, 2958
  %s1584 = smov 12
  %v1585 = vld [vmem:[%s1583] ss:$16 sm:%s1584]
  %vm1586 = vcmask 1043458
  %v1587 = vsel %vm1586, %v1585, %v1582
  %s1588 = scalar_lea.vmem %s0, 2958
  %s1589 = smov 48
  %v1590 = vld [vmem:[%s1588] ss:$16 sm:%s1589]
  %vm1591 = vcmask 1045508
  %v1592 = vsel %vm1591, %v1590, %v1587
  %s1593 = scalar_lea.vmem %s0, 2958
  %s1594 = smov 192
  %v1595 = vld [vmem:[%s1593] ss:$16 sm:%s1594]
  %vm1596 = vcmask 1047558
  %v1597 = vsel %vm1596, %v1595, %v1592
  %1598 = vrot.lane.b32.xlu0 %v1597, 56
  %v1599 = vpop.permute.xlu0 %1598
  %vm1600 = vcmask 490944
  %s1601 = scalar_lea.vmem %s1, 184
  %1602 = vst.msk [vmem:[%s1601] sm:$0xff] %vm1600, %v1599
  %s1603 = scalar_lea.vmem %s0, 13
  %s1604 = smov 3
  %v1605 = vld [vmem:[%s1603] ss:$16 sm:%s1604]
  %s1606 = scalar_lea.vmem %s0, 13
  %s1607 = smov 12
  %v1608 = vld [vmem:[%s1606] ss:$16 sm:%s1607]
  %vm1609 = vcmask 1043458
  %v1610 = vsel %vm1609, %v1608, %v1605
  %s1611 = scalar_lea.vmem %s0, 13
  %s1612 = smov 48
  %v1613 = vld [vmem:[%s1611] ss:$16 sm:%s1612]
  %vm1614 = vcmask 1045508
  %v1615 = vsel %vm1614, %v1613, %v1610
  %s1616 = scalar_lea.vmem %s0, 13
  %s1617 = smov 192
  %v1618 = vld [vmem:[%s1616] ss:$16 sm:%s1617]
  %vm1619 = vcmask 1047558
  %v1620 = vsel %vm1619, %v1618, %v1615
  %1621 = vrot.lane.b32.xlu0 %v1620, 52
  %v1622 = vpop.permute.xlu0 %1621
  %vm1623 = vcmask 458144
  %1624 = vst.msk [vmem:[%s1] sm:$0xff] %vm1623, %v1622
  %s1625 = scalar_lea.vmem %s0, 525
  %s1626 = smov 3
  %v1627 = vld [vmem:[%s1625] ss:$16 sm:%s1626]
  %s1628 = scalar_lea.vmem %s0, 525
  %s1629 = smov 12
  %v1630 = vld [vmem:[%s1628] ss:$16 sm:%s1629]
  %vm1631 = vcmask 1043458
  %v1632 = vsel %vm1631, %v1630, %v1627
  %s1633 = scalar_lea.vmem %s0, 525
  %s1634 = smov 48
  %v1635 = vld [vmem:[%s1633] ss:$16 sm:%s1634]
  %vm1636 = vcmask 1045508
  %v1637 = vsel %vm1636, %v1635, %v1632
  %s1638 = scalar_lea.vmem %s0, 525
  %s1639 = smov 192
  %v1640 = vld [vmem:[%s1638] ss:$16 sm:%s1639]
  %vm1641 = vcmask 1047558
  %v1642 = vsel %vm1641, %v1640, %v1637
  %1643 = vrot.lane.b32.xlu0 %v1642, 52
  %v1644 = vpop.permute.xlu0 %1643
  %vm1645 = vcmask 458144
  %s1646 = scalar_lea.vmem %s1, 32
  %1647 = vst.msk [vmem:[%s1646] sm:$0xff] %vm1645, %v1644
  %s1648 = scalar_lea.vmem %s0, 1037
  %s1649 = smov 3
  %v1650 = vld [vmem:[%s1648] ss:$16 sm:%s1649]
  %s1651 = scalar_lea.vmem %s0, 1037
  %s1652 = smov 12
  %v1653 = vld [vmem:[%s1651] ss:$16 sm:%s1652]
  %vm1654 = vcmask 1043458
  %v1655 = vsel %vm1654, %v1653, %v1650
  %s1656 = scalar_lea.vmem %s0, 1037
  %s1657 = smov 48
  %v1658 = vld [vmem:[%s1656] ss:$16 sm:%s1657]
  %vm1659 = vcmask 1045508
  %v1660 = vsel %vm1659, %v1658, %v1655
  %s1661 = scalar_lea.vmem %s0, 1037
  %s1662 = smov 192
  %v1663 = vld [vmem:[%s1661] ss:$16 sm:%s1662]
  %vm1664 = vcmask 1047558
  %v1665 = vsel %vm1664, %v1663, %v1660
  %1666 = vrot.lane.b32.xlu0 %v1665, 52
  %v1667 = vpop.permute.xlu0 %1666
  %vm1668 = vcmask 458144
  %s1669 = scalar_lea.vmem %s1, 64
  %1670 = vst.msk [vmem:[%s1669] sm:$0xff] %vm1668, %v1667
  %s1671 = scalar_lea.vmem %s0, 1549
  %s1672 = smov 3
  %v1673 = vld [vmem:[%s1671] ss:$16 sm:%s1672]
  %s1674 = scalar_lea.vmem %s0, 1549
  %s1675 = smov 12
  %v1676 = vld [vmem:[%s1674] ss:$16 sm:%s1675]
  %vm1677 = vcmask 1043458
  %v1678 = vsel %vm1677, %v1676, %v1673
  %s1679 = scalar_lea.vmem %s0, 1549
  %s1680 = smov 48
  %v1681 = vld [vmem:[%s1679] ss:$16 sm:%s1680]
  %vm1682 = vcmask 1045508
  %v1683 = vsel %vm1682, %v1681, %v1678
  %s1684 = scalar_lea.vmem %s0, 1549
  %s1685 = smov 192
  %v1686 = vld [vmem:[%s1684] ss:$16 sm:%s1685]
  %vm1687 = vcmask 1047558
  %v1688 = vsel %vm1687, %v1686, %v1683
  %1689 = vrot.lane.b32.xlu0 %v1688, 52
  %v1690 = vpop.permute.xlu0 %1689
  %vm1691 = vcmask 458144
  %s1692 = scalar_lea.vmem %s1, 96
  %1693 = vst.msk [vmem:[%s1692] sm:$0xff] %vm1691, %v1690
  %s1694 = scalar_lea.vmem %s0, 2061
  %s1695 = smov 3
  %v1696 = vld [vmem:[%s1694] ss:$16 sm:%s1695]
  %s1697 = scalar_lea.vmem %s0, 2061
  %s1698 = smov 12
  %v1699 = vld [vmem:[%s1697] ss:$16 sm:%s1698]
  %vm1700 = vcmask 1043458
  %v1701 = vsel %vm1700, %v1699, %v1696
  %s1702 = scalar_lea.vmem %s0, 2061
  %s1703 = smov 48
  %v1704 = vld [vmem:[%s1702] ss:$16 sm:%s1703]
  %vm1705 = vcmask 1045508
  %v1706 = vsel %vm1705, %v1704, %v1701
  %s1707 = scalar_lea.vmem %s0, 2061
  %s1708 = smov 192
  %v1709 = vld [vmem:[%s1707] ss:$16 sm:%s1708]
  %vm1710 = vcmask 1047558
  %v1711 = vsel %vm1710, %v1709, %v1706
  %1712 = vrot.lane.b32.xlu0 %v1711, 52
  %v1713 = vpop.permute.xlu0 %1712
  %vm1714 = vcmask 458144
  %s1715 = scalar_lea.vmem %s1, 128
  %1716 = vst.msk [vmem:[%s1715] sm:$0xff] %vm1714, %v1713
  %s1717 = scalar_lea.vmem %s0, 2573
  %s1718 = smov 3
  %v1719 = vld [vmem:[%s1717] ss:$16 sm:%s1718]
  %s1720 = scalar_lea.vmem %s0, 2573
  %s1721 = smov 12
  %v1722 = vld [vmem:[%s1720] ss:$16 sm:%s1721]
  %vm1723 = vcmask 1043458
  %v1724 = vsel %vm1723, %v1722, %v1719
  %s1725 = scalar_lea.vmem %s0, 2573
  %s1726 = smov 48
  %v1727 = vld [vmem:[%s1725] ss:$16 sm:%s1726]
  %vm1728 = vcmask 1045508
  %v1729 = vsel %vm1728, %v1727, %v1724
  %s1730 = scalar_lea.vmem %s0, 2573
  %s1731 = smov 192
  %v1732 = vld [vmem:[%s1730] ss:$16 sm:%s1731]
  %vm1733 = vcmask 1047558
  %v1734 = vsel %vm1733, %v1732, %v1729
  %1735 = vrot.lane.b32.xlu0 %v1734, 52
  %v1736 = vpop.permute.xlu0 %1735
  %vm1737 = vcmask 458144
  %s1738 = scalar_lea.vmem %s1, 160
  %1739 = vst.msk [vmem:[%s1738] sm:$0xff] %vm1737, %v1736
  %s1740 = scalar_lea.vmem %s0, 141
  %s1741 = smov 3
  %v1742 = vld [vmem:[%s1740] ss:$16 sm:%s1741]
  %s1743 = scalar_lea.vmem %s0, 141
  %s1744 = smov 12
  %v1745 = vld [vmem:[%s1743] ss:$16 sm:%s1744]
  %vm1746 = vcmask 1043458
  %v1747 = vsel %vm1746, %v1745, %v1742
  %s1748 = scalar_lea.vmem %s0, 141
  %s1749 = smov 48
  %v1750 = vld [vmem:[%s1748] ss:$16 sm:%s1749]
  %vm1751 = vcmask 1045508
  %v1752 = vsel %vm1751, %v1750, %v1747
  %s1753 = scalar_lea.vmem %s0, 141
  %s1754 = smov 192
  %v1755 = vld [vmem:[%s1753] ss:$16 sm:%s1754]
  %vm1756 = vcmask 1047558
  %v1757 = vsel %vm1756, %v1755, %v1752
  %1758 = vrot.lane.b32.xlu0 %v1757, 52
  %v1759 = vpop.permute.xlu0 %1758
  %vm1760 = vcmask 458144
  %s1761 = scalar_lea.vmem %s1, 8
  %1762 = vst.msk [vmem:[%s1761] sm:$0xff] %vm1760, %v1759
  %s1763 = scalar_lea.vmem %s0, 653
  %s1764 = smov 3
  %v1765 = vld [vmem:[%s1763] ss:$16 sm:%s1764]
  %s1766 = scalar_lea.vmem %s0, 653
  %s1767 = smov 12
  %v1768 = vld [vmem:[%s1766] ss:$16 sm:%s1767]
  %vm1769 = vcmask 1043458
  %v1770 = vsel %vm1769, %v1768, %v1765
  %s1771 = scalar_lea.vmem %s0, 653
  %s1772 = smov 48
  %v1773 = vld [vmem:[%s1771] ss:$16 sm:%s1772]
  %vm1774 = vcmask 1045508
  %v1775 = vsel %vm1774, %v1773, %v1770
  %s1776 = scalar_lea.vmem %s0, 653
  %s1777 = smov 192
  %v1778 = vld [vmem:[%s1776] ss:$16 sm:%s1777]
  %vm1779 = vcmask 1047558
  %v1780 = vsel %vm1779, %v1778, %v1775
  %1781 = vrot.lane.b32.xlu0 %v1780, 52
  %v1782 = vpop.permute.xlu0 %1781
  %vm1783 = vcmask 458144
  %s1784 = scalar_lea.vmem %s1, 40
  %1785 = vst.msk [vmem:[%s1784] sm:$0xff] %vm1783, %v1782
  %s1786 = scalar_lea.vmem %s0, 1165
  %s1787 = smov 3
  %v1788 = vld [vmem:[%s1786] ss:$16 sm:%s1787]
  %s1789 = scalar_lea.vmem %s0, 1165
  %s1790 = smov 12
  %v1791 = vld [vmem:[%s1789] ss:$16 sm:%s1790]
  %vm1792 = vcmask 1043458
  %v1793 = vsel %vm1792, %v1791, %v1788
  %s1794 = scalar_lea.vmem %s0, 1165
  %s1795 = smov 48
  %v1796 = vld [vmem:[%s1794] ss:$16 sm:%s1795]
  %vm1797 = vcmask 1045508
  %v1798 = vsel %vm1797, %v1796, %v1793
  %s1799 = scalar_lea.vmem %s0, 1165
  %s1800 = smov 192
  %v1801 = vld [vmem:[%s1799] ss:$16 sm:%s1800]
  %vm1802 = vcmask 1047558
  %v1803 = vsel %vm1802, %v1801, %v1798
  %1804 = vrot.lane.b32.xlu0 %v1803, 52
  %v1805 = vpop.permute.xlu0 %1804
  %vm1806 = vcmask 458144
  %s1807 = scalar_lea.vmem %s1, 72
  %1808 = vst.msk [vmem:[%s1807] sm:$0xff] %vm1806, %v1805
  %s1809 = scalar_lea.vmem %s0, 1677
  %s1810 = smov 3
  %v1811 = vld [vmem:[%s1809] ss:$16 sm:%s1810]
  %s1812 = scalar_lea.vmem %s0, 1677
  %s1813 = smov 12
  %v1814 = vld [vmem:[%s1812] ss:$16 sm:%s1813]
  %vm1815 = vcmask 1043458
  %v1816 = vsel %vm1815, %v1814, %v1811
  %s1817 = scalar_lea.vmem %s0, 1677
  %s1818 = smov 48
  %v1819 = vld [vmem:[%s1817] ss:$16 sm:%s1818]
  %vm1820 = vcmask 1045508
  %v1821 = vsel %vm1820, %v1819, %v1816
  %s1822 = scalar_lea.vmem %s0, 1677
  %s1823 = smov 192
  %v1824 = vld [vmem:[%s1822] ss:$16 sm:%s1823]
  %vm1825 = vcmask 1047558
  %v1826 = vsel %vm1825, %v1824, %v1821
  %1827 = vrot.lane.b32.xlu0 %v1826, 52
  %v1828 = vpop.permute.xlu0 %1827
  %vm1829 = vcmask 458144
  %s1830 = scalar_lea.vmem %s1, 104
  %1831 = vst.msk [vmem:[%s1830] sm:$0xff] %vm1829, %v1828
  %s1832 = scalar_lea.vmem %s0, 2189
  %s1833 = smov 3
  %v1834 = vld [vmem:[%s1832] ss:$16 sm:%s1833]
  %s1835 = scalar_lea.vmem %s0, 2189
  %s1836 = smov 12
  %v1837 = vld [vmem:[%s1835] ss:$16 sm:%s1836]
  %vm1838 = vcmask 1043458
  %v1839 = vsel %vm1838, %v1837, %v1834
  %s1840 = scalar_lea.vmem %s0, 2189
  %s1841 = smov 48
  %v1842 = vld [vmem:[%s1840] ss:$16 sm:%s1841]
  %vm1843 = vcmask 1045508
  %v1844 = vsel %vm1843, %v1842, %v1839
  %s1845 = scalar_lea.vmem %s0, 2189
  %s1846 = smov 192
  %v1847 = vld [vmem:[%s1845] ss:$16 sm:%s1846]
  %vm1848 = vcmask 1047558
  %v1849 = vsel %vm1848, %v1847, %v1844
  %1850 = vrot.lane.b32.xlu0 %v1849, 52
  %v1851 = vpop.permute.xlu0 %1850
  %vm1852 = vcmask 458144
  %s1853 = scalar_lea.vmem %s1, 136
  %1854 = vst.msk [vmem:[%s1853] sm:$0xff] %vm1852, %v1851
  %s1855 = scalar_lea.vmem %s0, 2701
  %s1856 = smov 3
  %v1857 = vld [vmem:[%s1855] ss:$16 sm:%s1856]
  %s1858 = scalar_lea.vmem %s0, 2701
  %s1859 = smov 12
  %v1860 = vld [vmem:[%s1858] ss:$16 sm:%s1859]
  %vm1861 = vcmask 1043458
  %v1862 = vsel %vm1861, %v1860, %v1857
  %s1863 = scalar_lea.vmem %s0, 2701
  %s1864 = smov 48
  %v1865 = vld [vmem:[%s1863] ss:$16 sm:%s1864]
  %vm1866 = vcmask 1045508
  %v1867 = vsel %vm1866, %v1865, %v1862
  %s1868 = scalar_lea.vmem %s0, 2701
  %s1869 = smov 192
  %v1870 = vld [vmem:[%s1868] ss:$16 sm:%s1869]
  %vm1871 = vcmask 1047558
  %v1872 = vsel %vm1871, %v1870, %v1867
  %1873 = vrot.lane.b32.xlu0 %v1872, 52
  %v1874 = vpop.permute.xlu0 %1873
  %vm1875 = vcmask 458144
  %s1876 = scalar_lea.vmem %s1, 168
  %1877 = vst.msk [vmem:[%s1876] sm:$0xff] %vm1875, %v1874
  %s1878 = scalar_lea.vmem %s0, 269
  %s1879 = smov 3
  %v1880 = vld [vmem:[%s1878] ss:$16 sm:%s1879]
  %s1881 = scalar_lea.vmem %s0, 269
  %s1882 = smov 12
  %v1883 = vld [vmem:[%s1881] ss:$16 sm:%s1882]
  %vm1884 = vcmask 1043458
  %v1885 = vsel %vm1884, %v1883, %v1880
  %s1886 = scalar_lea.vmem %s0, 269
  %s1887 = smov 48
  %v1888 = vld [vmem:[%s1886] ss:$16 sm:%s1887]
  %vm1889 = vcmask 1045508
  %v1890 = vsel %vm1889, %v1888, %v1885
  %s1891 = scalar_lea.vmem %s0, 269
  %s1892 = smov 192
  %v1893 = vld [vmem:[%s1891] ss:$16 sm:%s1892]
  %vm1894 = vcmask 1047558
  %v1895 = vsel %vm1894, %v1893, %v1890
  %1896 = vrot.lane.b32.xlu0 %v1895, 52
  %v1897 = vpop.permute.xlu0 %1896
  %vm1898 = vcmask 458144
  %s1899 = scalar_lea.vmem %s1, 16
  %1900 = vst.msk [vmem:[%s1899] sm:$0xff] %vm1898, %v1897
  %s1901 = scalar_lea.vmem %s0, 781
  %s1902 = smov 3
  %v1903 = vld [vmem:[%s1901] ss:$16 sm:%s1902]
  %s1904 = scalar_lea.vmem %s0, 781
  %s1905 = smov 12
  %v1906 = vld [vmem:[%s1904] ss:$16 sm:%s1905]
  %vm1907 = vcmask 1043458
  %v1908 = vsel %vm1907, %v1906, %v1903
  %s1909 = scalar_lea.vmem %s0, 781
  %s1910 = smov 48
  %v1911 = vld [vmem:[%s1909] ss:$16 sm:%s1910]
  %vm1912 = vcmask 1045508
  %v1913 = vsel %vm1912, %v1911, %v1908
  %s1914 = scalar_lea.vmem %s0, 781
  %s1915 = smov 192
  %v1916 = vld [vmem:[%s1914] ss:$16 sm:%s1915]
  %vm1917 = vcmask 1047558
  %v1918 = vsel %vm1917, %v1916, %v1913
  %1919 = vrot.lane.b32.xlu0 %v1918, 52
  %v1920 = vpop.permute.xlu0 %1919
  %vm1921 = vcmask 458144
  %s1922 = scalar_lea.vmem %s1, 48
  %1923 = vst.msk [vmem:[%s1922] sm:$0xff] %vm1921, %v1920
  %s1924 = scalar_lea.vmem %s0, 1293
  %s1925 = smov 3
  %v1926 = vld [vmem:[%s1924] ss:$16 sm:%s1925]
  %s1927 = scalar_lea.vmem %s0, 1293
  %s1928 = smov 12
  %v1929 = vld [vmem:[%s1927] ss:$16 sm:%s1928]
  %vm1930 = vcmask 1043458
  %v1931 = vsel %vm1930, %v1929, %v1926
  %s1932 = scalar_lea.vmem %s0, 1293
  %s1933 = smov 48
  %v1934 = vld [vmem:[%s1932] ss:$16 sm:%s1933]
  %vm1935 = vcmask 1045508
  %v1936 = vsel %vm1935, %v1934, %v1931
  %s1937 = scalar_lea.vmem %s0, 1293
  %s1938 = smov 192
  %v1939 = vld [vmem:[%s1937] ss:$16 sm:%s1938]
  %vm1940 = vcmask 1047558
  %v1941 = vsel %vm1940, %v1939, %v1936
  %1942 = vrot.lane.b32.xlu0 %v1941, 52
  %v1943 = vpop.permute.xlu0 %1942
  %vm1944 = vcmask 458144
  %s1945 = scalar_lea.vmem %s1, 80
  %1946 = vst.msk [vmem:[%s1945] sm:$0xff] %vm1944, %v1943
  %s1947 = scalar_lea.vmem %s0, 1805
  %s1948 = smov 3
  %v1949 = vld [vmem:[%s1947] ss:$16 sm:%s1948]
  %s1950 = scalar_lea.vmem %s0, 1805
  %s1951 = smov 12
  %v1952 = vld [vmem:[%s1950] ss:$16 sm:%s1951]
  %vm1953 = vcmask 1043458
  %v1954 = vsel %vm1953, %v1952, %v1949
  %s1955 = scalar_lea.vmem %s0, 1805
  %s1956 = smov 48
  %v1957 = vld [vmem:[%s1955] ss:$16 sm:%s1956]
  %vm1958 = vcmask 1045508
  %v1959 = vsel %vm1958, %v1957, %v1954
  %s1960 = scalar_lea.vmem %s0, 1805
  %s1961 = smov 192
  %v1962 = vld [vmem:[%s1960] ss:$16 sm:%s1961]
  %vm1963 = vcmask 1047558
  %v1964 = vsel %vm1963, %v1962, %v1959
  %1965 = vrot.lane.b32.xlu0 %v1964, 52
  %v1966 = vpop.permute.xlu0 %1965
  %vm1967 = vcmask 458144
  %s1968 = scalar_lea.vmem %s1, 112
  %1969 = vst.msk [vmem:[%s1968] sm:$0xff] %vm1967, %v1966
  %s1970 = scalar_lea.vmem %s0, 2317
  %s1971 = smov 3
  %v1972 = vld [vmem:[%s1970] ss:$16 sm:%s1971]
  %s1973 = scalar_lea.vmem %s0, 2317
  %s1974 = smov 12
  %v1975 = vld [vmem:[%s1973] ss:$16 sm:%s1974]
  %vm1976 = vcmask 1043458
  %v1977 = vsel %vm1976, %v1975, %v1972
  %s1978 = scalar_lea.vmem %s0, 2317
  %s1979 = smov 48
  %v1980 = vld [vmem:[%s1978] ss:$16 sm:%s1979]
  %vm1981 = vcmask 1045508
  %v1982 = vsel %vm1981, %v1980, %v1977
  %s1983 = scalar_lea.vmem %s0, 2317
  %s1984 = smov 192
  %v1985 = vld [vmem:[%s1983] ss:$16 sm:%s1984]
  %vm1986 = vcmask 1047558
  %v1987 = vsel %vm1986, %v1985, %v1982
  %1988 = vrot.lane.b32.xlu0 %v1987, 52
  %v1989 = vpop.permute.xlu0 %1988
  %vm1990 = vcmask 458144
  %s1991 = scalar_lea.vmem %s1, 144
  %1992 = vst.msk [vmem:[%s1991] sm:$0xff] %vm1990, %v1989
  %s1993 = scalar_lea.vmem %s0, 2829
  %s1994 = smov 3
  %v1995 = vld [vmem:[%s1993] ss:$16 sm:%s1994]
  %s1996 = scalar_lea.vmem %s0, 2829
  %s1997 = smov 12
  %v1998 = vld [vmem:[%s1996] ss:$16 sm:%s1997]
  %vm1999 = vcmask 1043458
  %v2000 = vsel %vm1999, %v1998, %v1995
  %s2001 = scalar_lea.vmem %s0, 2829
  %s2002 = smov 48
  %v2003 = vld [vmem:[%s2001] ss:$16 sm:%s2002]
  %vm2004 = vcmask 1045508
  %v2005 = vsel %vm2004, %v2003, %v2000
  %s2006 = scalar_lea.vmem %s0, 2829
  %s2007 = smov 192
  %v2008 = vld [vmem:[%s2006] ss:$16 sm:%s2007]
  %vm2009 = vcmask 1047558
  %v2010 = vsel %vm2009, %v2008, %v2005
  %2011 = vrot.lane.b32.xlu0 %v2010, 52
  %v2012 = vpop.permute.xlu0 %2011
  %vm2013 = vcmask 458144
  %s2014 = scalar_lea.vmem %s1, 176
  %2015 = vst.msk [vmem:[%s2014] sm:$0xff] %vm2013, %v2012
  %s2016 = scalar_lea.vmem %s0, 397
  %s2017 = smov 3
  %v2018 = vld [vmem:[%s2016] ss:$16 sm:%s2017]
  %s2019 = scalar_lea.vmem %s0, 397
  %s2020 = smov 12
  %v2021 = vld [vmem:[%s2019] ss:$16 sm:%s2020]
  %vm2022 = vcmask 1043458
  %v2023 = vsel %vm2022, %v2021, %v2018
  %s2024 = scalar_lea.vmem %s0, 397
  %s2025 = smov 48
  %v2026 = vld [vmem:[%s2024] ss:$16 sm:%s2025]
  %vm2027 = vcmask 1045508
  %v2028 = vsel %vm2027, %v2026, %v2023
  %s2029 = scalar_lea.vmem %s0, 397
  %s2030 = smov 192
  %v2031 = vld [vmem:[%s2029] ss:$16 sm:%s2030]
  %vm2032 = vcmask 1047558
  %v2033 = vsel %vm2032, %v2031, %v2028
  %2034 = vrot.lane.b32.xlu0 %v2033, 52
  %v2035 = vpop.permute.xlu0 %2034
  %vm2036 = vcmask 458144
  %s2037 = scalar_lea.vmem %s1, 24
  %2038 = vst.msk [vmem:[%s2037] sm:$0xff] %vm2036, %v2035
  %s2039 = scalar_lea.vmem %s0, 909
  %s2040 = smov 3
  %v2041 = vld [vmem:[%s2039] ss:$16 sm:%s2040]
  %s2042 = scalar_lea.vmem %s0, 909
  %s2043 = smov 12
  %v2044 = vld [vmem:[%s2042] ss:$16 sm:%s2043]
  %vm2045 = vcmask 1043458
  %v2046 = vsel %vm2045, %v2044, %v2041
  %s2047 = scalar_lea.vmem %s0, 909
  %s2048 = smov 48
  %v2049 = vld [vmem:[%s2047] ss:$16 sm:%s2048]
  %vm2050 = vcmask 1045508
  %v2051 = vsel %vm2050, %v2049, %v2046
  %s2052 = scalar_lea.vmem %s0, 909
  %s2053 = smov 192
  %v2054 = vld [vmem:[%s2052] ss:$16 sm:%s2053]
  %vm2055 = vcmask 1047558
  %v2056 = vsel %vm2055, %v2054, %v2051
  %2057 = vrot.lane.b32.xlu0 %v2056, 52
  %v2058 = vpop.permute.xlu0 %2057
  %vm2059 = vcmask 458144
  %s2060 = scalar_lea.vmem %s1, 56
  %2061 = vst.msk [vmem:[%s2060] sm:$0xff] %vm2059, %v2058
  %s2062 = scalar_lea.vmem %s0, 1421
  %s2063 = smov 3
  %v2064 = vld [vmem:[%s2062] ss:$16 sm:%s2063]
  %s2065 = scalar_lea.vmem %s0, 1421
  %s2066 = smov 12
  %v2067 = vld [vmem:[%s2065] ss:$16 sm:%s2066]
  %vm2068 = vcmask 1043458
  %v2069 = vsel %vm2068, %v2067, %v2064
  %s2070 = scalar_lea.vmem %s0, 1421
  %s2071 = smov 48
  %v2072 = vld [vmem:[%s2070] ss:$16 sm:%s2071]
  %vm2073 = vcmask 1045508
  %v2074 = vsel %vm2073, %v2072, %v2069
  %s2075 = scalar_lea.vmem %s0, 1421
  %s2076 = smov 192
  %v2077 = vld [vmem:[%s2075] ss:$16 sm:%s2076]
  %vm2078 = vcmask 1047558
  %v2079 = vsel %vm2078, %v2077, %v2074
  %2080 = vrot.lane.b32.xlu0 %v2079, 52
  %v2081 = vpop.permute.xlu0 %2080
  %vm2082 = vcmask 458144
  %s2083 = scalar_lea.vmem %s1, 88
  %2084 = vst.msk [vmem:[%s2083] sm:$0xff] %vm2082, %v2081
  %s2085 = scalar_lea.vmem %s0, 1933
  %s2086 = smov 3
  %v2087 = vld [vmem:[%s2085] ss:$16 sm:%s2086]
  %s2088 = scalar_lea.vmem %s0, 1933
  %s2089 = smov 12
  %v2090 = vld [vmem:[%s2088] ss:$16 sm:%s2089]
  %vm2091 = vcmask 1043458
  %v2092 = vsel %vm2091, %v2090, %v2087
  %s2093 = scalar_lea.vmem %s0, 1933
  %s2094 = smov 48
  %v2095 = vld [vmem:[%s2093] ss:$16 sm:%s2094]
  %vm2096 = vcmask 1045508
  %v2097 = vsel %vm2096, %v2095, %v2092
  %s2098 = scalar_lea.vmem %s0, 1933
  %s2099 = smov 192
  %v2100 = vld [vmem:[%s2098] ss:$16 sm:%s2099]
  %vm2101 = vcmask 1047558
  %v2102 = vsel %vm2101, %v2100, %v2097
  %2103 = vrot.lane.b32.xlu0 %v2102, 52
  %v2104 = vpop.permute.xlu0 %2103
  %vm2105 = vcmask 458144
  %s2106 = scalar_lea.vmem %s1, 120
  %2107 = vst.msk [vmem:[%s2106] sm:$0xff] %vm2105, %v2104
  %s2108 = scalar_lea.vmem %s0, 2445
  %s2109 = smov 3
  %v2110 = vld [vmem:[%s2108] ss:$16 sm:%s2109]
  %s2111 = scalar_lea.vmem %s0, 2445
  %s2112 = smov 12
  %v2113 = vld [vmem:[%s2111] ss:$16 sm:%s2112]
  %vm2114 = vcmask 1043458
  %v2115 = vsel %vm2114, %v2113, %v2110
  %s2116 = scalar_lea.vmem %s0, 2445
  %s2117 = smov 48
  %v2118 = vld [vmem:[%s2116] ss:$16 sm:%s2117]
  %vm2119 = vcmask 1045508
  %v2120 = vsel %vm2119, %v2118, %v2115
  %s2121 = scalar_lea.vmem %s0, 2445
  %s2122 = smov 192
  %v2123 = vld [vmem:[%s2121] ss:$16 sm:%s2122]
  %vm2124 = vcmask 1047558
  %v2125 = vsel %vm2124, %v2123, %v2120
  %2126 = vrot.lane.b32.xlu0 %v2125, 52
  %v2127 = vpop.permute.xlu0 %2126
  %vm2128 = vcmask 458144
  %s2129 = scalar_lea.vmem %s1, 152
  %2130 = vst.msk [vmem:[%s2129] sm:$0xff] %vm2128, %v2127
  %s2131 = scalar_lea.vmem %s0, 2957
  %s2132 = smov 3
  %v2133 = vld [vmem:[%s2131] ss:$16 sm:%s2132]
  %s2134 = scalar_lea.vmem %s0, 2957
  %s2135 = smov 12
  %v2136 = vld [vmem:[%s2134] ss:$16 sm:%s2135]
  %vm2137 = vcmask 1043458
  %v2138 = vsel %vm2137, %v2136, %v2133
  %s2139 = scalar_lea.vmem %s0, 2957
  %s2140 = smov 48
  %v2141 = vld [vmem:[%s2139] ss:$16 sm:%s2140]
  %vm2142 = vcmask 1045508
  %v2143 = vsel %vm2142, %v2141, %v2138
  %s2144 = scalar_lea.vmem %s0, 2957
  %s2145 = smov 192
  %v2146 = vld [vmem:[%s2144] ss:$16 sm:%s2145]
  %vm2147 = vcmask 1047558
  %v2148 = vsel %vm2147, %v2146, %v2143
  %2149 = vrot.lane.b32.xlu0 %v2148, 52
  %v2150 = vpop.permute.xlu0 %2149
  %vm2151 = vcmask 458144
  %s2152 = scalar_lea.vmem %s1, 184
  %2153 = vst.msk [vmem:[%s2152] sm:$0xff] %vm2151, %v2150
  %s2154 = scalar_lea.vmem %s0, 12
  %s2155 = smov 3
  %v2156 = vld [vmem:[%s2154] ss:$16 sm:%s2155]
  %s2157 = scalar_lea.vmem %s0, 12
  %s2158 = smov 12
  %v2159 = vld [vmem:[%s2157] ss:$16 sm:%s2158]
  %vm2160 = vcmask 1043458
  %v2161 = vsel %vm2160, %v2159, %v2156
  %s2162 = scalar_lea.vmem %s0, 12
  %s2163 = smov 48
  %v2164 = vld [vmem:[%s2162] ss:$16 sm:%s2163]
  %vm2165 = vcmask 1045508
  %v2166 = vsel %vm2165, %v2164, %v2161
  %s2167 = scalar_lea.vmem %s0, 12
  %s2168 = smov 192
  %v2169 = vld [vmem:[%s2167] ss:$16 sm:%s2168]
  %vm2170 = vcmask 1047558
  %v2171 = vsel %vm2170, %v2169, %v2166
  %2172 = vrot.lane.b32.xlu0 %v2171, 48
  %v2173 = vpop.permute.xlu0 %2172
  %vm2174 = vcmask 425344
  %2175 = vst.msk [vmem:[%s1] sm:$0xff] %vm2174, %v2173
  %s2176 = scalar_lea.vmem %s0, 524
  %s2177 = smov 3
  %v2178 = vld [vmem:[%s2176] ss:$16 sm:%s2177]
  %s2179 = scalar_lea.vmem %s0, 524
  %s2180 = smov 12
  %v2181 = vld [vmem:[%s2179] ss:$16 sm:%s2180]
  %vm2182 = vcmask 1043458
  %v2183 = vsel %vm2182, %v2181, %v2178
  %s2184 = scalar_lea.vmem %s0, 524
  %s2185 = smov 48
  %v2186 = vld [vmem:[%s2184] ss:$16 sm:%s2185]
  %vm2187 = vcmask 1045508
  %v2188 = vsel %vm2187, %v2186, %v2183
  %s2189 = scalar_lea.vmem %s0, 524
  %s2190 = smov 192
  %v2191 = vld [vmem:[%s2189] ss:$16 sm:%s2190]
  %vm2192 = vcmask 1047558
  %v2193 = vsel %vm2192, %v2191, %v2188
  %2194 = vrot.lane.b32.xlu0 %v2193, 48
  %v2195 = vpop.permute.xlu0 %2194
  %vm2196 = vcmask 425344
  %s2197 = scalar_lea.vmem %s1, 32
  %2198 = vst.msk [vmem:[%s2197] sm:$0xff] %vm2196, %v2195
  %s2199 = scalar_lea.vmem %s0, 1036
  %s2200 = smov 3
  %v2201 = vld [vmem:[%s2199] ss:$16 sm:%s2200]
  %s2202 = scalar_lea.vmem %s0, 1036
  %s2203 = smov 12
  %v2204 = vld [vmem:[%s2202] ss:$16 sm:%s2203]
  %vm2205 = vcmask 1043458
  %v2206 = vsel %vm2205, %v2204, %v2201
  %s2207 = scalar_lea.vmem %s0, 1036
  %s2208 = smov 48
  %v2209 = vld [vmem:[%s2207] ss:$16 sm:%s2208]
  %vm2210 = vcmask 1045508
  %v2211 = vsel %vm2210, %v2209, %v2206
  %s2212 = scalar_lea.vmem %s0, 1036
  %s2213 = smov 192
  %v2214 = vld [vmem:[%s2212] ss:$16 sm:%s2213]
  %vm2215 = vcmask 1047558
  %v2216 = vsel %vm2215, %v2214, %v2211
  %2217 = vrot.lane.b32.xlu0 %v2216, 48
  %v2218 = vpop.permute.xlu0 %2217
  %vm2219 = vcmask 425344
  %s2220 = scalar_lea.vmem %s1, 64
  %2221 = vst.msk [vmem:[%s2220] sm:$0xff] %vm2219, %v2218
  %s2222 = scalar_lea.vmem %s0, 1548
  %s2223 = smov 3
  %v2224 = vld [vmem:[%s2222] ss:$16 sm:%s2223]
  %s2225 = scalar_lea.vmem %s0, 1548
  %s2226 = smov 12
  %v2227 = vld [vmem:[%s2225] ss:$16 sm:%s2226]
  %vm2228 = vcmask 1043458
  %v2229 = vsel %vm2228, %v2227, %v2224
  %s2230 = scalar_lea.vmem %s0, 1548
  %s2231 = smov 48
  %v2232 = vld [vmem:[%s2230] ss:$16 sm:%s2231]
  %vm2233 = vcmask 1045508
  %v2234 = vsel %vm2233, %v2232, %v2229
  %s2235 = scalar_lea.vmem %s0, 1548
  %s2236 = smov 192
  %v2237 = vld [vmem:[%s2235] ss:$16 sm:%s2236]
  %vm2238 = vcmask 1047558
  %v2239 = vsel %vm2238, %v2237, %v2234
  %2240 = vrot.lane.b32.xlu0 %v2239, 48
  %v2241 = vpop.permute.xlu0 %2240
  %vm2242 = vcmask 425344
  %s2243 = scalar_lea.vmem %s1, 96
  %2244 = vst.msk [vmem:[%s2243] sm:$0xff] %vm2242, %v2241
  %s2245 = scalar_lea.vmem %s0, 2060
  %s2246 = smov 3
  %v2247 = vld [vmem:[%s2245] ss:$16 sm:%s2246]
  %s2248 = scalar_lea.vmem %s0, 2060
  %s2249 = smov 12
  %v2250 = vld [vmem:[%s2248] ss:$16 sm:%s2249]
  %vm2251 = vcmask 1043458
  %v2252 = vsel %vm2251, %v2250, %v2247
  %s2253 = scalar_lea.vmem %s0, 2060
  %s2254 = smov 48
  %v2255 = vld [vmem:[%s2253] ss:$16 sm:%s2254]
  %vm2256 = vcmask 1045508
  %v2257 = vsel %vm2256, %v2255, %v2252
  %s2258 = scalar_lea.vmem %s0, 2060
  %s2259 = smov 192
  %v2260 = vld [vmem:[%s2258] ss:$16 sm:%s2259]
  %vm2261 = vcmask 1047558
  %v2262 = vsel %vm2261, %v2260, %v2257
  %2263 = vrot.lane.b32.xlu0 %v2262, 48
  %v2264 = vpop.permute.xlu0 %2263
  %vm2265 = vcmask 425344
  %s2266 = scalar_lea.vmem %s1, 128
  %2267 = vst.msk [vmem:[%s2266] sm:$0xff] %vm2265, %v2264
  %s2268 = scalar_lea.vmem %s0, 2572
  %s2269 = smov 3
  %v2270 = vld [vmem:[%s2268] ss:$16 sm:%s2269]
  %s2271 = scalar_lea.vmem %s0, 2572
  %s2272 = smov 12
  %v2273 = vld [vmem:[%s2271] ss:$16 sm:%s2272]
  %vm2274 = vcmask 1043458
  %v2275 = vsel %vm2274, %v2273, %v2270
  %s2276 = scalar_lea.vmem %s0, 2572
  %s2277 = smov 48
  %v2278 = vld [vmem:[%s2276] ss:$16 sm:%s2277]
  %vm2279 = vcmask 1045508
  %v2280 = vsel %vm2279, %v2278, %v2275
  %s2281 = scalar_lea.vmem %s0, 2572
  %s2282 = smov 192
  %v2283 = vld [vmem:[%s2281] ss:$16 sm:%s2282]
  %vm2284 = vcmask 1047558
  %v2285 = vsel %vm2284, %v2283, %v2280
  %2286 = vrot.lane.b32.xlu0 %v2285, 48
  %v2287 = vpop.permute.xlu0 %2286
  %vm2288 = vcmask 425344
  %s2289 = scalar_lea.vmem %s1, 160
  %2290 = vst.msk [vmem:[%s2289] sm:$0xff] %vm2288, %v2287
  %s2291 = scalar_lea.vmem %s0, 140
  %s2292 = smov 3
  %v2293 = vld [vmem:[%s2291] ss:$16 sm:%s2292]
  %s2294 = scalar_lea.vmem %s0, 140
  %s2295 = smov 12
  %v2296 = vld [vmem:[%s2294] ss:$16 sm:%s2295]
  %vm2297 = vcmask 1043458
  %v2298 = vsel %vm2297, %v2296, %v2293
  %s2299 = scalar_lea.vmem %s0, 140
  %s2300 = smov 48
  %v2301 = vld [vmem:[%s2299] ss:$16 sm:%s2300]
  %vm2302 = vcmask 1045508
  %v2303 = vsel %vm2302, %v2301, %v2298
  %s2304 = scalar_lea.vmem %s0, 140
  %s2305 = smov 192
  %v2306 = vld [vmem:[%s2304] ss:$16 sm:%s2305]
  %vm2307 = vcmask 1047558
  %v2308 = vsel %vm2307, %v2306, %v2303
  %2309 = vrot.lane.b32.xlu0 %v2308, 48
  %v2310 = vpop.permute.xlu0 %2309
  %vm2311 = vcmask 425344
  %s2312 = scalar_lea.vmem %s1, 8
  %2313 = vst.msk [vmem:[%s2312] sm:$0xff] %vm2311, %v2310
  %s2314 = scalar_lea.vmem %s0, 652
  %s2315 = smov 3
  %v2316 = vld [vmem:[%s2314] ss:$16 sm:%s2315]
  %s2317 = scalar_lea.vmem %s0, 652
  %s2318 = smov 12
  %v2319 = vld [vmem:[%s2317] ss:$16 sm:%s2318]
  %vm2320 = vcmask 1043458
  %v2321 = vsel %vm2320, %v2319, %v2316
  %s2322 = scalar_lea.vmem %s0, 652
  %s2323 = smov 48
  %v2324 = vld [vmem:[%s2322] ss:$16 sm:%s2323]
  %vm2325 = vcmask 1045508
  %v2326 = vsel %vm2325, %v2324, %v2321
  %s2327 = scalar_lea.vmem %s0, 652
  %s2328 = smov 192
  %v2329 = vld [vmem:[%s2327] ss:$16 sm:%s2328]
  %vm2330 = vcmask 1047558
  %v2331 = vsel %vm2330, %v2329, %v2326
  %2332 = vrot.lane.b32.xlu0 %v2331, 48
  %v2333 = vpop.permute.xlu0 %2332
  %vm2334 = vcmask 425344
  %s2335 = scalar_lea.vmem %s1, 40
  %2336 = vst.msk [vmem:[%s2335] sm:$0xff] %vm2334, %v2333
  %s2337 = scalar_lea.vmem %s0, 1164
  %s2338 = smov 3
  %v2339 = vld [vmem:[%s2337] ss:$16 sm:%s2338]
  %s2340 = scalar_lea.vmem %s0, 1164
  %s2341 = smov 12
  %v2342 = vld [vmem:[%s2340] ss:$16 sm:%s2341]
  %vm2343 = vcmask 1043458
  %v2344 = vsel %vm2343, %v2342, %v2339
  %s2345 = scalar_lea.vmem %s0, 1164
  %s2346 = smov 48
  %v2347 = vld [vmem:[%s2345] ss:$16 sm:%s2346]
  %vm2348 = vcmask 1045508
  %v2349 = vsel %vm2348, %v2347, %v2344
  %s2350 = scalar_lea.vmem %s0, 1164
  %s2351 = smov 192
  %v2352 = vld [vmem:[%s2350] ss:$16 sm:%s2351]
  %vm2353 = vcmask 1047558
  %v2354 = vsel %vm2353, %v2352, %v2349
  %2355 = vrot.lane.b32.xlu0 %v2354, 48
  %v2356 = vpop.permute.xlu0 %2355
  %vm2357 = vcmask 425344
  %s2358 = scalar_lea.vmem %s1, 72
  %2359 = vst.msk [vmem:[%s2358] sm:$0xff] %vm2357, %v2356
  %s2360 = scalar_lea.vmem %s0, 1676
  %s2361 = smov 3
  %v2362 = vld [vmem:[%s2360] ss:$16 sm:%s2361]
  %s2363 = scalar_lea.vmem %s0, 1676
  %s2364 = smov 12
  %v2365 = vld [vmem:[%s2363] ss:$16 sm:%s2364]
  %vm2366 = vcmask 1043458
  %v2367 = vsel %vm2366, %v2365, %v2362
  %s2368 = scalar_lea.vmem %s0, 1676
  %s2369 = smov 48
  %v2370 = vld [vmem:[%s2368] ss:$16 sm:%s2369]
  %vm2371 = vcmask 1045508
  %v2372 = vsel %vm2371, %v2370, %v2367
  %s2373 = scalar_lea.vmem %s0, 1676
  %s2374 = smov 192
  %v2375 = vld [vmem:[%s2373] ss:$16 sm:%s2374]
  %vm2376 = vcmask 1047558
  %v2377 = vsel %vm2376, %v2375, %v2372
  %2378 = vrot.lane.b32.xlu0 %v2377, 48
  %v2379 = vpop.permute.xlu0 %2378
  %vm2380 = vcmask 425344
  %s2381 = scalar_lea.vmem %s1, 104
  %2382 = vst.msk [vmem:[%s2381] sm:$0xff] %vm2380, %v2379
  %s2383 = scalar_lea.vmem %s0, 2188
  %s2384 = smov 3
  %v2385 = vld [vmem:[%s2383] ss:$16 sm:%s2384]
  %s2386 = scalar_lea.vmem %s0, 2188
  %s2387 = smov 12
  %v2388 = vld [vmem:[%s2386] ss:$16 sm:%s2387]
  %vm2389 = vcmask 1043458
  %v2390 = vsel %vm2389, %v2388, %v2385
  %s2391 = scalar_lea.vmem %s0, 2188
  %s2392 = smov 48
  %v2393 = vld [vmem:[%s2391] ss:$16 sm:%s2392]
  %vm2394 = vcmask 1045508
  %v2395 = vsel %vm2394, %v2393, %v2390
  %s2396 = scalar_lea.vmem %s0, 2188
  %s2397 = smov 192
  %v2398 = vld [vmem:[%s2396] ss:$16 sm:%s2397]
  %vm2399 = vcmask 1047558
  %v2400 = vsel %vm2399, %v2398, %v2395
  %2401 = vrot.lane.b32.xlu0 %v2400, 48
  %v2402 = vpop.permute.xlu0 %2401
  %vm2403 = vcmask 425344
  %s2404 = scalar_lea.vmem %s1, 136
  %2405 = vst.msk [vmem:[%s2404] sm:$0xff] %vm2403, %v2402
  %s2406 = scalar_lea.vmem %s0, 2700
  %s2407 = smov 3
  %v2408 = vld [vmem:[%s2406] ss:$16 sm:%s2407]
  %s2409 = scalar_lea.vmem %s0, 2700
  %s2410 = smov 12
  %v2411 = vld [vmem:[%s2409] ss:$16 sm:%s2410]
  %vm2412 = vcmask 1043458
  %v2413 = vsel %vm2412, %v2411, %v2408
  %s2414 = scalar_lea.vmem %s0, 2700
  %s2415 = smov 48
  %v2416 = vld [vmem:[%s2414] ss:$16 sm:%s2415]
  %vm2417 = vcmask 1045508
  %v2418 = vsel %vm2417, %v2416, %v2413
  %s2419 = scalar_lea.vmem %s0, 2700
  %s2420 = smov 192
  %v2421 = vld [vmem:[%s2419] ss:$16 sm:%s2420]
  %vm2422 = vcmask 1047558
  %v2423 = vsel %vm2422, %v2421, %v2418
  %2424 = vrot.lane.b32.xlu0 %v2423, 48
  %v2425 = vpop.permute.xlu0 %2424
  %vm2426 = vcmask 425344
  %s2427 = scalar_lea.vmem %s1, 168
  %2428 = vst.msk [vmem:[%s2427] sm:$0xff] %vm2426, %v2425
  %s2429 = scalar_lea.vmem %s0, 268
  %s2430 = smov 3
  %v2431 = vld [vmem:[%s2429] ss:$16 sm:%s2430]
  %s2432 = scalar_lea.vmem %s0, 268
  %s2433 = smov 12
  %v2434 = vld [vmem:[%s2432] ss:$16 sm:%s2433]
  %vm2435 = vcmask 1043458
  %v2436 = vsel %vm2435, %v2434, %v2431
  %s2437 = scalar_lea.vmem %s0, 268
  %s2438 = smov 48
  %v2439 = vld [vmem:[%s2437] ss:$16 sm:%s2438]
  %vm2440 = vcmask 1045508
  %v2441 = vsel %vm2440, %v2439, %v2436
  %s2442 = scalar_lea.vmem %s0, 268
  %s2443 = smov 192
  %v2444 = vld [vmem:[%s2442] ss:$16 sm:%s2443]
  %vm2445 = vcmask 1047558
  %v2446 = vsel %vm2445, %v2444, %v2441
  %2447 = vrot.lane.b32.xlu0 %v2446, 48
  %v2448 = vpop.permute.xlu0 %2447
  %vm2449 = vcmask 425344
  %s2450 = scalar_lea.vmem %s1, 16
  %2451 = vst.msk [vmem:[%s2450] sm:$0xff] %vm2449, %v2448
  %s2452 = scalar_lea.vmem %s0, 780
  %s2453 = smov 3
  %v2454 = vld [vmem:[%s2452] ss:$16 sm:%s2453]
  %s2455 = scalar_lea.vmem %s0, 780
  %s2456 = smov 12
  %v2457 = vld [vmem:[%s2455] ss:$16 sm:%s2456]
  %vm2458 = vcmask 1043458
  %v2459 = vsel %vm2458, %v2457, %v2454
  %s2460 = scalar_lea.vmem %s0, 780
  %s2461 = smov 48
  %v2462 = vld [vmem:[%s2460] ss:$16 sm:%s2461]
  %vm2463 = vcmask 1045508
  %v2464 = vsel %vm2463, %v2462, %v2459
  %s2465 = scalar_lea.vmem %s0, 780
  %s2466 = smov 192
  %v2467 = vld [vmem:[%s2465] ss:$16 sm:%s2466]
  %vm2468 = vcmask 1047558
  %v2469 = vsel %vm2468, %v2467, %v2464
  %2470 = vrot.lane.b32.xlu0 %v2469, 48
  %v2471 = vpop.permute.xlu0 %2470
  %vm2472 = vcmask 425344
  %s2473 = scalar_lea.vmem %s1, 48
  %2474 = vst.msk [vmem:[%s2473] sm:$0xff] %vm2472, %v2471
  %s2475 = scalar_lea.vmem %s0, 1292
  %s2476 = smov 3
  %v2477 = vld [vmem:[%s2475] ss:$16 sm:%s2476]
  %s2478 = scalar_lea.vmem %s0, 1292
  %s2479 = smov 12
  %v2480 = vld [vmem:[%s2478] ss:$16 sm:%s2479]
  %vm2481 = vcmask 1043458
  %v2482 = vsel %vm2481, %v2480, %v2477
  %s2483 = scalar_lea.vmem %s0, 1292
  %s2484 = smov 48
  %v2485 = vld [vmem:[%s2483] ss:$16 sm:%s2484]
  %vm2486 = vcmask 1045508
  %v2487 = vsel %vm2486, %v2485, %v2482
  %s2488 = scalar_lea.vmem %s0, 1292
  %s2489 = smov 192
  %v2490 = vld [vmem:[%s2488] ss:$16 sm:%s2489]
  %vm2491 = vcmask 1047558
  %v2492 = vsel %vm2491, %v2490, %v2487
  %2493 = vrot.lane.b32.xlu0 %v2492, 48
  %v2494 = vpop.permute.xlu0 %2493
  %vm2495 = vcmask 425344
  %s2496 = scalar_lea.vmem %s1, 80
  %2497 = vst.msk [vmem:[%s2496] sm:$0xff] %vm2495, %v2494
  %s2498 = scalar_lea.vmem %s0, 1804
  %s2499 = smov 3
  %v2500 = vld [vmem:[%s2498] ss:$16 sm:%s2499]
  %s2501 = scalar_lea.vmem %s0, 1804
  %s2502 = smov 12
  %v2503 = vld [vmem:[%s2501] ss:$16 sm:%s2502]
  %vm2504 = vcmask 1043458
  %v2505 = vsel %vm2504, %v2503, %v2500
  %s2506 = scalar_lea.vmem %s0, 1804
  %s2507 = smov 48
  %v2508 = vld [vmem:[%s2506] ss:$16 sm:%s2507]
  %vm2509 = vcmask 1045508
  %v2510 = vsel %vm2509, %v2508, %v2505
  %s2511 = scalar_lea.vmem %s0, 1804
  %s2512 = smov 192
  %v2513 = vld [vmem:[%s2511] ss:$16 sm:%s2512]
  %vm2514 = vcmask 1047558
  %v2515 = vsel %vm2514, %v2513, %v2510
  %2516 = vrot.lane.b32.xlu0 %v2515, 48
  %v2517 = vpop.permute.xlu0 %2516
  %vm2518 = vcmask 425344
  %s2519 = scalar_lea.vmem %s1, 112
  %2520 = vst.msk [vmem:[%s2519] sm:$0xff] %vm2518, %v2517
  %s2521 = scalar_lea.vmem %s0, 2316
  %s2522 = smov 3
  %v2523 = vld [vmem:[%s2521] ss:$16 sm:%s2522]
  %s2524 = scalar_lea.vmem %s0, 2316
  %s2525 = smov 12
  %v2526 = vld [vmem:[%s2524] ss:$16 sm:%s2525]
  %vm2527 = vcmask 1043458
  %v2528 = vsel %vm2527, %v2526, %v2523
  %s2529 = scalar_lea.vmem %s0, 2316
  %s2530 = smov 48
  %v2531 = vld [vmem:[%s2529] ss:$16 sm:%s2530]
  %vm2532 = vcmask 1045508
  %v2533 = vsel %vm2532, %v2531, %v2528
  %s2534 = scalar_lea.vmem %s0, 2316
  %s2535 = smov 192
  %v2536 = vld [vmem:[%s2534] ss:$16 sm:%s2535]
  %vm2537 = vcmask 1047558
  %v2538 = vsel %vm2537, %v2536, %v2533
  %2539 = vrot.lane.b32.xlu0 %v2538, 48
  %v2540 = vpop.permute.xlu0 %2539
  %vm2541 = vcmask 425344
  %s2542 = scalar_lea.vmem %s1, 144
  %2543 = vst.msk [vmem:[%s2542] sm:$0xff] %vm2541, %v2540
  %s2544 = scalar_lea.vmem %s0, 2828
  %s2545 = smov 3
  %v2546 = vld [vmem:[%s2544] ss:$16 sm:%s2545]
  %s2547 = scalar_lea.vmem %s0, 2828
  %s2548 = smov 12
  %v2549 = vld [vmem:[%s2547] ss:$16 sm:%s2548]
  %vm2550 = vcmask 1043458
  %v2551 = vsel %vm2550, %v2549, %v2546
  %s2552 = scalar_lea.vmem %s0, 2828
  %s2553 = smov 48
  %v2554 = vld [vmem:[%s2552] ss:$16 sm:%s2553]
  %vm2555 = vcmask 1045508
  %v2556 = vsel %vm2555, %v2554, %v2551
  %s2557 = scalar_lea.vmem %s0, 2828
  %s2558 = smov 192
  %v2559 = vld [vmem:[%s2557] ss:$16 sm:%s2558]
  %vm2560 = vcmask 1047558
  %v2561 = vsel %vm2560, %v2559, %v2556
  %2562 = vrot.lane.b32.xlu0 %v2561, 48
  %v2563 = vpop.permute.xlu0 %2562
  %vm2564 = vcmask 425344
  %s2565 = scalar_lea.vmem %s1, 176
  %2566 = vst.msk [vmem:[%s2565] sm:$0xff] %vm2564, %v2563
  %s2567 = scalar_lea.vmem %s0, 396
  %s2568 = smov 3
  %v2569 = vld [vmem:[%s2567] ss:$16 sm:%s2568]
  %s2570 = scalar_lea.vmem %s0, 396
  %s2571 = smov 12
  %v2572 = vld [vmem:[%s2570] ss:$16 sm:%s2571]
  %vm2573 = vcmask 1043458
  %v2574 = vsel %vm2573, %v2572, %v2569
  %s2575 = scalar_lea.vmem %s0, 396
  %s2576 = smov 48
  %v2577 = vld [vmem:[%s2575] ss:$16 sm:%s2576]
  %vm2578 = vcmask 1045508
  %v2579 = vsel %vm2578, %v2577, %v2574
  %s2580 = scalar_lea.vmem %s0, 396
  %s2581 = smov 192
  %v2582 = vld [vmem:[%s2580] ss:$16 sm:%s2581]
  %vm2583 = vcmask 1047558
  %v2584 = vsel %vm2583, %v2582, %v2579
  %2585 = vrot.lane.b32.xlu0 %v2584, 48
  %v2586 = vpop.permute.xlu0 %2585
  %vm2587 = vcmask 425344
  %s2588 = scalar_lea.vmem %s1, 24
  %2589 = vst.msk [vmem:[%s2588] sm:$0xff] %vm2587, %v2586
  %s2590 = scalar_lea.vmem %s0, 908
  %s2591 = smov 3
  %v2592 = vld [vmem:[%s2590] ss:$16 sm:%s2591]
  %s2593 = scalar_lea.vmem %s0, 908
  %s2594 = smov 12
  %v2595 = vld [vmem:[%s2593] ss:$16 sm:%s2594]
  %vm2596 = vcmask 1043458
  %v2597 = vsel %vm2596, %v2595, %v2592
  %s2598 = scalar_lea.vmem %s0, 908
  %s2599 = smov 48
  %v2600 = vld [vmem:[%s2598] ss:$16 sm:%s2599]
  %vm2601 = vcmask 1045508
  %v2602 = vsel %vm2601, %v2600, %v2597
  %s2603 = scalar_lea.vmem %s0, 908
  %s2604 = smov 192
  %v2605 = vld [vmem:[%s2603] ss:$16 sm:%s2604]
  %vm2606 = vcmask 1047558
  %v2607 = vsel %vm2606, %v2605, %v2602
  %2608 = vrot.lane.b32.xlu0 %v2607, 48
  %v2609 = vpop.permute.xlu0 %2608
  %vm2610 = vcmask 425344
  %s2611 = scalar_lea.vmem %s1, 56
  %2612 = vst.msk [vmem:[%s2611] sm:$0xff] %vm2610, %v2609
  %s2613 = scalar_lea.vmem %s0, 1420
  %s2614 = smov 3
  %v2615 = vld [vmem:[%s2613] ss:$16 sm:%s2614]
  %s2616 = scalar_lea.vmem %s0, 1420
  %s2617 = smov 12
  %v2618 = vld [vmem:[%s2616] ss:$16 sm:%s2617]
  %vm2619 = vcmask 1043458
  %v2620 = vsel %vm2619, %v2618, %v2615
  %s2621 = scalar_lea.vmem %s0, 1420
  %s2622 = smov 48
  %v2623 = vld [vmem:[%s2621] ss:$16 sm:%s2622]
  %vm2624 = vcmask 1045508
  %v2625 = vsel %vm2624, %v2623, %v2620
  %s2626 = scalar_lea.vmem %s0, 1420
  %s2627 = smov 192
  %v2628 = vld [vmem:[%s2626] ss:$16 sm:%s2627]
  %vm2629 = vcmask 1047558
  %v2630 = vsel %vm2629, %v2628, %v2625
  %2631 = vrot.lane.b32.xlu0 %v2630, 48
  %v2632 = vpop.permute.xlu0 %2631
  %vm2633 = vcmask 425344
  %s2634 = scalar_lea.vmem %s1, 88
  %2635 = vst.msk [vmem:[%s2634] sm:$0xff] %vm2633, %v2632
  %s2636 = scalar_lea.vmem %s0, 1932
  %s2637 = smov 3
  %v2638 = vld [vmem:[%s2636] ss:$16 sm:%s2637]
  %s2639 = scalar_lea.vmem %s0, 1932
  %s2640 = smov 12
  %v2641 = vld [vmem:[%s2639] ss:$16 sm:%s2640]
  %vm2642 = vcmask 1043458
  %v2643 = vsel %vm2642, %v2641, %v2638
  %s2644 = scalar_lea.vmem %s0, 1932
  %s2645 = smov 48
  %v2646 = vld [vmem:[%s2644] ss:$16 sm:%s2645]
  %vm2647 = vcmask 1045508
  %v2648 = vsel %vm2647, %v2646, %v2643
  %s2649 = scalar_lea.vmem %s0, 1932
  %s2650 = smov 192
  %v2651 = vld [vmem:[%s2649] ss:$16 sm:%s2650]
  %vm2652 = vcmask 1047558
  %v2653 = vsel %vm2652, %v2651, %v2648
  %2654 = vrot.lane.b32.xlu0 %v2653, 48
  %v2655 = vpop.permute.xlu0 %2654
  %vm2656 = vcmask 425344
  %s2657 = scalar_lea.vmem %s1, 120
  %2658 = vst.msk [vmem:[%s2657] sm:$0xff] %vm2656, %v2655
  %s2659 = scalar_lea.vmem %s0, 2444
  %s2660 = smov 3
  %v2661 = vld [vmem:[%s2659] ss:$16 sm:%s2660]
  %s2662 = scalar_lea.vmem %s0, 2444
  %s2663 = smov 12
  %v2664 = vld [vmem:[%s2662] ss:$16 sm:%s2663]
  %vm2665 = vcmask 1043458
  %v2666 = vsel %vm2665, %v2664, %v2661
  %s2667 = scalar_lea.vmem %s0, 2444
  %s2668 = smov 48
  %v2669 = vld [vmem:[%s2667] ss:$16 sm:%s2668]
  %vm2670 = vcmask 1045508
  %v2671 = vsel %vm2670, %v2669, %v2666
  %s2672 = scalar_lea.vmem %s0, 2444
  %s2673 = smov 192
  %v2674 = vld [vmem:[%s2672] ss:$16 sm:%s2673]
  %vm2675 = vcmask 1047558
  %v2676 = vsel %vm2675, %v2674, %v2671
  %2677 = vrot.lane.b32.xlu0 %v2676, 48
  %v2678 = vpop.permute.xlu0 %2677
  %vm2679 = vcmask 425344
  %s2680 = scalar_lea.vmem %s1, 152
  %2681 = vst.msk [vmem:[%s2680] sm:$0xff] %vm2679, %v2678
  %s2682 = scalar_lea.vmem %s0, 2956
  %s2683 = smov 3
  %v2684 = vld [vmem:[%s2682] ss:$16 sm:%s2683]
  %s2685 = scalar_lea.vmem %s0, 2956
  %s2686 = smov 12
  %v2687 = vld [vmem:[%s2685] ss:$16 sm:%s2686]
  %vm2688 = vcmask 1043458
  %v2689 = vsel %vm2688, %v2687, %v2684
  %s2690 = scalar_lea.vmem %s0, 2956
  %s2691 = smov 48
  %v2692 = vld [vmem:[%s2690] ss:$16 sm:%s2691]
  %vm2693 = vcmask 1045508
  %v2694 = vsel %vm2693, %v2692, %v2689
  %s2695 = scalar_lea.vmem %s0, 2956
  %s2696 = smov 192
  %v2697 = vld [vmem:[%s2695] ss:$16 sm:%s2696]
  %vm2698 = vcmask 1047558
  %v2699 = vsel %vm2698, %v2697, %v2694
  %2700 = vrot.lane.b32.xlu0 %v2699, 48
  %v2701 = vpop.permute.xlu0 %2700
  %vm2702 = vcmask 425344
  %s2703 = scalar_lea.vmem %s1, 184
  %2704 = vst.msk [vmem:[%s2703] sm:$0xff] %vm2702, %v2701
  %s2705 = scalar_lea.vmem %s0, 11
  %s2706 = smov 3
  %v2707 = vld [vmem:[%s2705] ss:$16 sm:%s2706]
  %s2708 = scalar_lea.vmem %s0, 11
  %s2709 = smov 12
  %v2710 = vld [vmem:[%s2708] ss:$16 sm:%s2709]
  %vm2711 = vcmask 1043458
  %v2712 = vsel %vm2711, %v2710, %v2707
  %s2713 = scalar_lea.vmem %s0, 11
  %s2714 = smov 48
  %v2715 = vld [vmem:[%s2713] ss:$16 sm:%s2714]
  %vm2716 = vcmask 1045508
  %v2717 = vsel %vm2716, %v2715, %v2712
  %s2718 = scalar_lea.vmem %s0, 11
  %s2719 = smov 192
  %v2720 = vld [vmem:[%s2718] ss:$16 sm:%s2719]
  %vm2721 = vcmask 1047558
  %v2722 = vsel %vm2721, %v2720, %v2717
  %2723 = vrot.lane.b32.xlu0 %v2722, 44
  %v2724 = vpop.permute.xlu0 %2723
  %vm2725 = vcmask 392544
  %2726 = vst.msk [vmem:[%s1] sm:$0xff] %vm2725, %v2724
  %s2727 = scalar_lea.vmem %s0, 523
  %s2728 = smov 3
  %v2729 = vld [vmem:[%s2727] ss:$16 sm:%s2728]
  %s2730 = scalar_lea.vmem %s0, 523
  %s2731 = smov 12
  %v2732 = vld [vmem:[%s2730] ss:$16 sm:%s2731]
  %vm2733 = vcmask 1043458
  %v2734 = vsel %vm2733, %v2732, %v2729
  %s2735 = scalar_lea.vmem %s0, 523
  %s2736 = smov 48
  %v2737 = vld [vmem:[%s2735] ss:$16 sm:%s2736]
  %vm2738 = vcmask 1045508
  %v2739 = vsel %vm2738, %v2737, %v2734
  %s2740 = scalar_lea.vmem %s0, 523
  %s2741 = smov 192
  %v2742 = vld [vmem:[%s2740] ss:$16 sm:%s2741]
  %vm2743 = vcmask 1047558
  %v2744 = vsel %vm2743, %v2742, %v2739
  %2745 = vrot.lane.b32.xlu0 %v2744, 44
  %v2746 = vpop.permute.xlu0 %2745
  %vm2747 = vcmask 392544
  %s2748 = scalar_lea.vmem %s1, 32
  %2749 = vst.msk [vmem:[%s2748] sm:$0xff] %vm2747, %v2746
  %s2750 = scalar_lea.vmem %s0, 1035
  %s2751 = smov 3
  %v2752 = vld [vmem:[%s2750] ss:$16 sm:%s2751]
  %s2753 = scalar_lea.vmem %s0, 1035
  %s2754 = smov 12
  %v2755 = vld [vmem:[%s2753] ss:$16 sm:%s2754]
  %vm2756 = vcmask 1043458
  %v2757 = vsel %vm2756, %v2755, %v2752
  %s2758 = scalar_lea.vmem %s0, 1035
  %s2759 = smov 48
  %v2760 = vld [vmem:[%s2758] ss:$16 sm:%s2759]
  %vm2761 = vcmask 1045508
  %v2762 = vsel %vm2761, %v2760, %v2757
  %s2763 = scalar_lea.vmem %s0, 1035
  %s2764 = smov 192
  %v2765 = vld [vmem:[%s2763] ss:$16 sm:%s2764]
  %vm2766 = vcmask 1047558
  %v2767 = vsel %vm2766, %v2765, %v2762
  %2768 = vrot.lane.b32.xlu0 %v2767, 44
  %v2769 = vpop.permute.xlu0 %2768
  %vm2770 = vcmask 392544
  %s2771 = scalar_lea.vmem %s1, 64
  %2772 = vst.msk [vmem:[%s2771] sm:$0xff] %vm2770, %v2769
  %s2773 = scalar_lea.vmem %s0, 1547
  %s2774 = smov 3
  %v2775 = vld [vmem:[%s2773] ss:$16 sm:%s2774]
  %s2776 = scalar_lea.vmem %s0, 1547
  %s2777 = smov 12
  %v2778 = vld [vmem:[%s2776] ss:$16 sm:%s2777]
  %vm2779 = vcmask 1043458
  %v2780 = vsel %vm2779, %v2778, %v2775
  %s2781 = scalar_lea.vmem %s0, 1547
  %s2782 = smov 48
  %v2783 = vld [vmem:[%s2781] ss:$16 sm:%s2782]
  %vm2784 = vcmask 1045508
  %v2785 = vsel %vm2784, %v2783, %v2780
  %s2786 = scalar_lea.vmem %s0, 1547
  %s2787 = smov 192
  %v2788 = vld [vmem:[%s2786] ss:$16 sm:%s2787]
  %vm2789 = vcmask 1047558
  %v2790 = vsel %vm2789, %v2788, %v2785
  %2791 = vrot.lane.b32.xlu0 %v2790, 44
  %v2792 = vpop.permute.xlu0 %2791
  %vm2793 = vcmask 392544
  %s2794 = scalar_lea.vmem %s1, 96
  %2795 = vst.msk [vmem:[%s2794] sm:$0xff] %vm2793, %v2792
  %s2796 = scalar_lea.vmem %s0, 2059
  %s2797 = smov 3
  %v2798 = vld [vmem:[%s2796] ss:$16 sm:%s2797]
  %s2799 = scalar_lea.vmem %s0, 2059
  %s2800 = smov 12
  %v2801 = vld [vmem:[%s2799] ss:$16 sm:%s2800]
  %vm2802 = vcmask 1043458
  %v2803 = vsel %vm2802, %v2801, %v2798
  %s2804 = scalar_lea.vmem %s0, 2059
  %s2805 = smov 48
  %v2806 = vld [vmem:[%s2804] ss:$16 sm:%s2805]
  %vm2807 = vcmask 1045508
  %v2808 = vsel %vm2807, %v2806, %v2803
  %s2809 = scalar_lea.vmem %s0, 2059
  %s2810 = smov 192
  %v2811 = vld [vmem:[%s2809] ss:$16 sm:%s2810]
  %vm2812 = vcmask 1047558
  %v2813 = vsel %vm2812, %v2811, %v2808
  %2814 = vrot.lane.b32.xlu0 %v2813, 44
  %v2815 = vpop.permute.xlu0 %2814
  %vm2816 = vcmask 392544
  %s2817 = scalar_lea.vmem %s1, 128
  %2818 = vst.msk [vmem:[%s2817] sm:$0xff] %vm2816, %v2815
  %s2819 = scalar_lea.vmem %s0, 2571
  %s2820 = smov 3
  %v2821 = vld [vmem:[%s2819] ss:$16 sm:%s2820]
  %s2822 = scalar_lea.vmem %s0, 2571
  %s2823 = smov 12
  %v2824 = vld [vmem:[%s2822] ss:$16 sm:%s2823]
  %vm2825 = vcmask 1043458
  %v2826 = vsel %vm2825, %v2824, %v2821
  %s2827 = scalar_lea.vmem %s0, 2571
  %s2828 = smov 48
  %v2829 = vld [vmem:[%s2827] ss:$16 sm:%s2828]
  %vm2830 = vcmask 1045508
  %v2831 = vsel %vm2830, %v2829, %v2826
  %s2832 = scalar_lea.vmem %s0, 2571
  %s2833 = smov 192
  %v2834 = vld [vmem:[%s2832] ss:$16 sm:%s2833]
  %vm2835 = vcmask 1047558
  %v2836 = vsel %vm2835, %v2834, %v2831
  %2837 = vrot.lane.b32.xlu0 %v2836, 44
  %v2838 = vpop.permute.xlu0 %2837
  %vm2839 = vcmask 392544
  %s2840 = scalar_lea.vmem %s1, 160
  %2841 = vst.msk [vmem:[%s2840] sm:$0xff] %vm2839, %v2838
  %s2842 = scalar_lea.vmem %s0, 139
  %s2843 = smov 3
  %v2844 = vld [vmem:[%s2842] ss:$16 sm:%s2843]
  %s2845 = scalar_lea.vmem %s0, 139
  %s2846 = smov 12
  %v2847 = vld [vmem:[%s2845] ss:$16 sm:%s2846]
  %vm2848 = vcmask 1043458
  %v2849 = vsel %vm2848, %v2847, %v2844
  %s2850 = scalar_lea.vmem %s0, 139
  %s2851 = smov 48
  %v2852 = vld [vmem:[%s2850] ss:$16 sm:%s2851]
  %vm2853 = vcmask 1045508
  %v2854 = vsel %vm2853, %v2852, %v2849
  %s2855 = scalar_lea.vmem %s0, 139
  %s2856 = smov 192
  %v2857 = vld [vmem:[%s2855] ss:$16 sm:%s2856]
  %vm2858 = vcmask 1047558
  %v2859 = vsel %vm2858, %v2857, %v2854
  %2860 = vrot.lane.b32.xlu0 %v2859, 44
  %v2861 = vpop.permute.xlu0 %2860
  %vm2862 = vcmask 392544
  %s2863 = scalar_lea.vmem %s1, 8
  %2864 = vst.msk [vmem:[%s2863] sm:$0xff] %vm2862, %v2861
  %s2865 = scalar_lea.vmem %s0, 651
  %s2866 = smov 3
  %v2867 = vld [vmem:[%s2865] ss:$16 sm:%s2866]
  %s2868 = scalar_lea.vmem %s0, 651
  %s2869 = smov 12
  %v2870 = vld [vmem:[%s2868] ss:$16 sm:%s2869]
  %vm2871 = vcmask 1043458
  %v2872 = vsel %vm2871, %v2870, %v2867
  %s2873 = scalar_lea.vmem %s0, 651
  %s2874 = smov 48
  %v2875 = vld [vmem:[%s2873] ss:$16 sm:%s2874]
  %vm2876 = vcmask 1045508
  %v2877 = vsel %vm2876, %v2875, %v2872
  %s2878 = scalar_lea.vmem %s0, 651
  %s2879 = smov 192
  %v2880 = vld [vmem:[%s2878] ss:$16 sm:%s2879]
  %vm2881 = vcmask 1047558
  %v2882 = vsel %vm2881, %v2880, %v2877
  %2883 = vrot.lane.b32.xlu0 %v2882, 44
  %v2884 = vpop.permute.xlu0 %2883
  %vm2885 = vcmask 392544
  %s2886 = scalar_lea.vmem %s1, 40
  %2887 = vst.msk [vmem:[%s2886] sm:$0xff] %vm2885, %v2884
  %s2888 = scalar_lea.vmem %s0, 1163
  %s2889 = smov 3
  %v2890 = vld [vmem:[%s2888] ss:$16 sm:%s2889]
  %s2891 = scalar_lea.vmem %s0, 1163
  %s2892 = smov 12
  %v2893 = vld [vmem:[%s2891] ss:$16 sm:%s2892]
  %vm2894 = vcmask 1043458
  %v2895 = vsel %vm2894, %v2893, %v2890
  %s2896 = scalar_lea.vmem %s0, 1163
  %s2897 = smov 48
  %v2898 = vld [vmem:[%s2896] ss:$16 sm:%s2897]
  %vm2899 = vcmask 1045508
  %v2900 = vsel %vm2899, %v2898, %v2895
  %s2901 = scalar_lea.vmem %s0, 1163
  %s2902 = smov 192
  %v2903 = vld [vmem:[%s2901] ss:$16 sm:%s2902]
  %vm2904 = vcmask 1047558
  %v2905 = vsel %vm2904, %v2903, %v2900
  %2906 = vrot.lane.b32.xlu0 %v2905, 44
  %v2907 = vpop.permute.xlu0 %2906
  %vm2908 = vcmask 392544
  %s2909 = scalar_lea.vmem %s1, 72
  %2910 = vst.msk [vmem:[%s2909] sm:$0xff] %vm2908, %v2907
  %s2911 = scalar_lea.vmem %s0, 1675
  %s2912 = smov 3
  %v2913 = vld [vmem:[%s2911] ss:$16 sm:%s2912]
  %s2914 = scalar_lea.vmem %s0, 1675
  %s2915 = smov 12
  %v2916 = vld [vmem:[%s2914] ss:$16 sm:%s2915]
  %vm2917 = vcmask 1043458
  %v2918 = vsel %vm2917, %v2916, %v2913
  %s2919 = scalar_lea.vmem %s0, 1675
  %s2920 = smov 48
  %v2921 = vld [vmem:[%s2919] ss:$16 sm:%s2920]
  %vm2922 = vcmask 1045508
  %v2923 = vsel %vm2922, %v2921, %v2918
  %s2924 = scalar_lea.vmem %s0, 1675
  %s2925 = smov 192
  %v2926 = vld [vmem:[%s2924] ss:$16 sm:%s2925]
  %vm2927 = vcmask 1047558
  %v2928 = vsel %vm2927, %v2926, %v2923
  %2929 = vrot.lane.b32.xlu0 %v2928, 44
  %v2930 = vpop.permute.xlu0 %2929
  %vm2931 = vcmask 392544
  %s2932 = scalar_lea.vmem %s1, 104
  %2933 = vst.msk [vmem:[%s2932] sm:$0xff] %vm2931, %v2930
  %s2934 = scalar_lea.vmem %s0, 2187
  %s2935 = smov 3
  %v2936 = vld [vmem:[%s2934] ss:$16 sm:%s2935]
  %s2937 = scalar_lea.vmem %s0, 2187
  %s2938 = smov 12
  %v2939 = vld [vmem:[%s2937] ss:$16 sm:%s2938]
  %vm2940 = vcmask 1043458
  %v2941 = vsel %vm2940, %v2939, %v2936
  %s2942 = scalar_lea.vmem %s0, 2187
  %s2943 = smov 48
  %v2944 = vld [vmem:[%s2942] ss:$16 sm:%s2943]
  %vm2945 = vcmask 1045508
  %v2946 = vsel %vm2945, %v2944, %v2941
  %s2947 = scalar_lea.vmem %s0, 2187
  %s2948 = smov 192
  %v2949 = vld [vmem:[%s2947] ss:$16 sm:%s2948]
  %vm2950 = vcmask 1047558
  %v2951 = vsel %vm2950, %v2949, %v2946
  %2952 = vrot.lane.b32.xlu0 %v2951, 44
  %v2953 = vpop.permute.xlu0 %2952
  %vm2954 = vcmask 392544
  %s2955 = scalar_lea.vmem %s1, 136
  %2956 = vst.msk [vmem:[%s2955] sm:$0xff] %vm2954, %v2953
  %s2957 = scalar_lea.vmem %s0, 2699
  %s2958 = smov 3
  %v2959 = vld [vmem:[%s2957] ss:$16 sm:%s2958]
  %s2960 = scalar_lea.vmem %s0, 2699
  %s2961 = smov 12
  %v2962 = vld [vmem:[%s2960] ss:$16 sm:%s2961]
  %vm2963 = vcmask 1043458
  %v2964 = vsel %vm2963, %v2962, %v2959
  %s2965 = scalar_lea.vmem %s0, 2699
  %s2966 = smov 48
  %v2967 = vld [vmem:[%s2965] ss:$16 sm:%s2966]
  %vm2968 = vcmask 1045508
  %v2969 = vsel %vm2968, %v2967, %v2964
  %s2970 = scalar_lea.vmem %s0, 2699
  %s2971 = smov 192
  %v2972 = vld [vmem:[%s2970] ss:$16 sm:%s2971]
  %vm2973 = vcmask 1047558
  %v2974 = vsel %vm2973, %v2972, %v2969
  %2975 = vrot.lane.b32.xlu0 %v2974, 44
  %v2976 = vpop.permute.xlu0 %2975
  %vm2977 = vcmask 392544
  %s2978 = scalar_lea.vmem %s1, 168
  %2979 = vst.msk [vmem:[%s2978] sm:$0xff] %vm2977, %v2976
  %s2980 = scalar_lea.vmem %s0, 267
  %s2981 = smov 3
  %v2982 = vld [vmem:[%s2980] ss:$16 sm:%s2981]
  %s2983 = scalar_lea.vmem %s0, 267
  %s2984 = smov 12
  %v2985 = vld [vmem:[%s2983] ss:$16 sm:%s2984]
  %vm2986 = vcmask 1043458
  %v2987 = vsel %vm2986, %v2985, %v2982
  %s2988 = scalar_lea.vmem %s0, 267
  %s2989 = smov 48
  %v2990 = vld [vmem:[%s2988] ss:$16 sm:%s2989]
  %vm2991 = vcmask 1045508
  %v2992 = vsel %vm2991, %v2990, %v2987
  %s2993 = scalar_lea.vmem %s0, 267
  %s2994 = smov 192
  %v2995 = vld [vmem:[%s2993] ss:$16 sm:%s2994]
  %vm2996 = vcmask 1047558
  %v2997 = vsel %vm2996, %v2995, %v2992
  %2998 = vrot.lane.b32.xlu0 %v2997, 44
  %v2999 = vpop.permute.xlu0 %2998
  %vm3000 = vcmask 392544
  %s3001 = scalar_lea.vmem %s1, 16
  %3002 = vst.msk [vmem:[%s3001] sm:$0xff] %vm3000, %v2999
  %s3003 = scalar_lea.vmem %s0, 779
  %s3004 = smov 3
  %v3005 = vld [vmem:[%s3003] ss:$16 sm:%s3004]
  %s3006 = scalar_lea.vmem %s0, 779
  %s3007 = smov 12
  %v3008 = vld [vmem:[%s3006] ss:$16 sm:%s3007]
  %vm3009 = vcmask 1043458
  %v3010 = vsel %vm3009, %v3008, %v3005
  %s3011 = scalar_lea.vmem %s0, 779
  %s3012 = smov 48
  %v3013 = vld [vmem:[%s3011] ss:$16 sm:%s3012]
  %vm3014 = vcmask 1045508
  %v3015 = vsel %vm3014, %v3013, %v3010
  %s3016 = scalar_lea.vmem %s0, 779
  %s3017 = smov 192
  %v3018 = vld [vmem:[%s3016] ss:$16 sm:%s3017]
  %vm3019 = vcmask 1047558
  %v3020 = vsel %vm3019, %v3018, %v3015
  %3021 = vrot.lane.b32.xlu0 %v3020, 44
  %v3022 = vpop.permute.xlu0 %3021
  %vm3023 = vcmask 392544
  %s3024 = scalar_lea.vmem %s1, 48
  %3025 = vst.msk [vmem:[%s3024] sm:$0xff] %vm3023, %v3022
  %s3026 = scalar_lea.vmem %s0, 1291
  %s3027 = smov 3
  %v3028 = vld [vmem:[%s3026] ss:$16 sm:%s3027]
  %s3029 = scalar_lea.vmem %s0, 1291
  %s3030 = smov 12
  %v3031 = vld [vmem:[%s3029] ss:$16 sm:%s3030]
  %vm3032 = vcmask 1043458
  %v3033 = vsel %vm3032, %v3031, %v3028
  %s3034 = scalar_lea.vmem %s0, 1291
  %s3035 = smov 48
  %v3036 = vld [vmem:[%s3034] ss:$16 sm:%s3035]
  %vm3037 = vcmask 1045508
  %v3038 = vsel %vm3037, %v3036, %v3033
  %s3039 = scalar_lea.vmem %s0, 1291
  %s3040 = smov 192
  %v3041 = vld [vmem:[%s3039] ss:$16 sm:%s3040]
  %vm3042 = vcmask 1047558
  %v3043 = vsel %vm3042, %v3041, %v3038
  %3044 = vrot.lane.b32.xlu0 %v3043, 44
  %v3045 = vpop.permute.xlu0 %3044
  %vm3046 = vcmask 392544
  %s3047 = scalar_lea.vmem %s1, 80
  %3048 = vst.msk [vmem:[%s3047] sm:$0xff] %vm3046, %v3045
  %s3049 = scalar_lea.vmem %s0, 1803
  %s3050 = smov 3
  %v3051 = vld [vmem:[%s3049] ss:$16 sm:%s3050]
  %s3052 = scalar_lea.vmem %s0, 1803
  %s3053 = smov 12
  %v3054 = vld [vmem:[%s3052] ss:$16 sm:%s3053]
  %vm3055 = vcmask 1043458
  %v3056 = vsel %vm3055, %v3054, %v3051
  %s3057 = scalar_lea.vmem %s0, 1803
  %s3058 = smov 48
  %v3059 = vld [vmem:[%s3057] ss:$16 sm:%s3058]
  %vm3060 = vcmask 1045508
  %v3061 = vsel %vm3060, %v3059, %v3056
  %s3062 = scalar_lea.vmem %s0, 1803
  %s3063 = smov 192
  %v3064 = vld [vmem:[%s3062] ss:$16 sm:%s3063]
  %vm3065 = vcmask 1047558
  %v3066 = vsel %vm3065, %v3064, %v3061
  %3067 = vrot.lane.b32.xlu0 %v3066, 44
  %v3068 = vpop.permute.xlu0 %3067
  %vm3069 = vcmask 392544
  %s3070 = scalar_lea.vmem %s1, 112
  %3071 = vst.msk [vmem:[%s3070] sm:$0xff] %vm3069, %v3068
  %s3072 = scalar_lea.vmem %s0, 2315
  %s3073 = smov 3
  %v3074 = vld [vmem:[%s3072] ss:$16 sm:%s3073]
  %s3075 = scalar_lea.vmem %s0, 2315
  %s3076 = smov 12
  %v3077 = vld [vmem:[%s3075] ss:$16 sm:%s3076]
  %vm3078 = vcmask 1043458
  %v3079 = vsel %vm3078, %v3077, %v3074
  %s3080 = scalar_lea.vmem %s0, 2315
  %s3081 = smov 48
  %v3082 = vld [vmem:[%s3080] ss:$16 sm:%s3081]
  %vm3083 = vcmask 1045508
  %v3084 = vsel %vm3083, %v3082, %v3079
  %s3085 = scalar_lea.vmem %s0, 2315
  %s3086 = smov 192
  %v3087 = vld [vmem:[%s3085] ss:$16 sm:%s3086]
  %vm3088 = vcmask 1047558
  %v3089 = vsel %vm3088, %v3087, %v3084
  %3090 = vrot.lane.b32.xlu0 %v3089, 44
  %v3091 = vpop.permute.xlu0 %3090
  %vm3092 = vcmask 392544
  %s3093 = scalar_lea.vmem %s1, 144
  %3094 = vst.msk [vmem:[%s3093] sm:$0xff] %vm3092, %v3091
  %s3095 = scalar_lea.vmem %s0, 2827
  %s3096 = smov 3
  %v3097 = vld [vmem:[%s3095] ss:$16 sm:%s3096]
  %s3098 = scalar_lea.vmem %s0, 2827
  %s3099 = smov 12
  %v3100 = vld [vmem:[%s3098] ss:$16 sm:%s3099]
  %vm3101 = vcmask 1043458
  %v3102 = vsel %vm3101, %v3100, %v3097
  %s3103 = scalar_lea.vmem %s0, 2827
  %s3104 = smov 48
  %v3105 = vld [vmem:[%s3103] ss:$16 sm:%s3104]
  %vm3106 = vcmask 1045508
  %v3107 = vsel %vm3106, %v3105, %v3102
  %s3108 = scalar_lea.vmem %s0, 2827
  %s3109 = smov 192
  %v3110 = vld [vmem:[%s3108] ss:$16 sm:%s3109]
  %vm3111 = vcmask 1047558
  %v3112 = vsel %vm3111, %v3110, %v3107
  %3113 = vrot.lane.b32.xlu0 %v3112, 44
  %v3114 = vpop.permute.xlu0 %3113
  %vm3115 = vcmask 392544
  %s3116 = scalar_lea.vmem %s1, 176
  %3117 = vst.msk [vmem:[%s3116] sm:$0xff] %vm3115, %v3114
  %s3118 = scalar_lea.vmem %s0, 395
  %s3119 = smov 3
  %v3120 = vld [vmem:[%s3118] ss:$16 sm:%s3119]
  %s3121 = scalar_lea.vmem %s0, 395
  %s3122 = smov 12
  %v3123 = vld [vmem:[%s3121] ss:$16 sm:%s3122]
  %vm3124 = vcmask 1043458
  %v3125 = vsel %vm3124, %v3123, %v3120
  %s3126 = scalar_lea.vmem %s0, 395
  %s3127 = smov 48
  %v3128 = vld [vmem:[%s3126] ss:$16 sm:%s3127]
  %vm3129 = vcmask 1045508
  %v3130 = vsel %vm3129, %v3128, %v3125
  %s3131 = scalar_lea.vmem %s0, 395
  %s3132 = smov 192
  %v3133 = vld [vmem:[%s3131] ss:$16 sm:%s3132]
  %vm3134 = vcmask 1047558
  %v3135 = vsel %vm3134, %v3133, %v3130
  %3136 = vrot.lane.b32.xlu0 %v3135, 44
  %v3137 = vpop.permute.xlu0 %3136
  %vm3138 = vcmask 392544
  %s3139 = scalar_lea.vmem %s1, 24
  %3140 = vst.msk [vmem:[%s3139] sm:$0xff] %vm3138, %v3137
  %s3141 = scalar_lea.vmem %s0, 907
  %s3142 = smov 3
  %v3143 = vld [vmem:[%s3141] ss:$16 sm:%s3142]
  %s3144 = scalar_lea.vmem %s0, 907
  %s3145 = smov 12
  %v3146 = vld [vmem:[%s3144] ss:$16 sm:%s3145]
  %vm3147 = vcmask 1043458
  %v3148 = vsel %vm3147, %v3146, %v3143
  %s3149 = scalar_lea.vmem %s0, 907
  %s3150 = smov 48
  %v3151 = vld [vmem:[%s3149] ss:$16 sm:%s3150]
  %vm3152 = vcmask 1045508
  %v3153 = vsel %vm3152, %v3151, %v3148
  %s3154 = scalar_lea.vmem %s0, 907
  %s3155 = smov 192
  %v3156 = vld [vmem:[%s3154] ss:$16 sm:%s3155]
  %vm3157 = vcmask 1047558
  %v3158 = vsel %vm3157, %v3156, %v3153
  %3159 = vrot.lane.b32.xlu0 %v3158, 44
  %v3160 = vpop.permute.xlu0 %3159
  %vm3161 = vcmask 392544
  %s3162 = scalar_lea.vmem %s1, 56
  %3163 = vst.msk [vmem:[%s3162] sm:$0xff] %vm3161, %v3160
  %s3164 = scalar_lea.vmem %s0, 1419
  %s3165 = smov 3
  %v3166 = vld [vmem:[%s3164] ss:$16 sm:%s3165]
  %s3167 = scalar_lea.vmem %s0, 1419
  %s3168 = smov 12
  %v3169 = vld [vmem:[%s3167] ss:$16 sm:%s3168]
  %vm3170 = vcmask 1043458
  %v3171 = vsel %vm3170, %v3169, %v3166
  %s3172 = scalar_lea.vmem %s0, 1419
  %s3173 = smov 48
  %v3174 = vld [vmem:[%s3172] ss:$16 sm:%s3173]
  %vm3175 = vcmask 1045508
  %v3176 = vsel %vm3175, %v3174, %v3171
  %s3177 = scalar_lea.vmem %s0, 1419
  %s3178 = smov 192
  %v3179 = vld [vmem:[%s3177] ss:$16 sm:%s3178]
  %vm3180 = vcmask 1047558
  %v3181 = vsel %vm3180, %v3179, %v3176
  %3182 = vrot.lane.b32.xlu0 %v3181, 44
  %v3183 = vpop.permute.xlu0 %3182
  %vm3184 = vcmask 392544
  %s3185 = scalar_lea.vmem %s1, 88
  %3186 = vst.msk [vmem:[%s3185] sm:$0xff] %vm3184, %v3183
  %s3187 = scalar_lea.vmem %s0, 1931
  %s3188 = smov 3
  %v3189 = vld [vmem:[%s3187] ss:$16 sm:%s3188]
  %s3190 = scalar_lea.vmem %s0, 1931
  %s3191 = smov 12
  %v3192 = vld [vmem:[%s3190] ss:$16 sm:%s3191]
  %vm3193 = vcmask 1043458
  %v3194 = vsel %vm3193, %v3192, %v3189
  %s3195 = scalar_lea.vmem %s0, 1931
  %s3196 = smov 48
  %v3197 = vld [vmem:[%s3195] ss:$16 sm:%s3196]
  %vm3198 = vcmask 1045508
  %v3199 = vsel %vm3198, %v3197, %v3194
  %s3200 = scalar_lea.vmem %s0, 1931
  %s3201 = smov 192
  %v3202 = vld [vmem:[%s3200] ss:$16 sm:%s3201]
  %vm3203 = vcmask 1047558
  %v3204 = vsel %vm3203, %v3202, %v3199
  %3205 = vrot.lane.b32.xlu0 %v3204, 44
  %v3206 = vpop.permute.xlu0 %3205
  %vm3207 = vcmask 392544
  %s3208 = scalar_lea.vmem %s1, 120
  %3209 = vst.msk [vmem:[%s3208] sm:$0xff] %vm3207, %v3206
  %s3210 = scalar_lea.vmem %s0, 2443
  %s3211 = smov 3
  %v3212 = vld [vmem:[%s3210] ss:$16 sm:%s3211]
  %s3213 = scalar_lea.vmem %s0, 2443
  %s3214 = smov 12
  %v3215 = vld [vmem:[%s3213] ss:$16 sm:%s3214]
  %vm3216 = vcmask 1043458
  %v3217 = vsel %vm3216, %v3215, %v3212
  %s3218 = scalar_lea.vmem %s0, 2443
  %s3219 = smov 48
  %v3220 = vld [vmem:[%s3218] ss:$16 sm:%s3219]
  %vm3221 = vcmask 1045508
  %v3222 = vsel %vm3221, %v3220, %v3217
  %s3223 = scalar_lea.vmem %s0, 2443
  %s3224 = smov 192
  %v3225 = vld [vmem:[%s3223] ss:$16 sm:%s3224]
  %vm3226 = vcmask 1047558
  %v3227 = vsel %vm3226, %v3225, %v3222
  %3228 = vrot.lane.b32.xlu0 %v3227, 44
  %v3229 = vpop.permute.xlu0 %3228
  %vm3230 = vcmask 392544
  %s3231 = scalar_lea.vmem %s1, 152
  %3232 = vst.msk [vmem:[%s3231] sm:$0xff] %vm3230, %v3229
  %s3233 = scalar_lea.vmem %s0, 2955
  %s3234 = smov 3
  %v3235 = vld [vmem:[%s3233] ss:$16 sm:%s3234]
  %s3236 = scalar_lea.vmem %s0, 2955
  %s3237 = smov 12
  %v3238 = vld [vmem:[%s3236] ss:$16 sm:%s3237]
  %vm3239 = vcmask 1043458
  %v3240 = vsel %vm3239, %v3238, %v3235
  %s3241 = scalar_lea.vmem %s0, 2955
  %s3242 = smov 48
  %v3243 = vld [vmem:[%s3241] ss:$16 sm:%s3242]
  %vm3244 = vcmask 1045508
  %v3245 = vsel %vm3244, %v3243, %v3240
  %s3246 = scalar_lea.vmem %s0, 2955
  %s3247 = smov 192
  %v3248 = vld [vmem:[%s3246] ss:$16 sm:%s3247]
  %vm3249 = vcmask 1047558
  %v3250 = vsel %vm3249, %v3248, %v3245
  %3251 = vrot.lane.b32.xlu0 %v3250, 44
  %v3252 = vpop.permute.xlu0 %3251
  %vm3253 = vcmask 392544
  %s3254 = scalar_lea.vmem %s1, 184
  %3255 = vst.msk [vmem:[%s3254] sm:$0xff] %vm3253, %v3252
  %s3256 = scalar_lea.vmem %s0, 10
  %s3257 = smov 3
  %v3258 = vld [vmem:[%s3256] ss:$16 sm:%s3257]
  %s3259 = scalar_lea.vmem %s0, 10
  %s3260 = smov 12
  %v3261 = vld [vmem:[%s3259] ss:$16 sm:%s3260]
  %vm3262 = vcmask 1043458
  %v3263 = vsel %vm3262, %v3261, %v3258
  %s3264 = scalar_lea.vmem %s0, 10
  %s3265 = smov 48
  %v3266 = vld [vmem:[%s3264] ss:$16 sm:%s3265]
  %vm3267 = vcmask 1045508
  %v3268 = vsel %vm3267, %v3266, %v3263
  %s3269 = scalar_lea.vmem %s0, 10
  %s3270 = smov 192
  %v3271 = vld [vmem:[%s3269] ss:$16 sm:%s3270]
  %vm3272 = vcmask 1047558
  %v3273 = vsel %vm3272, %v3271, %v3268
  %3274 = vrot.lane.b32.xlu0 %v3273, 40
  %v3275 = vpop.permute.xlu0 %3274
  %vm3276 = vcmask 359744
  %3277 = vst.msk [vmem:[%s1] sm:$0xff] %vm3276, %v3275
  %s3278 = scalar_lea.vmem %s0, 522
  %s3279 = smov 3
  %v3280 = vld [vmem:[%s3278] ss:$16 sm:%s3279]
  %s3281 = scalar_lea.vmem %s0, 522
  %s3282 = smov 12
  %v3283 = vld [vmem:[%s3281] ss:$16 sm:%s3282]
  %vm3284 = vcmask 1043458
  %v3285 = vsel %vm3284, %v3283, %v3280
  %s3286 = scalar_lea.vmem %s0, 522
  %s3287 = smov 48
  %v3288 = vld [vmem:[%s3286] ss:$16 sm:%s3287]
  %vm3289 = vcmask 1045508
  %v3290 = vsel %vm3289, %v3288, %v3285
  %s3291 = scalar_lea.vmem %s0, 522
  %s3292 = smov 192
  %v3293 = vld [vmem:[%s3291] ss:$16 sm:%s3292]
  %vm3294 = vcmask 1047558
  %v3295 = vsel %vm3294, %v3293, %v3290
  %3296 = vrot.lane.b32.xlu0 %v3295, 40
  %v3297 = vpop.permute.xlu0 %3296
  %vm3298 = vcmask 359744
  %s3299 = scalar_lea.vmem %s1, 32
  %3300 = vst.msk [vmem:[%s3299] sm:$0xff] %vm3298, %v3297
  %s3301 = scalar_lea.vmem %s0, 1034
  %s3302 = smov 3
  %v3303 = vld [vmem:[%s3301] ss:$16 sm:%s3302]
  %s3304 = scalar_lea.vmem %s0, 1034
  %s3305 = smov 12
  %v3306 = vld [vmem:[%s3304] ss:$16 sm:%s3305]
  %vm3307 = vcmask 1043458
  %v3308 = vsel %vm3307, %v3306, %v3303
  %s3309 = scalar_lea.vmem %s0, 1034
  %s3310 = smov 48
  %v3311 = vld [vmem:[%s3309] ss:$16 sm:%s3310]
  %vm3312 = vcmask 1045508
  %v3313 = vsel %vm3312, %v3311, %v3308
  %s3314 = scalar_lea.vmem %s0, 1034
  %s3315 = smov 192
  %v3316 = vld [vmem:[%s3314] ss:$16 sm:%s3315]
  %vm3317 = vcmask 1047558
  %v3318 = vsel %vm3317, %v3316, %v3313
  %3319 = vrot.lane.b32.xlu0 %v3318, 40
  %v3320 = vpop.permute.xlu0 %3319
  %vm3321 = vcmask 359744
  %s3322 = scalar_lea.vmem %s1, 64
  %3323 = vst.msk [vmem:[%s3322] sm:$0xff] %vm3321, %v3320
  %s3324 = scalar_lea.vmem %s0, 1546
  %s3325 = smov 3
  %v3326 = vld [vmem:[%s3324] ss:$16 sm:%s3325]
  %s3327 = scalar_lea.vmem %s0, 1546
  %s3328 = smov 12
  %v3329 = vld [vmem:[%s3327] ss:$16 sm:%s3328]
  %vm3330 = vcmask 1043458
  %v3331 = vsel %vm3330, %v3329, %v3326
  %s3332 = scalar_lea.vmem %s0, 1546
  %s3333 = smov 48
  %v3334 = vld [vmem:[%s3332] ss:$16 sm:%s3333]
  %vm3335 = vcmask 1045508
  %v3336 = vsel %vm3335, %v3334, %v3331
  %s3337 = scalar_lea.vmem %s0, 1546
  %s3338 = smov 192
  %v3339 = vld [vmem:[%s3337] ss:$16 sm:%s3338]
  %vm3340 = vcmask 1047558
  %v3341 = vsel %vm3340, %v3339, %v3336
  %3342 = vrot.lane.b32.xlu0 %v3341, 40
  %v3343 = vpop.permute.xlu0 %3342
  %vm3344 = vcmask 359744
  %s3345 = scalar_lea.vmem %s1, 96
  %3346 = vst.msk [vmem:[%s3345] sm:$0xff] %vm3344, %v3343
  %s3347 = scalar_lea.vmem %s0, 2058
  %s3348 = smov 3
  %v3349 = vld [vmem:[%s3347] ss:$16 sm:%s3348]
  %s3350 = scalar_lea.vmem %s0, 2058
  %s3351 = smov 12
  %v3352 = vld [vmem:[%s3350] ss:$16 sm:%s3351]
  %vm3353 = vcmask 1043458
  %v3354 = vsel %vm3353, %v3352, %v3349
  %s3355 = scalar_lea.vmem %s0, 2058
  %s3356 = smov 48
  %v3357 = vld [vmem:[%s3355] ss:$16 sm:%s3356]
  %vm3358 = vcmask 1045508
  %v3359 = vsel %vm3358, %v3357, %v3354
  %s3360 = scalar_lea.vmem %s0, 2058
  %s3361 = smov 192
  %v3362 = vld [vmem:[%s3360] ss:$16 sm:%s3361]
  %vm3363 = vcmask 1047558
  %v3364 = vsel %vm3363, %v3362, %v3359
  %3365 = vrot.lane.b32.xlu0 %v3364, 40
  %v3366 = vpop.permute.xlu0 %3365
  %vm3367 = vcmask 359744
  %s3368 = scalar_lea.vmem %s1, 128
  %3369 = vst.msk [vmem:[%s3368] sm:$0xff] %vm3367, %v3366
  %s3370 = scalar_lea.vmem %s0, 2570
  %s3371 = smov 3
  %v3372 = vld [vmem:[%s3370] ss:$16 sm:%s3371]
  %s3373 = scalar_lea.vmem %s0, 2570
  %s3374 = smov 12
  %v3375 = vld [vmem:[%s3373] ss:$16 sm:%s3374]
  %vm3376 = vcmask 1043458
  %v3377 = vsel %vm3376, %v3375, %v3372
  %s3378 = scalar_lea.vmem %s0, 2570
  %s3379 = smov 48
  %v3380 = vld [vmem:[%s3378] ss:$16 sm:%s3379]
  %vm3381 = vcmask 1045508
  %v3382 = vsel %vm3381, %v3380, %v3377
  %s3383 = scalar_lea.vmem %s0, 2570
  %s3384 = smov 192
  %v3385 = vld [vmem:[%s3383] ss:$16 sm:%s3384]
  %vm3386 = vcmask 1047558
  %v3387 = vsel %vm3386, %v3385, %v3382
  %3388 = vrot.lane.b32.xlu0 %v3387, 40
  %v3389 = vpop.permute.xlu0 %3388
  %vm3390 = vcmask 359744
  %s3391 = scalar_lea.vmem %s1, 160
  %3392 = vst.msk [vmem:[%s3391] sm:$0xff] %vm3390, %v3389
  %s3393 = scalar_lea.vmem %s0, 138
  %s3394 = smov 3
  %v3395 = vld [vmem:[%s3393] ss:$16 sm:%s3394]
  %s3396 = scalar_lea.vmem %s0, 138
  %s3397 = smov 12
  %v3398 = vld [vmem:[%s3396] ss:$16 sm:%s3397]
  %vm3399 = vcmask 1043458
  %v3400 = vsel %vm3399, %v3398, %v3395
  %s3401 = scalar_lea.vmem %s0, 138
  %s3402 = smov 48
  %v3403 = vld [vmem:[%s3401] ss:$16 sm:%s3402]
  %vm3404 = vcmask 1045508
  %v3405 = vsel %vm3404, %v3403, %v3400
  %s3406 = scalar_lea.vmem %s0, 138
  %s3407 = smov 192
  %v3408 = vld [vmem:[%s3406] ss:$16 sm:%s3407]
  %vm3409 = vcmask 1047558
  %v3410 = vsel %vm3409, %v3408, %v3405
  %3411 = vrot.lane.b32.xlu0 %v3410, 40
  %v3412 = vpop.permute.xlu0 %3411
  %vm3413 = vcmask 359744
  %s3414 = scalar_lea.vmem %s1, 8
  %3415 = vst.msk [vmem:[%s3414] sm:$0xff] %vm3413, %v3412
  %s3416 = scalar_lea.vmem %s0, 650
  %s3417 = smov 3
  %v3418 = vld [vmem:[%s3416] ss:$16 sm:%s3417]
  %s3419 = scalar_lea.vmem %s0, 650
  %s3420 = smov 12
  %v3421 = vld [vmem:[%s3419] ss:$16 sm:%s3420]
  %vm3422 = vcmask 1043458
  %v3423 = vsel %vm3422, %v3421, %v3418
  %s3424 = scalar_lea.vmem %s0, 650
  %s3425 = smov 48
  %v3426 = vld [vmem:[%s3424] ss:$16 sm:%s3425]
  %vm3427 = vcmask 1045508
  %v3428 = vsel %vm3427, %v3426, %v3423
  %s3429 = scalar_lea.vmem %s0, 650
  %s3430 = smov 192
  %v3431 = vld [vmem:[%s3429] ss:$16 sm:%s3430]
  %vm3432 = vcmask 1047558
  %v3433 = vsel %vm3432, %v3431, %v3428
  %3434 = vrot.lane.b32.xlu0 %v3433, 40
  %v3435 = vpop.permute.xlu0 %3434
  %vm3436 = vcmask 359744
  %s3437 = scalar_lea.vmem %s1, 40
  %3438 = vst.msk [vmem:[%s3437] sm:$0xff] %vm3436, %v3435
  %s3439 = scalar_lea.vmem %s0, 1162
  %s3440 = smov 3
  %v3441 = vld [vmem:[%s3439] ss:$16 sm:%s3440]
  %s3442 = scalar_lea.vmem %s0, 1162
  %s3443 = smov 12
  %v3444 = vld [vmem:[%s3442] ss:$16 sm:%s3443]
  %vm3445 = vcmask 1043458
  %v3446 = vsel %vm3445, %v3444, %v3441
  %s3447 = scalar_lea.vmem %s0, 1162
  %s3448 = smov 48
  %v3449 = vld [vmem:[%s3447] ss:$16 sm:%s3448]
  %vm3450 = vcmask 1045508
  %v3451 = vsel %vm3450, %v3449, %v3446
  %s3452 = scalar_lea.vmem %s0, 1162
  %s3453 = smov 192
  %v3454 = vld [vmem:[%s3452] ss:$16 sm:%s3453]
  %vm3455 = vcmask 1047558
  %v3456 = vsel %vm3455, %v3454, %v3451
  %3457 = vrot.lane.b32.xlu0 %v3456, 40
  %v3458 = vpop.permute.xlu0 %3457
  %vm3459 = vcmask 359744
  %s3460 = scalar_lea.vmem %s1, 72
  %3461 = vst.msk [vmem:[%s3460] sm:$0xff] %vm3459, %v3458
  %s3462 = scalar_lea.vmem %s0, 1674
  %s3463 = smov 3
  %v3464 = vld [vmem:[%s3462] ss:$16 sm:%s3463]
  %s3465 = scalar_lea.vmem %s0, 1674
  %s3466 = smov 12
  %v3467 = vld [vmem:[%s3465] ss:$16 sm:%s3466]
  %vm3468 = vcmask 1043458
  %v3469 = vsel %vm3468, %v3467, %v3464
  %s3470 = scalar_lea.vmem %s0, 1674
  %s3471 = smov 48
  %v3472 = vld [vmem:[%s3470] ss:$16 sm:%s3471]
  %vm3473 = vcmask 1045508
  %v3474 = vsel %vm3473, %v3472, %v3469
  %s3475 = scalar_lea.vmem %s0, 1674
  %s3476 = smov 192
  %v3477 = vld [vmem:[%s3475] ss:$16 sm:%s3476]
  %vm3478 = vcmask 1047558
  %v3479 = vsel %vm3478, %v3477, %v3474
  %3480 = vrot.lane.b32.xlu0 %v3479, 40
  %v3481 = vpop.permute.xlu0 %3480
  %vm3482 = vcmask 359744
  %s3483 = scalar_lea.vmem %s1, 104
  %3484 = vst.msk [vmem:[%s3483] sm:$0xff] %vm3482, %v3481
  %s3485 = scalar_lea.vmem %s0, 2186
  %s3486 = smov 3
  %v3487 = vld [vmem:[%s3485] ss:$16 sm:%s3486]
  %s3488 = scalar_lea.vmem %s0, 2186
  %s3489 = smov 12
  %v3490 = vld [vmem:[%s3488] ss:$16 sm:%s3489]
  %vm3491 = vcmask 1043458
  %v3492 = vsel %vm3491, %v3490, %v3487
  %s3493 = scalar_lea.vmem %s0, 2186
  %s3494 = smov 48
  %v3495 = vld [vmem:[%s3493] ss:$16 sm:%s3494]
  %vm3496 = vcmask 1045508
  %v3497 = vsel %vm3496, %v3495, %v3492
  %s3498 = scalar_lea.vmem %s0, 2186
  %s3499 = smov 192
  %v3500 = vld [vmem:[%s3498] ss:$16 sm:%s3499]
  %vm3501 = vcmask 1047558
  %v3502 = vsel %vm3501, %v3500, %v3497
  %3503 = vrot.lane.b32.xlu0 %v3502, 40
  %v3504 = vpop.permute.xlu0 %3503
  %vm3505 = vcmask 359744
  %s3506 = scalar_lea.vmem %s1, 136
  %3507 = vst.msk [vmem:[%s3506] sm:$0xff] %vm3505, %v3504
  %s3508 = scalar_lea.vmem %s0, 2698
  %s3509 = smov 3
  %v3510 = vld [vmem:[%s3508] ss:$16 sm:%s3509]
  %s3511 = scalar_lea.vmem %s0, 2698
  %s3512 = smov 12
  %v3513 = vld [vmem:[%s3511] ss:$16 sm:%s3512]
  %vm3514 = vcmask 1043458
  %v3515 = vsel %vm3514, %v3513, %v3510
  %s3516 = scalar_lea.vmem %s0, 2698
  %s3517 = smov 48
  %v3518 = vld [vmem:[%s3516] ss:$16 sm:%s3517]
  %vm3519 = vcmask 1045508
  %v3520 = vsel %vm3519, %v3518, %v3515
  %s3521 = scalar_lea.vmem %s0, 2698
  %s3522 = smov 192
  %v3523 = vld [vmem:[%s3521] ss:$16 sm:%s3522]
  %vm3524 = vcmask 1047558
  %v3525 = vsel %vm3524, %v3523, %v3520
  %3526 = vrot.lane.b32.xlu0 %v3525, 40
  %v3527 = vpop.permute.xlu0 %3526
  %vm3528 = vcmask 359744
  %s3529 = scalar_lea.vmem %s1, 168
  %3530 = vst.msk [vmem:[%s3529] sm:$0xff] %vm3528, %v3527
  %s3531 = scalar_lea.vmem %s0, 266
  %s3532 = smov 3
  %v3533 = vld [vmem:[%s3531] ss:$16 sm:%s3532]
  %s3534 = scalar_lea.vmem %s0, 266
  %s3535 = smov 12
  %v3536 = vld [vmem:[%s3534] ss:$16 sm:%s3535]
  %vm3537 = vcmask 1043458
  %v3538 = vsel %vm3537, %v3536, %v3533
  %s3539 = scalar_lea.vmem %s0, 266
  %s3540 = smov 48
  %v3541 = vld [vmem:[%s3539] ss:$16 sm:%s3540]
  %vm3542 = vcmask 1045508
  %v3543 = vsel %vm3542, %v3541, %v3538
  %s3544 = scalar_lea.vmem %s0, 266
  %s3545 = smov 192
  %v3546 = vld [vmem:[%s3544] ss:$16 sm:%s3545]
  %vm3547 = vcmask 1047558
  %v3548 = vsel %vm3547, %v3546, %v3543
  %3549 = vrot.lane.b32.xlu0 %v3548, 40
  %v3550 = vpop.permute.xlu0 %3549
  %vm3551 = vcmask 359744
  %s3552 = scalar_lea.vmem %s1, 16
  %3553 = vst.msk [vmem:[%s3552] sm:$0xff] %vm3551, %v3550
  %s3554 = scalar_lea.vmem %s0, 778
  %s3555 = smov 3
  %v3556 = vld [vmem:[%s3554] ss:$16 sm:%s3555]
  %s3557 = scalar_lea.vmem %s0, 778
  %s3558 = smov 12
  %v3559 = vld [vmem:[%s3557] ss:$16 sm:%s3558]
  %vm3560 = vcmask 1043458
  %v3561 = vsel %vm3560, %v3559, %v3556
  %s3562 = scalar_lea.vmem %s0, 778
  %s3563 = smov 48
  %v3564 = vld [vmem:[%s3562] ss:$16 sm:%s3563]
  %vm3565 = vcmask 1045508
  %v3566 = vsel %vm3565, %v3564, %v3561
  %s3567 = scalar_lea.vmem %s0, 778
  %s3568 = smov 192
  %v3569 = vld [vmem:[%s3567] ss:$16 sm:%s3568]
  %vm3570 = vcmask 1047558
  %v3571 = vsel %vm3570, %v3569, %v3566
  %3572 = vrot.lane.b32.xlu0 %v3571, 40
  %v3573 = vpop.permute.xlu0 %3572
  %vm3574 = vcmask 359744
  %s3575 = scalar_lea.vmem %s1, 48
  %3576 = vst.msk [vmem:[%s3575] sm:$0xff] %vm3574, %v3573
  %s3577 = scalar_lea.vmem %s0, 1290
  %s3578 = smov 3
  %v3579 = vld [vmem:[%s3577] ss:$16 sm:%s3578]
  %s3580 = scalar_lea.vmem %s0, 1290
  %s3581 = smov 12
  %v3582 = vld [vmem:[%s3580] ss:$16 sm:%s3581]
  %vm3583 = vcmask 1043458
  %v3584 = vsel %vm3583, %v3582, %v3579
  %s3585 = scalar_lea.vmem %s0, 1290
  %s3586 = smov 48
  %v3587 = vld [vmem:[%s3585] ss:$16 sm:%s3586]
  %vm3588 = vcmask 1045508
  %v3589 = vsel %vm3588, %v3587, %v3584
  %s3590 = scalar_lea.vmem %s0, 1290
  %s3591 = smov 192
  %v3592 = vld [vmem:[%s3590] ss:$16 sm:%s3591]
  %vm3593 = vcmask 1047558
  %v3594 = vsel %vm3593, %v3592, %v3589
  %3595 = vrot.lane.b32.xlu0 %v3594, 40
  %v3596 = vpop.permute.xlu0 %3595
  %vm3597 = vcmask 359744
  %s3598 = scalar_lea.vmem %s1, 80
  %3599 = vst.msk [vmem:[%s3598] sm:$0xff] %vm3597, %v3596
  %s3600 = scalar_lea.vmem %s0, 1802
  %s3601 = smov 3
  %v3602 = vld [vmem:[%s3600] ss:$16 sm:%s3601]
  %s3603 = scalar_lea.vmem %s0, 1802
  %s3604 = smov 12
  %v3605 = vld [vmem:[%s3603] ss:$16 sm:%s3604]
  %vm3606 = vcmask 1043458
  %v3607 = vsel %vm3606, %v3605, %v3602
  %s3608 = scalar_lea.vmem %s0, 1802
  %s3609 = smov 48
  %v3610 = vld [vmem:[%s3608] ss:$16 sm:%s3609]
  %vm3611 = vcmask 1045508
  %v3612 = vsel %vm3611, %v3610, %v3607
  %s3613 = scalar_lea.vmem %s0, 1802
  %s3614 = smov 192
  %v3615 = vld [vmem:[%s3613] ss:$16 sm:%s3614]
  %vm3616 = vcmask 1047558
  %v3617 = vsel %vm3616, %v3615, %v3612
  %3618 = vrot.lane.b32.xlu0 %v3617, 40
  %v3619 = vpop.permute.xlu0 %3618
  %vm3620 = vcmask 359744
  %s3621 = scalar_lea.vmem %s1, 112
  %3622 = vst.msk [vmem:[%s3621] sm:$0xff] %vm3620, %v3619
  %s3623 = scalar_lea.vmem %s0, 2314
  %s3624 = smov 3
  %v3625 = vld [vmem:[%s3623] ss:$16 sm:%s3624]
  %s3626 = scalar_lea.vmem %s0, 2314
  %s3627 = smov 12
  %v3628 = vld [vmem:[%s3626] ss:$16 sm:%s3627]
  %vm3629 = vcmask 1043458
  %v3630 = vsel %vm3629, %v3628, %v3625
  %s3631 = scalar_lea.vmem %s0, 2314
  %s3632 = smov 48
  %v3633 = vld [vmem:[%s3631] ss:$16 sm:%s3632]
  %vm3634 = vcmask 1045508
  %v3635 = vsel %vm3634, %v3633, %v3630
  %s3636 = scalar_lea.vmem %s0, 2314
  %s3637 = smov 192
  %v3638 = vld [vmem:[%s3636] ss:$16 sm:%s3637]
  %vm3639 = vcmask 1047558
  %v3640 = vsel %vm3639, %v3638, %v3635
  %3641 = vrot.lane.b32.xlu0 %v3640, 40
  %v3642 = vpop.permute.xlu0 %3641
  %vm3643 = vcmask 359744
  %s3644 = scalar_lea.vmem %s1, 144
  %3645 = vst.msk [vmem:[%s3644] sm:$0xff] %vm3643, %v3642
  %s3646 = scalar_lea.vmem %s0, 2826
  %s3647 = smov 3
  %v3648 = vld [vmem:[%s3646] ss:$16 sm:%s3647]
  %s3649 = scalar_lea.vmem %s0, 2826
  %s3650 = smov 12
  %v3651 = vld [vmem:[%s3649] ss:$16 sm:%s3650]
  %vm3652 = vcmask 1043458
  %v3653 = vsel %vm3652, %v3651, %v3648
  %s3654 = scalar_lea.vmem %s0, 2826
  %s3655 = smov 48
  %v3656 = vld [vmem:[%s3654] ss:$16 sm:%s3655]
  %vm3657 = vcmask 1045508
  %v3658 = vsel %vm3657, %v3656, %v3653
  %s3659 = scalar_lea.vmem %s0, 2826
  %s3660 = smov 192
  %v3661 = vld [vmem:[%s3659] ss:$16 sm:%s3660]
  %vm3662 = vcmask 1047558
  %v3663 = vsel %vm3662, %v3661, %v3658
  %3664 = vrot.lane.b32.xlu0 %v3663, 40
  %v3665 = vpop.permute.xlu0 %3664
  %vm3666 = vcmask 359744
  %s3667 = scalar_lea.vmem %s1, 176
  %3668 = vst.msk [vmem:[%s3667] sm:$0xff] %vm3666, %v3665
  %s3669 = scalar_lea.vmem %s0, 394
  %s3670 = smov 3
  %v3671 = vld [vmem:[%s3669] ss:$16 sm:%s3670]
  %s3672 = scalar_lea.vmem %s0, 394
  %s3673 = smov 12
  %v3674 = vld [vmem:[%s3672] ss:$16 sm:%s3673]
  %vm3675 = vcmask 1043458
  %v3676 = vsel %vm3675, %v3674, %v3671
  %s3677 = scalar_lea.vmem %s0, 394
  %s3678 = smov 48
  %v3679 = vld [vmem:[%s3677] ss:$16 sm:%s3678]
  %vm3680 = vcmask 1045508
  %v3681 = vsel %vm3680, %v3679, %v3676
  %s3682 = scalar_lea.vmem %s0, 394
  %s3683 = smov 192
  %v3684 = vld [vmem:[%s3682] ss:$16 sm:%s3683]
  %vm3685 = vcmask 1047558
  %v3686 = vsel %vm3685, %v3684, %v3681
  %3687 = vrot.lane.b32.xlu0 %v3686, 40
  %v3688 = vpop.permute.xlu0 %3687
  %vm3689 = vcmask 359744
  %s3690 = scalar_lea.vmem %s1, 24
  %3691 = vst.msk [vmem:[%s3690] sm:$0xff] %vm3689, %v3688
  %s3692 = scalar_lea.vmem %s0, 906
  %s3693 = smov 3
  %v3694 = vld [vmem:[%s3692] ss:$16 sm:%s3693]
  %s3695 = scalar_lea.vmem %s0, 906
  %s3696 = smov 12
  %v3697 = vld [vmem:[%s3695] ss:$16 sm:%s3696]
  %vm3698 = vcmask 1043458
  %v3699 = vsel %vm3698, %v3697, %v3694
  %s3700 = scalar_lea.vmem %s0, 906
  %s3701 = smov 48
  %v3702 = vld [vmem:[%s3700] ss:$16 sm:%s3701]
  %vm3703 = vcmask 1045508
  %v3704 = vsel %vm3703, %v3702, %v3699
  %s3705 = scalar_lea.vmem %s0, 906
  %s3706 = smov 192
  %v3707 = vld [vmem:[%s3705] ss:$16 sm:%s3706]
  %vm3708 = vcmask 1047558
  %v3709 = vsel %vm3708, %v3707, %v3704
  %3710 = vrot.lane.b32.xlu0 %v3709, 40
  %v3711 = vpop.permute.xlu0 %3710
  %vm3712 = vcmask 359744
  %s3713 = scalar_lea.vmem %s1, 56
  %3714 = vst.msk [vmem:[%s3713] sm:$0xff] %vm3712, %v3711
  %s3715 = scalar_lea.vmem %s0, 1418
  %s3716 = smov 3
  %v3717 = vld [vmem:[%s3715] ss:$16 sm:%s3716]
  %s3718 = scalar_lea.vmem %s0, 1418
  %s3719 = smov 12
  %v3720 = vld [vmem:[%s3718] ss:$16 sm:%s3719]
  %vm3721 = vcmask 1043458
  %v3722 = vsel %vm3721, %v3720, %v3717
  %s3723 = scalar_lea.vmem %s0, 1418
  %s3724 = smov 48
  %v3725 = vld [vmem:[%s3723] ss:$16 sm:%s3724]
  %vm3726 = vcmask 1045508
  %v3727 = vsel %vm3726, %v3725, %v3722
  %s3728 = scalar_lea.vmem %s0, 1418
  %s3729 = smov 192
  %v3730 = vld [vmem:[%s3728] ss:$16 sm:%s3729]
  %vm3731 = vcmask 1047558
  %v3732 = vsel %vm3731, %v3730, %v3727
  %3733 = vrot.lane.b32.xlu0 %v3732, 40
  %v3734 = vpop.permute.xlu0 %3733
  %vm3735 = vcmask 359744
  %s3736 = scalar_lea.vmem %s1, 88
  %3737 = vst.msk [vmem:[%s3736] sm:$0xff] %vm3735, %v3734
  %s3738 = scalar_lea.vmem %s0, 1930
  %s3739 = smov 3
  %v3740 = vld [vmem:[%s3738] ss:$16 sm:%s3739]
  %s3741 = scalar_lea.vmem %s0, 1930
  %s3742 = smov 12
  %v3743 = vld [vmem:[%s3741] ss:$16 sm:%s3742]
  %vm3744 = vcmask 1043458
  %v3745 = vsel %vm3744, %v3743, %v3740
  %s3746 = scalar_lea.vmem %s0, 1930
  %s3747 = smov 48
  %v3748 = vld [vmem:[%s3746] ss:$16 sm:%s3747]
  %vm3749 = vcmask 1045508
  %v3750 = vsel %vm3749, %v3748, %v3745
  %s3751 = scalar_lea.vmem %s0, 1930
  %s3752 = smov 192
  %v3753 = vld [vmem:[%s3751] ss:$16 sm:%s3752]
  %vm3754 = vcmask 1047558
  %v3755 = vsel %vm3754, %v3753, %v3750
  %3756 = vrot.lane.b32.xlu0 %v3755, 40
  %v3757 = vpop.permute.xlu0 %3756
  %vm3758 = vcmask 359744
  %s3759 = scalar_lea.vmem %s1, 120
  %3760 = vst.msk [vmem:[%s3759] sm:$0xff] %vm3758, %v3757
  %s3761 = scalar_lea.vmem %s0, 2442
  %s3762 = smov 3
  %v3763 = vld [vmem:[%s3761] ss:$16 sm:%s3762]
  %s3764 = scalar_lea.vmem %s0, 2442
  %s3765 = smov 12
  %v3766 = vld [vmem:[%s3764] ss:$16 sm:%s3765]
  %vm3767 = vcmask 1043458
  %v3768 = vsel %vm3767, %v3766, %v3763
  %s3769 = scalar_lea.vmem %s0, 2442
  %s3770 = smov 48
  %v3771 = vld [vmem:[%s3769] ss:$16 sm:%s3770]
  %vm3772 = vcmask 1045508
  %v3773 = vsel %vm3772, %v3771, %v3768
  %s3774 = scalar_lea.vmem %s0, 2442
  %s3775 = smov 192
  %v3776 = vld [vmem:[%s3774] ss:$16 sm:%s3775]
  %vm3777 = vcmask 1047558
  %v3778 = vsel %vm3777, %v3776, %v3773
  %3779 = vrot.lane.b32.xlu0 %v3778, 40
  %v3780 = vpop.permute.xlu0 %3779
  %vm3781 = vcmask 359744
  %s3782 = scalar_lea.vmem %s1, 152
  %3783 = vst.msk [vmem:[%s3782] sm:$0xff] %vm3781, %v3780
  %s3784 = scalar_lea.vmem %s0, 2954
  %s3785 = smov 3
  %v3786 = vld [vmem:[%s3784] ss:$16 sm:%s3785]
  %s3787 = scalar_lea.vmem %s0, 2954
  %s3788 = smov 12
  %v3789 = vld [vmem:[%s3787] ss:$16 sm:%s3788]
  %vm3790 = vcmask 1043458
  %v3791 = vsel %vm3790, %v3789, %v3786
  %s3792 = scalar_lea.vmem %s0, 2954
  %s3793 = smov 48
  %v3794 = vld [vmem:[%s3792] ss:$16 sm:%s3793]
  %vm3795 = vcmask 1045508
  %v3796 = vsel %vm3795, %v3794, %v3791
  %s3797 = scalar_lea.vmem %s0, 2954
  %s3798 = smov 192
  %v3799 = vld [vmem:[%s3797] ss:$16 sm:%s3798]
  %vm3800 = vcmask 1047558
  %v3801 = vsel %vm3800, %v3799, %v3796
  %3802 = vrot.lane.b32.xlu0 %v3801, 40
  %v3803 = vpop.permute.xlu0 %3802
  %vm3804 = vcmask 359744
  %s3805 = scalar_lea.vmem %s1, 184
  %3806 = vst.msk [vmem:[%s3805] sm:$0xff] %vm3804, %v3803
  %s3807 = scalar_lea.vmem %s0, 9
  %s3808 = smov 3
  %v3809 = vld [vmem:[%s3807] ss:$16 sm:%s3808]
  %s3810 = scalar_lea.vmem %s0, 9
  %s3811 = smov 12
  %v3812 = vld [vmem:[%s3810] ss:$16 sm:%s3811]
  %vm3813 = vcmask 1043458
  %v3814 = vsel %vm3813, %v3812, %v3809
  %s3815 = scalar_lea.vmem %s0, 9
  %s3816 = smov 48
  %v3817 = vld [vmem:[%s3815] ss:$16 sm:%s3816]
  %vm3818 = vcmask 1045508
  %v3819 = vsel %vm3818, %v3817, %v3814
  %s3820 = scalar_lea.vmem %s0, 9
  %s3821 = smov 192
  %v3822 = vld [vmem:[%s3820] ss:$16 sm:%s3821]
  %vm3823 = vcmask 1047558
  %v3824 = vsel %vm3823, %v3822, %v3819
  %3825 = vrot.lane.b32.xlu0 %v3824, 36
  %v3826 = vpop.permute.xlu0 %3825
  %vm3827 = vcmask 326944
  %3828 = vst.msk [vmem:[%s1] sm:$0xff] %vm3827, %v3826
  %s3829 = scalar_lea.vmem %s0, 521
  %s3830 = smov 3
  %v3831 = vld [vmem:[%s3829] ss:$16 sm:%s3830]
  %s3832 = scalar_lea.vmem %s0, 521
  %s3833 = smov 12
  %v3834 = vld [vmem:[%s3832] ss:$16 sm:%s3833]
  %vm3835 = vcmask 1043458
  %v3836 = vsel %vm3835, %v3834, %v3831
  %s3837 = scalar_lea.vmem %s0, 521
  %s3838 = smov 48
  %v3839 = vld [vmem:[%s3837] ss:$16 sm:%s3838]
  %vm3840 = vcmask 1045508
  %v3841 = vsel %vm3840, %v3839, %v3836
  %s3842 = scalar_lea.vmem %s0, 521
  %s3843 = smov 192
  %v3844 = vld [vmem:[%s3842] ss:$16 sm:%s3843]
  %vm3845 = vcmask 1047558
  %v3846 = vsel %vm3845, %v3844, %v3841
  %3847 = vrot.lane.b32.xlu0 %v3846, 36
  %v3848 = vpop.permute.xlu0 %3847
  %vm3849 = vcmask 326944
  %s3850 = scalar_lea.vmem %s1, 32
  %3851 = vst.msk [vmem:[%s3850] sm:$0xff] %vm3849, %v3848
  %s3852 = scalar_lea.vmem %s0, 1033
  %s3853 = smov 3
  %v3854 = vld [vmem:[%s3852] ss:$16 sm:%s3853]
  %s3855 = scalar_lea.vmem %s0, 1033
  %s3856 = smov 12
  %v3857 = vld [vmem:[%s3855] ss:$16 sm:%s3856]
  %vm3858 = vcmask 1043458
  %v3859 = vsel %vm3858, %v3857, %v3854
  %s3860 = scalar_lea.vmem %s0, 1033
  %s3861 = smov 48
  %v3862 = vld [vmem:[%s3860] ss:$16 sm:%s3861]
  %vm3863 = vcmask 1045508
  %v3864 = vsel %vm3863, %v3862, %v3859
  %s3865 = scalar_lea.vmem %s0, 1033
  %s3866 = smov 192
  %v3867 = vld [vmem:[%s3865] ss:$16 sm:%s3866]
  %vm3868 = vcmask 1047558
  %v3869 = vsel %vm3868, %v3867, %v3864
  %3870 = vrot.lane.b32.xlu0 %v3869, 36
  %v3871 = vpop.permute.xlu0 %3870
  %vm3872 = vcmask 326944
  %s3873 = scalar_lea.vmem %s1, 64
  %3874 = vst.msk [vmem:[%s3873] sm:$0xff] %vm3872, %v3871
  %s3875 = scalar_lea.vmem %s0, 1545
  %s3876 = smov 3
  %v3877 = vld [vmem:[%s3875] ss:$16 sm:%s3876]
  %s3878 = scalar_lea.vmem %s0, 1545
  %s3879 = smov 12
  %v3880 = vld [vmem:[%s3878] ss:$16 sm:%s3879]
  %vm3881 = vcmask 1043458
  %v3882 = vsel %vm3881, %v3880, %v3877
  %s3883 = scalar_lea.vmem %s0, 1545
  %s3884 = smov 48
  %v3885 = vld [vmem:[%s3883] ss:$16 sm:%s3884]
  %vm3886 = vcmask 1045508
  %v3887 = vsel %vm3886, %v3885, %v3882
  %s3888 = scalar_lea.vmem %s0, 1545
  %s3889 = smov 192
  %v3890 = vld [vmem:[%s3888] ss:$16 sm:%s3889]
  %vm3891 = vcmask 1047558
  %v3892 = vsel %vm3891, %v3890, %v3887
  %3893 = vrot.lane.b32.xlu0 %v3892, 36
  %v3894 = vpop.permute.xlu0 %3893
  %vm3895 = vcmask 326944
  %s3896 = scalar_lea.vmem %s1, 96
  %3897 = vst.msk [vmem:[%s3896] sm:$0xff] %vm3895, %v3894
  %s3898 = scalar_lea.vmem %s0, 2057
  %s3899 = smov 3
  %v3900 = vld [vmem:[%s3898] ss:$16 sm:%s3899]
  %s3901 = scalar_lea.vmem %s0, 2057
  %s3902 = smov 12
  %v3903 = vld [vmem:[%s3901] ss:$16 sm:%s3902]
  %vm3904 = vcmask 1043458
  %v3905 = vsel %vm3904, %v3903, %v3900
  %s3906 = scalar_lea.vmem %s0, 2057
  %s3907 = smov 48
  %v3908 = vld [vmem:[%s3906] ss:$16 sm:%s3907]
  %vm3909 = vcmask 1045508
  %v3910 = vsel %vm3909, %v3908, %v3905
  %s3911 = scalar_lea.vmem %s0, 2057
  %s3912 = smov 192
  %v3913 = vld [vmem:[%s3911] ss:$16 sm:%s3912]
  %vm3914 = vcmask 1047558
  %v3915 = vsel %vm3914, %v3913, %v3910
  %3916 = vrot.lane.b32.xlu0 %v3915, 36
  %v3917 = vpop.permute.xlu0 %3916
  %vm3918 = vcmask 326944
  %s3919 = scalar_lea.vmem %s1, 128
  %3920 = vst.msk [vmem:[%s3919] sm:$0xff] %vm3918, %v3917
  %s3921 = scalar_lea.vmem %s0, 2569
  %s3922 = smov 3
  %v3923 = vld [vmem:[%s3921] ss:$16 sm:%s3922]
  %s3924 = scalar_lea.vmem %s0, 2569
  %s3925 = smov 12
  %v3926 = vld [vmem:[%s3924] ss:$16 sm:%s3925]
  %vm3927 = vcmask 1043458
  %v3928 = vsel %vm3927, %v3926, %v3923
  %s3929 = scalar_lea.vmem %s0, 2569
  %s3930 = smov 48
  %v3931 = vld [vmem:[%s3929] ss:$16 sm:%s3930]
  %vm3932 = vcmask 1045508
  %v3933 = vsel %vm3932, %v3931, %v3928
  %s3934 = scalar_lea.vmem %s0, 2569
  %s3935 = smov 192
  %v3936 = vld [vmem:[%s3934] ss:$16 sm:%s3935]
  %vm3937 = vcmask 1047558
  %v3938 = vsel %vm3937, %v3936, %v3933
  %3939 = vrot.lane.b32.xlu0 %v3938, 36
  %v3940 = vpop.permute.xlu0 %3939
  %vm3941 = vcmask 326944
  %s3942 = scalar_lea.vmem %s1, 160
  %3943 = vst.msk [vmem:[%s3942] sm:$0xff] %vm3941, %v3940
  %s3944 = scalar_lea.vmem %s0, 137
  %s3945 = smov 3
  %v3946 = vld [vmem:[%s3944] ss:$16 sm:%s3945]
  %s3947 = scalar_lea.vmem %s0, 137
  %s3948 = smov 12
  %v3949 = vld [vmem:[%s3947] ss:$16 sm:%s3948]
  %vm3950 = vcmask 1043458
  %v3951 = vsel %vm3950, %v3949, %v3946
  %s3952 = scalar_lea.vmem %s0, 137
  %s3953 = smov 48
  %v3954 = vld [vmem:[%s3952] ss:$16 sm:%s3953]
  %vm3955 = vcmask 1045508
  %v3956 = vsel %vm3955, %v3954, %v3951
  %s3957 = scalar_lea.vmem %s0, 137
  %s3958 = smov 192
  %v3959 = vld [vmem:[%s3957] ss:$16 sm:%s3958]
  %vm3960 = vcmask 1047558
  %v3961 = vsel %vm3960, %v3959, %v3956
  %3962 = vrot.lane.b32.xlu0 %v3961, 36
  %v3963 = vpop.permute.xlu0 %3962
  %vm3964 = vcmask 326944
  %s3965 = scalar_lea.vmem %s1, 8
  %3966 = vst.msk [vmem:[%s3965] sm:$0xff] %vm3964, %v3963
  %s3967 = scalar_lea.vmem %s0, 649
  %s3968 = smov 3
  %v3969 = vld [vmem:[%s3967] ss:$16 sm:%s3968]
  %s3970 = scalar_lea.vmem %s0, 649
  %s3971 = smov 12
  %v3972 = vld [vmem:[%s3970] ss:$16 sm:%s3971]
  %vm3973 = vcmask 1043458
  %v3974 = vsel %vm3973, %v3972, %v3969
  %s3975 = scalar_lea.vmem %s0, 649
  %s3976 = smov 48
  %v3977 = vld [vmem:[%s3975] ss:$16 sm:%s3976]
  %vm3978 = vcmask 1045508
  %v3979 = vsel %vm3978, %v3977, %v3974
  %s3980 = scalar_lea.vmem %s0, 649
  %s3981 = smov 192
  %v3982 = vld [vmem:[%s3980] ss:$16 sm:%s3981]
  %vm3983 = vcmask 1047558
  %v3984 = vsel %vm3983, %v3982, %v3979
  %3985 = vrot.lane.b32.xlu0 %v3984, 36
  %v3986 = vpop.permute.xlu0 %3985
  %vm3987 = vcmask 326944
  %s3988 = scalar_lea.vmem %s1, 40
  %3989 = vst.msk [vmem:[%s3988] sm:$0xff] %vm3987, %v3986
  %s3990 = scalar_lea.vmem %s0, 1161
  %s3991 = smov 3
  %v3992 = vld [vmem:[%s3990] ss:$16 sm:%s3991]
  %s3993 = scalar_lea.vmem %s0, 1161
  %s3994 = smov 12
  %v3995 = vld [vmem:[%s3993] ss:$16 sm:%s3994]
  %vm3996 = vcmask 1043458
  %v3997 = vsel %vm3996, %v3995, %v3992
  %s3998 = scalar_lea.vmem %s0, 1161
  %s3999 = smov 48
  %v4000 = vld [vmem:[%s3998] ss:$16 sm:%s3999]
  %vm4001 = vcmask 1045508
  %v4002 = vsel %vm4001, %v4000, %v3997
  %s4003 = scalar_lea.vmem %s0, 1161
  %s4004 = smov 192
  %v4005 = vld [vmem:[%s4003] ss:$16 sm:%s4004]
  %vm4006 = vcmask 1047558
  %v4007 = vsel %vm4006, %v4005, %v4002
  %4008 = vrot.lane.b32.xlu0 %v4007, 36
  %v4009 = vpop.permute.xlu0 %4008
  %vm4010 = vcmask 326944
  %s4011 = scalar_lea.vmem %s1, 72
  %4012 = vst.msk [vmem:[%s4011] sm:$0xff] %vm4010, %v4009
  %s4013 = scalar_lea.vmem %s0, 1673
  %s4014 = smov 3
  %v4015 = vld [vmem:[%s4013] ss:$16 sm:%s4014]
  %s4016 = scalar_lea.vmem %s0, 1673
  %s4017 = smov 12
  %v4018 = vld [vmem:[%s4016] ss:$16 sm:%s4017]
  %vm4019 = vcmask 1043458
  %v4020 = vsel %vm4019, %v4018, %v4015
  %s4021 = scalar_lea.vmem %s0, 1673
  %s4022 = smov 48
  %v4023 = vld [vmem:[%s4021] ss:$16 sm:%s4022]
  %vm4024 = vcmask 1045508
  %v4025 = vsel %vm4024, %v4023, %v4020
  %s4026 = scalar_lea.vmem %s0, 1673
  %s4027 = smov 192
  %v4028 = vld [vmem:[%s4026] ss:$16 sm:%s4027]
  %vm4029 = vcmask 1047558
  %v4030 = vsel %vm4029, %v4028, %v4025
  %4031 = vrot.lane.b32.xlu0 %v4030, 36
  %v4032 = vpop.permute.xlu0 %4031
  %vm4033 = vcmask 326944
  %s4034 = scalar_lea.vmem %s1, 104
  %4035 = vst.msk [vmem:[%s4034] sm:$0xff] %vm4033, %v4032
  %s4036 = scalar_lea.vmem %s0, 2185
  %s4037 = smov 3
  %v4038 = vld [vmem:[%s4036] ss:$16 sm:%s4037]
  %s4039 = scalar_lea.vmem %s0, 2185
  %s4040 = smov 12
  %v4041 = vld [vmem:[%s4039] ss:$16 sm:%s4040]
  %vm4042 = vcmask 1043458
  %v4043 = vsel %vm4042, %v4041, %v4038
  %s4044 = scalar_lea.vmem %s0, 2185
  %s4045 = smov 48
  %v4046 = vld [vmem:[%s4044] ss:$16 sm:%s4045]
  %vm4047 = vcmask 1045508
  %v4048 = vsel %vm4047, %v4046, %v4043
  %s4049 = scalar_lea.vmem %s0, 2185
  %s4050 = smov 192
  %v4051 = vld [vmem:[%s4049] ss:$16 sm:%s4050]
  %vm4052 = vcmask 1047558
  %v4053 = vsel %vm4052, %v4051, %v4048
  %4054 = vrot.lane.b32.xlu0 %v4053, 36
  %v4055 = vpop.permute.xlu0 %4054
  %vm4056 = vcmask 326944
  %s4057 = scalar_lea.vmem %s1, 136
  %4058 = vst.msk [vmem:[%s4057] sm:$0xff] %vm4056, %v4055
  %s4059 = scalar_lea.vmem %s0, 2697
  %s4060 = smov 3
  %v4061 = vld [vmem:[%s4059] ss:$16 sm:%s4060]
  %s4062 = scalar_lea.vmem %s0, 2697
  %s4063 = smov 12
  %v4064 = vld [vmem:[%s4062] ss:$16 sm:%s4063]
  %vm4065 = vcmask 1043458
  %v4066 = vsel %vm4065, %v4064, %v4061
  %s4067 = scalar_lea.vmem %s0, 2697
  %s4068 = smov 48
  %v4069 = vld [vmem:[%s4067] ss:$16 sm:%s4068]
  %vm4070 = vcmask 1045508
  %v4071 = vsel %vm4070, %v4069, %v4066
  %s4072 = scalar_lea.vmem %s0, 2697
  %s4073 = smov 192
  %v4074 = vld [vmem:[%s4072] ss:$16 sm:%s4073]
  %vm4075 = vcmask 1047558
  %v4076 = vsel %vm4075, %v4074, %v4071
  %4077 = vrot.lane.b32.xlu0 %v4076, 36
  %v4078 = vpop.permute.xlu0 %4077
  %vm4079 = vcmask 326944
  %s4080 = scalar_lea.vmem %s1, 168
  %4081 = vst.msk [vmem:[%s4080] sm:$0xff] %vm4079, %v4078
  %s4082 = scalar_lea.vmem %s0, 265
  %s4083 = smov 3
  %v4084 = vld [vmem:[%s4082] ss:$16 sm:%s4083]
  %s4085 = scalar_lea.vmem %s0, 265
  %s4086 = smov 12
  %v4087 = vld [vmem:[%s4085] ss:$16 sm:%s4086]
  %vm4088 = vcmask 1043458
  %v4089 = vsel %vm4088, %v4087, %v4084
  %s4090 = scalar_lea.vmem %s0, 265
  %s4091 = smov 48
  %v4092 = vld [vmem:[%s4090] ss:$16 sm:%s4091]
  %vm4093 = vcmask 1045508
  %v4094 = vsel %vm4093, %v4092, %v4089
  %s4095 = scalar_lea.vmem %s0, 265
  %s4096 = smov 192
  %v4097 = vld [vmem:[%s4095] ss:$16 sm:%s4096]
  %vm4098 = vcmask 1047558
  %v4099 = vsel %vm4098, %v4097, %v4094
  %4100 = vrot.lane.b32.xlu0 %v4099, 36
  %v4101 = vpop.permute.xlu0 %4100
  %vm4102 = vcmask 326944
  %s4103 = scalar_lea.vmem %s1, 16
  %4104 = vst.msk [vmem:[%s4103] sm:$0xff] %vm4102, %v4101
  %s4105 = scalar_lea.vmem %s0, 777
  %s4106 = smov 3
  %v4107 = vld [vmem:[%s4105] ss:$16 sm:%s4106]
  %s4108 = scalar_lea.vmem %s0, 777
  %s4109 = smov 12
  %v4110 = vld [vmem:[%s4108] ss:$16 sm:%s4109]
  %vm4111 = vcmask 1043458
  %v4112 = vsel %vm4111, %v4110, %v4107
  %s4113 = scalar_lea.vmem %s0, 777
  %s4114 = smov 48
  %v4115 = vld [vmem:[%s4113] ss:$16 sm:%s4114]
  %vm4116 = vcmask 1045508
  %v4117 = vsel %vm4116, %v4115, %v4112
  %s4118 = scalar_lea.vmem %s0, 777
  %s4119 = smov 192
  %v4120 = vld [vmem:[%s4118] ss:$16 sm:%s4119]
  %vm4121 = vcmask 1047558
  %v4122 = vsel %vm4121, %v4120, %v4117
  %4123 = vrot.lane.b32.xlu0 %v4122, 36
  %v4124 = vpop.permute.xlu0 %4123
  %vm4125 = vcmask 326944
  %s4126 = scalar_lea.vmem %s1, 48
  %4127 = vst.msk [vmem:[%s4126] sm:$0xff] %vm4125, %v4124
  %s4128 = scalar_lea.vmem %s0, 1289
  %s4129 = smov 3
  %v4130 = vld [vmem:[%s4128] ss:$16 sm:%s4129]
  %s4131 = scalar_lea.vmem %s0, 1289
  %s4132 = smov 12
  %v4133 = vld [vmem:[%s4131] ss:$16 sm:%s4132]
  %vm4134 = vcmask 1043458
  %v4135 = vsel %vm4134, %v4133, %v4130
  %s4136 = scalar_lea.vmem %s0, 1289
  %s4137 = smov 48
  %v4138 = vld [vmem:[%s4136] ss:$16 sm:%s4137]
  %vm4139 = vcmask 1045508
  %v4140 = vsel %vm4139, %v4138, %v4135
  %s4141 = scalar_lea.vmem %s0, 1289
  %s4142 = smov 192
  %v4143 = vld [vmem:[%s4141] ss:$16 sm:%s4142]
  %vm4144 = vcmask 1047558
  %v4145 = vsel %vm4144, %v4143, %v4140
  %4146 = vrot.lane.b32.xlu0 %v4145, 36
  %v4147 = vpop.permute.xlu0 %4146
  %vm4148 = vcmask 326944
  %s4149 = scalar_lea.vmem %s1, 80
  %4150 = vst.msk [vmem:[%s4149] sm:$0xff] %vm4148, %v4147
  %s4151 = scalar_lea.vmem %s0, 1801
  %s4152 = smov 3
  %v4153 = vld [vmem:[%s4151] ss:$16 sm:%s4152]
  %s4154 = scalar_lea.vmem %s0, 1801
  %s4155 = smov 12
  %v4156 = vld [vmem:[%s4154] ss:$16 sm:%s4155]
  %vm4157 = vcmask 1043458
  %v4158 = vsel %vm4157, %v4156, %v4153
  %s4159 = scalar_lea.vmem %s0, 1801
  %s4160 = smov 48
  %v4161 = vld [vmem:[%s4159] ss:$16 sm:%s4160]
  %vm4162 = vcmask 1045508
  %v4163 = vsel %vm4162, %v4161, %v4158
  %s4164 = scalar_lea.vmem %s0, 1801
  %s4165 = smov 192
  %v4166 = vld [vmem:[%s4164] ss:$16 sm:%s4165]
  %vm4167 = vcmask 1047558
  %v4168 = vsel %vm4167, %v4166, %v4163
  %4169 = vrot.lane.b32.xlu0 %v4168, 36
  %v4170 = vpop.permute.xlu0 %4169
  %vm4171 = vcmask 326944
  %s4172 = scalar_lea.vmem %s1, 112
  %4173 = vst.msk [vmem:[%s4172] sm:$0xff] %vm4171, %v4170
  %s4174 = scalar_lea.vmem %s0, 2313
  %s4175 = smov 3
  %v4176 = vld [vmem:[%s4174] ss:$16 sm:%s4175]
  %s4177 = scalar_lea.vmem %s0, 2313
  %s4178 = smov 12
  %v4179 = vld [vmem:[%s4177] ss:$16 sm:%s4178]
  %vm4180 = vcmask 1043458
  %v4181 = vsel %vm4180, %v4179, %v4176
  %s4182 = scalar_lea.vmem %s0, 2313
  %s4183 = smov 48
  %v4184 = vld [vmem:[%s4182] ss:$16 sm:%s4183]
  %vm4185 = vcmask 1045508
  %v4186 = vsel %vm4185, %v4184, %v4181
  %s4187 = scalar_lea.vmem %s0, 2313
  %s4188 = smov 192
  %v4189 = vld [vmem:[%s4187] ss:$16 sm:%s4188]
  %vm4190 = vcmask 1047558
  %v4191 = vsel %vm4190, %v4189, %v4186
  %4192 = vrot.lane.b32.xlu0 %v4191, 36
  %v4193 = vpop.permute.xlu0 %4192
  %vm4194 = vcmask 326944
  %s4195 = scalar_lea.vmem %s1, 144
  %4196 = vst.msk [vmem:[%s4195] sm:$0xff] %vm4194, %v4193
  %s4197 = scalar_lea.vmem %s0, 2825
  %s4198 = smov 3
  %v4199 = vld [vmem:[%s4197] ss:$16 sm:%s4198]
  %s4200 = scalar_lea.vmem %s0, 2825
  %s4201 = smov 12
  %v4202 = vld [vmem:[%s4200] ss:$16 sm:%s4201]
  %vm4203 = vcmask 1043458
  %v4204 = vsel %vm4203, %v4202, %v4199
  %s4205 = scalar_lea.vmem %s0, 2825
  %s4206 = smov 48
  %v4207 = vld [vmem:[%s4205] ss:$16 sm:%s4206]
  %vm4208 = vcmask 1045508
  %v4209 = vsel %vm4208, %v4207, %v4204
  %s4210 = scalar_lea.vmem %s0, 2825
  %s4211 = smov 192
  %v4212 = vld [vmem:[%s4210] ss:$16 sm:%s4211]
  %vm4213 = vcmask 1047558
  %v4214 = vsel %vm4213, %v4212, %v4209
  %4215 = vrot.lane.b32.xlu0 %v4214, 36
  %v4216 = vpop.permute.xlu0 %4215
  %vm4217 = vcmask 326944
  %s4218 = scalar_lea.vmem %s1, 176
  %4219 = vst.msk [vmem:[%s4218] sm:$0xff] %vm4217, %v4216
  %s4220 = scalar_lea.vmem %s0, 393
  %s4221 = smov 3
  %v4222 = vld [vmem:[%s4220] ss:$16 sm:%s4221]
  %s4223 = scalar_lea.vmem %s0, 393
  %s4224 = smov 12
  %v4225 = vld [vmem:[%s4223] ss:$16 sm:%s4224]
  %vm4226 = vcmask 1043458
  %v4227 = vsel %vm4226, %v4225, %v4222
  %s4228 = scalar_lea.vmem %s0, 393
  %s4229 = smov 48
  %v4230 = vld [vmem:[%s4228] ss:$16 sm:%s4229]
  %vm4231 = vcmask 1045508
  %v4232 = vsel %vm4231, %v4230, %v4227
  %s4233 = scalar_lea.vmem %s0, 393
  %s4234 = smov 192
  %v4235 = vld [vmem:[%s4233] ss:$16 sm:%s4234]
  %vm4236 = vcmask 1047558
  %v4237 = vsel %vm4236, %v4235, %v4232
  %4238 = vrot.lane.b32.xlu0 %v4237, 36
  %v4239 = vpop.permute.xlu0 %4238
  %vm4240 = vcmask 326944
  %s4241 = scalar_lea.vmem %s1, 24
  %4242 = vst.msk [vmem:[%s4241] sm:$0xff] %vm4240, %v4239
  %s4243 = scalar_lea.vmem %s0, 905
  %s4244 = smov 3
  %v4245 = vld [vmem:[%s4243] ss:$16 sm:%s4244]
  %s4246 = scalar_lea.vmem %s0, 905
  %s4247 = smov 12
  %v4248 = vld [vmem:[%s4246] ss:$16 sm:%s4247]
  %vm4249 = vcmask 1043458
  %v4250 = vsel %vm4249, %v4248, %v4245
  %s4251 = scalar_lea.vmem %s0, 905
  %s4252 = smov 48
  %v4253 = vld [vmem:[%s4251] ss:$16 sm:%s4252]
  %vm4254 = vcmask 1045508
  %v4255 = vsel %vm4254, %v4253, %v4250
  %s4256 = scalar_lea.vmem %s0, 905
  %s4257 = smov 192
  %v4258 = vld [vmem:[%s4256] ss:$16 sm:%s4257]
  %vm4259 = vcmask 1047558
  %v4260 = vsel %vm4259, %v4258, %v4255
  %4261 = vrot.lane.b32.xlu0 %v4260, 36
  %v4262 = vpop.permute.xlu0 %4261
  %vm4263 = vcmask 326944
  %s4264 = scalar_lea.vmem %s1, 56
  %4265 = vst.msk [vmem:[%s4264] sm:$0xff] %vm4263, %v4262
  %s4266 = scalar_lea.vmem %s0, 1417
  %s4267 = smov 3
  %v4268 = vld [vmem:[%s4266] ss:$16 sm:%s4267]
  %s4269 = scalar_lea.vmem %s0, 1417
  %s4270 = smov 12
  %v4271 = vld [vmem:[%s4269] ss:$16 sm:%s4270]
  %vm4272 = vcmask 1043458
  %v4273 = vsel %vm4272, %v4271, %v4268
  %s4274 = scalar_lea.vmem %s0, 1417
  %s4275 = smov 48
  %v4276 = vld [vmem:[%s4274] ss:$16 sm:%s4275]
  %vm4277 = vcmask 1045508
  %v4278 = vsel %vm4277, %v4276, %v4273
  %s4279 = scalar_lea.vmem %s0, 1417
  %s4280 = smov 192
  %v4281 = vld [vmem:[%s4279] ss:$16 sm:%s4280]
  %vm4282 = vcmask 1047558
  %v4283 = vsel %vm4282, %v4281, %v4278
  %4284 = vrot.lane.b32.xlu0 %v4283, 36
  %v4285 = vpop.permute.xlu0 %4284
  %vm4286 = vcmask 326944
  %s4287 = scalar_lea.vmem %s1, 88
  %4288 = vst.msk [vmem:[%s4287] sm:$0xff] %vm4286, %v4285
  %s4289 = scalar_lea.vmem %s0, 1929
  %s4290 = smov 3
  %v4291 = vld [vmem:[%s4289] ss:$16 sm:%s4290]
  %s4292 = scalar_lea.vmem %s0, 1929
  %s4293 = smov 12
  %v4294 = vld [vmem:[%s4292] ss:$16 sm:%s4293]
  %vm4295 = vcmask 1043458
  %v4296 = vsel %vm4295, %v4294, %v4291
  %s4297 = scalar_lea.vmem %s0, 1929
  %s4298 = smov 48
  %v4299 = vld [vmem:[%s4297] ss:$16 sm:%s4298]
  %vm4300 = vcmask 1045508
  %v4301 = vsel %vm4300, %v4299, %v4296
  %s4302 = scalar_lea.vmem %s0, 1929
  %s4303 = smov 192
  %v4304 = vld [vmem:[%s4302] ss:$16 sm:%s4303]
  %vm4305 = vcmask 1047558
  %v4306 = vsel %vm4305, %v4304, %v4301
  %4307 = vrot.lane.b32.xlu0 %v4306, 36
  %v4308 = vpop.permute.xlu0 %4307
  %vm4309 = vcmask 326944
  %s4310 = scalar_lea.vmem %s1, 120
  %4311 = vst.msk [vmem:[%s4310] sm:$0xff] %vm4309, %v4308
  %s4312 = scalar_lea.vmem %s0, 2441
  %s4313 = smov 3
  %v4314 = vld [vmem:[%s4312] ss:$16 sm:%s4313]
  %s4315 = scalar_lea.vmem %s0, 2441
  %s4316 = smov 12
  %v4317 = vld [vmem:[%s4315] ss:$16 sm:%s4316]
  %vm4318 = vcmask 1043458
  %v4319 = vsel %vm4318, %v4317, %v4314
  %s4320 = scalar_lea.vmem %s0, 2441
  %s4321 = smov 48
  %v4322 = vld [vmem:[%s4320] ss:$16 sm:%s4321]
  %vm4323 = vcmask 1045508
  %v4324 = vsel %vm4323, %v4322, %v4319
  %s4325 = scalar_lea.vmem %s0, 2441
  %s4326 = smov 192
  %v4327 = vld [vmem:[%s4325] ss:$16 sm:%s4326]
  %vm4328 = vcmask 1047558
  %v4329 = vsel %vm4328, %v4327, %v4324
  %4330 = vrot.lane.b32.xlu0 %v4329, 36
  %v4331 = vpop.permute.xlu0 %4330
  %vm4332 = vcmask 326944
  %s4333 = scalar_lea.vmem %s1, 152
  %4334 = vst.msk [vmem:[%s4333] sm:$0xff] %vm4332, %v4331
  %s4335 = scalar_lea.vmem %s0, 2953
  %s4336 = smov 3
  %v4337 = vld [vmem:[%s4335] ss:$16 sm:%s4336]
  %s4338 = scalar_lea.vmem %s0, 2953
  %s4339 = smov 12
  %v4340 = vld [vmem:[%s4338] ss:$16 sm:%s4339]
  %vm4341 = vcmask 1043458
  %v4342 = vsel %vm4341, %v4340, %v4337
  %s4343 = scalar_lea.vmem %s0, 2953
  %s4344 = smov 48
  %v4345 = vld [vmem:[%s4343] ss:$16 sm:%s4344]
  %vm4346 = vcmask 1045508
  %v4347 = vsel %vm4346, %v4345, %v4342
  %s4348 = scalar_lea.vmem %s0, 2953
  %s4349 = smov 192
  %v4350 = vld [vmem:[%s4348] ss:$16 sm:%s4349]
  %vm4351 = vcmask 1047558
  %v4352 = vsel %vm4351, %v4350, %v4347
  %4353 = vrot.lane.b32.xlu0 %v4352, 36
  %v4354 = vpop.permute.xlu0 %4353
  %vm4355 = vcmask 326944
  %s4356 = scalar_lea.vmem %s1, 184
  %4357 = vst.msk [vmem:[%s4356] sm:$0xff] %vm4355, %v4354
  %s4358 = scalar_lea.vmem %s0, 8
  %s4359 = smov 3
  %v4360 = vld [vmem:[%s4358] ss:$16 sm:%s4359]
  %s4361 = scalar_lea.vmem %s0, 8
  %s4362 = smov 12
  %v4363 = vld [vmem:[%s4361] ss:$16 sm:%s4362]
  %vm4364 = vcmask 1043458
  %v4365 = vsel %vm4364, %v4363, %v4360
  %s4366 = scalar_lea.vmem %s0, 8
  %s4367 = smov 48
  %v4368 = vld [vmem:[%s4366] ss:$16 sm:%s4367]
  %vm4369 = vcmask 1045508
  %v4370 = vsel %vm4369, %v4368, %v4365
  %s4371 = scalar_lea.vmem %s0, 8
  %s4372 = smov 192
  %v4373 = vld [vmem:[%s4371] ss:$16 sm:%s4372]
  %vm4374 = vcmask 1047558
  %v4375 = vsel %vm4374, %v4373, %v4370
  %4376 = vrot.lane.b32.xlu0 %v4375, 32
  %v4377 = vpop.permute.xlu0 %4376
  %vm4378 = vcmask 294144
  %4379 = vst.msk [vmem:[%s1] sm:$0xff] %vm4378, %v4377
  %s4380 = scalar_lea.vmem %s0, 520
  %s4381 = smov 3
  %v4382 = vld [vmem:[%s4380] ss:$16 sm:%s4381]
  %s4383 = scalar_lea.vmem %s0, 520
  %s4384 = smov 12
  %v4385 = vld [vmem:[%s4383] ss:$16 sm:%s4384]
  %vm4386 = vcmask 1043458
  %v4387 = vsel %vm4386, %v4385, %v4382
  %s4388 = scalar_lea.vmem %s0, 520
  %s4389 = smov 48
  %v4390 = vld [vmem:[%s4388] ss:$16 sm:%s4389]
  %vm4391 = vcmask 1045508
  %v4392 = vsel %vm4391, %v4390, %v4387
  %s4393 = scalar_lea.vmem %s0, 520
  %s4394 = smov 192
  %v4395 = vld [vmem:[%s4393] ss:$16 sm:%s4394]
  %vm4396 = vcmask 1047558
  %v4397 = vsel %vm4396, %v4395, %v4392
  %4398 = vrot.lane.b32.xlu0 %v4397, 32
  %v4399 = vpop.permute.xlu0 %4398
  %vm4400 = vcmask 294144
  %s4401 = scalar_lea.vmem %s1, 32
  %4402 = vst.msk [vmem:[%s4401] sm:$0xff] %vm4400, %v4399
  %s4403 = scalar_lea.vmem %s0, 1032
  %s4404 = smov 3
  %v4405 = vld [vmem:[%s4403] ss:$16 sm:%s4404]
  %s4406 = scalar_lea.vmem %s0, 1032
  %s4407 = smov 12
  %v4408 = vld [vmem:[%s4406] ss:$16 sm:%s4407]
  %vm4409 = vcmask 1043458
  %v4410 = vsel %vm4409, %v4408, %v4405
  %s4411 = scalar_lea.vmem %s0, 1032
  %s4412 = smov 48
  %v4413 = vld [vmem:[%s4411] ss:$16 sm:%s4412]
  %vm4414 = vcmask 1045508
  %v4415 = vsel %vm4414, %v4413, %v4410
  %s4416 = scalar_lea.vmem %s0, 1032
  %s4417 = smov 192
  %v4418 = vld [vmem:[%s4416] ss:$16 sm:%s4417]
  %vm4419 = vcmask 1047558
  %v4420 = vsel %vm4419, %v4418, %v4415
  %4421 = vrot.lane.b32.xlu0 %v4420, 32
  %v4422 = vpop.permute.xlu0 %4421
  %vm4423 = vcmask 294144
  %s4424 = scalar_lea.vmem %s1, 64
  %4425 = vst.msk [vmem:[%s4424] sm:$0xff] %vm4423, %v4422
  %s4426 = scalar_lea.vmem %s0, 1544
  %s4427 = smov 3
  %v4428 = vld [vmem:[%s4426] ss:$16 sm:%s4427]
  %s4429 = scalar_lea.vmem %s0, 1544
  %s4430 = smov 12
  %v4431 = vld [vmem:[%s4429] ss:$16 sm:%s4430]
  %vm4432 = vcmask 1043458
  %v4433 = vsel %vm4432, %v4431, %v4428
  %s4434 = scalar_lea.vmem %s0, 1544
  %s4435 = smov 48
  %v4436 = vld [vmem:[%s4434] ss:$16 sm:%s4435]
  %vm4437 = vcmask 1045508
  %v4438 = vsel %vm4437, %v4436, %v4433
  %s4439 = scalar_lea.vmem %s0, 1544
  %s4440 = smov 192
  %v4441 = vld [vmem:[%s4439] ss:$16 sm:%s4440]
  %vm4442 = vcmask 1047558
  %v4443 = vsel %vm4442, %v4441, %v4438
  %4444 = vrot.lane.b32.xlu0 %v4443, 32
  %v4445 = vpop.permute.xlu0 %4444
  %vm4446 = vcmask 294144
  %s4447 = scalar_lea.vmem %s1, 96
  %4448 = vst.msk [vmem:[%s4447] sm:$0xff] %vm4446, %v4445
  %s4449 = scalar_lea.vmem %s0, 2056
  %s4450 = smov 3
  %v4451 = vld [vmem:[%s4449] ss:$16 sm:%s4450]
  %s4452 = scalar_lea.vmem %s0, 2056
  %s4453 = smov 12
  %v4454 = vld [vmem:[%s4452] ss:$16 sm:%s4453]
  %vm4455 = vcmask 1043458
  %v4456 = vsel %vm4455, %v4454, %v4451
  %s4457 = scalar_lea.vmem %s0, 2056
  %s4458 = smov 48
  %v4459 = vld [vmem:[%s4457] ss:$16 sm:%s4458]
  %vm4460 = vcmask 1045508
  %v4461 = vsel %vm4460, %v4459, %v4456
  %s4462 = scalar_lea.vmem %s0, 2056
  %s4463 = smov 192
  %v4464 = vld [vmem:[%s4462] ss:$16 sm:%s4463]
  %vm4465 = vcmask 1047558
  %v4466 = vsel %vm4465, %v4464, %v4461
  %4467 = vrot.lane.b32.xlu0 %v4466, 32
  %v4468 = vpop.permute.xlu0 %4467
  %vm4469 = vcmask 294144
  %s4470 = scalar_lea.vmem %s1, 128
  %4471 = vst.msk [vmem:[%s4470] sm:$0xff] %vm4469, %v4468
  %s4472 = scalar_lea.vmem %s0, 2568
  %s4473 = smov 3
  %v4474 = vld [vmem:[%s4472] ss:$16 sm:%s4473]
  %s4475 = scalar_lea.vmem %s0, 2568
  %s4476 = smov 12
  %v4477 = vld [vmem:[%s4475] ss:$16 sm:%s4476]
  %vm4478 = vcmask 1043458
  %v4479 = vsel %vm4478, %v4477, %v4474
  %s4480 = scalar_lea.vmem %s0, 2568
  %s4481 = smov 48
  %v4482 = vld [vmem:[%s4480] ss:$16 sm:%s4481]
  %vm4483 = vcmask 1045508
  %v4484 = vsel %vm4483, %v4482, %v4479
  %s4485 = scalar_lea.vmem %s0, 2568
  %s4486 = smov 192
  %v4487 = vld [vmem:[%s4485] ss:$16 sm:%s4486]
  %vm4488 = vcmask 1047558
  %v4489 = vsel %vm4488, %v4487, %v4484
  %4490 = vrot.lane.b32.xlu0 %v4489, 32
  %v4491 = vpop.permute.xlu0 %4490
  %vm4492 = vcmask 294144
  %s4493 = scalar_lea.vmem %s1, 160
  %4494 = vst.msk [vmem:[%s4493] sm:$0xff] %vm4492, %v4491
  %s4495 = scalar_lea.vmem %s0, 136
  %s4496 = smov 3
  %v4497 = vld [vmem:[%s4495] ss:$16 sm:%s4496]
  %s4498 = scalar_lea.vmem %s0, 136
  %s4499 = smov 12
  %v4500 = vld [vmem:[%s4498] ss:$16 sm:%s4499]
  %vm4501 = vcmask 1043458
  %v4502 = vsel %vm4501, %v4500, %v4497
  %s4503 = scalar_lea.vmem %s0, 136
  %s4504 = smov 48
  %v4505 = vld [vmem:[%s4503] ss:$16 sm:%s4504]
  %vm4506 = vcmask 1045508
  %v4507 = vsel %vm4506, %v4505, %v4502
  %s4508 = scalar_lea.vmem %s0, 136
  %s4509 = smov 192
  %v4510 = vld [vmem:[%s4508] ss:$16 sm:%s4509]
  %vm4511 = vcmask 1047558
  %v4512 = vsel %vm4511, %v4510, %v4507
  %4513 = vrot.lane.b32.xlu0 %v4512, 32
  %v4514 = vpop.permute.xlu0 %4513
  %vm4515 = vcmask 294144
  %s4516 = scalar_lea.vmem %s1, 8
  %4517 = vst.msk [vmem:[%s4516] sm:$0xff] %vm4515, %v4514
  %s4518 = scalar_lea.vmem %s0, 648
  %s4519 = smov 3
  %v4520 = vld [vmem:[%s4518] ss:$16 sm:%s4519]
  %s4521 = scalar_lea.vmem %s0, 648
  %s4522 = smov 12
  %v4523 = vld [vmem:[%s4521] ss:$16 sm:%s4522]
  %vm4524 = vcmask 1043458
  %v4525 = vsel %vm4524, %v4523, %v4520
  %s4526 = scalar_lea.vmem %s0, 648
  %s4527 = smov 48
  %v4528 = vld [vmem:[%s4526] ss:$16 sm:%s4527]
  %vm4529 = vcmask 1045508
  %v4530 = vsel %vm4529, %v4528, %v4525
  %s4531 = scalar_lea.vmem %s0, 648
  %s4532 = smov 192
  %v4533 = vld [vmem:[%s4531] ss:$16 sm:%s4532]
  %vm4534 = vcmask 1047558
  %v4535 = vsel %vm4534, %v4533, %v4530
  %4536 = vrot.lane.b32.xlu0 %v4535, 32
  %v4537 = vpop.permute.xlu0 %4536
  %vm4538 = vcmask 294144
  %s4539 = scalar_lea.vmem %s1, 40
  %4540 = vst.msk [vmem:[%s4539] sm:$0xff] %vm4538, %v4537
  %s4541 = scalar_lea.vmem %s0, 1160
  %s4542 = smov 3
  %v4543 = vld [vmem:[%s4541] ss:$16 sm:%s4542]
  %s4544 = scalar_lea.vmem %s0, 1160
  %s4545 = smov 12
  %v4546 = vld [vmem:[%s4544] ss:$16 sm:%s4545]
  %vm4547 = vcmask 1043458
  %v4548 = vsel %vm4547, %v4546, %v4543
  %s4549 = scalar_lea.vmem %s0, 1160
  %s4550 = smov 48
  %v4551 = vld [vmem:[%s4549] ss:$16 sm:%s4550]
  %vm4552 = vcmask 1045508
  %v4553 = vsel %vm4552, %v4551, %v4548
  %s4554 = scalar_lea.vmem %s0, 1160
  %s4555 = smov 192
  %v4556 = vld [vmem:[%s4554] ss:$16 sm:%s4555]
  %vm4557 = vcmask 1047558
  %v4558 = vsel %vm4557, %v4556, %v4553
  %4559 = vrot.lane.b32.xlu0 %v4558, 32
  %v4560 = vpop.permute.xlu0 %4559
  %vm4561 = vcmask 294144
  %s4562 = scalar_lea.vmem %s1, 72
  %4563 = vst.msk [vmem:[%s4562] sm:$0xff] %vm4561, %v4560
  %s4564 = scalar_lea.vmem %s0, 1672
  %s4565 = smov 3
  %v4566 = vld [vmem:[%s4564] ss:$16 sm:%s4565]
  %s4567 = scalar_lea.vmem %s0, 1672
  %s4568 = smov 12
  %v4569 = vld [vmem:[%s4567] ss:$16 sm:%s4568]
  %vm4570 = vcmask 1043458
  %v4571 = vsel %vm4570, %v4569, %v4566
  %s4572 = scalar_lea.vmem %s0, 1672
  %s4573 = smov 48
  %v4574 = vld [vmem:[%s4572] ss:$16 sm:%s4573]
  %vm4575 = vcmask 1045508
  %v4576 = vsel %vm4575, %v4574, %v4571
  %s4577 = scalar_lea.vmem %s0, 1672
  %s4578 = smov 192
  %v4579 = vld [vmem:[%s4577] ss:$16 sm:%s4578]
  %vm4580 = vcmask 1047558
  %v4581 = vsel %vm4580, %v4579, %v4576
  %4582 = vrot.lane.b32.xlu0 %v4581, 32
  %v4583 = vpop.permute.xlu0 %4582
  %vm4584 = vcmask 294144
  %s4585 = scalar_lea.vmem %s1, 104
  %4586 = vst.msk [vmem:[%s4585] sm:$0xff] %vm4584, %v4583
  %s4587 = scalar_lea.vmem %s0, 2184
  %s4588 = smov 3
  %v4589 = vld [vmem:[%s4587] ss:$16 sm:%s4588]
  %s4590 = scalar_lea.vmem %s0, 2184
  %s4591 = smov 12
  %v4592 = vld [vmem:[%s4590] ss:$16 sm:%s4591]
  %vm4593 = vcmask 1043458
  %v4594 = vsel %vm4593, %v4592, %v4589
  %s4595 = scalar_lea.vmem %s0, 2184
  %s4596 = smov 48
  %v4597 = vld [vmem:[%s4595] ss:$16 sm:%s4596]
  %vm4598 = vcmask 1045508
  %v4599 = vsel %vm4598, %v4597, %v4594
  %s4600 = scalar_lea.vmem %s0, 2184
  %s4601 = smov 192
  %v4602 = vld [vmem:[%s4600] ss:$16 sm:%s4601]
  %vm4603 = vcmask 1047558
  %v4604 = vsel %vm4603, %v4602, %v4599
  %4605 = vrot.lane.b32.xlu0 %v4604, 32
  %v4606 = vpop.permute.xlu0 %4605
  %vm4607 = vcmask 294144
  %s4608 = scalar_lea.vmem %s1, 136
  %4609 = vst.msk [vmem:[%s4608] sm:$0xff] %vm4607, %v4606
  %s4610 = scalar_lea.vmem %s0, 2696
  %s4611 = smov 3
  %v4612 = vld [vmem:[%s4610] ss:$16 sm:%s4611]
  %s4613 = scalar_lea.vmem %s0, 2696
  %s4614 = smov 12
  %v4615 = vld [vmem:[%s4613] ss:$16 sm:%s4614]
  %vm4616 = vcmask 1043458
  %v4617 = vsel %vm4616, %v4615, %v4612
  %s4618 = scalar_lea.vmem %s0, 2696
  %s4619 = smov 48
  %v4620 = vld [vmem:[%s4618] ss:$16 sm:%s4619]
  %vm4621 = vcmask 1045508
  %v4622 = vsel %vm4621, %v4620, %v4617
  %s4623 = scalar_lea.vmem %s0, 2696
  %s4624 = smov 192
  %v4625 = vld [vmem:[%s4623] ss:$16 sm:%s4624]
  %vm4626 = vcmask 1047558
  %v4627 = vsel %vm4626, %v4625, %v4622
  %4628 = vrot.lane.b32.xlu0 %v4627, 32
  %v4629 = vpop.permute.xlu0 %4628
  %vm4630 = vcmask 294144
  %s4631 = scalar_lea.vmem %s1, 168
  %4632 = vst.msk [vmem:[%s4631] sm:$0xff] %vm4630, %v4629
  %s4633 = scalar_lea.vmem %s0, 264
  %s4634 = smov 3
  %v4635 = vld [vmem:[%s4633] ss:$16 sm:%s4634]
  %s4636 = scalar_lea.vmem %s0, 264
  %s4637 = smov 12
  %v4638 = vld [vmem:[%s4636] ss:$16 sm:%s4637]
  %vm4639 = vcmask 1043458
  %v4640 = vsel %vm4639, %v4638, %v4635
  %s4641 = scalar_lea.vmem %s0, 264
  %s4642 = smov 48
  %v4643 = vld [vmem:[%s4641] ss:$16 sm:%s4642]
  %vm4644 = vcmask 1045508
  %v4645 = vsel %vm4644, %v4643, %v4640
  %s4646 = scalar_lea.vmem %s0, 264
  %s4647 = smov 192
  %v4648 = vld [vmem:[%s4646] ss:$16 sm:%s4647]
  %vm4649 = vcmask 1047558
  %v4650 = vsel %vm4649, %v4648, %v4645
  %4651 = vrot.lane.b32.xlu0 %v4650, 32
  %v4652 = vpop.permute.xlu0 %4651
  %vm4653 = vcmask 294144
  %s4654 = scalar_lea.vmem %s1, 16
  %4655 = vst.msk [vmem:[%s4654] sm:$0xff] %vm4653, %v4652
  %s4656 = scalar_lea.vmem %s0, 776
  %s4657 = smov 3
  %v4658 = vld [vmem:[%s4656] ss:$16 sm:%s4657]
  %s4659 = scalar_lea.vmem %s0, 776
  %s4660 = smov 12
  %v4661 = vld [vmem:[%s4659] ss:$16 sm:%s4660]
  %vm4662 = vcmask 1043458
  %v4663 = vsel %vm4662, %v4661, %v4658
  %s4664 = scalar_lea.vmem %s0, 776
  %s4665 = smov 48
  %v4666 = vld [vmem:[%s4664] ss:$16 sm:%s4665]
  %vm4667 = vcmask 1045508
  %v4668 = vsel %vm4667, %v4666, %v4663
  %s4669 = scalar_lea.vmem %s0, 776
  %s4670 = smov 192
  %v4671 = vld [vmem:[%s4669] ss:$16 sm:%s4670]
  %vm4672 = vcmask 1047558
  %v4673 = vsel %vm4672, %v4671, %v4668
  %4674 = vrot.lane.b32.xlu0 %v4673, 32
  %v4675 = vpop.permute.xlu0 %4674
  %vm4676 = vcmask 294144
  %s4677 = scalar_lea.vmem %s1, 48
  %4678 = vst.msk [vmem:[%s4677] sm:$0xff] %vm4676, %v4675
  %s4679 = scalar_lea.vmem %s0, 1288
  %s4680 = smov 3
  %v4681 = vld [vmem:[%s4679] ss:$16 sm:%s4680]
  %s4682 = scalar_lea.vmem %s0, 1288
  %s4683 = smov 12
  %v4684 = vld [vmem:[%s4682] ss:$16 sm:%s4683]
  %vm4685 = vcmask 1043458
  %v4686 = vsel %vm4685, %v4684, %v4681
  %s4687 = scalar_lea.vmem %s0, 1288
  %s4688 = smov 48
  %v4689 = vld [vmem:[%s4687] ss:$16 sm:%s4688]
  %vm4690 = vcmask 1045508
  %v4691 = vsel %vm4690, %v4689, %v4686
  %s4692 = scalar_lea.vmem %s0, 1288
  %s4693 = smov 192
  %v4694 = vld [vmem:[%s4692] ss:$16 sm:%s4693]
  %vm4695 = vcmask 1047558
  %v4696 = vsel %vm4695, %v4694, %v4691
  %4697 = vrot.lane.b32.xlu0 %v4696, 32
  %v4698 = vpop.permute.xlu0 %4697
  %vm4699 = vcmask 294144
  %s4700 = scalar_lea.vmem %s1, 80
  %4701 = vst.msk [vmem:[%s4700] sm:$0xff] %vm4699, %v4698
  %s4702 = scalar_lea.vmem %s0, 1800
  %s4703 = smov 3
  %v4704 = vld [vmem:[%s4702] ss:$16 sm:%s4703]
  %s4705 = scalar_lea.vmem %s0, 1800
  %s4706 = smov 12
  %v4707 = vld [vmem:[%s4705] ss:$16 sm:%s4706]
  %vm4708 = vcmask 1043458
  %v4709 = vsel %vm4708, %v4707, %v4704
  %s4710 = scalar_lea.vmem %s0, 1800
  %s4711 = smov 48
  %v4712 = vld [vmem:[%s4710] ss:$16 sm:%s4711]
  %vm4713 = vcmask 1045508
  %v4714 = vsel %vm4713, %v4712, %v4709
  %s4715 = scalar_lea.vmem %s0, 1800
  %s4716 = smov 192
  %v4717 = vld [vmem:[%s4715] ss:$16 sm:%s4716]
  %vm4718 = vcmask 1047558
  %v4719 = vsel %vm4718, %v4717, %v4714
  %4720 = vrot.lane.b32.xlu0 %v4719, 32
  %v4721 = vpop.permute.xlu0 %4720
  %vm4722 = vcmask 294144
  %s4723 = scalar_lea.vmem %s1, 112
  %4724 = vst.msk [vmem:[%s4723] sm:$0xff] %vm4722, %v4721
  %s4725 = scalar_lea.vmem %s0, 2312
  %s4726 = smov 3
  %v4727 = vld [vmem:[%s4725] ss:$16 sm:%s4726]
  %s4728 = scalar_lea.vmem %s0, 2312
  %s4729 = smov 12
  %v4730 = vld [vmem:[%s4728] ss:$16 sm:%s4729]
  %vm4731 = vcmask 1043458
  %v4732 = vsel %vm4731, %v4730, %v4727
  %s4733 = scalar_lea.vmem %s0, 2312
  %s4734 = smov 48
  %v4735 = vld [vmem:[%s4733] ss:$16 sm:%s4734]
  %vm4736 = vcmask 1045508
  %v4737 = vsel %vm4736, %v4735, %v4732
  %s4738 = scalar_lea.vmem %s0, 2312
  %s4739 = smov 192
  %v4740 = vld [vmem:[%s4738] ss:$16 sm:%s4739]
  %vm4741 = vcmask 1047558
  %v4742 = vsel %vm4741, %v4740, %v4737
  %4743 = vrot.lane.b32.xlu0 %v4742, 32
  %v4744 = vpop.permute.xlu0 %4743
  %vm4745 = vcmask 294144
  %s4746 = scalar_lea.vmem %s1, 144
  %4747 = vst.msk [vmem:[%s4746] sm:$0xff] %vm4745, %v4744
  %s4748 = scalar_lea.vmem %s0, 2824
  %s4749 = smov 3
  %v4750 = vld [vmem:[%s4748] ss:$16 sm:%s4749]
  %s4751 = scalar_lea.vmem %s0, 2824
  %s4752 = smov 12
  %v4753 = vld [vmem:[%s4751] ss:$16 sm:%s4752]
  %vm4754 = vcmask 1043458
  %v4755 = vsel %vm4754, %v4753, %v4750
  %s4756 = scalar_lea.vmem %s0, 2824
  %s4757 = smov 48
  %v4758 = vld [vmem:[%s4756] ss:$16 sm:%s4757]
  %vm4759 = vcmask 1045508
  %v4760 = vsel %vm4759, %v4758, %v4755
  %s4761 = scalar_lea.vmem %s0, 2824
  %s4762 = smov 192
  %v4763 = vld [vmem:[%s4761] ss:$16 sm:%s4762]
  %vm4764 = vcmask 1047558
  %v4765 = vsel %vm4764, %v4763, %v4760
  %4766 = vrot.lane.b32.xlu0 %v4765, 32
  %v4767 = vpop.permute.xlu0 %4766
  %vm4768 = vcmask 294144
  %s4769 = scalar_lea.vmem %s1, 176
  %4770 = vst.msk [vmem:[%s4769] sm:$0xff] %vm4768, %v4767
  %s4771 = scalar_lea.vmem %s0, 392
  %s4772 = smov 3
  %v4773 = vld [vmem:[%s4771] ss:$16 sm:%s4772]
  %s4774 = scalar_lea.vmem %s0, 392
  %s4775 = smov 12
  %v4776 = vld [vmem:[%s4774] ss:$16 sm:%s4775]
  %vm4777 = vcmask 1043458
  %v4778 = vsel %vm4777, %v4776, %v4773
  %s4779 = scalar_lea.vmem %s0, 392
  %s4780 = smov 48
  %v4781 = vld [vmem:[%s4779] ss:$16 sm:%s4780]
  %vm4782 = vcmask 1045508
  %v4783 = vsel %vm4782, %v4781, %v4778
  %s4784 = scalar_lea.vmem %s0, 392
  %s4785 = smov 192
  %v4786 = vld [vmem:[%s4784] ss:$16 sm:%s4785]
  %vm4787 = vcmask 1047558
  %v4788 = vsel %vm4787, %v4786, %v4783
  %4789 = vrot.lane.b32.xlu0 %v4788, 32
  %v4790 = vpop.permute.xlu0 %4789
  %vm4791 = vcmask 294144
  %s4792 = scalar_lea.vmem %s1, 24
  %4793 = vst.msk [vmem:[%s4792] sm:$0xff] %vm4791, %v4790
  %s4794 = scalar_lea.vmem %s0, 904
  %s4795 = smov 3
  %v4796 = vld [vmem:[%s4794] ss:$16 sm:%s4795]
  %s4797 = scalar_lea.vmem %s0, 904
  %s4798 = smov 12
  %v4799 = vld [vmem:[%s4797] ss:$16 sm:%s4798]
  %vm4800 = vcmask 1043458
  %v4801 = vsel %vm4800, %v4799, %v4796
  %s4802 = scalar_lea.vmem %s0, 904
  %s4803 = smov 48
  %v4804 = vld [vmem:[%s4802] ss:$16 sm:%s4803]
  %vm4805 = vcmask 1045508
  %v4806 = vsel %vm4805, %v4804, %v4801
  %s4807 = scalar_lea.vmem %s0, 904
  %s4808 = smov 192
  %v4809 = vld [vmem:[%s4807] ss:$16 sm:%s4808]
  %vm4810 = vcmask 1047558
  %v4811 = vsel %vm4810, %v4809, %v4806
  %4812 = vrot.lane.b32.xlu0 %v4811, 32
  %v4813 = vpop.permute.xlu0 %4812
  %vm4814 = vcmask 294144
  %s4815 = scalar_lea.vmem %s1, 56
  %4816 = vst.msk [vmem:[%s4815] sm:$0xff] %vm4814, %v4813
  %s4817 = scalar_lea.vmem %s0, 1416
  %s4818 = smov 3
  %v4819 = vld [vmem:[%s4817] ss:$16 sm:%s4818]
  %s4820 = scalar_lea.vmem %s0, 1416
  %s4821 = smov 12
  %v4822 = vld [vmem:[%s4820] ss:$16 sm:%s4821]
  %vm4823 = vcmask 1043458
  %v4824 = vsel %vm4823, %v4822, %v4819
  %s4825 = scalar_lea.vmem %s0, 1416
  %s4826 = smov 48
  %v4827 = vld [vmem:[%s4825] ss:$16 sm:%s4826]
  %vm4828 = vcmask 1045508
  %v4829 = vsel %vm4828, %v4827, %v4824
  %s4830 = scalar_lea.vmem %s0, 1416
  %s4831 = smov 192
  %v4832 = vld [vmem:[%s4830] ss:$16 sm:%s4831]
  %vm4833 = vcmask 1047558
  %v4834 = vsel %vm4833, %v4832, %v4829
  %4835 = vrot.lane.b32.xlu0 %v4834, 32
  %v4836 = vpop.permute.xlu0 %4835
  %vm4837 = vcmask 294144
  %s4838 = scalar_lea.vmem %s1, 88
  %4839 = vst.msk [vmem:[%s4838] sm:$0xff] %vm4837, %v4836
  %s4840 = scalar_lea.vmem %s0, 1928
  %s4841 = smov 3
  %v4842 = vld [vmem:[%s4840] ss:$16 sm:%s4841]
  %s4843 = scalar_lea.vmem %s0, 1928
  %s4844 = smov 12
  %v4845 = vld [vmem:[%s4843] ss:$16 sm:%s4844]
  %vm4846 = vcmask 1043458
  %v4847 = vsel %vm4846, %v4845, %v4842
  %s4848 = scalar_lea.vmem %s0, 1928
  %s4849 = smov 48
  %v4850 = vld [vmem:[%s4848] ss:$16 sm:%s4849]
  %vm4851 = vcmask 1045508
  %v4852 = vsel %vm4851, %v4850, %v4847
  %s4853 = scalar_lea.vmem %s0, 1928
  %s4854 = smov 192
  %v4855 = vld [vmem:[%s4853] ss:$16 sm:%s4854]
  %vm4856 = vcmask 1047558
  %v4857 = vsel %vm4856, %v4855, %v4852
  %4858 = vrot.lane.b32.xlu0 %v4857, 32
  %v4859 = vpop.permute.xlu0 %4858
  %vm4860 = vcmask 294144
  %s4861 = scalar_lea.vmem %s1, 120
  %4862 = vst.msk [vmem:[%s4861] sm:$0xff] %vm4860, %v4859
  %s4863 = scalar_lea.vmem %s0, 2440
  %s4864 = smov 3
  %v4865 = vld [vmem:[%s4863] ss:$16 sm:%s4864]
  %s4866 = scalar_lea.vmem %s0, 2440
  %s4867 = smov 12
  %v4868 = vld [vmem:[%s4866] ss:$16 sm:%s4867]
  %vm4869 = vcmask 1043458
  %v4870 = vsel %vm4869, %v4868, %v4865
  %s4871 = scalar_lea.vmem %s0, 2440
  %s4872 = smov 48
  %v4873 = vld [vmem:[%s4871] ss:$16 sm:%s4872]
  %vm4874 = vcmask 1045508
  %v4875 = vsel %vm4874, %v4873, %v4870
  %s4876 = scalar_lea.vmem %s0, 2440
  %s4877 = smov 192
  %v4878 = vld [vmem:[%s4876] ss:$16 sm:%s4877]
  %vm4879 = vcmask 1047558
  %v4880 = vsel %vm4879, %v4878, %v4875
  %4881 = vrot.lane.b32.xlu0 %v4880, 32
  %v4882 = vpop.permute.xlu0 %4881
  %vm4883 = vcmask 294144
  %s4884 = scalar_lea.vmem %s1, 152
  %4885 = vst.msk [vmem:[%s4884] sm:$0xff] %vm4883, %v4882
  %s4886 = scalar_lea.vmem %s0, 2952
  %s4887 = smov 3
  %v4888 = vld [vmem:[%s4886] ss:$16 sm:%s4887]
  %s4889 = scalar_lea.vmem %s0, 2952
  %s4890 = smov 12
  %v4891 = vld [vmem:[%s4889] ss:$16 sm:%s4890]
  %vm4892 = vcmask 1043458
  %v4893 = vsel %vm4892, %v4891, %v4888
  %s4894 = scalar_lea.vmem %s0, 2952
  %s4895 = smov 48
  %v4896 = vld [vmem:[%s4894] ss:$16 sm:%s4895]
  %vm4897 = vcmask 1045508
  %v4898 = vsel %vm4897, %v4896, %v4893
  %s4899 = scalar_lea.vmem %s0, 2952
  %s4900 = smov 192
  %v4901 = vld [vmem:[%s4899] ss:$16 sm:%s4900]
  %vm4902 = vcmask 1047558
  %v4903 = vsel %vm4902, %v4901, %v4898
  %4904 = vrot.lane.b32.xlu0 %v4903, 32
  %v4905 = vpop.permute.xlu0 %4904
  %vm4906 = vcmask 294144
  %s4907 = scalar_lea.vmem %s1, 184
  %4908 = vst.msk [vmem:[%s4907] sm:$0xff] %vm4906, %v4905
  %s4909 = scalar_lea.vmem %s0, 7
  %s4910 = smov 3
  %v4911 = vld [vmem:[%s4909] ss:$16 sm:%s4910]
  %s4912 = scalar_lea.vmem %s0, 7
  %s4913 = smov 12
  %v4914 = vld [vmem:[%s4912] ss:$16 sm:%s4913]
  %vm4915 = vcmask 1043458
  %v4916 = vsel %vm4915, %v4914, %v4911
  %s4917 = scalar_lea.vmem %s0, 7
  %s4918 = smov 48
  %v4919 = vld [vmem:[%s4917] ss:$16 sm:%s4918]
  %vm4920 = vcmask 1045508
  %v4921 = vsel %vm4920, %v4919, %v4916
  %s4922 = scalar_lea.vmem %s0, 7
  %s4923 = smov 192
  %v4924 = vld [vmem:[%s4922] ss:$16 sm:%s4923]
  %vm4925 = vcmask 1047558
  %v4926 = vsel %vm4925, %v4924, %v4921
  %4927 = vrot.lane.b32.xlu0 %v4926, 28
  %v4928 = vpop.permute.xlu0 %4927
  %vm4929 = vcmask 261344
  %4930 = vst.msk [vmem:[%s1] sm:$0xff] %vm4929, %v4928
  %s4931 = scalar_lea.vmem %s0, 519
  %s4932 = smov 3
  %v4933 = vld [vmem:[%s4931] ss:$16 sm:%s4932]
  %s4934 = scalar_lea.vmem %s0, 519
  %s4935 = smov 12
  %v4936 = vld [vmem:[%s4934] ss:$16 sm:%s4935]
  %vm4937 = vcmask 1043458
  %v4938 = vsel %vm4937, %v4936, %v4933
  %s4939 = scalar_lea.vmem %s0, 519
  %s4940 = smov 48
  %v4941 = vld [vmem:[%s4939] ss:$16 sm:%s4940]
  %vm4942 = vcmask 1045508
  %v4943 = vsel %vm4942, %v4941, %v4938
  %s4944 = scalar_lea.vmem %s0, 519
  %s4945 = smov 192
  %v4946 = vld [vmem:[%s4944] ss:$16 sm:%s4945]
  %vm4947 = vcmask 1047558
  %v4948 = vsel %vm4947, %v4946, %v4943
  %4949 = vrot.lane.b32.xlu0 %v4948, 28
  %v4950 = vpop.permute.xlu0 %4949
  %vm4951 = vcmask 261344
  %s4952 = scalar_lea.vmem %s1, 32
  %4953 = vst.msk [vmem:[%s4952] sm:$0xff] %vm4951, %v4950
  %s4954 = scalar_lea.vmem %s0, 1031
  %s4955 = smov 3
  %v4956 = vld [vmem:[%s4954] ss:$16 sm:%s4955]
  %s4957 = scalar_lea.vmem %s0, 1031
  %s4958 = smov 12
  %v4959 = vld [vmem:[%s4957] ss:$16 sm:%s4958]
  %vm4960 = vcmask 1043458
  %v4961 = vsel %vm4960, %v4959, %v4956
  %s4962 = scalar_lea.vmem %s0, 1031
  %s4963 = smov 48
  %v4964 = vld [vmem:[%s4962] ss:$16 sm:%s4963]
  %vm4965 = vcmask 1045508
  %v4966 = vsel %vm4965, %v4964, %v4961
  %s4967 = scalar_lea.vmem %s0, 1031
  %s4968 = smov 192
  %v4969 = vld [vmem:[%s4967] ss:$16 sm:%s4968]
  %vm4970 = vcmask 1047558
  %v4971 = vsel %vm4970, %v4969, %v4966
  %4972 = vrot.lane.b32.xlu0 %v4971, 28
  %v4973 = vpop.permute.xlu0 %4972
  %vm4974 = vcmask 261344
  %s4975 = scalar_lea.vmem %s1, 64
  %4976 = vst.msk [vmem:[%s4975] sm:$0xff] %vm4974, %v4973
  %s4977 = scalar_lea.vmem %s0, 1543
  %s4978 = smov 3
  %v4979 = vld [vmem:[%s4977] ss:$16 sm:%s4978]
  %s4980 = scalar_lea.vmem %s0, 1543
  %s4981 = smov 12
  %v4982 = vld [vmem:[%s4980] ss:$16 sm:%s4981]
  %vm4983 = vcmask 1043458
  %v4984 = vsel %vm4983, %v4982, %v4979
  %s4985 = scalar_lea.vmem %s0, 1543
  %s4986 = smov 48
  %v4987 = vld [vmem:[%s4985] ss:$16 sm:%s4986]
  %vm4988 = vcmask 1045508
  %v4989 = vsel %vm4988, %v4987, %v4984
  %s4990 = scalar_lea.vmem %s0, 1543
  %s4991 = smov 192
  %v4992 = vld [vmem:[%s4990] ss:$16 sm:%s4991]
  %vm4993 = vcmask 1047558
  %v4994 = vsel %vm4993, %v4992, %v4989
  %4995 = vrot.lane.b32.xlu0 %v4994, 28
  %v4996 = vpop.permute.xlu0 %4995
  %vm4997 = vcmask 261344
  %s4998 = scalar_lea.vmem %s1, 96
  %4999 = vst.msk [vmem:[%s4998] sm:$0xff] %vm4997, %v4996
  %s5000 = scalar_lea.vmem %s0, 2055
  %s5001 = smov 3
  %v5002 = vld [vmem:[%s5000] ss:$16 sm:%s5001]
  %s5003 = scalar_lea.vmem %s0, 2055
  %s5004 = smov 12
  %v5005 = vld [vmem:[%s5003] ss:$16 sm:%s5004]
  %vm5006 = vcmask 1043458
  %v5007 = vsel %vm5006, %v5005, %v5002
  %s5008 = scalar_lea.vmem %s0, 2055
  %s5009 = smov 48
  %v5010 = vld [vmem:[%s5008] ss:$16 sm:%s5009]
  %vm5011 = vcmask 1045508
  %v5012 = vsel %vm5011, %v5010, %v5007
  %s5013 = scalar_lea.vmem %s0, 2055
  %s5014 = smov 192
  %v5015 = vld [vmem:[%s5013] ss:$16 sm:%s5014]
  %vm5016 = vcmask 1047558
  %v5017 = vsel %vm5016, %v5015, %v5012
  %5018 = vrot.lane.b32.xlu0 %v5017, 28
  %v5019 = vpop.permute.xlu0 %5018
  %vm5020 = vcmask 261344
  %s5021 = scalar_lea.vmem %s1, 128
  %5022 = vst.msk [vmem:[%s5021] sm:$0xff] %vm5020, %v5019
  %s5023 = scalar_lea.vmem %s0, 2567
  %s5024 = smov 3
  %v5025 = vld [vmem:[%s5023] ss:$16 sm:%s5024]
  %s5026 = scalar_lea.vmem %s0, 2567
  %s5027 = smov 12
  %v5028 = vld [vmem:[%s5026] ss:$16 sm:%s5027]
  %vm5029 = vcmask 1043458
  %v5030 = vsel %vm5029, %v5028, %v5025
  %s5031 = scalar_lea.vmem %s0, 2567
  %s5032 = smov 48
  %v5033 = vld [vmem:[%s5031] ss:$16 sm:%s5032]
  %vm5034 = vcmask 1045508
  %v5035 = vsel %vm5034, %v5033, %v5030
  %s5036 = scalar_lea.vmem %s0, 2567
  %s5037 = smov 192
  %v5038 = vld [vmem:[%s5036] ss:$16 sm:%s5037]
  %vm5039 = vcmask 1047558
  %v5040 = vsel %vm5039, %v5038, %v5035
  %5041 = vrot.lane.b32.xlu0 %v5040, 28
  %v5042 = vpop.permute.xlu0 %5041
  %vm5043 = vcmask 261344
  %s5044 = scalar_lea.vmem %s1, 160
  %5045 = vst.msk [vmem:[%s5044] sm:$0xff] %vm5043, %v5042
  %s5046 = scalar_lea.vmem %s0, 135
  %s5047 = smov 3
  %v5048 = vld [vmem:[%s5046] ss:$16 sm:%s5047]
  %s5049 = scalar_lea.vmem %s0, 135
  %s5050 = smov 12
  %v5051 = vld [vmem:[%s5049] ss:$16 sm:%s5050]
  %vm5052 = vcmask 1043458
  %v5053 = vsel %vm5052, %v5051, %v5048
  %s5054 = scalar_lea.vmem %s0, 135
  %s5055 = smov 48
  %v5056 = vld [vmem:[%s5054] ss:$16 sm:%s5055]
  %vm5057 = vcmask 1045508
  %v5058 = vsel %vm5057, %v5056, %v5053
  %s5059 = scalar_lea.vmem %s0, 135
  %s5060 = smov 192
  %v5061 = vld [vmem:[%s5059] ss:$16 sm:%s5060]
  %vm5062 = vcmask 1047558
  %v5063 = vsel %vm5062, %v5061, %v5058
  %5064 = vrot.lane.b32.xlu0 %v5063, 28
  %v5065 = vpop.permute.xlu0 %5064
  %vm5066 = vcmask 261344
  %s5067 = scalar_lea.vmem %s1, 8
  %5068 = vst.msk [vmem:[%s5067] sm:$0xff] %vm5066, %v5065
  %s5069 = scalar_lea.vmem %s0, 647
  %s5070 = smov 3
  %v5071 = vld [vmem:[%s5069] ss:$16 sm:%s5070]
  %s5072 = scalar_lea.vmem %s0, 647
  %s5073 = smov 12
  %v5074 = vld [vmem:[%s5072] ss:$16 sm:%s5073]
  %vm5075 = vcmask 1043458
  %v5076 = vsel %vm5075, %v5074, %v5071
  %s5077 = scalar_lea.vmem %s0, 647
  %s5078 = smov 48
  %v5079 = vld [vmem:[%s5077] ss:$16 sm:%s5078]
  %vm5080 = vcmask 1045508
  %v5081 = vsel %vm5080, %v5079, %v5076
  %s5082 = scalar_lea.vmem %s0, 647
  %s5083 = smov 192
  %v5084 = vld [vmem:[%s5082] ss:$16 sm:%s5083]
  %vm5085 = vcmask 1047558
  %v5086 = vsel %vm5085, %v5084, %v5081
  %5087 = vrot.lane.b32.xlu0 %v5086, 28
  %v5088 = vpop.permute.xlu0 %5087
  %vm5089 = vcmask 261344
  %s5090 = scalar_lea.vmem %s1, 40
  %5091 = vst.msk [vmem:[%s5090] sm:$0xff] %vm5089, %v5088
  %s5092 = scalar_lea.vmem %s0, 1159
  %s5093 = smov 3
  %v5094 = vld [vmem:[%s5092] ss:$16 sm:%s5093]
  %s5095 = scalar_lea.vmem %s0, 1159
  %s5096 = smov 12
  %v5097 = vld [vmem:[%s5095] ss:$16 sm:%s5096]
  %vm5098 = vcmask 1043458
  %v5099 = vsel %vm5098, %v5097, %v5094
  %s5100 = scalar_lea.vmem %s0, 1159
  %s5101 = smov 48
  %v5102 = vld [vmem:[%s5100] ss:$16 sm:%s5101]
  %vm5103 = vcmask 1045508
  %v5104 = vsel %vm5103, %v5102, %v5099
  %s5105 = scalar_lea.vmem %s0, 1159
  %s5106 = smov 192
  %v5107 = vld [vmem:[%s5105] ss:$16 sm:%s5106]
  %vm5108 = vcmask 1047558
  %v5109 = vsel %vm5108, %v5107, %v5104
  %5110 = vrot.lane.b32.xlu0 %v5109, 28
  %v5111 = vpop.permute.xlu0 %5110
  %vm5112 = vcmask 261344
  %s5113 = scalar_lea.vmem %s1, 72
  %5114 = vst.msk [vmem:[%s5113] sm:$0xff] %vm5112, %v5111
  %s5115 = scalar_lea.vmem %s0, 1671
  %s5116 = smov 3
  %v5117 = vld [vmem:[%s5115] ss:$16 sm:%s5116]
  %s5118 = scalar_lea.vmem %s0, 1671
  %s5119 = smov 12
  %v5120 = vld [vmem:[%s5118] ss:$16 sm:%s5119]
  %vm5121 = vcmask 1043458
  %v5122 = vsel %vm5121, %v5120, %v5117
  %s5123 = scalar_lea.vmem %s0, 1671
  %s5124 = smov 48
  %v5125 = vld [vmem:[%s5123] ss:$16 sm:%s5124]
  %vm5126 = vcmask 1045508
  %v5127 = vsel %vm5126, %v5125, %v5122
  %s5128 = scalar_lea.vmem %s0, 1671
  %s5129 = smov 192
  %v5130 = vld [vmem:[%s5128] ss:$16 sm:%s5129]
  %vm5131 = vcmask 1047558
  %v5132 = vsel %vm5131, %v5130, %v5127
  %5133 = vrot.lane.b32.xlu0 %v5132, 28
  %v5134 = vpop.permute.xlu0 %5133
  %vm5135 = vcmask 261344
  %s5136 = scalar_lea.vmem %s1, 104
  %5137 = vst.msk [vmem:[%s5136] sm:$0xff] %vm5135, %v5134
  %s5138 = scalar_lea.vmem %s0, 2183
  %s5139 = smov 3
  %v5140 = vld [vmem:[%s5138] ss:$16 sm:%s5139]
  %s5141 = scalar_lea.vmem %s0, 2183
  %s5142 = smov 12
  %v5143 = vld [vmem:[%s5141] ss:$16 sm:%s5142]
  %vm5144 = vcmask 1043458
  %v5145 = vsel %vm5144, %v5143, %v5140
  %s5146 = scalar_lea.vmem %s0, 2183
  %s5147 = smov 48
  %v5148 = vld [vmem:[%s5146] ss:$16 sm:%s5147]
  %vm5149 = vcmask 1045508
  %v5150 = vsel %vm5149, %v5148, %v5145
  %s5151 = scalar_lea.vmem %s0, 2183
  %s5152 = smov 192
  %v5153 = vld [vmem:[%s5151] ss:$16 sm:%s5152]
  %vm5154 = vcmask 1047558
  %v5155 = vsel %vm5154, %v5153, %v5150
  %5156 = vrot.lane.b32.xlu0 %v5155, 28
  %v5157 = vpop.permute.xlu0 %5156
  %vm5158 = vcmask 261344
  %s5159 = scalar_lea.vmem %s1, 136
  %5160 = vst.msk [vmem:[%s5159] sm:$0xff] %vm5158, %v5157
  %s5161 = scalar_lea.vmem %s0, 2695
  %s5162 = smov 3
  %v5163 = vld [vmem:[%s5161] ss:$16 sm:%s5162]
  %s5164 = scalar_lea.vmem %s0, 2695
  %s5165 = smov 12
  %v5166 = vld [vmem:[%s5164] ss:$16 sm:%s5165]
  %vm5167 = vcmask 1043458
  %v5168 = vsel %vm5167, %v5166, %v5163
  %s5169 = scalar_lea.vmem %s0, 2695
  %s5170 = smov 48
  %v5171 = vld [vmem:[%s5169] ss:$16 sm:%s5170]
  %vm5172 = vcmask 1045508
  %v5173 = vsel %vm5172, %v5171, %v5168
  %s5174 = scalar_lea.vmem %s0, 2695
  %s5175 = smov 192
  %v5176 = vld [vmem:[%s5174] ss:$16 sm:%s5175]
  %vm5177 = vcmask 1047558
  %v5178 = vsel %vm5177, %v5176, %v5173
  %5179 = vrot.lane.b32.xlu0 %v5178, 28
  %v5180 = vpop.permute.xlu0 %5179
  %vm5181 = vcmask 261344
  %s5182 = scalar_lea.vmem %s1, 168
  %5183 = vst.msk [vmem:[%s5182] sm:$0xff] %vm5181, %v5180
  %s5184 = scalar_lea.vmem %s0, 263
  %s5185 = smov 3
  %v5186 = vld [vmem:[%s5184] ss:$16 sm:%s5185]
  %s5187 = scalar_lea.vmem %s0, 263
  %s5188 = smov 12
  %v5189 = vld [vmem:[%s5187] ss:$16 sm:%s5188]
  %vm5190 = vcmask 1043458
  %v5191 = vsel %vm5190, %v5189, %v5186
  %s5192 = scalar_lea.vmem %s0, 263
  %s5193 = smov 48
  %v5194 = vld [vmem:[%s5192] ss:$16 sm:%s5193]
  %vm5195 = vcmask 1045508
  %v5196 = vsel %vm5195, %v5194, %v5191
  %s5197 = scalar_lea.vmem %s0, 263
  %s5198 = smov 192
  %v5199 = vld [vmem:[%s5197] ss:$16 sm:%s5198]
  %vm5200 = vcmask 1047558
  %v5201 = vsel %vm5200, %v5199, %v5196
  %5202 = vrot.lane.b32.xlu0 %v5201, 28
  %v5203 = vpop.permute.xlu0 %5202
  %vm5204 = vcmask 261344
  %s5205 = scalar_lea.vmem %s1, 16
  %5206 = vst.msk [vmem:[%s5205] sm:$0xff] %vm5204, %v5203
  %s5207 = scalar_lea.vmem %s0, 775
  %s5208 = smov 3
  %v5209 = vld [vmem:[%s5207] ss:$16 sm:%s5208]
  %s5210 = scalar_lea.vmem %s0, 775
  %s5211 = smov 12
  %v5212 = vld [vmem:[%s5210] ss:$16 sm:%s5211]
  %vm5213 = vcmask 1043458
  %v5214 = vsel %vm5213, %v5212, %v5209
  %s5215 = scalar_lea.vmem %s0, 775
  %s5216 = smov 48
  %v5217 = vld [vmem:[%s5215] ss:$16 sm:%s5216]
  %vm5218 = vcmask 1045508
  %v5219 = vsel %vm5218, %v5217, %v5214
  %s5220 = scalar_lea.vmem %s0, 775
  %s5221 = smov 192
  %v5222 = vld [vmem:[%s5220] ss:$16 sm:%s5221]
  %vm5223 = vcmask 1047558
  %v5224 = vsel %vm5223, %v5222, %v5219
  %5225 = vrot.lane.b32.xlu0 %v5224, 28
  %v5226 = vpop.permute.xlu0 %5225
  %vm5227 = vcmask 261344
  %s5228 = scalar_lea.vmem %s1, 48
  %5229 = vst.msk [vmem:[%s5228] sm:$0xff] %vm5227, %v5226
  %s5230 = scalar_lea.vmem %s0, 1287
  %s5231 = smov 3
  %v5232 = vld [vmem:[%s5230] ss:$16 sm:%s5231]
  %s5233 = scalar_lea.vmem %s0, 1287
  %s5234 = smov 12
  %v5235 = vld [vmem:[%s5233] ss:$16 sm:%s5234]
  %vm5236 = vcmask 1043458
  %v5237 = vsel %vm5236, %v5235, %v5232
  %s5238 = scalar_lea.vmem %s0, 1287
  %s5239 = smov 48
  %v5240 = vld [vmem:[%s5238] ss:$16 sm:%s5239]
  %vm5241 = vcmask 1045508
  %v5242 = vsel %vm5241, %v5240, %v5237
  %s5243 = scalar_lea.vmem %s0, 1287
  %s5244 = smov 192
  %v5245 = vld [vmem:[%s5243] ss:$16 sm:%s5244]
  %vm5246 = vcmask 1047558
  %v5247 = vsel %vm5246, %v5245, %v5242
  %5248 = vrot.lane.b32.xlu0 %v5247, 28
  %v5249 = vpop.permute.xlu0 %5248
  %vm5250 = vcmask 261344
  %s5251 = scalar_lea.vmem %s1, 80
  %5252 = vst.msk [vmem:[%s5251] sm:$0xff] %vm5250, %v5249
  %s5253 = scalar_lea.vmem %s0, 1799
  %s5254 = smov 3
  %v5255 = vld [vmem:[%s5253] ss:$16 sm:%s5254]
  %s5256 = scalar_lea.vmem %s0, 1799
  %s5257 = smov 12
  %v5258 = vld [vmem:[%s5256] ss:$16 sm:%s5257]
  %vm5259 = vcmask 1043458
  %v5260 = vsel %vm5259, %v5258, %v5255
  %s5261 = scalar_lea.vmem %s0, 1799
  %s5262 = smov 48
  %v5263 = vld [vmem:[%s5261] ss:$16 sm:%s5262]
  %vm5264 = vcmask 1045508
  %v5265 = vsel %vm5264, %v5263, %v5260
  %s5266 = scalar_lea.vmem %s0, 1799
  %s5267 = smov 192
  %v5268 = vld [vmem:[%s5266] ss:$16 sm:%s5267]
  %vm5269 = vcmask 1047558
  %v5270 = vsel %vm5269, %v5268, %v5265
  %5271 = vrot.lane.b32.xlu0 %v5270, 28
  %v5272 = vpop.permute.xlu0 %5271
  %vm5273 = vcmask 261344
  %s5274 = scalar_lea.vmem %s1, 112
  %5275 = vst.msk [vmem:[%s5274] sm:$0xff] %vm5273, %v5272
  %s5276 = scalar_lea.vmem %s0, 2311
  %s5277 = smov 3
  %v5278 = vld [vmem:[%s5276] ss:$16 sm:%s5277]
  %s5279 = scalar_lea.vmem %s0, 2311
  %s5280 = smov 12
  %v5281 = vld [vmem:[%s5279] ss:$16 sm:%s5280]
  %vm5282 = vcmask 1043458
  %v5283 = vsel %vm5282, %v5281, %v5278
  %s5284 = scalar_lea.vmem %s0, 2311
  %s5285 = smov 48
  %v5286 = vld [vmem:[%s5284] ss:$16 sm:%s5285]
  %vm5287 = vcmask 1045508
  %v5288 = vsel %vm5287, %v5286, %v5283
  %s5289 = scalar_lea.vmem %s0, 2311
  %s5290 = smov 192
  %v5291 = vld [vmem:[%s5289] ss:$16 sm:%s5290]
  %vm5292 = vcmask 1047558
  %v5293 = vsel %vm5292, %v5291, %v5288
  %5294 = vrot.lane.b32.xlu0 %v5293, 28
  %v5295 = vpop.permute.xlu0 %5294
  %vm5296 = vcmask 261344
  %s5297 = scalar_lea.vmem %s1, 144
  %5298 = vst.msk [vmem:[%s5297] sm:$0xff] %vm5296, %v5295
  %s5299 = scalar_lea.vmem %s0, 2823
  %s5300 = smov 3
  %v5301 = vld [vmem:[%s5299] ss:$16 sm:%s5300]
  %s5302 = scalar_lea.vmem %s0, 2823
  %s5303 = smov 12
  %v5304 = vld [vmem:[%s5302] ss:$16 sm:%s5303]
  %vm5305 = vcmask 1043458
  %v5306 = vsel %vm5305, %v5304, %v5301
  %s5307 = scalar_lea.vmem %s0, 2823
  %s5308 = smov 48
  %v5309 = vld [vmem:[%s5307] ss:$16 sm:%s5308]
  %vm5310 = vcmask 1045508
  %v5311 = vsel %vm5310, %v5309, %v5306
  %s5312 = scalar_lea.vmem %s0, 2823
  %s5313 = smov 192
  %v5314 = vld [vmem:[%s5312] ss:$16 sm:%s5313]
  %vm5315 = vcmask 1047558
  %v5316 = vsel %vm5315, %v5314, %v5311
  %5317 = vrot.lane.b32.xlu0 %v5316, 28
  %v5318 = vpop.permute.xlu0 %5317
  %vm5319 = vcmask 261344
  %s5320 = scalar_lea.vmem %s1, 176
  %5321 = vst.msk [vmem:[%s5320] sm:$0xff] %vm5319, %v5318
  %s5322 = scalar_lea.vmem %s0, 391
  %s5323 = smov 3
  %v5324 = vld [vmem:[%s5322] ss:$16 sm:%s5323]
  %s5325 = scalar_lea.vmem %s0, 391
  %s5326 = smov 12
  %v5327 = vld [vmem:[%s5325] ss:$16 sm:%s5326]
  %vm5328 = vcmask 1043458
  %v5329 = vsel %vm5328, %v5327, %v5324
  %s5330 = scalar_lea.vmem %s0, 391
  %s5331 = smov 48
  %v5332 = vld [vmem:[%s5330] ss:$16 sm:%s5331]
  %vm5333 = vcmask 1045508
  %v5334 = vsel %vm5333, %v5332, %v5329
  %s5335 = scalar_lea.vmem %s0, 391
  %s5336 = smov 192
  %v5337 = vld [vmem:[%s5335] ss:$16 sm:%s5336]
  %vm5338 = vcmask 1047558
  %v5339 = vsel %vm5338, %v5337, %v5334
  %5340 = vrot.lane.b32.xlu0 %v5339, 28
  %v5341 = vpop.permute.xlu0 %5340
  %vm5342 = vcmask 261344
  %s5343 = scalar_lea.vmem %s1, 24
  %5344 = vst.msk [vmem:[%s5343] sm:$0xff] %vm5342, %v5341
  %s5345 = scalar_lea.vmem %s0, 903
  %s5346 = smov 3
  %v5347 = vld [vmem:[%s5345] ss:$16 sm:%s5346]
  %s5348 = scalar_lea.vmem %s0, 903
  %s5349 = smov 12
  %v5350 = vld [vmem:[%s5348] ss:$16 sm:%s5349]
  %vm5351 = vcmask 1043458
  %v5352 = vsel %vm5351, %v5350, %v5347
  %s5353 = scalar_lea.vmem %s0, 903
  %s5354 = smov 48
  %v5355 = vld [vmem:[%s5353] ss:$16 sm:%s5354]
  %vm5356 = vcmask 1045508
  %v5357 = vsel %vm5356, %v5355, %v5352
  %s5358 = scalar_lea.vmem %s0, 903
  %s5359 = smov 192
  %v5360 = vld [vmem:[%s5358] ss:$16 sm:%s5359]
  %vm5361 = vcmask 1047558
  %v5362 = vsel %vm5361, %v5360, %v5357
  %5363 = vrot.lane.b32.xlu0 %v5362, 28
  %v5364 = vpop.permute.xlu0 %5363
  %vm5365 = vcmask 261344
  %s5366 = scalar_lea.vmem %s1, 56
  %5367 = vst.msk [vmem:[%s5366] sm:$0xff] %vm5365, %v5364
  %s5368 = scalar_lea.vmem %s0, 1415
  %s5369 = smov 3
  %v5370 = vld [vmem:[%s5368] ss:$16 sm:%s5369]
  %s5371 = scalar_lea.vmem %s0, 1415
  %s5372 = smov 12
  %v5373 = vld [vmem:[%s5371] ss:$16 sm:%s5372]
  %vm5374 = vcmask 1043458
  %v5375 = vsel %vm5374, %v5373, %v5370
  %s5376 = scalar_lea.vmem %s0, 1415
  %s5377 = smov 48
  %v5378 = vld [vmem:[%s5376] ss:$16 sm:%s5377]
  %vm5379 = vcmask 1045508
  %v5380 = vsel %vm5379, %v5378, %v5375
  %s5381 = scalar_lea.vmem %s0, 1415
  %s5382 = smov 192
  %v5383 = vld [vmem:[%s5381] ss:$16 sm:%s5382]
  %vm5384 = vcmask 1047558
  %v5385 = vsel %vm5384, %v5383, %v5380
  %5386 = vrot.lane.b32.xlu0 %v5385, 28
  %v5387 = vpop.permute.xlu0 %5386
  %vm5388 = vcmask 261344
  %s5389 = scalar_lea.vmem %s1, 88
  %5390 = vst.msk [vmem:[%s5389] sm:$0xff] %vm5388, %v5387
  %s5391 = scalar_lea.vmem %s0, 1927
  %s5392 = smov 3
  %v5393 = vld [vmem:[%s5391] ss:$16 sm:%s5392]
  %s5394 = scalar_lea.vmem %s0, 1927
  %s5395 = smov 12
  %v5396 = vld [vmem:[%s5394] ss:$16 sm:%s5395]
  %vm5397 = vcmask 1043458
  %v5398 = vsel %vm5397, %v5396, %v5393
  %s5399 = scalar_lea.vmem %s0, 1927
  %s5400 = smov 48
  %v5401 = vld [vmem:[%s5399] ss:$16 sm:%s5400]
  %vm5402 = vcmask 1045508
  %v5403 = vsel %vm5402, %v5401, %v5398
  %s5404 = scalar_lea.vmem %s0, 1927
  %s5405 = smov 192
  %v5406 = vld [vmem:[%s5404] ss:$16 sm:%s5405]
  %vm5407 = vcmask 1047558
  %v5408 = vsel %vm5407, %v5406, %v5403
  %5409 = vrot.lane.b32.xlu0 %v5408, 28
  %v5410 = vpop.permute.xlu0 %5409
  %vm5411 = vcmask 261344
  %s5412 = scalar_lea.vmem %s1, 120
  %5413 = vst.msk [vmem:[%s5412] sm:$0xff] %vm5411, %v5410
  %s5414 = scalar_lea.vmem %s0, 2439
  %s5415 = smov 3
  %v5416 = vld [vmem:[%s5414] ss:$16 sm:%s5415]
  %s5417 = scalar_lea.vmem %s0, 2439
  %s5418 = smov 12
  %v5419 = vld [vmem:[%s5417] ss:$16 sm:%s5418]
  %vm5420 = vcmask 1043458
  %v5421 = vsel %vm5420, %v5419, %v5416
  %s5422 = scalar_lea.vmem %s0, 2439
  %s5423 = smov 48
  %v5424 = vld [vmem:[%s5422] ss:$16 sm:%s5423]
  %vm5425 = vcmask 1045508
  %v5426 = vsel %vm5425, %v5424, %v5421
  %s5427 = scalar_lea.vmem %s0, 2439
  %s5428 = smov 192
  %v5429 = vld [vmem:[%s5427] ss:$16 sm:%s5428]
  %vm5430 = vcmask 1047558
  %v5431 = vsel %vm5430, %v5429, %v5426
  %5432 = vrot.lane.b32.xlu0 %v5431, 28
  %v5433 = vpop.permute.xlu0 %5432
  %vm5434 = vcmask 261344
  %s5435 = scalar_lea.vmem %s1, 152
  %5436 = vst.msk [vmem:[%s5435] sm:$0xff] %vm5434, %v5433
  %s5437 = scalar_lea.vmem %s0, 2951
  %s5438 = smov 3
  %v5439 = vld [vmem:[%s5437] ss:$16 sm:%s5438]
  %s5440 = scalar_lea.vmem %s0, 2951
  %s5441 = smov 12
  %v5442 = vld [vmem:[%s5440] ss:$16 sm:%s5441]
  %vm5443 = vcmask 1043458
  %v5444 = vsel %vm5443, %v5442, %v5439
  %s5445 = scalar_lea.vmem %s0, 2951
  %s5446 = smov 48
  %v5447 = vld [vmem:[%s5445] ss:$16 sm:%s5446]
  %vm5448 = vcmask 1045508
  %v5449 = vsel %vm5448, %v5447, %v5444
  %s5450 = scalar_lea.vmem %s0, 2951
  %s5451 = smov 192
  %v5452 = vld [vmem:[%s5450] ss:$16 sm:%s5451]
  %vm5453 = vcmask 1047558
  %v5454 = vsel %vm5453, %v5452, %v5449
  %5455 = vrot.lane.b32.xlu0 %v5454, 28
  %v5456 = vpop.permute.xlu0 %5455
  %vm5457 = vcmask 261344
  %s5458 = scalar_lea.vmem %s1, 184
  %5459 = vst.msk [vmem:[%s5458] sm:$0xff] %vm5457, %v5456
  %s5460 = scalar_lea.vmem %s0, 6
  %s5461 = smov 3
  %v5462 = vld [vmem:[%s5460] ss:$16 sm:%s5461]
  %s5463 = scalar_lea.vmem %s0, 6
  %s5464 = smov 12
  %v5465 = vld [vmem:[%s5463] ss:$16 sm:%s5464]
  %vm5466 = vcmask 1043458
  %v5467 = vsel %vm5466, %v5465, %v5462
  %s5468 = scalar_lea.vmem %s0, 6
  %s5469 = smov 48
  %v5470 = vld [vmem:[%s5468] ss:$16 sm:%s5469]
  %vm5471 = vcmask 1045508
  %v5472 = vsel %vm5471, %v5470, %v5467
  %s5473 = scalar_lea.vmem %s0, 6
  %s5474 = smov 192
  %v5475 = vld [vmem:[%s5473] ss:$16 sm:%s5474]
  %vm5476 = vcmask 1047558
  %v5477 = vsel %vm5476, %v5475, %v5472
  %5478 = vrot.lane.b32.xlu0 %v5477, 24
  %v5479 = vpop.permute.xlu0 %5478
  %vm5480 = vcmask 228544
  %5481 = vst.msk [vmem:[%s1] sm:$0xff] %vm5480, %v5479
  %s5482 = scalar_lea.vmem %s0, 518
  %s5483 = smov 3
  %v5484 = vld [vmem:[%s5482] ss:$16 sm:%s5483]
  %s5485 = scalar_lea.vmem %s0, 518
  %s5486 = smov 12
  %v5487 = vld [vmem:[%s5485] ss:$16 sm:%s5486]
  %vm5488 = vcmask 1043458
  %v5489 = vsel %vm5488, %v5487, %v5484
  %s5490 = scalar_lea.vmem %s0, 518
  %s5491 = smov 48
  %v5492 = vld [vmem:[%s5490] ss:$16 sm:%s5491]
  %vm5493 = vcmask 1045508
  %v5494 = vsel %vm5493, %v5492, %v5489
  %s5495 = scalar_lea.vmem %s0, 518
  %s5496 = smov 192
  %v5497 = vld [vmem:[%s5495] ss:$16 sm:%s5496]
  %vm5498 = vcmask 1047558
  %v5499 = vsel %vm5498, %v5497, %v5494
  %5500 = vrot.lane.b32.xlu0 %v5499, 24
  %v5501 = vpop.permute.xlu0 %5500
  %vm5502 = vcmask 228544
  %s5503 = scalar_lea.vmem %s1, 32
  %5504 = vst.msk [vmem:[%s5503] sm:$0xff] %vm5502, %v5501
  %s5505 = scalar_lea.vmem %s0, 1030
  %s5506 = smov 3
  %v5507 = vld [vmem:[%s5505] ss:$16 sm:%s5506]
  %s5508 = scalar_lea.vmem %s0, 1030
  %s5509 = smov 12
  %v5510 = vld [vmem:[%s5508] ss:$16 sm:%s5509]
  %vm5511 = vcmask 1043458
  %v5512 = vsel %vm5511, %v5510, %v5507
  %s5513 = scalar_lea.vmem %s0, 1030
  %s5514 = smov 48
  %v5515 = vld [vmem:[%s5513] ss:$16 sm:%s5514]
  %vm5516 = vcmask 1045508
  %v5517 = vsel %vm5516, %v5515, %v5512
  %s5518 = scalar_lea.vmem %s0, 1030
  %s5519 = smov 192
  %v5520 = vld [vmem:[%s5518] ss:$16 sm:%s5519]
  %vm5521 = vcmask 1047558
  %v5522 = vsel %vm5521, %v5520, %v5517
  %5523 = vrot.lane.b32.xlu0 %v5522, 24
  %v5524 = vpop.permute.xlu0 %5523
  %vm5525 = vcmask 228544
  %s5526 = scalar_lea.vmem %s1, 64
  %5527 = vst.msk [vmem:[%s5526] sm:$0xff] %vm5525, %v5524
  %s5528 = scalar_lea.vmem %s0, 1542
  %s5529 = smov 3
  %v5530 = vld [vmem:[%s5528] ss:$16 sm:%s5529]
  %s5531 = scalar_lea.vmem %s0, 1542
  %s5532 = smov 12
  %v5533 = vld [vmem:[%s5531] ss:$16 sm:%s5532]
  %vm5534 = vcmask 1043458
  %v5535 = vsel %vm5534, %v5533, %v5530
  %s5536 = scalar_lea.vmem %s0, 1542
  %s5537 = smov 48
  %v5538 = vld [vmem:[%s5536] ss:$16 sm:%s5537]
  %vm5539 = vcmask 1045508
  %v5540 = vsel %vm5539, %v5538, %v5535
  %s5541 = scalar_lea.vmem %s0, 1542
  %s5542 = smov 192
  %v5543 = vld [vmem:[%s5541] ss:$16 sm:%s5542]
  %vm5544 = vcmask 1047558
  %v5545 = vsel %vm5544, %v5543, %v5540
  %5546 = vrot.lane.b32.xlu0 %v5545, 24
  %v5547 = vpop.permute.xlu0 %5546
  %vm5548 = vcmask 228544
  %s5549 = scalar_lea.vmem %s1, 96
  %5550 = vst.msk [vmem:[%s5549] sm:$0xff] %vm5548, %v5547
  %s5551 = scalar_lea.vmem %s0, 2054
  %s5552 = smov 3
  %v5553 = vld [vmem:[%s5551] ss:$16 sm:%s5552]
  %s5554 = scalar_lea.vmem %s0, 2054
  %s5555 = smov 12
  %v5556 = vld [vmem:[%s5554] ss:$16 sm:%s5555]
  %vm5557 = vcmask 1043458
  %v5558 = vsel %vm5557, %v5556, %v5553
  %s5559 = scalar_lea.vmem %s0, 2054
  %s5560 = smov 48
  %v5561 = vld [vmem:[%s5559] ss:$16 sm:%s5560]
  %vm5562 = vcmask 1045508
  %v5563 = vsel %vm5562, %v5561, %v5558
  %s5564 = scalar_lea.vmem %s0, 2054
  %s5565 = smov 192
  %v5566 = vld [vmem:[%s5564] ss:$16 sm:%s5565]
  %vm5567 = vcmask 1047558
  %v5568 = vsel %vm5567, %v5566, %v5563
  %5569 = vrot.lane.b32.xlu0 %v5568, 24
  %v5570 = vpop.permute.xlu0 %5569
  %vm5571 = vcmask 228544
  %s5572 = scalar_lea.vmem %s1, 128
  %5573 = vst.msk [vmem:[%s5572] sm:$0xff] %vm5571, %v5570
  %s5574 = scalar_lea.vmem %s0, 2566
  %s5575 = smov 3
  %v5576 = vld [vmem:[%s5574] ss:$16 sm:%s5575]
  %s5577 = scalar_lea.vmem %s0, 2566
  %s5578 = smov 12
  %v5579 = vld [vmem:[%s5577] ss:$16 sm:%s5578]
  %vm5580 = vcmask 1043458
  %v5581 = vsel %vm5580, %v5579, %v5576
  %s5582 = scalar_lea.vmem %s0, 2566
  %s5583 = smov 48
  %v5584 = vld [vmem:[%s5582] ss:$16 sm:%s5583]
  %vm5585 = vcmask 1045508
  %v5586 = vsel %vm5585, %v5584, %v5581
  %s5587 = scalar_lea.vmem %s0, 2566
  %s5588 = smov 192
  %v5589 = vld [vmem:[%s5587] ss:$16 sm:%s5588]
  %vm5590 = vcmask 1047558
  %v5591 = vsel %vm5590, %v5589, %v5586
  %5592 = vrot.lane.b32.xlu0 %v5591, 24
  %v5593 = vpop.permute.xlu0 %5592
  %vm5594 = vcmask 228544
  %s5595 = scalar_lea.vmem %s1, 160
  %5596 = vst.msk [vmem:[%s5595] sm:$0xff] %vm5594, %v5593
  %s5597 = scalar_lea.vmem %s0, 134
  %s5598 = smov 3
  %v5599 = vld [vmem:[%s5597] ss:$16 sm:%s5598]
  %s5600 = scalar_lea.vmem %s0, 134
  %s5601 = smov 12
  %v5602 = vld [vmem:[%s5600] ss:$16 sm:%s5601]
  %vm5603 = vcmask 1043458
  %v5604 = vsel %vm5603, %v5602, %v5599
  %s5605 = scalar_lea.vmem %s0, 134
  %s5606 = smov 48
  %v5607 = vld [vmem:[%s5605] ss:$16 sm:%s5606]
  %vm5608 = vcmask 1045508
  %v5609 = vsel %vm5608, %v5607, %v5604
  %s5610 = scalar_lea.vmem %s0, 134
  %s5611 = smov 192
  %v5612 = vld [vmem:[%s5610] ss:$16 sm:%s5611]
  %vm5613 = vcmask 1047558
  %v5614 = vsel %vm5613, %v5612, %v5609
  %5615 = vrot.lane.b32.xlu0 %v5614, 24
  %v5616 = vpop.permute.xlu0 %5615
  %vm5617 = vcmask 228544
  %s5618 = scalar_lea.vmem %s1, 8
  %5619 = vst.msk [vmem:[%s5618] sm:$0xff] %vm5617, %v5616
  %s5620 = scalar_lea.vmem %s0, 646
  %s5621 = smov 3
  %v5622 = vld [vmem:[%s5620] ss:$16 sm:%s5621]
  %s5623 = scalar_lea.vmem %s0, 646
  %s5624 = smov 12
  %v5625 = vld [vmem:[%s5623] ss:$16 sm:%s5624]
  %vm5626 = vcmask 1043458
  %v5627 = vsel %vm5626, %v5625, %v5622
  %s5628 = scalar_lea.vmem %s0, 646
  %s5629 = smov 48
  %v5630 = vld [vmem:[%s5628] ss:$16 sm:%s5629]
  %vm5631 = vcmask 1045508
  %v5632 = vsel %vm5631, %v5630, %v5627
  %s5633 = scalar_lea.vmem %s0, 646
  %s5634 = smov 192
  %v5635 = vld [vmem:[%s5633] ss:$16 sm:%s5634]
  %vm5636 = vcmask 1047558
  %v5637 = vsel %vm5636, %v5635, %v5632
  %5638 = vrot.lane.b32.xlu0 %v5637, 24
  %v5639 = vpop.permute.xlu0 %5638
  %vm5640 = vcmask 228544
  %s5641 = scalar_lea.vmem %s1, 40
  %5642 = vst.msk [vmem:[%s5641] sm:$0xff] %vm5640, %v5639
  %s5643 = scalar_lea.vmem %s0, 1158
  %s5644 = smov 3
  %v5645 = vld [vmem:[%s5643] ss:$16 sm:%s5644]
  %s5646 = scalar_lea.vmem %s0, 1158
  %s5647 = smov 12
  %v5648 = vld [vmem:[%s5646] ss:$16 sm:%s5647]
  %vm5649 = vcmask 1043458
  %v5650 = vsel %vm5649, %v5648, %v5645
  %s5651 = scalar_lea.vmem %s0, 1158
  %s5652 = smov 48
  %v5653 = vld [vmem:[%s5651] ss:$16 sm:%s5652]
  %vm5654 = vcmask 1045508
  %v5655 = vsel %vm5654, %v5653, %v5650
  %s5656 = scalar_lea.vmem %s0, 1158
  %s5657 = smov 192
  %v5658 = vld [vmem:[%s5656] ss:$16 sm:%s5657]
  %vm5659 = vcmask 1047558
  %v5660 = vsel %vm5659, %v5658, %v5655
  %5661 = vrot.lane.b32.xlu0 %v5660, 24
  %v5662 = vpop.permute.xlu0 %5661
  %vm5663 = vcmask 228544
  %s5664 = scalar_lea.vmem %s1, 72
  %5665 = vst.msk [vmem:[%s5664] sm:$0xff] %vm5663, %v5662
  %s5666 = scalar_lea.vmem %s0, 1670
  %s5667 = smov 3
  %v5668 = vld [vmem:[%s5666] ss:$16 sm:%s5667]
  %s5669 = scalar_lea.vmem %s0, 1670
  %s5670 = smov 12
  %v5671 = vld [vmem:[%s5669] ss:$16 sm:%s5670]
  %vm5672 = vcmask 1043458
  %v5673 = vsel %vm5672, %v5671, %v5668
  %s5674 = scalar_lea.vmem %s0, 1670
  %s5675 = smov 48
  %v5676 = vld [vmem:[%s5674] ss:$16 sm:%s5675]
  %vm5677 = vcmask 1045508
  %v5678 = vsel %vm5677, %v5676, %v5673
  %s5679 = scalar_lea.vmem %s0, 1670
  %s5680 = smov 192
  %v5681 = vld [vmem:[%s5679] ss:$16 sm:%s5680]
  %vm5682 = vcmask 1047558
  %v5683 = vsel %vm5682, %v5681, %v5678
  %5684 = vrot.lane.b32.xlu0 %v5683, 24
  %v5685 = vpop.permute.xlu0 %5684
  %vm5686 = vcmask 228544
  %s5687 = scalar_lea.vmem %s1, 104
  %5688 = vst.msk [vmem:[%s5687] sm:$0xff] %vm5686, %v5685
  %s5689 = scalar_lea.vmem %s0, 2182
  %s5690 = smov 3
  %v5691 = vld [vmem:[%s5689] ss:$16 sm:%s5690]
  %s5692 = scalar_lea.vmem %s0, 2182
  %s5693 = smov 12
  %v5694 = vld [vmem:[%s5692] ss:$16 sm:%s5693]
  %vm5695 = vcmask 1043458
  %v5696 = vsel %vm5695, %v5694, %v5691
  %s5697 = scalar_lea.vmem %s0, 2182
  %s5698 = smov 48
  %v5699 = vld [vmem:[%s5697] ss:$16 sm:%s5698]
  %vm5700 = vcmask 1045508
  %v5701 = vsel %vm5700, %v5699, %v5696
  %s5702 = scalar_lea.vmem %s0, 2182
  %s5703 = smov 192
  %v5704 = vld [vmem:[%s5702] ss:$16 sm:%s5703]
  %vm5705 = vcmask 1047558
  %v5706 = vsel %vm5705, %v5704, %v5701
  %5707 = vrot.lane.b32.xlu0 %v5706, 24
  %v5708 = vpop.permute.xlu0 %5707
  %vm5709 = vcmask 228544
  %s5710 = scalar_lea.vmem %s1, 136
  %5711 = vst.msk [vmem:[%s5710] sm:$0xff] %vm5709, %v5708
  %s5712 = scalar_lea.vmem %s0, 2694
  %s5713 = smov 3
  %v5714 = vld [vmem:[%s5712] ss:$16 sm:%s5713]
  %s5715 = scalar_lea.vmem %s0, 2694
  %s5716 = smov 12
  %v5717 = vld [vmem:[%s5715] ss:$16 sm:%s5716]
  %vm5718 = vcmask 1043458
  %v5719 = vsel %vm5718, %v5717, %v5714
  %s5720 = scalar_lea.vmem %s0, 2694
  %s5721 = smov 48
  %v5722 = vld [vmem:[%s5720] ss:$16 sm:%s5721]
  %vm5723 = vcmask 1045508
  %v5724 = vsel %vm5723, %v5722, %v5719
  %s5725 = scalar_lea.vmem %s0, 2694
  %s5726 = smov 192
  %v5727 = vld [vmem:[%s5725] ss:$16 sm:%s5726]
  %vm5728 = vcmask 1047558
  %v5729 = vsel %vm5728, %v5727, %v5724
  %5730 = vrot.lane.b32.xlu0 %v5729, 24
  %v5731 = vpop.permute.xlu0 %5730
  %vm5732 = vcmask 228544
  %s5733 = scalar_lea.vmem %s1, 168
  %5734 = vst.msk [vmem:[%s5733] sm:$0xff] %vm5732, %v5731
  %s5735 = scalar_lea.vmem %s0, 262
  %s5736 = smov 3
  %v5737 = vld [vmem:[%s5735] ss:$16 sm:%s5736]
  %s5738 = scalar_lea.vmem %s0, 262
  %s5739 = smov 12
  %v5740 = vld [vmem:[%s5738] ss:$16 sm:%s5739]
  %vm5741 = vcmask 1043458
  %v5742 = vsel %vm5741, %v5740, %v5737
  %s5743 = scalar_lea.vmem %s0, 262
  %s5744 = smov 48
  %v5745 = vld [vmem:[%s5743] ss:$16 sm:%s5744]
  %vm5746 = vcmask 1045508
  %v5747 = vsel %vm5746, %v5745, %v5742
  %s5748 = scalar_lea.vmem %s0, 262
  %s5749 = smov 192
  %v5750 = vld [vmem:[%s5748] ss:$16 sm:%s5749]
  %vm5751 = vcmask 1047558
  %v5752 = vsel %vm5751, %v5750, %v5747
  %5753 = vrot.lane.b32.xlu0 %v5752, 24
  %v5754 = vpop.permute.xlu0 %5753
  %vm5755 = vcmask 228544
  %s5756 = scalar_lea.vmem %s1, 16
  %5757 = vst.msk [vmem:[%s5756] sm:$0xff] %vm5755, %v5754
  %s5758 = scalar_lea.vmem %s0, 774
  %s5759 = smov 3
  %v5760 = vld [vmem:[%s5758] ss:$16 sm:%s5759]
  %s5761 = scalar_lea.vmem %s0, 774
  %s5762 = smov 12
  %v5763 = vld [vmem:[%s5761] ss:$16 sm:%s5762]
  %vm5764 = vcmask 1043458
  %v5765 = vsel %vm5764, %v5763, %v5760
  %s5766 = scalar_lea.vmem %s0, 774
  %s5767 = smov 48
  %v5768 = vld [vmem:[%s5766] ss:$16 sm:%s5767]
  %vm5769 = vcmask 1045508
  %v5770 = vsel %vm5769, %v5768, %v5765
  %s5771 = scalar_lea.vmem %s0, 774
  %s5772 = smov 192
  %v5773 = vld [vmem:[%s5771] ss:$16 sm:%s5772]
  %vm5774 = vcmask 1047558
  %v5775 = vsel %vm5774, %v5773, %v5770
  %5776 = vrot.lane.b32.xlu0 %v5775, 24
  %v5777 = vpop.permute.xlu0 %5776
  %vm5778 = vcmask 228544
  %s5779 = scalar_lea.vmem %s1, 48
  %5780 = vst.msk [vmem:[%s5779] sm:$0xff] %vm5778, %v5777
  %s5781 = scalar_lea.vmem %s0, 1286
  %s5782 = smov 3
  %v5783 = vld [vmem:[%s5781] ss:$16 sm:%s5782]
  %s5784 = scalar_lea.vmem %s0, 1286
  %s5785 = smov 12
  %v5786 = vld [vmem:[%s5784] ss:$16 sm:%s5785]
  %vm5787 = vcmask 1043458
  %v5788 = vsel %vm5787, %v5786, %v5783
  %s5789 = scalar_lea.vmem %s0, 1286
  %s5790 = smov 48
  %v5791 = vld [vmem:[%s5789] ss:$16 sm:%s5790]
  %vm5792 = vcmask 1045508
  %v5793 = vsel %vm5792, %v5791, %v5788
  %s5794 = scalar_lea.vmem %s0, 1286
  %s5795 = smov 192
  %v5796 = vld [vmem:[%s5794] ss:$16 sm:%s5795]
  %vm5797 = vcmask 1047558
  %v5798 = vsel %vm5797, %v5796, %v5793
  %5799 = vrot.lane.b32.xlu0 %v5798, 24
  %v5800 = vpop.permute.xlu0 %5799
  %vm5801 = vcmask 228544
  %s5802 = scalar_lea.vmem %s1, 80
  %5803 = vst.msk [vmem:[%s5802] sm:$0xff] %vm5801, %v5800
  %s5804 = scalar_lea.vmem %s0, 1798
  %s5805 = smov 3
  %v5806 = vld [vmem:[%s5804] ss:$16 sm:%s5805]
  %s5807 = scalar_lea.vmem %s0, 1798
  %s5808 = smov 12
  %v5809 = vld [vmem:[%s5807] ss:$16 sm:%s5808]
  %vm5810 = vcmask 1043458
  %v5811 = vsel %vm5810, %v5809, %v5806
  %s5812 = scalar_lea.vmem %s0, 1798
  %s5813 = smov 48
  %v5814 = vld [vmem:[%s5812] ss:$16 sm:%s5813]
  %vm5815 = vcmask 1045508
  %v5816 = vsel %vm5815, %v5814, %v5811
  %s5817 = scalar_lea.vmem %s0, 1798
  %s5818 = smov 192
  %v5819 = vld [vmem:[%s5817] ss:$16 sm:%s5818]
  %vm5820 = vcmask 1047558
  %v5821 = vsel %vm5820, %v5819, %v5816
  %5822 = vrot.lane.b32.xlu0 %v5821, 24
  %v5823 = vpop.permute.xlu0 %5822
  %vm5824 = vcmask 228544
  %s5825 = scalar_lea.vmem %s1, 112
  %5826 = vst.msk [vmem:[%s5825] sm:$0xff] %vm5824, %v5823
  %s5827 = scalar_lea.vmem %s0, 2310
  %s5828 = smov 3
  %v5829 = vld [vmem:[%s5827] ss:$16 sm:%s5828]
  %s5830 = scalar_lea.vmem %s0, 2310
  %s5831 = smov 12
  %v5832 = vld [vmem:[%s5830] ss:$16 sm:%s5831]
  %vm5833 = vcmask 1043458
  %v5834 = vsel %vm5833, %v5832, %v5829
  %s5835 = scalar_lea.vmem %s0, 2310
  %s5836 = smov 48
  %v5837 = vld [vmem:[%s5835] ss:$16 sm:%s5836]
  %vm5838 = vcmask 1045508
  %v5839 = vsel %vm5838, %v5837, %v5834
  %s5840 = scalar_lea.vmem %s0, 2310
  %s5841 = smov 192
  %v5842 = vld [vmem:[%s5840] ss:$16 sm:%s5841]
  %vm5843 = vcmask 1047558
  %v5844 = vsel %vm5843, %v5842, %v5839
  %5845 = vrot.lane.b32.xlu0 %v5844, 24
  %v5846 = vpop.permute.xlu0 %5845
  %vm5847 = vcmask 228544
  %s5848 = scalar_lea.vmem %s1, 144
  %5849 = vst.msk [vmem:[%s5848] sm:$0xff] %vm5847, %v5846
  %s5850 = scalar_lea.vmem %s0, 2822
  %s5851 = smov 3
  %v5852 = vld [vmem:[%s5850] ss:$16 sm:%s5851]
  %s5853 = scalar_lea.vmem %s0, 2822
  %s5854 = smov 12
  %v5855 = vld [vmem:[%s5853] ss:$16 sm:%s5854]
  %vm5856 = vcmask 1043458
  %v5857 = vsel %vm5856, %v5855, %v5852
  %s5858 = scalar_lea.vmem %s0, 2822
  %s5859 = smov 48
  %v5860 = vld [vmem:[%s5858] ss:$16 sm:%s5859]
  %vm5861 = vcmask 1045508
  %v5862 = vsel %vm5861, %v5860, %v5857
  %s5863 = scalar_lea.vmem %s0, 2822
  %s5864 = smov 192
  %v5865 = vld [vmem:[%s5863] ss:$16 sm:%s5864]
  %vm5866 = vcmask 1047558
  %v5867 = vsel %vm5866, %v5865, %v5862
  %5868 = vrot.lane.b32.xlu0 %v5867, 24
  %v5869 = vpop.permute.xlu0 %5868
  %vm5870 = vcmask 228544
  %s5871 = scalar_lea.vmem %s1, 176
  %5872 = vst.msk [vmem:[%s5871] sm:$0xff] %vm5870, %v5869
  %s5873 = scalar_lea.vmem %s0, 390
  %s5874 = smov 3
  %v5875 = vld [vmem:[%s5873] ss:$16 sm:%s5874]
  %s5876 = scalar_lea.vmem %s0, 390
  %s5877 = smov 12
  %v5878 = vld [vmem:[%s5876] ss:$16 sm:%s5877]
  %vm5879 = vcmask 1043458
  %v5880 = vsel %vm5879, %v5878, %v5875
  %s5881 = scalar_lea.vmem %s0, 390
  %s5882 = smov 48
  %v5883 = vld [vmem:[%s5881] ss:$16 sm:%s5882]
  %vm5884 = vcmask 1045508
  %v5885 = vsel %vm5884, %v5883, %v5880
  %s5886 = scalar_lea.vmem %s0, 390
  %s5887 = smov 192
  %v5888 = vld [vmem:[%s5886] ss:$16 sm:%s5887]
  %vm5889 = vcmask 1047558
  %v5890 = vsel %vm5889, %v5888, %v5885
  %5891 = vrot.lane.b32.xlu0 %v5890, 24
  %v5892 = vpop.permute.xlu0 %5891
  %vm5893 = vcmask 228544
  %s5894 = scalar_lea.vmem %s1, 24
  %5895 = vst.msk [vmem:[%s5894] sm:$0xff] %vm5893, %v5892
  %s5896 = scalar_lea.vmem %s0, 902
  %s5897 = smov 3
  %v5898 = vld [vmem:[%s5896] ss:$16 sm:%s5897]
  %s5899 = scalar_lea.vmem %s0, 902
  %s5900 = smov 12
  %v5901 = vld [vmem:[%s5899] ss:$16 sm:%s5900]
  %vm5902 = vcmask 1043458
  %v5903 = vsel %vm5902, %v5901, %v5898
  %s5904 = scalar_lea.vmem %s0, 902
  %s5905 = smov 48
  %v5906 = vld [vmem:[%s5904] ss:$16 sm:%s5905]
  %vm5907 = vcmask 1045508
  %v5908 = vsel %vm5907, %v5906, %v5903
  %s5909 = scalar_lea.vmem %s0, 902
  %s5910 = smov 192
  %v5911 = vld [vmem:[%s5909] ss:$16 sm:%s5910]
  %vm5912 = vcmask 1047558
  %v5913 = vsel %vm5912, %v5911, %v5908
  %5914 = vrot.lane.b32.xlu0 %v5913, 24
  %v5915 = vpop.permute.xlu0 %5914
  %vm5916 = vcmask 228544
  %s5917 = scalar_lea.vmem %s1, 56
  %5918 = vst.msk [vmem:[%s5917] sm:$0xff] %vm5916, %v5915
  %s5919 = scalar_lea.vmem %s0, 1414
  %s5920 = smov 3
  %v5921 = vld [vmem:[%s5919] ss:$16 sm:%s5920]
  %s5922 = scalar_lea.vmem %s0, 1414
  %s5923 = smov 12
  %v5924 = vld [vmem:[%s5922] ss:$16 sm:%s5923]
  %vm5925 = vcmask 1043458
  %v5926 = vsel %vm5925, %v5924, %v5921
  %s5927 = scalar_lea.vmem %s0, 1414
  %s5928 = smov 48
  %v5929 = vld [vmem:[%s5927] ss:$16 sm:%s5928]
  %vm5930 = vcmask 1045508
  %v5931 = vsel %vm5930, %v5929, %v5926
  %s5932 = scalar_lea.vmem %s0, 1414
  %s5933 = smov 192
  %v5934 = vld [vmem:[%s5932] ss:$16 sm:%s5933]
  %vm5935 = vcmask 1047558
  %v5936 = vsel %vm5935, %v5934, %v5931
  %5937 = vrot.lane.b32.xlu0 %v5936, 24
  %v5938 = vpop.permute.xlu0 %5937
  %vm5939 = vcmask 228544
  %s5940 = scalar_lea.vmem %s1, 88
  %5941 = vst.msk [vmem:[%s5940] sm:$0xff] %vm5939, %v5938
  %s5942 = scalar_lea.vmem %s0, 1926
  %s5943 = smov 3
  %v5944 = vld [vmem:[%s5942] ss:$16 sm:%s5943]
  %s5945 = scalar_lea.vmem %s0, 1926
  %s5946 = smov 12
  %v5947 = vld [vmem:[%s5945] ss:$16 sm:%s5946]
  %vm5948 = vcmask 1043458
  %v5949 = vsel %vm5948, %v5947, %v5944
  %s5950 = scalar_lea.vmem %s0, 1926
  %s5951 = smov 48
  %v5952 = vld [vmem:[%s5950] ss:$16 sm:%s5951]
  %vm5953 = vcmask 1045508
  %v5954 = vsel %vm5953, %v5952, %v5949
  %s5955 = scalar_lea.vmem %s0, 1926
  %s5956 = smov 192
  %v5957 = vld [vmem:[%s5955] ss:$16 sm:%s5956]
  %vm5958 = vcmask 1047558
  %v5959 = vsel %vm5958, %v5957, %v5954
  %5960 = vrot.lane.b32.xlu0 %v5959, 24
  %v5961 = vpop.permute.xlu0 %5960
  %vm5962 = vcmask 228544
  %s5963 = scalar_lea.vmem %s1, 120
  %5964 = vst.msk [vmem:[%s5963] sm:$0xff] %vm5962, %v5961
  %s5965 = scalar_lea.vmem %s0, 2438
  %s5966 = smov 3
  %v5967 = vld [vmem:[%s5965] ss:$16 sm:%s5966]
  %s5968 = scalar_lea.vmem %s0, 2438
  %s5969 = smov 12
  %v5970 = vld [vmem:[%s5968] ss:$16 sm:%s5969]
  %vm5971 = vcmask 1043458
  %v5972 = vsel %vm5971, %v5970, %v5967
  %s5973 = scalar_lea.vmem %s0, 2438
  %s5974 = smov 48
  %v5975 = vld [vmem:[%s5973] ss:$16 sm:%s5974]
  %vm5976 = vcmask 1045508
  %v5977 = vsel %vm5976, %v5975, %v5972
  %s5978 = scalar_lea.vmem %s0, 2438
  %s5979 = smov 192
  %v5980 = vld [vmem:[%s5978] ss:$16 sm:%s5979]
  %vm5981 = vcmask 1047558
  %v5982 = vsel %vm5981, %v5980, %v5977
  %5983 = vrot.lane.b32.xlu0 %v5982, 24
  %v5984 = vpop.permute.xlu0 %5983
  %vm5985 = vcmask 228544
  %s5986 = scalar_lea.vmem %s1, 152
  %5987 = vst.msk [vmem:[%s5986] sm:$0xff] %vm5985, %v5984
  %s5988 = scalar_lea.vmem %s0, 2950
  %s5989 = smov 3
  %v5990 = vld [vmem:[%s5988] ss:$16 sm:%s5989]
  %s5991 = scalar_lea.vmem %s0, 2950
  %s5992 = smov 12
  %v5993 = vld [vmem:[%s5991] ss:$16 sm:%s5992]
  %vm5994 = vcmask 1043458
  %v5995 = vsel %vm5994, %v5993, %v5990
  %s5996 = scalar_lea.vmem %s0, 2950
  %s5997 = smov 48
  %v5998 = vld [vmem:[%s5996] ss:$16 sm:%s5997]
  %vm5999 = vcmask 1045508
  %v6000 = vsel %vm5999, %v5998, %v5995
  %s6001 = scalar_lea.vmem %s0, 2950
  %s6002 = smov 192
  %v6003 = vld [vmem:[%s6001] ss:$16 sm:%s6002]
  %vm6004 = vcmask 1047558
  %v6005 = vsel %vm6004, %v6003, %v6000
  %6006 = vrot.lane.b32.xlu0 %v6005, 24
  %v6007 = vpop.permute.xlu0 %6006
  %vm6008 = vcmask 228544
  %s6009 = scalar_lea.vmem %s1, 184
  %6010 = vst.msk [vmem:[%s6009] sm:$0xff] %vm6008, %v6007
  %s6011 = scalar_lea.vmem %s0, 5
  %s6012 = smov 3
  %v6013 = vld [vmem:[%s6011] ss:$16 sm:%s6012]
  %s6014 = scalar_lea.vmem %s0, 5
  %s6015 = smov 12
  %v6016 = vld [vmem:[%s6014] ss:$16 sm:%s6015]
  %vm6017 = vcmask 1043458
  %v6018 = vsel %vm6017, %v6016, %v6013
  %s6019 = scalar_lea.vmem %s0, 5
  %s6020 = smov 48
  %v6021 = vld [vmem:[%s6019] ss:$16 sm:%s6020]
  %vm6022 = vcmask 1045508
  %v6023 = vsel %vm6022, %v6021, %v6018
  %s6024 = scalar_lea.vmem %s0, 5
  %s6025 = smov 192
  %v6026 = vld [vmem:[%s6024] ss:$16 sm:%s6025]
  %vm6027 = vcmask 1047558
  %v6028 = vsel %vm6027, %v6026, %v6023
  %6029 = vrot.lane.b32.xlu0 %v6028, 20
  %v6030 = vpop.permute.xlu0 %6029
  %vm6031 = vcmask 195744
  %6032 = vst.msk [vmem:[%s1] sm:$0xff] %vm6031, %v6030
  %s6033 = scalar_lea.vmem %s0, 517
  %s6034 = smov 3
  %v6035 = vld [vmem:[%s6033] ss:$16 sm:%s6034]
  %s6036 = scalar_lea.vmem %s0, 517
  %s6037 = smov 12
  %v6038 = vld [vmem:[%s6036] ss:$16 sm:%s6037]
  %vm6039 = vcmask 1043458
  %v6040 = vsel %vm6039, %v6038, %v6035
  %s6041 = scalar_lea.vmem %s0, 517
  %s6042 = smov 48
  %v6043 = vld [vmem:[%s6041] ss:$16 sm:%s6042]
  %vm6044 = vcmask 1045508
  %v6045 = vsel %vm6044, %v6043, %v6040
  %s6046 = scalar_lea.vmem %s0, 517
  %s6047 = smov 192
  %v6048 = vld [vmem:[%s6046] ss:$16 sm:%s6047]
  %vm6049 = vcmask 1047558
  %v6050 = vsel %vm6049, %v6048, %v6045
  %6051 = vrot.lane.b32.xlu0 %v6050, 20
  %v6052 = vpop.permute.xlu0 %6051
  %vm6053 = vcmask 195744
  %s6054 = scalar_lea.vmem %s1, 32
  %6055 = vst.msk [vmem:[%s6054] sm:$0xff] %vm6053, %v6052
  %s6056 = scalar_lea.vmem %s0, 1029
  %s6057 = smov 3
  %v6058 = vld [vmem:[%s6056] ss:$16 sm:%s6057]
  %s6059 = scalar_lea.vmem %s0, 1029
  %s6060 = smov 12
  %v6061 = vld [vmem:[%s6059] ss:$16 sm:%s6060]
  %vm6062 = vcmask 1043458
  %v6063 = vsel %vm6062, %v6061, %v6058
  %s6064 = scalar_lea.vmem %s0, 1029
  %s6065 = smov 48
  %v6066 = vld [vmem:[%s6064] ss:$16 sm:%s6065]
  %vm6067 = vcmask 1045508
  %v6068 = vsel %vm6067, %v6066, %v6063
  %s6069 = scalar_lea.vmem %s0, 1029
  %s6070 = smov 192
  %v6071 = vld [vmem:[%s6069] ss:$16 sm:%s6070]
  %vm6072 = vcmask 1047558
  %v6073 = vsel %vm6072, %v6071, %v6068
  %6074 = vrot.lane.b32.xlu0 %v6073, 20
  %v6075 = vpop.permute.xlu0 %6074
  %vm6076 = vcmask 195744
  %s6077 = scalar_lea.vmem %s1, 64
  %6078 = vst.msk [vmem:[%s6077] sm:$0xff] %vm6076, %v6075
  %s6079 = scalar_lea.vmem %s0, 1541
  %s6080 = smov 3
  %v6081 = vld [vmem:[%s6079] ss:$16 sm:%s6080]
  %s6082 = scalar_lea.vmem %s0, 1541
  %s6083 = smov 12
  %v6084 = vld [vmem:[%s6082] ss:$16 sm:%s6083]
  %vm6085 = vcmask 1043458
  %v6086 = vsel %vm6085, %v6084, %v6081
  %s6087 = scalar_lea.vmem %s0, 1541
  %s6088 = smov 48
  %v6089 = vld [vmem:[%s6087] ss:$16 sm:%s6088]
  %vm6090 = vcmask 1045508
  %v6091 = vsel %vm6090, %v6089, %v6086
  %s6092 = scalar_lea.vmem %s0, 1541
  %s6093 = smov 192
  %v6094 = vld [vmem:[%s6092] ss:$16 sm:%s6093]
  %vm6095 = vcmask 1047558
  %v6096 = vsel %vm6095, %v6094, %v6091
  %6097 = vrot.lane.b32.xlu0 %v6096, 20
  %v6098 = vpop.permute.xlu0 %6097
  %vm6099 = vcmask 195744
  %s6100 = scalar_lea.vmem %s1, 96
  %6101 = vst.msk [vmem:[%s6100] sm:$0xff] %vm6099, %v6098
  %s6102 = scalar_lea.vmem %s0, 2053
  %s6103 = smov 3
  %v6104 = vld [vmem:[%s6102] ss:$16 sm:%s6103]
  %s6105 = scalar_lea.vmem %s0, 2053
  %s6106 = smov 12
  %v6107 = vld [vmem:[%s6105] ss:$16 sm:%s6106]
  %vm6108 = vcmask 1043458
  %v6109 = vsel %vm6108, %v6107, %v6104
  %s6110 = scalar_lea.vmem %s0, 2053
  %s6111 = smov 48
  %v6112 = vld [vmem:[%s6110] ss:$16 sm:%s6111]
  %vm6113 = vcmask 1045508
  %v6114 = vsel %vm6113, %v6112, %v6109
  %s6115 = scalar_lea.vmem %s0, 2053
  %s6116 = smov 192
  %v6117 = vld [vmem:[%s6115] ss:$16 sm:%s6116]
  %vm6118 = vcmask 1047558
  %v6119 = vsel %vm6118, %v6117, %v6114
  %6120 = vrot.lane.b32.xlu0 %v6119, 20
  %v6121 = vpop.permute.xlu0 %6120
  %vm6122 = vcmask 195744
  %s6123 = scalar_lea.vmem %s1, 128
  %6124 = vst.msk [vmem:[%s6123] sm:$0xff] %vm6122, %v6121
  %s6125 = scalar_lea.vmem %s0, 2565
  %s6126 = smov 3
  %v6127 = vld [vmem:[%s6125] ss:$16 sm:%s6126]
  %s6128 = scalar_lea.vmem %s0, 2565
  %s6129 = smov 12
  %v6130 = vld [vmem:[%s6128] ss:$16 sm:%s6129]
  %vm6131 = vcmask 1043458
  %v6132 = vsel %vm6131, %v6130, %v6127
  %s6133 = scalar_lea.vmem %s0, 2565
  %s6134 = smov 48
  %v6135 = vld [vmem:[%s6133] ss:$16 sm:%s6134]
  %vm6136 = vcmask 1045508
  %v6137 = vsel %vm6136, %v6135, %v6132
  %s6138 = scalar_lea.vmem %s0, 2565
  %s6139 = smov 192
  %v6140 = vld [vmem:[%s6138] ss:$16 sm:%s6139]
  %vm6141 = vcmask 1047558
  %v6142 = vsel %vm6141, %v6140, %v6137
  %6143 = vrot.lane.b32.xlu0 %v6142, 20
  %v6144 = vpop.permute.xlu0 %6143
  %vm6145 = vcmask 195744
  %s6146 = scalar_lea.vmem %s1, 160
  %6147 = vst.msk [vmem:[%s6146] sm:$0xff] %vm6145, %v6144
  %s6148 = scalar_lea.vmem %s0, 133
  %s6149 = smov 3
  %v6150 = vld [vmem:[%s6148] ss:$16 sm:%s6149]
  %s6151 = scalar_lea.vmem %s0, 133
  %s6152 = smov 12
  %v6153 = vld [vmem:[%s6151] ss:$16 sm:%s6152]
  %vm6154 = vcmask 1043458
  %v6155 = vsel %vm6154, %v6153, %v6150
  %s6156 = scalar_lea.vmem %s0, 133
  %s6157 = smov 48
  %v6158 = vld [vmem:[%s6156] ss:$16 sm:%s6157]
  %vm6159 = vcmask 1045508
  %v6160 = vsel %vm6159, %v6158, %v6155
  %s6161 = scalar_lea.vmem %s0, 133
  %s6162 = smov 192
  %v6163 = vld [vmem:[%s6161] ss:$16 sm:%s6162]
  %vm6164 = vcmask 1047558
  %v6165 = vsel %vm6164, %v6163, %v6160
  %6166 = vrot.lane.b32.xlu0 %v6165, 20
  %v6167 = vpop.permute.xlu0 %6166
  %vm6168 = vcmask 195744
  %s6169 = scalar_lea.vmem %s1, 8
  %6170 = vst.msk [vmem:[%s6169] sm:$0xff] %vm6168, %v6167
  %s6171 = scalar_lea.vmem %s0, 645
  %s6172 = smov 3
  %v6173 = vld [vmem:[%s6171] ss:$16 sm:%s6172]
  %s6174 = scalar_lea.vmem %s0, 645
  %s6175 = smov 12
  %v6176 = vld [vmem:[%s6174] ss:$16 sm:%s6175]
  %vm6177 = vcmask 1043458
  %v6178 = vsel %vm6177, %v6176, %v6173
  %s6179 = scalar_lea.vmem %s0, 645
  %s6180 = smov 48
  %v6181 = vld [vmem:[%s6179] ss:$16 sm:%s6180]
  %vm6182 = vcmask 1045508
  %v6183 = vsel %vm6182, %v6181, %v6178
  %s6184 = scalar_lea.vmem %s0, 645
  %s6185 = smov 192
  %v6186 = vld [vmem:[%s6184] ss:$16 sm:%s6185]
  %vm6187 = vcmask 1047558
  %v6188 = vsel %vm6187, %v6186, %v6183
  %6189 = vrot.lane.b32.xlu0 %v6188, 20
  %v6190 = vpop.permute.xlu0 %6189
  %vm6191 = vcmask 195744
  %s6192 = scalar_lea.vmem %s1, 40
  %6193 = vst.msk [vmem:[%s6192] sm:$0xff] %vm6191, %v6190
  %s6194 = scalar_lea.vmem %s0, 1157
  %s6195 = smov 3
  %v6196 = vld [vmem:[%s6194] ss:$16 sm:%s6195]
  %s6197 = scalar_lea.vmem %s0, 1157
  %s6198 = smov 12
  %v6199 = vld [vmem:[%s6197] ss:$16 sm:%s6198]
  %vm6200 = vcmask 1043458
  %v6201 = vsel %vm6200, %v6199, %v6196
  %s6202 = scalar_lea.vmem %s0, 1157
  %s6203 = smov 48
  %v6204 = vld [vmem:[%s6202] ss:$16 sm:%s6203]
  %vm6205 = vcmask 1045508
  %v6206 = vsel %vm6205, %v6204, %v6201
  %s6207 = scalar_lea.vmem %s0, 1157
  %s6208 = smov 192
  %v6209 = vld [vmem:[%s6207] ss:$16 sm:%s6208]
  %vm6210 = vcmask 1047558
  %v6211 = vsel %vm6210, %v6209, %v6206
  %6212 = vrot.lane.b32.xlu0 %v6211, 20
  %v6213 = vpop.permute.xlu0 %6212
  %vm6214 = vcmask 195744
  %s6215 = scalar_lea.vmem %s1, 72
  %6216 = vst.msk [vmem:[%s6215] sm:$0xff] %vm6214, %v6213
  %s6217 = scalar_lea.vmem %s0, 1669
  %s6218 = smov 3
  %v6219 = vld [vmem:[%s6217] ss:$16 sm:%s6218]
  %s6220 = scalar_lea.vmem %s0, 1669
  %s6221 = smov 12
  %v6222 = vld [vmem:[%s6220] ss:$16 sm:%s6221]
  %vm6223 = vcmask 1043458
  %v6224 = vsel %vm6223, %v6222, %v6219
  %s6225 = scalar_lea.vmem %s0, 1669
  %s6226 = smov 48
  %v6227 = vld [vmem:[%s6225] ss:$16 sm:%s6226]
  %vm6228 = vcmask 1045508
  %v6229 = vsel %vm6228, %v6227, %v6224
  %s6230 = scalar_lea.vmem %s0, 1669
  %s6231 = smov 192
  %v6232 = vld [vmem:[%s6230] ss:$16 sm:%s6231]
  %vm6233 = vcmask 1047558
  %v6234 = vsel %vm6233, %v6232, %v6229
  %6235 = vrot.lane.b32.xlu0 %v6234, 20
  %v6236 = vpop.permute.xlu0 %6235
  %vm6237 = vcmask 195744
  %s6238 = scalar_lea.vmem %s1, 104
  %6239 = vst.msk [vmem:[%s6238] sm:$0xff] %vm6237, %v6236
  %s6240 = scalar_lea.vmem %s0, 2181
  %s6241 = smov 3
  %v6242 = vld [vmem:[%s6240] ss:$16 sm:%s6241]
  %s6243 = scalar_lea.vmem %s0, 2181
  %s6244 = smov 12
  %v6245 = vld [vmem:[%s6243] ss:$16 sm:%s6244]
  %vm6246 = vcmask 1043458
  %v6247 = vsel %vm6246, %v6245, %v6242
  %s6248 = scalar_lea.vmem %s0, 2181
  %s6249 = smov 48
  %v6250 = vld [vmem:[%s6248] ss:$16 sm:%s6249]
  %vm6251 = vcmask 1045508
  %v6252 = vsel %vm6251, %v6250, %v6247
  %s6253 = scalar_lea.vmem %s0, 2181
  %s6254 = smov 192
  %v6255 = vld [vmem:[%s6253] ss:$16 sm:%s6254]
  %vm6256 = vcmask 1047558
  %v6257 = vsel %vm6256, %v6255, %v6252
  %6258 = vrot.lane.b32.xlu0 %v6257, 20
  %v6259 = vpop.permute.xlu0 %6258
  %vm6260 = vcmask 195744
  %s6261 = scalar_lea.vmem %s1, 136
  %6262 = vst.msk [vmem:[%s6261] sm:$0xff] %vm6260, %v6259
  %s6263 = scalar_lea.vmem %s0, 2693
  %s6264 = smov 3
  %v6265 = vld [vmem:[%s6263] ss:$16 sm:%s6264]
  %s6266 = scalar_lea.vmem %s0, 2693
  %s6267 = smov 12
  %v6268 = vld [vmem:[%s6266] ss:$16 sm:%s6267]
  %vm6269 = vcmask 1043458
  %v6270 = vsel %vm6269, %v6268, %v6265
  %s6271 = scalar_lea.vmem %s0, 2693
  %s6272 = smov 48
  %v6273 = vld [vmem:[%s6271] ss:$16 sm:%s6272]
  %vm6274 = vcmask 1045508
  %v6275 = vsel %vm6274, %v6273, %v6270
  %s6276 = scalar_lea.vmem %s0, 2693
  %s6277 = smov 192
  %v6278 = vld [vmem:[%s6276] ss:$16 sm:%s6277]
  %vm6279 = vcmask 1047558
  %v6280 = vsel %vm6279, %v6278, %v6275
  %6281 = vrot.lane.b32.xlu0 %v6280, 20
  %v6282 = vpop.permute.xlu0 %6281
  %vm6283 = vcmask 195744
  %s6284 = scalar_lea.vmem %s1, 168
  %6285 = vst.msk [vmem:[%s6284] sm:$0xff] %vm6283, %v6282
  %s6286 = scalar_lea.vmem %s0, 261
  %s6287 = smov 3
  %v6288 = vld [vmem:[%s6286] ss:$16 sm:%s6287]
  %s6289 = scalar_lea.vmem %s0, 261
  %s6290 = smov 12
  %v6291 = vld [vmem:[%s6289] ss:$16 sm:%s6290]
  %vm6292 = vcmask 1043458
  %v6293 = vsel %vm6292, %v6291, %v6288
  %s6294 = scalar_lea.vmem %s0, 261
  %s6295 = smov 48
  %v6296 = vld [vmem:[%s6294] ss:$16 sm:%s6295]
  %vm6297 = vcmask 1045508
  %v6298 = vsel %vm6297, %v6296, %v6293
  %s6299 = scalar_lea.vmem %s0, 261
  %s6300 = smov 192
  %v6301 = vld [vmem:[%s6299] ss:$16 sm:%s6300]
  %vm6302 = vcmask 1047558
  %v6303 = vsel %vm6302, %v6301, %v6298
  %6304 = vrot.lane.b32.xlu0 %v6303, 20
  %v6305 = vpop.permute.xlu0 %6304
  %vm6306 = vcmask 195744
  %s6307 = scalar_lea.vmem %s1, 16
  %6308 = vst.msk [vmem:[%s6307] sm:$0xff] %vm6306, %v6305
  %s6309 = scalar_lea.vmem %s0, 773
  %s6310 = smov 3
  %v6311 = vld [vmem:[%s6309] ss:$16 sm:%s6310]
  %s6312 = scalar_lea.vmem %s0, 773
  %s6313 = smov 12
  %v6314 = vld [vmem:[%s6312] ss:$16 sm:%s6313]
  %vm6315 = vcmask 1043458
  %v6316 = vsel %vm6315, %v6314, %v6311
  %s6317 = scalar_lea.vmem %s0, 773
  %s6318 = smov 48
  %v6319 = vld [vmem:[%s6317] ss:$16 sm:%s6318]
  %vm6320 = vcmask 1045508
  %v6321 = vsel %vm6320, %v6319, %v6316
  %s6322 = scalar_lea.vmem %s0, 773
  %s6323 = smov 192
  %v6324 = vld [vmem:[%s6322] ss:$16 sm:%s6323]
  %vm6325 = vcmask 1047558
  %v6326 = vsel %vm6325, %v6324, %v6321
  %6327 = vrot.lane.b32.xlu0 %v6326, 20
  %v6328 = vpop.permute.xlu0 %6327
  %vm6329 = vcmask 195744
  %s6330 = scalar_lea.vmem %s1, 48
  %6331 = vst.msk [vmem:[%s6330] sm:$0xff] %vm6329, %v6328
  %s6332 = scalar_lea.vmem %s0, 1285
  %s6333 = smov 3
  %v6334 = vld [vmem:[%s6332] ss:$16 sm:%s6333]
  %s6335 = scalar_lea.vmem %s0, 1285
  %s6336 = smov 12
  %v6337 = vld [vmem:[%s6335] ss:$16 sm:%s6336]
  %vm6338 = vcmask 1043458
  %v6339 = vsel %vm6338, %v6337, %v6334
  %s6340 = scalar_lea.vmem %s0, 1285
  %s6341 = smov 48
  %v6342 = vld [vmem:[%s6340] ss:$16 sm:%s6341]
  %vm6343 = vcmask 1045508
  %v6344 = vsel %vm6343, %v6342, %v6339
  %s6345 = scalar_lea.vmem %s0, 1285
  %s6346 = smov 192
  %v6347 = vld [vmem:[%s6345] ss:$16 sm:%s6346]
  %vm6348 = vcmask 1047558
  %v6349 = vsel %vm6348, %v6347, %v6344
  %6350 = vrot.lane.b32.xlu0 %v6349, 20
  %v6351 = vpop.permute.xlu0 %6350
  %vm6352 = vcmask 195744
  %s6353 = scalar_lea.vmem %s1, 80
  %6354 = vst.msk [vmem:[%s6353] sm:$0xff] %vm6352, %v6351
  %s6355 = scalar_lea.vmem %s0, 1797
  %s6356 = smov 3
  %v6357 = vld [vmem:[%s6355] ss:$16 sm:%s6356]
  %s6358 = scalar_lea.vmem %s0, 1797
  %s6359 = smov 12
  %v6360 = vld [vmem:[%s6358] ss:$16 sm:%s6359]
  %vm6361 = vcmask 1043458
  %v6362 = vsel %vm6361, %v6360, %v6357
  %s6363 = scalar_lea.vmem %s0, 1797
  %s6364 = smov 48
  %v6365 = vld [vmem:[%s6363] ss:$16 sm:%s6364]
  %vm6366 = vcmask 1045508
  %v6367 = vsel %vm6366, %v6365, %v6362
  %s6368 = scalar_lea.vmem %s0, 1797
  %s6369 = smov 192
  %v6370 = vld [vmem:[%s6368] ss:$16 sm:%s6369]
  %vm6371 = vcmask 1047558
  %v6372 = vsel %vm6371, %v6370, %v6367
  %6373 = vrot.lane.b32.xlu0 %v6372, 20
  %v6374 = vpop.permute.xlu0 %6373
  %vm6375 = vcmask 195744
  %s6376 = scalar_lea.vmem %s1, 112
  %6377 = vst.msk [vmem:[%s6376] sm:$0xff] %vm6375, %v6374
  %s6378 = scalar_lea.vmem %s0, 2309
  %s6379 = smov 3
  %v6380 = vld [vmem:[%s6378] ss:$16 sm:%s6379]
  %s6381 = scalar_lea.vmem %s0, 2309
  %s6382 = smov 12
  %v6383 = vld [vmem:[%s6381] ss:$16 sm:%s6382]
  %vm6384 = vcmask 1043458
  %v6385 = vsel %vm6384, %v6383, %v6380
  %s6386 = scalar_lea.vmem %s0, 2309
  %s6387 = smov 48
  %v6388 = vld [vmem:[%s6386] ss:$16 sm:%s6387]
  %vm6389 = vcmask 1045508
  %v6390 = vsel %vm6389, %v6388, %v6385
  %s6391 = scalar_lea.vmem %s0, 2309
  %s6392 = smov 192
  %v6393 = vld [vmem:[%s6391] ss:$16 sm:%s6392]
  %vm6394 = vcmask 1047558
  %v6395 = vsel %vm6394, %v6393, %v6390
  %6396 = vrot.lane.b32.xlu0 %v6395, 20
  %v6397 = vpop.permute.xlu0 %6396
  %vm6398 = vcmask 195744
  %s6399 = scalar_lea.vmem %s1, 144
  %6400 = vst.msk [vmem:[%s6399] sm:$0xff] %vm6398, %v6397
  %s6401 = scalar_lea.vmem %s0, 2821
  %s6402 = smov 3
  %v6403 = vld [vmem:[%s6401] ss:$16 sm:%s6402]
  %s6404 = scalar_lea.vmem %s0, 2821
  %s6405 = smov 12
  %v6406 = vld [vmem:[%s6404] ss:$16 sm:%s6405]
  %vm6407 = vcmask 1043458
  %v6408 = vsel %vm6407, %v6406, %v6403
  %s6409 = scalar_lea.vmem %s0, 2821
  %s6410 = smov 48
  %v6411 = vld [vmem:[%s6409] ss:$16 sm:%s6410]
  %vm6412 = vcmask 1045508
  %v6413 = vsel %vm6412, %v6411, %v6408
  %s6414 = scalar_lea.vmem %s0, 2821
  %s6415 = smov 192
  %v6416 = vld [vmem:[%s6414] ss:$16 sm:%s6415]
  %vm6417 = vcmask 1047558
  %v6418 = vsel %vm6417, %v6416, %v6413
  %6419 = vrot.lane.b32.xlu0 %v6418, 20
  %v6420 = vpop.permute.xlu0 %6419
  %vm6421 = vcmask 195744
  %s6422 = scalar_lea.vmem %s1, 176
  %6423 = vst.msk [vmem:[%s6422] sm:$0xff] %vm6421, %v6420
  %s6424 = scalar_lea.vmem %s0, 389
  %s6425 = smov 3
  %v6426 = vld [vmem:[%s6424] ss:$16 sm:%s6425]
  %s6427 = scalar_lea.vmem %s0, 389
  %s6428 = smov 12
  %v6429 = vld [vmem:[%s6427] ss:$16 sm:%s6428]
  %vm6430 = vcmask 1043458
  %v6431 = vsel %vm6430, %v6429, %v6426
  %s6432 = scalar_lea.vmem %s0, 389
  %s6433 = smov 48
  %v6434 = vld [vmem:[%s6432] ss:$16 sm:%s6433]
  %vm6435 = vcmask 1045508
  %v6436 = vsel %vm6435, %v6434, %v6431
  %s6437 = scalar_lea.vmem %s0, 389
  %s6438 = smov 192
  %v6439 = vld [vmem:[%s6437] ss:$16 sm:%s6438]
  %vm6440 = vcmask 1047558
  %v6441 = vsel %vm6440, %v6439, %v6436
  %6442 = vrot.lane.b32.xlu0 %v6441, 20
  %v6443 = vpop.permute.xlu0 %6442
  %vm6444 = vcmask 195744
  %s6445 = scalar_lea.vmem %s1, 24
  %6446 = vst.msk [vmem:[%s6445] sm:$0xff] %vm6444, %v6443
  %s6447 = scalar_lea.vmem %s0, 901
  %s6448 = smov 3
  %v6449 = vld [vmem:[%s6447] ss:$16 sm:%s6448]
  %s6450 = scalar_lea.vmem %s0, 901
  %s6451 = smov 12
  %v6452 = vld [vmem:[%s6450] ss:$16 sm:%s6451]
  %vm6453 = vcmask 1043458
  %v6454 = vsel %vm6453, %v6452, %v6449
  %s6455 = scalar_lea.vmem %s0, 901
  %s6456 = smov 48
  %v6457 = vld [vmem:[%s6455] ss:$16 sm:%s6456]
  %vm6458 = vcmask 1045508
  %v6459 = vsel %vm6458, %v6457, %v6454
  %s6460 = scalar_lea.vmem %s0, 901
  %s6461 = smov 192
  %v6462 = vld [vmem:[%s6460] ss:$16 sm:%s6461]
  %vm6463 = vcmask 1047558
  %v6464 = vsel %vm6463, %v6462, %v6459
  %6465 = vrot.lane.b32.xlu0 %v6464, 20
  %v6466 = vpop.permute.xlu0 %6465
  %vm6467 = vcmask 195744
  %s6468 = scalar_lea.vmem %s1, 56
  %6469 = vst.msk [vmem:[%s6468] sm:$0xff] %vm6467, %v6466
  %s6470 = scalar_lea.vmem %s0, 1413
  %s6471 = smov 3
  %v6472 = vld [vmem:[%s6470] ss:$16 sm:%s6471]
  %s6473 = scalar_lea.vmem %s0, 1413
  %s6474 = smov 12
  %v6475 = vld [vmem:[%s6473] ss:$16 sm:%s6474]
  %vm6476 = vcmask 1043458
  %v6477 = vsel %vm6476, %v6475, %v6472
  %s6478 = scalar_lea.vmem %s0, 1413
  %s6479 = smov 48
  %v6480 = vld [vmem:[%s6478] ss:$16 sm:%s6479]
  %vm6481 = vcmask 1045508
  %v6482 = vsel %vm6481, %v6480, %v6477
  %s6483 = scalar_lea.vmem %s0, 1413
  %s6484 = smov 192
  %v6485 = vld [vmem:[%s6483] ss:$16 sm:%s6484]
  %vm6486 = vcmask 1047558
  %v6487 = vsel %vm6486, %v6485, %v6482
  %6488 = vrot.lane.b32.xlu0 %v6487, 20
  %v6489 = vpop.permute.xlu0 %6488
  %vm6490 = vcmask 195744
  %s6491 = scalar_lea.vmem %s1, 88
  %6492 = vst.msk [vmem:[%s6491] sm:$0xff] %vm6490, %v6489
  %s6493 = scalar_lea.vmem %s0, 1925
  %s6494 = smov 3
  %v6495 = vld [vmem:[%s6493] ss:$16 sm:%s6494]
  %s6496 = scalar_lea.vmem %s0, 1925
  %s6497 = smov 12
  %v6498 = vld [vmem:[%s6496] ss:$16 sm:%s6497]
  %vm6499 = vcmask 1043458
  %v6500 = vsel %vm6499, %v6498, %v6495
  %s6501 = scalar_lea.vmem %s0, 1925
  %s6502 = smov 48
  %v6503 = vld [vmem:[%s6501] ss:$16 sm:%s6502]
  %vm6504 = vcmask 1045508
  %v6505 = vsel %vm6504, %v6503, %v6500
  %s6506 = scalar_lea.vmem %s0, 1925
  %s6507 = smov 192
  %v6508 = vld [vmem:[%s6506] ss:$16 sm:%s6507]
  %vm6509 = vcmask 1047558
  %v6510 = vsel %vm6509, %v6508, %v6505
  %6511 = vrot.lane.b32.xlu0 %v6510, 20
  %v6512 = vpop.permute.xlu0 %6511
  %vm6513 = vcmask 195744
  %s6514 = scalar_lea.vmem %s1, 120
  %6515 = vst.msk [vmem:[%s6514] sm:$0xff] %vm6513, %v6512
  %s6516 = scalar_lea.vmem %s0, 2437
  %s6517 = smov 3
  %v6518 = vld [vmem:[%s6516] ss:$16 sm:%s6517]
  %s6519 = scalar_lea.vmem %s0, 2437
  %s6520 = smov 12
  %v6521 = vld [vmem:[%s6519] ss:$16 sm:%s6520]
  %vm6522 = vcmask 1043458
  %v6523 = vsel %vm6522, %v6521, %v6518
  %s6524 = scalar_lea.vmem %s0, 2437
  %s6525 = smov 48
  %v6526 = vld [vmem:[%s6524] ss:$16 sm:%s6525]
  %vm6527 = vcmask 1045508
  %v6528 = vsel %vm6527, %v6526, %v6523
  %s6529 = scalar_lea.vmem %s0, 2437
  %s6530 = smov 192
  %v6531 = vld [vmem:[%s6529] ss:$16 sm:%s6530]
  %vm6532 = vcmask 1047558
  %v6533 = vsel %vm6532, %v6531, %v6528
  %6534 = vrot.lane.b32.xlu0 %v6533, 20
  %v6535 = vpop.permute.xlu0 %6534
  %vm6536 = vcmask 195744
  %s6537 = scalar_lea.vmem %s1, 152
  %6538 = vst.msk [vmem:[%s6537] sm:$0xff] %vm6536, %v6535
  %s6539 = scalar_lea.vmem %s0, 2949
  %s6540 = smov 3
  %v6541 = vld [vmem:[%s6539] ss:$16 sm:%s6540]
  %s6542 = scalar_lea.vmem %s0, 2949
  %s6543 = smov 12
  %v6544 = vld [vmem:[%s6542] ss:$16 sm:%s6543]
  %vm6545 = vcmask 1043458
  %v6546 = vsel %vm6545, %v6544, %v6541
  %s6547 = scalar_lea.vmem %s0, 2949
  %s6548 = smov 48
  %v6549 = vld [vmem:[%s6547] ss:$16 sm:%s6548]
  %vm6550 = vcmask 1045508
  %v6551 = vsel %vm6550, %v6549, %v6546
  %s6552 = scalar_lea.vmem %s0, 2949
  %s6553 = smov 192
  %v6554 = vld [vmem:[%s6552] ss:$16 sm:%s6553]
  %vm6555 = vcmask 1047558
  %v6556 = vsel %vm6555, %v6554, %v6551
  %6557 = vrot.lane.b32.xlu0 %v6556, 20
  %v6558 = vpop.permute.xlu0 %6557
  %vm6559 = vcmask 195744
  %s6560 = scalar_lea.vmem %s1, 184
  %6561 = vst.msk [vmem:[%s6560] sm:$0xff] %vm6559, %v6558
  %s6562 = scalar_lea.vmem %s0, 4
  %s6563 = smov 3
  %v6564 = vld [vmem:[%s6562] ss:$16 sm:%s6563]
  %s6565 = scalar_lea.vmem %s0, 4
  %s6566 = smov 12
  %v6567 = vld [vmem:[%s6565] ss:$16 sm:%s6566]
  %vm6568 = vcmask 1043458
  %v6569 = vsel %vm6568, %v6567, %v6564
  %s6570 = scalar_lea.vmem %s0, 4
  %s6571 = smov 48
  %v6572 = vld [vmem:[%s6570] ss:$16 sm:%s6571]
  %vm6573 = vcmask 1045508
  %v6574 = vsel %vm6573, %v6572, %v6569
  %s6575 = scalar_lea.vmem %s0, 4
  %s6576 = smov 192
  %v6577 = vld [vmem:[%s6575] ss:$16 sm:%s6576]
  %vm6578 = vcmask 1047558
  %v6579 = vsel %vm6578, %v6577, %v6574
  %6580 = vrot.lane.b32.xlu0 %v6579, 16
  %v6581 = vpop.permute.xlu0 %6580
  %vm6582 = vcmask 162944
  %6583 = vst.msk [vmem:[%s1] sm:$0xff] %vm6582, %v6581
  %s6584 = scalar_lea.vmem %s0, 516
  %s6585 = smov 3
  %v6586 = vld [vmem:[%s6584] ss:$16 sm:%s6585]
  %s6587 = scalar_lea.vmem %s0, 516
  %s6588 = smov 12
  %v6589 = vld [vmem:[%s6587] ss:$16 sm:%s6588]
  %vm6590 = vcmask 1043458
  %v6591 = vsel %vm6590, %v6589, %v6586
  %s6592 = scalar_lea.vmem %s0, 516
  %s6593 = smov 48
  %v6594 = vld [vmem:[%s6592] ss:$16 sm:%s6593]
  %vm6595 = vcmask 1045508
  %v6596 = vsel %vm6595, %v6594, %v6591
  %s6597 = scalar_lea.vmem %s0, 516
  %s6598 = smov 192
  %v6599 = vld [vmem:[%s6597] ss:$16 sm:%s6598]
  %vm6600 = vcmask 1047558
  %v6601 = vsel %vm6600, %v6599, %v6596
  %6602 = vrot.lane.b32.xlu0 %v6601, 16
  %v6603 = vpop.permute.xlu0 %6602
  %vm6604 = vcmask 162944
  %s6605 = scalar_lea.vmem %s1, 32
  %6606 = vst.msk [vmem:[%s6605] sm:$0xff] %vm6604, %v6603
  %s6607 = scalar_lea.vmem %s0, 1028
  %s6608 = smov 3
  %v6609 = vld [vmem:[%s6607] ss:$16 sm:%s6608]
  %s6610 = scalar_lea.vmem %s0, 1028
  %s6611 = smov 12
  %v6612 = vld [vmem:[%s6610] ss:$16 sm:%s6611]
  %vm6613 = vcmask 1043458
  %v6614 = vsel %vm6613, %v6612, %v6609
  %s6615 = scalar_lea.vmem %s0, 1028
  %s6616 = smov 48
  %v6617 = vld [vmem:[%s6615] ss:$16 sm:%s6616]
  %vm6618 = vcmask 1045508
  %v6619 = vsel %vm6618, %v6617, %v6614
  %s6620 = scalar_lea.vmem %s0, 1028
  %s6621 = smov 192
  %v6622 = vld [vmem:[%s6620] ss:$16 sm:%s6621]
  %vm6623 = vcmask 1047558
  %v6624 = vsel %vm6623, %v6622, %v6619
  %6625 = vrot.lane.b32.xlu0 %v6624, 16
  %v6626 = vpop.permute.xlu0 %6625
  %vm6627 = vcmask 162944
  %s6628 = scalar_lea.vmem %s1, 64
  %6629 = vst.msk [vmem:[%s6628] sm:$0xff] %vm6627, %v6626
  %s6630 = scalar_lea.vmem %s0, 1540
  %s6631 = smov 3
  %v6632 = vld [vmem:[%s6630] ss:$16 sm:%s6631]
  %s6633 = scalar_lea.vmem %s0, 1540
  %s6634 = smov 12
  %v6635 = vld [vmem:[%s6633] ss:$16 sm:%s6634]
  %vm6636 = vcmask 1043458
  %v6637 = vsel %vm6636, %v6635, %v6632
  %s6638 = scalar_lea.vmem %s0, 1540
  %s6639 = smov 48
  %v6640 = vld [vmem:[%s6638] ss:$16 sm:%s6639]
  %vm6641 = vcmask 1045508
  %v6642 = vsel %vm6641, %v6640, %v6637
  %s6643 = scalar_lea.vmem %s0, 1540
  %s6644 = smov 192
  %v6645 = vld [vmem:[%s6643] ss:$16 sm:%s6644]
  %vm6646 = vcmask 1047558
  %v6647 = vsel %vm6646, %v6645, %v6642
  %6648 = vrot.lane.b32.xlu0 %v6647, 16
  %v6649 = vpop.permute.xlu0 %6648
  %vm6650 = vcmask 162944
  %s6651 = scalar_lea.vmem %s1, 96
  %6652 = vst.msk [vmem:[%s6651] sm:$0xff] %vm6650, %v6649
  %s6653 = scalar_lea.vmem %s0, 2052
  %s6654 = smov 3
  %v6655 = vld [vmem:[%s6653] ss:$16 sm:%s6654]
  %s6656 = scalar_lea.vmem %s0, 2052
  %s6657 = smov 12
  %v6658 = vld [vmem:[%s6656] ss:$16 sm:%s6657]
  %vm6659 = vcmask 1043458
  %v6660 = vsel %vm6659, %v6658, %v6655
  %s6661 = scalar_lea.vmem %s0, 2052
  %s6662 = smov 48
  %v6663 = vld [vmem:[%s6661] ss:$16 sm:%s6662]
  %vm6664 = vcmask 1045508
  %v6665 = vsel %vm6664, %v6663, %v6660
  %s6666 = scalar_lea.vmem %s0, 2052
  %s6667 = smov 192
  %v6668 = vld [vmem:[%s6666] ss:$16 sm:%s6667]
  %vm6669 = vcmask 1047558
  %v6670 = vsel %vm6669, %v6668, %v6665
  %6671 = vrot.lane.b32.xlu0 %v6670, 16
  %v6672 = vpop.permute.xlu0 %6671
  %vm6673 = vcmask 162944
  %s6674 = scalar_lea.vmem %s1, 128
  %6675 = vst.msk [vmem:[%s6674] sm:$0xff] %vm6673, %v6672
  %s6676 = scalar_lea.vmem %s0, 2564
  %s6677 = smov 3
  %v6678 = vld [vmem:[%s6676] ss:$16 sm:%s6677]
  %s6679 = scalar_lea.vmem %s0, 2564
  %s6680 = smov 12
  %v6681 = vld [vmem:[%s6679] ss:$16 sm:%s6680]
  %vm6682 = vcmask 1043458
  %v6683 = vsel %vm6682, %v6681, %v6678
  %s6684 = scalar_lea.vmem %s0, 2564
  %s6685 = smov 48
  %v6686 = vld [vmem:[%s6684] ss:$16 sm:%s6685]
  %vm6687 = vcmask 1045508
  %v6688 = vsel %vm6687, %v6686, %v6683
  %s6689 = scalar_lea.vmem %s0, 2564
  %s6690 = smov 192
  %v6691 = vld [vmem:[%s6689] ss:$16 sm:%s6690]
  %vm6692 = vcmask 1047558
  %v6693 = vsel %vm6692, %v6691, %v6688
  %6694 = vrot.lane.b32.xlu0 %v6693, 16
  %v6695 = vpop.permute.xlu0 %6694
  %vm6696 = vcmask 162944
  %s6697 = scalar_lea.vmem %s1, 160
  %6698 = vst.msk [vmem:[%s6697] sm:$0xff] %vm6696, %v6695
  %s6699 = scalar_lea.vmem %s0, 132
  %s6700 = smov 3
  %v6701 = vld [vmem:[%s6699] ss:$16 sm:%s6700]
  %s6702 = scalar_lea.vmem %s0, 132
  %s6703 = smov 12
  %v6704 = vld [vmem:[%s6702] ss:$16 sm:%s6703]
  %vm6705 = vcmask 1043458
  %v6706 = vsel %vm6705, %v6704, %v6701
  %s6707 = scalar_lea.vmem %s0, 132
  %s6708 = smov 48
  %v6709 = vld [vmem:[%s6707] ss:$16 sm:%s6708]
  %vm6710 = vcmask 1045508
  %v6711 = vsel %vm6710, %v6709, %v6706
  %s6712 = scalar_lea.vmem %s0, 132
  %s6713 = smov 192
  %v6714 = vld [vmem:[%s6712] ss:$16 sm:%s6713]
  %vm6715 = vcmask 1047558
  %v6716 = vsel %vm6715, %v6714, %v6711
  %6717 = vrot.lane.b32.xlu0 %v6716, 16
  %v6718 = vpop.permute.xlu0 %6717
  %vm6719 = vcmask 162944
  %s6720 = scalar_lea.vmem %s1, 8
  %6721 = vst.msk [vmem:[%s6720] sm:$0xff] %vm6719, %v6718
  %s6722 = scalar_lea.vmem %s0, 644
  %s6723 = smov 3
  %v6724 = vld [vmem:[%s6722] ss:$16 sm:%s6723]
  %s6725 = scalar_lea.vmem %s0, 644
  %s6726 = smov 12
  %v6727 = vld [vmem:[%s6725] ss:$16 sm:%s6726]
  %vm6728 = vcmask 1043458
  %v6729 = vsel %vm6728, %v6727, %v6724
  %s6730 = scalar_lea.vmem %s0, 644
  %s6731 = smov 48
  %v6732 = vld [vmem:[%s6730] ss:$16 sm:%s6731]
  %vm6733 = vcmask 1045508
  %v6734 = vsel %vm6733, %v6732, %v6729
  %s6735 = scalar_lea.vmem %s0, 644
  %s6736 = smov 192
  %v6737 = vld [vmem:[%s6735] ss:$16 sm:%s6736]
  %vm6738 = vcmask 1047558
  %v6739 = vsel %vm6738, %v6737, %v6734
  %6740 = vrot.lane.b32.xlu0 %v6739, 16
  %v6741 = vpop.permute.xlu0 %6740
  %vm6742 = vcmask 162944
  %s6743 = scalar_lea.vmem %s1, 40
  %6744 = vst.msk [vmem:[%s6743] sm:$0xff] %vm6742, %v6741
  %s6745 = scalar_lea.vmem %s0, 1156
  %s6746 = smov 3
  %v6747 = vld [vmem:[%s6745] ss:$16 sm:%s6746]
  %s6748 = scalar_lea.vmem %s0, 1156
  %s6749 = smov 12
  %v6750 = vld [vmem:[%s6748] ss:$16 sm:%s6749]
  %vm6751 = vcmask 1043458
  %v6752 = vsel %vm6751, %v6750, %v6747
  %s6753 = scalar_lea.vmem %s0, 1156
  %s6754 = smov 48
  %v6755 = vld [vmem:[%s6753] ss:$16 sm:%s6754]
  %vm6756 = vcmask 1045508
  %v6757 = vsel %vm6756, %v6755, %v6752
  %s6758 = scalar_lea.vmem %s0, 1156
  %s6759 = smov 192
  %v6760 = vld [vmem:[%s6758] ss:$16 sm:%s6759]
  %vm6761 = vcmask 1047558
  %v6762 = vsel %vm6761, %v6760, %v6757
  %6763 = vrot.lane.b32.xlu0 %v6762, 16
  %v6764 = vpop.permute.xlu0 %6763
  %vm6765 = vcmask 162944
  %s6766 = scalar_lea.vmem %s1, 72
  %6767 = vst.msk [vmem:[%s6766] sm:$0xff] %vm6765, %v6764
  %s6768 = scalar_lea.vmem %s0, 1668
  %s6769 = smov 3
  %v6770 = vld [vmem:[%s6768] ss:$16 sm:%s6769]
  %s6771 = scalar_lea.vmem %s0, 1668
  %s6772 = smov 12
  %v6773 = vld [vmem:[%s6771] ss:$16 sm:%s6772]
  %vm6774 = vcmask 1043458
  %v6775 = vsel %vm6774, %v6773, %v6770
  %s6776 = scalar_lea.vmem %s0, 1668
  %s6777 = smov 48
  %v6778 = vld [vmem:[%s6776] ss:$16 sm:%s6777]
  %vm6779 = vcmask 1045508
  %v6780 = vsel %vm6779, %v6778, %v6775
  %s6781 = scalar_lea.vmem %s0, 1668
  %s6782 = smov 192
  %v6783 = vld [vmem:[%s6781] ss:$16 sm:%s6782]
  %vm6784 = vcmask 1047558
  %v6785 = vsel %vm6784, %v6783, %v6780
  %6786 = vrot.lane.b32.xlu0 %v6785, 16
  %v6787 = vpop.permute.xlu0 %6786
  %vm6788 = vcmask 162944
  %s6789 = scalar_lea.vmem %s1, 104
  %6790 = vst.msk [vmem:[%s6789] sm:$0xff] %vm6788, %v6787
  %s6791 = scalar_lea.vmem %s0, 2180
  %s6792 = smov 3
  %v6793 = vld [vmem:[%s6791] ss:$16 sm:%s6792]
  %s6794 = scalar_lea.vmem %s0, 2180
  %s6795 = smov 12
  %v6796 = vld [vmem:[%s6794] ss:$16 sm:%s6795]
  %vm6797 = vcmask 1043458
  %v6798 = vsel %vm6797, %v6796, %v6793
  %s6799 = scalar_lea.vmem %s0, 2180
  %s6800 = smov 48
  %v6801 = vld [vmem:[%s6799] ss:$16 sm:%s6800]
  %vm6802 = vcmask 1045508
  %v6803 = vsel %vm6802, %v6801, %v6798
  %s6804 = scalar_lea.vmem %s0, 2180
  %s6805 = smov 192
  %v6806 = vld [vmem:[%s6804] ss:$16 sm:%s6805]
  %vm6807 = vcmask 1047558
  %v6808 = vsel %vm6807, %v6806, %v6803
  %6809 = vrot.lane.b32.xlu0 %v6808, 16
  %v6810 = vpop.permute.xlu0 %6809
  %vm6811 = vcmask 162944
  %s6812 = scalar_lea.vmem %s1, 136
  %6813 = vst.msk [vmem:[%s6812] sm:$0xff] %vm6811, %v6810
  %s6814 = scalar_lea.vmem %s0, 2692
  %s6815 = smov 3
  %v6816 = vld [vmem:[%s6814] ss:$16 sm:%s6815]
  %s6817 = scalar_lea.vmem %s0, 2692
  %s6818 = smov 12
  %v6819 = vld [vmem:[%s6817] ss:$16 sm:%s6818]
  %vm6820 = vcmask 1043458
  %v6821 = vsel %vm6820, %v6819, %v6816
  %s6822 = scalar_lea.vmem %s0, 2692
  %s6823 = smov 48
  %v6824 = vld [vmem:[%s6822] ss:$16 sm:%s6823]
  %vm6825 = vcmask 1045508
  %v6826 = vsel %vm6825, %v6824, %v6821
  %s6827 = scalar_lea.vmem %s0, 2692
  %s6828 = smov 192
  %v6829 = vld [vmem:[%s6827] ss:$16 sm:%s6828]
  %vm6830 = vcmask 1047558
  %v6831 = vsel %vm6830, %v6829, %v6826
  %6832 = vrot.lane.b32.xlu0 %v6831, 16
  %v6833 = vpop.permute.xlu0 %6832
  %vm6834 = vcmask 162944
  %s6835 = scalar_lea.vmem %s1, 168
  %6836 = vst.msk [vmem:[%s6835] sm:$0xff] %vm6834, %v6833
  %s6837 = scalar_lea.vmem %s0, 260
  %s6838 = smov 3
  %v6839 = vld [vmem:[%s6837] ss:$16 sm:%s6838]
  %s6840 = scalar_lea.vmem %s0, 260
  %s6841 = smov 12
  %v6842 = vld [vmem:[%s6840] ss:$16 sm:%s6841]
  %vm6843 = vcmask 1043458
  %v6844 = vsel %vm6843, %v6842, %v6839
  %s6845 = scalar_lea.vmem %s0, 260
  %s6846 = smov 48
  %v6847 = vld [vmem:[%s6845] ss:$16 sm:%s6846]
  %vm6848 = vcmask 1045508
  %v6849 = vsel %vm6848, %v6847, %v6844
  %s6850 = scalar_lea.vmem %s0, 260
  %s6851 = smov 192
  %v6852 = vld [vmem:[%s6850] ss:$16 sm:%s6851]
  %vm6853 = vcmask 1047558
  %v6854 = vsel %vm6853, %v6852, %v6849
  %6855 = vrot.lane.b32.xlu0 %v6854, 16
  %v6856 = vpop.permute.xlu0 %6855
  %vm6857 = vcmask 162944
  %s6858 = scalar_lea.vmem %s1, 16
  %6859 = vst.msk [vmem:[%s6858] sm:$0xff] %vm6857, %v6856
  %s6860 = scalar_lea.vmem %s0, 772
  %s6861 = smov 3
  %v6862 = vld [vmem:[%s6860] ss:$16 sm:%s6861]
  %s6863 = scalar_lea.vmem %s0, 772
  %s6864 = smov 12
  %v6865 = vld [vmem:[%s6863] ss:$16 sm:%s6864]
  %vm6866 = vcmask 1043458
  %v6867 = vsel %vm6866, %v6865, %v6862
  %s6868 = scalar_lea.vmem %s0, 772
  %s6869 = smov 48
  %v6870 = vld [vmem:[%s6868] ss:$16 sm:%s6869]
  %vm6871 = vcmask 1045508
  %v6872 = vsel %vm6871, %v6870, %v6867
  %s6873 = scalar_lea.vmem %s0, 772
  %s6874 = smov 192
  %v6875 = vld [vmem:[%s6873] ss:$16 sm:%s6874]
  %vm6876 = vcmask 1047558
  %v6877 = vsel %vm6876, %v6875, %v6872
  %6878 = vrot.lane.b32.xlu0 %v6877, 16
  %v6879 = vpop.permute.xlu0 %6878
  %vm6880 = vcmask 162944
  %s6881 = scalar_lea.vmem %s1, 48
  %6882 = vst.msk [vmem:[%s6881] sm:$0xff] %vm6880, %v6879
  %s6883 = scalar_lea.vmem %s0, 1284
  %s6884 = smov 3
  %v6885 = vld [vmem:[%s6883] ss:$16 sm:%s6884]
  %s6886 = scalar_lea.vmem %s0, 1284
  %s6887 = smov 12
  %v6888 = vld [vmem:[%s6886] ss:$16 sm:%s6887]
  %vm6889 = vcmask 1043458
  %v6890 = vsel %vm6889, %v6888, %v6885
  %s6891 = scalar_lea.vmem %s0, 1284
  %s6892 = smov 48
  %v6893 = vld [vmem:[%s6891] ss:$16 sm:%s6892]
  %vm6894 = vcmask 1045508
  %v6895 = vsel %vm6894, %v6893, %v6890
  %s6896 = scalar_lea.vmem %s0, 1284
  %s6897 = smov 192
  %v6898 = vld [vmem:[%s6896] ss:$16 sm:%s6897]
  %vm6899 = vcmask 1047558
  %v6900 = vsel %vm6899, %v6898, %v6895
  %6901 = vrot.lane.b32.xlu0 %v6900, 16
  %v6902 = vpop.permute.xlu0 %6901
  %vm6903 = vcmask 162944
  %s6904 = scalar_lea.vmem %s1, 80
  %6905 = vst.msk [vmem:[%s6904] sm:$0xff] %vm6903, %v6902
  %s6906 = scalar_lea.vmem %s0, 1796
  %s6907 = smov 3
  %v6908 = vld [vmem:[%s6906] ss:$16 sm:%s6907]
  %s6909 = scalar_lea.vmem %s0, 1796
  %s6910 = smov 12
  %v6911 = vld [vmem:[%s6909] ss:$16 sm:%s6910]
  %vm6912 = vcmask 1043458
  %v6913 = vsel %vm6912, %v6911, %v6908
  %s6914 = scalar_lea.vmem %s0, 1796
  %s6915 = smov 48
  %v6916 = vld [vmem:[%s6914] ss:$16 sm:%s6915]
  %vm6917 = vcmask 1045508
  %v6918 = vsel %vm6917, %v6916, %v6913
  %s6919 = scalar_lea.vmem %s0, 1796
  %s6920 = smov 192
  %v6921 = vld [vmem:[%s6919] ss:$16 sm:%s6920]
  %vm6922 = vcmask 1047558
  %v6923 = vsel %vm6922, %v6921, %v6918
  %6924 = vrot.lane.b32.xlu0 %v6923, 16
  %v6925 = vpop.permute.xlu0 %6924
  %vm6926 = vcmask 162944
  %s6927 = scalar_lea.vmem %s1, 112
  %6928 = vst.msk [vmem:[%s6927] sm:$0xff] %vm6926, %v6925
  %s6929 = scalar_lea.vmem %s0, 2308
  %s6930 = smov 3
  %v6931 = vld [vmem:[%s6929] ss:$16 sm:%s6930]
  %s6932 = scalar_lea.vmem %s0, 2308
  %s6933 = smov 12
  %v6934 = vld [vmem:[%s6932] ss:$16 sm:%s6933]
  %vm6935 = vcmask 1043458
  %v6936 = vsel %vm6935, %v6934, %v6931
  %s6937 = scalar_lea.vmem %s0, 2308
  %s6938 = smov 48
  %v6939 = vld [vmem:[%s6937] ss:$16 sm:%s6938]
  %vm6940 = vcmask 1045508
  %v6941 = vsel %vm6940, %v6939, %v6936
  %s6942 = scalar_lea.vmem %s0, 2308
  %s6943 = smov 192
  %v6944 = vld [vmem:[%s6942] ss:$16 sm:%s6943]
  %vm6945 = vcmask 1047558
  %v6946 = vsel %vm6945, %v6944, %v6941
  %6947 = vrot.lane.b32.xlu0 %v6946, 16
  %v6948 = vpop.permute.xlu0 %6947
  %vm6949 = vcmask 162944
  %s6950 = scalar_lea.vmem %s1, 144
  %6951 = vst.msk [vmem:[%s6950] sm:$0xff] %vm6949, %v6948
  %s6952 = scalar_lea.vmem %s0, 2820
  %s6953 = smov 3
  %v6954 = vld [vmem:[%s6952] ss:$16 sm:%s6953]
  %s6955 = scalar_lea.vmem %s0, 2820
  %s6956 = smov 12
  %v6957 = vld [vmem:[%s6955] ss:$16 sm:%s6956]
  %vm6958 = vcmask 1043458
  %v6959 = vsel %vm6958, %v6957, %v6954
  %s6960 = scalar_lea.vmem %s0, 2820
  %s6961 = smov 48
  %v6962 = vld [vmem:[%s6960] ss:$16 sm:%s6961]
  %vm6963 = vcmask 1045508
  %v6964 = vsel %vm6963, %v6962, %v6959
  %s6965 = scalar_lea.vmem %s0, 2820
  %s6966 = smov 192
  %v6967 = vld [vmem:[%s6965] ss:$16 sm:%s6966]
  %vm6968 = vcmask 1047558
  %v6969 = vsel %vm6968, %v6967, %v6964
  %6970 = vrot.lane.b32.xlu0 %v6969, 16
  %v6971 = vpop.permute.xlu0 %6970
  %vm6972 = vcmask 162944
  %s6973 = scalar_lea.vmem %s1, 176
  %6974 = vst.msk [vmem:[%s6973] sm:$0xff] %vm6972, %v6971
  %s6975 = scalar_lea.vmem %s0, 388
  %s6976 = smov 3
  %v6977 = vld [vmem:[%s6975] ss:$16 sm:%s6976]
  %s6978 = scalar_lea.vmem %s0, 388
  %s6979 = smov 12
  %v6980 = vld [vmem:[%s6978] ss:$16 sm:%s6979]
  %vm6981 = vcmask 1043458
  %v6982 = vsel %vm6981, %v6980, %v6977
  %s6983 = scalar_lea.vmem %s0, 388
  %s6984 = smov 48
  %v6985 = vld [vmem:[%s6983] ss:$16 sm:%s6984]
  %vm6986 = vcmask 1045508
  %v6987 = vsel %vm6986, %v6985, %v6982
  %s6988 = scalar_lea.vmem %s0, 388
  %s6989 = smov 192
  %v6990 = vld [vmem:[%s6988] ss:$16 sm:%s6989]
  %vm6991 = vcmask 1047558
  %v6992 = vsel %vm6991, %v6990, %v6987
  %6993 = vrot.lane.b32.xlu0 %v6992, 16
  %v6994 = vpop.permute.xlu0 %6993
  %vm6995 = vcmask 162944
  %s6996 = scalar_lea.vmem %s1, 24
  %6997 = vst.msk [vmem:[%s6996] sm:$0xff] %vm6995, %v6994
  %s6998 = scalar_lea.vmem %s0, 900
  %s6999 = smov 3
  %v7000 = vld [vmem:[%s6998] ss:$16 sm:%s6999]
  %s7001 = scalar_lea.vmem %s0, 900
  %s7002 = smov 12
  %v7003 = vld [vmem:[%s7001] ss:$16 sm:%s7002]
  %vm7004 = vcmask 1043458
  %v7005 = vsel %vm7004, %v7003, %v7000
  %s7006 = scalar_lea.vmem %s0, 900
  %s7007 = smov 48
  %v7008 = vld [vmem:[%s7006] ss:$16 sm:%s7007]
  %vm7009 = vcmask 1045508
  %v7010 = vsel %vm7009, %v7008, %v7005
  %s7011 = scalar_lea.vmem %s0, 900
  %s7012 = smov 192
  %v7013 = vld [vmem:[%s7011] ss:$16 sm:%s7012]
  %vm7014 = vcmask 1047558
  %v7015 = vsel %vm7014, %v7013, %v7010
  %7016 = vrot.lane.b32.xlu0 %v7015, 16
  %v7017 = vpop.permute.xlu0 %7016
  %vm7018 = vcmask 162944
  %s7019 = scalar_lea.vmem %s1, 56
  %7020 = vst.msk [vmem:[%s7019] sm:$0xff] %vm7018, %v7017
  %s7021 = scalar_lea.vmem %s0, 1412
  %s7022 = smov 3
  %v7023 = vld [vmem:[%s7021] ss:$16 sm:%s7022]
  %s7024 = scalar_lea.vmem %s0, 1412
  %s7025 = smov 12
  %v7026 = vld [vmem:[%s7024] ss:$16 sm:%s7025]
  %vm7027 = vcmask 1043458
  %v7028 = vsel %vm7027, %v7026, %v7023
  %s7029 = scalar_lea.vmem %s0, 1412
  %s7030 = smov 48
  %v7031 = vld [vmem:[%s7029] ss:$16 sm:%s7030]
  %vm7032 = vcmask 1045508
  %v7033 = vsel %vm7032, %v7031, %v7028
  %s7034 = scalar_lea.vmem %s0, 1412
  %s7035 = smov 192
  %v7036 = vld [vmem:[%s7034] ss:$16 sm:%s7035]
  %vm7037 = vcmask 1047558
  %v7038 = vsel %vm7037, %v7036, %v7033
  %7039 = vrot.lane.b32.xlu0 %v7038, 16
  %v7040 = vpop.permute.xlu0 %7039
  %vm7041 = vcmask 162944
  %s7042 = scalar_lea.vmem %s1, 88
  %7043 = vst.msk [vmem:[%s7042] sm:$0xff] %vm7041, %v7040
  %s7044 = scalar_lea.vmem %s0, 1924
  %s7045 = smov 3
  %v7046 = vld [vmem:[%s7044] ss:$16 sm:%s7045]
  %s7047 = scalar_lea.vmem %s0, 1924
  %s7048 = smov 12
  %v7049 = vld [vmem:[%s7047] ss:$16 sm:%s7048]
  %vm7050 = vcmask 1043458
  %v7051 = vsel %vm7050, %v7049, %v7046
  %s7052 = scalar_lea.vmem %s0, 1924
  %s7053 = smov 48
  %v7054 = vld [vmem:[%s7052] ss:$16 sm:%s7053]
  %vm7055 = vcmask 1045508
  %v7056 = vsel %vm7055, %v7054, %v7051
  %s7057 = scalar_lea.vmem %s0, 1924
  %s7058 = smov 192
  %v7059 = vld [vmem:[%s7057] ss:$16 sm:%s7058]
  %vm7060 = vcmask 1047558
  %v7061 = vsel %vm7060, %v7059, %v7056
  %7062 = vrot.lane.b32.xlu0 %v7061, 16
  %v7063 = vpop.permute.xlu0 %7062
  %vm7064 = vcmask 162944
  %s7065 = scalar_lea.vmem %s1, 120
  %7066 = vst.msk [vmem:[%s7065] sm:$0xff] %vm7064, %v7063
  %s7067 = scalar_lea.vmem %s0, 2436
  %s7068 = smov 3
  %v7069 = vld [vmem:[%s7067] ss:$16 sm:%s7068]
  %s7070 = scalar_lea.vmem %s0, 2436
  %s7071 = smov 12
  %v7072 = vld [vmem:[%s7070] ss:$16 sm:%s7071]
  %vm7073 = vcmask 1043458
  %v7074 = vsel %vm7073, %v7072, %v7069
  %s7075 = scalar_lea.vmem %s0, 2436
  %s7076 = smov 48
  %v7077 = vld [vmem:[%s7075] ss:$16 sm:%s7076]
  %vm7078 = vcmask 1045508
  %v7079 = vsel %vm7078, %v7077, %v7074
  %s7080 = scalar_lea.vmem %s0, 2436
  %s7081 = smov 192
  %v7082 = vld [vmem:[%s7080] ss:$16 sm:%s7081]
  %vm7083 = vcmask 1047558
  %v7084 = vsel %vm7083, %v7082, %v7079
  %7085 = vrot.lane.b32.xlu0 %v7084, 16
  %v7086 = vpop.permute.xlu0 %7085
  %vm7087 = vcmask 162944
  %s7088 = scalar_lea.vmem %s1, 152
  %7089 = vst.msk [vmem:[%s7088] sm:$0xff] %vm7087, %v7086
  %s7090 = scalar_lea.vmem %s0, 2948
  %s7091 = smov 3
  %v7092 = vld [vmem:[%s7090] ss:$16 sm:%s7091]
  %s7093 = scalar_lea.vmem %s0, 2948
  %s7094 = smov 12
  %v7095 = vld [vmem:[%s7093] ss:$16 sm:%s7094]
  %vm7096 = vcmask 1043458
  %v7097 = vsel %vm7096, %v7095, %v7092
  %s7098 = scalar_lea.vmem %s0, 2948
  %s7099 = smov 48
  %v7100 = vld [vmem:[%s7098] ss:$16 sm:%s7099]
  %vm7101 = vcmask 1045508
  %v7102 = vsel %vm7101, %v7100, %v7097
  %s7103 = scalar_lea.vmem %s0, 2948
  %s7104 = smov 192
  %v7105 = vld [vmem:[%s7103] ss:$16 sm:%s7104]
  %vm7106 = vcmask 1047558
  %v7107 = vsel %vm7106, %v7105, %v7102
  %7108 = vrot.lane.b32.xlu0 %v7107, 16
  %v7109 = vpop.permute.xlu0 %7108
  %vm7110 = vcmask 162944
  %s7111 = scalar_lea.vmem %s1, 184
  %7112 = vst.msk [vmem:[%s7111] sm:$0xff] %vm7110, %v7109
  %s7113 = scalar_lea.vmem %s0, 3
  %s7114 = smov 3
  %v7115 = vld [vmem:[%s7113] ss:$16 sm:%s7114]
  %s7116 = scalar_lea.vmem %s0, 3
  %s7117 = smov 12
  %v7118 = vld [vmem:[%s7116] ss:$16 sm:%s7117]
  %vm7119 = vcmask 1043458
  %v7120 = vsel %vm7119, %v7118, %v7115
  %s7121 = scalar_lea.vmem %s0, 3
  %s7122 = smov 48
  %v7123 = vld [vmem:[%s7121] ss:$16 sm:%s7122]
  %vm7124 = vcmask 1045508
  %v7125 = vsel %vm7124, %v7123, %v7120
  %s7126 = scalar_lea.vmem %s0, 3
  %s7127 = smov 192
  %v7128 = vld [vmem:[%s7126] ss:$16 sm:%s7127]
  %vm7129 = vcmask 1047558
  %v7130 = vsel %vm7129, %v7128, %v7125
  %7131 = vrot.lane.b32.xlu0 %v7130, 12
  %v7132 = vpop.permute.xlu0 %7131
  %vm7133 = vcmask 130144
  %7134 = vst.msk [vmem:[%s1] sm:$0xff] %vm7133, %v7132
  %s7135 = scalar_lea.vmem %s0, 515
  %s7136 = smov 3
  %v7137 = vld [vmem:[%s7135] ss:$16 sm:%s7136]
  %s7138 = scalar_lea.vmem %s0, 515
  %s7139 = smov 12
  %v7140 = vld [vmem:[%s7138] ss:$16 sm:%s7139]
  %vm7141 = vcmask 1043458
  %v7142 = vsel %vm7141, %v7140, %v7137
  %s7143 = scalar_lea.vmem %s0, 515
  %s7144 = smov 48
  %v7145 = vld [vmem:[%s7143] ss:$16 sm:%s7144]
  %vm7146 = vcmask 1045508
  %v7147 = vsel %vm7146, %v7145, %v7142
  %s7148 = scalar_lea.vmem %s0, 515
  %s7149 = smov 192
  %v7150 = vld [vmem:[%s7148] ss:$16 sm:%s7149]
  %vm7151 = vcmask 1047558
  %v7152 = vsel %vm7151, %v7150, %v7147
  %7153 = vrot.lane.b32.xlu0 %v7152, 12
  %v7154 = vpop.permute.xlu0 %7153
  %vm7155 = vcmask 130144
  %s7156 = scalar_lea.vmem %s1, 32
  %7157 = vst.msk [vmem:[%s7156] sm:$0xff] %vm7155, %v7154
  %s7158 = scalar_lea.vmem %s0, 1027
  %s7159 = smov 3
  %v7160 = vld [vmem:[%s7158] ss:$16 sm:%s7159]
  %s7161 = scalar_lea.vmem %s0, 1027
  %s7162 = smov 12
  %v7163 = vld [vmem:[%s7161] ss:$16 sm:%s7162]
  %vm7164 = vcmask 1043458
  %v7165 = vsel %vm7164, %v7163, %v7160
  %s7166 = scalar_lea.vmem %s0, 1027
  %s7167 = smov 48
  %v7168 = vld [vmem:[%s7166] ss:$16 sm:%s7167]
  %vm7169 = vcmask 1045508
  %v7170 = vsel %vm7169, %v7168, %v7165
  %s7171 = scalar_lea.vmem %s0, 1027
  %s7172 = smov 192
  %v7173 = vld [vmem:[%s7171] ss:$16 sm:%s7172]
  %vm7174 = vcmask 1047558
  %v7175 = vsel %vm7174, %v7173, %v7170
  %7176 = vrot.lane.b32.xlu0 %v7175, 12
  %v7177 = vpop.permute.xlu0 %7176
  %vm7178 = vcmask 130144
  %s7179 = scalar_lea.vmem %s1, 64
  %7180 = vst.msk [vmem:[%s7179] sm:$0xff] %vm7178, %v7177
  %s7181 = scalar_lea.vmem %s0, 1539
  %s7182 = smov 3
  %v7183 = vld [vmem:[%s7181] ss:$16 sm:%s7182]
  %s7184 = scalar_lea.vmem %s0, 1539
  %s7185 = smov 12
  %v7186 = vld [vmem:[%s7184] ss:$16 sm:%s7185]
  %vm7187 = vcmask 1043458
  %v7188 = vsel %vm7187, %v7186, %v7183
  %s7189 = scalar_lea.vmem %s0, 1539
  %s7190 = smov 48
  %v7191 = vld [vmem:[%s7189] ss:$16 sm:%s7190]
  %vm7192 = vcmask 1045508
  %v7193 = vsel %vm7192, %v7191, %v7188
  %s7194 = scalar_lea.vmem %s0, 1539
  %s7195 = smov 192
  %v7196 = vld [vmem:[%s7194] ss:$16 sm:%s7195]
  %vm7197 = vcmask 1047558
  %v7198 = vsel %vm7197, %v7196, %v7193
  %7199 = vrot.lane.b32.xlu0 %v7198, 12
  %v7200 = vpop.permute.xlu0 %7199
  %vm7201 = vcmask 130144
  %s7202 = scalar_lea.vmem %s1, 96
  %7203 = vst.msk [vmem:[%s7202] sm:$0xff] %vm7201, %v7200
  %s7204 = scalar_lea.vmem %s0, 2051
  %s7205 = smov 3
  %v7206 = vld [vmem:[%s7204] ss:$16 sm:%s7205]
  %s7207 = scalar_lea.vmem %s0, 2051
  %s7208 = smov 12
  %v7209 = vld [vmem:[%s7207] ss:$16 sm:%s7208]
  %vm7210 = vcmask 1043458
  %v7211 = vsel %vm7210, %v7209, %v7206
  %s7212 = scalar_lea.vmem %s0, 2051
  %s7213 = smov 48
  %v7214 = vld [vmem:[%s7212] ss:$16 sm:%s7213]
  %vm7215 = vcmask 1045508
  %v7216 = vsel %vm7215, %v7214, %v7211
  %s7217 = scalar_lea.vmem %s0, 2051
  %s7218 = smov 192
  %v7219 = vld [vmem:[%s7217] ss:$16 sm:%s7218]
  %vm7220 = vcmask 1047558
  %v7221 = vsel %vm7220, %v7219, %v7216
  %7222 = vrot.lane.b32.xlu0 %v7221, 12
  %v7223 = vpop.permute.xlu0 %7222
  %vm7224 = vcmask 130144
  %s7225 = scalar_lea.vmem %s1, 128
  %7226 = vst.msk [vmem:[%s7225] sm:$0xff] %vm7224, %v7223
  %s7227 = scalar_lea.vmem %s0, 2563
  %s7228 = smov 3
  %v7229 = vld [vmem:[%s7227] ss:$16 sm:%s7228]
  %s7230 = scalar_lea.vmem %s0, 2563
  %s7231 = smov 12
  %v7232 = vld [vmem:[%s7230] ss:$16 sm:%s7231]
  %vm7233 = vcmask 1043458
  %v7234 = vsel %vm7233, %v7232, %v7229
  %s7235 = scalar_lea.vmem %s0, 2563
  %s7236 = smov 48
  %v7237 = vld [vmem:[%s7235] ss:$16 sm:%s7236]
  %vm7238 = vcmask 1045508
  %v7239 = vsel %vm7238, %v7237, %v7234
  %s7240 = scalar_lea.vmem %s0, 2563
  %s7241 = smov 192
  %v7242 = vld [vmem:[%s7240] ss:$16 sm:%s7241]
  %vm7243 = vcmask 1047558
  %v7244 = vsel %vm7243, %v7242, %v7239
  %7245 = vrot.lane.b32.xlu0 %v7244, 12
  %v7246 = vpop.permute.xlu0 %7245
  %vm7247 = vcmask 130144
  %s7248 = scalar_lea.vmem %s1, 160
  %7249 = vst.msk [vmem:[%s7248] sm:$0xff] %vm7247, %v7246
  %s7250 = scalar_lea.vmem %s0, 131
  %s7251 = smov 3
  %v7252 = vld [vmem:[%s7250] ss:$16 sm:%s7251]
  %s7253 = scalar_lea.vmem %s0, 131
  %s7254 = smov 12
  %v7255 = vld [vmem:[%s7253] ss:$16 sm:%s7254]
  %vm7256 = vcmask 1043458
  %v7257 = vsel %vm7256, %v7255, %v7252
  %s7258 = scalar_lea.vmem %s0, 131
  %s7259 = smov 48
  %v7260 = vld [vmem:[%s7258] ss:$16 sm:%s7259]
  %vm7261 = vcmask 1045508
  %v7262 = vsel %vm7261, %v7260, %v7257
  %s7263 = scalar_lea.vmem %s0, 131
  %s7264 = smov 192
  %v7265 = vld [vmem:[%s7263] ss:$16 sm:%s7264]
  %vm7266 = vcmask 1047558
  %v7267 = vsel %vm7266, %v7265, %v7262
  %7268 = vrot.lane.b32.xlu0 %v7267, 12
  %v7269 = vpop.permute.xlu0 %7268
  %vm7270 = vcmask 130144
  %s7271 = scalar_lea.vmem %s1, 8
  %7272 = vst.msk [vmem:[%s7271] sm:$0xff] %vm7270, %v7269
  %s7273 = scalar_lea.vmem %s0, 643
  %s7274 = smov 3
  %v7275 = vld [vmem:[%s7273] ss:$16 sm:%s7274]
  %s7276 = scalar_lea.vmem %s0, 643
  %s7277 = smov 12
  %v7278 = vld [vmem:[%s7276] ss:$16 sm:%s7277]
  %vm7279 = vcmask 1043458
  %v7280 = vsel %vm7279, %v7278, %v7275
  %s7281 = scalar_lea.vmem %s0, 643
  %s7282 = smov 48
  %v7283 = vld [vmem:[%s7281] ss:$16 sm:%s7282]
  %vm7284 = vcmask 1045508
  %v7285 = vsel %vm7284, %v7283, %v7280
  %s7286 = scalar_lea.vmem %s0, 643
  %s7287 = smov 192
  %v7288 = vld [vmem:[%s7286] ss:$16 sm:%s7287]
  %vm7289 = vcmask 1047558
  %v7290 = vsel %vm7289, %v7288, %v7285
  %7291 = vrot.lane.b32.xlu0 %v7290, 12
  %v7292 = vpop.permute.xlu0 %7291
  %vm7293 = vcmask 130144
  %s7294 = scalar_lea.vmem %s1, 40
  %7295 = vst.msk [vmem:[%s7294] sm:$0xff] %vm7293, %v7292
  %s7296 = scalar_lea.vmem %s0, 1155
  %s7297 = smov 3
  %v7298 = vld [vmem:[%s7296] ss:$16 sm:%s7297]
  %s7299 = scalar_lea.vmem %s0, 1155
  %s7300 = smov 12
  %v7301 = vld [vmem:[%s7299] ss:$16 sm:%s7300]
  %vm7302 = vcmask 1043458
  %v7303 = vsel %vm7302, %v7301, %v7298
  %s7304 = scalar_lea.vmem %s0, 1155
  %s7305 = smov 48
  %v7306 = vld [vmem:[%s7304] ss:$16 sm:%s7305]
  %vm7307 = vcmask 1045508
  %v7308 = vsel %vm7307, %v7306, %v7303
  %s7309 = scalar_lea.vmem %s0, 1155
  %s7310 = smov 192
  %v7311 = vld [vmem:[%s7309] ss:$16 sm:%s7310]
  %vm7312 = vcmask 1047558
  %v7313 = vsel %vm7312, %v7311, %v7308
  %7314 = vrot.lane.b32.xlu0 %v7313, 12
  %v7315 = vpop.permute.xlu0 %7314
  %vm7316 = vcmask 130144
  %s7317 = scalar_lea.vmem %s1, 72
  %7318 = vst.msk [vmem:[%s7317] sm:$0xff] %vm7316, %v7315
  %s7319 = scalar_lea.vmem %s0, 1667
  %s7320 = smov 3
  %v7321 = vld [vmem:[%s7319] ss:$16 sm:%s7320]
  %s7322 = scalar_lea.vmem %s0, 1667
  %s7323 = smov 12
  %v7324 = vld [vmem:[%s7322] ss:$16 sm:%s7323]
  %vm7325 = vcmask 1043458
  %v7326 = vsel %vm7325, %v7324, %v7321
  %s7327 = scalar_lea.vmem %s0, 1667
  %s7328 = smov 48
  %v7329 = vld [vmem:[%s7327] ss:$16 sm:%s7328]
  %vm7330 = vcmask 1045508
  %v7331 = vsel %vm7330, %v7329, %v7326
  %s7332 = scalar_lea.vmem %s0, 1667
  %s7333 = smov 192
  %v7334 = vld [vmem:[%s7332] ss:$16 sm:%s7333]
  %vm7335 = vcmask 1047558
  %v7336 = vsel %vm7335, %v7334, %v7331
  %7337 = vrot.lane.b32.xlu0 %v7336, 12
  %v7338 = vpop.permute.xlu0 %7337
  %vm7339 = vcmask 130144
  %s7340 = scalar_lea.vmem %s1, 104
  %7341 = vst.msk [vmem:[%s7340] sm:$0xff] %vm7339, %v7338
  %s7342 = scalar_lea.vmem %s0, 2179
  %s7343 = smov 3
  %v7344 = vld [vmem:[%s7342] ss:$16 sm:%s7343]
  %s7345 = scalar_lea.vmem %s0, 2179
  %s7346 = smov 12
  %v7347 = vld [vmem:[%s7345] ss:$16 sm:%s7346]
  %vm7348 = vcmask 1043458
  %v7349 = vsel %vm7348, %v7347, %v7344
  %s7350 = scalar_lea.vmem %s0, 2179
  %s7351 = smov 48
  %v7352 = vld [vmem:[%s7350] ss:$16 sm:%s7351]
  %vm7353 = vcmask 1045508
  %v7354 = vsel %vm7353, %v7352, %v7349
  %s7355 = scalar_lea.vmem %s0, 2179
  %s7356 = smov 192
  %v7357 = vld [vmem:[%s7355] ss:$16 sm:%s7356]
  %vm7358 = vcmask 1047558
  %v7359 = vsel %vm7358, %v7357, %v7354
  %7360 = vrot.lane.b32.xlu0 %v7359, 12
  %v7361 = vpop.permute.xlu0 %7360
  %vm7362 = vcmask 130144
  %s7363 = scalar_lea.vmem %s1, 136
  %7364 = vst.msk [vmem:[%s7363] sm:$0xff] %vm7362, %v7361
  %s7365 = scalar_lea.vmem %s0, 2691
  %s7366 = smov 3
  %v7367 = vld [vmem:[%s7365] ss:$16 sm:%s7366]
  %s7368 = scalar_lea.vmem %s0, 2691
  %s7369 = smov 12
  %v7370 = vld [vmem:[%s7368] ss:$16 sm:%s7369]
  %vm7371 = vcmask 1043458
  %v7372 = vsel %vm7371, %v7370, %v7367
  %s7373 = scalar_lea.vmem %s0, 2691
  %s7374 = smov 48
  %v7375 = vld [vmem:[%s7373] ss:$16 sm:%s7374]
  %vm7376 = vcmask 1045508
  %v7377 = vsel %vm7376, %v7375, %v7372
  %s7378 = scalar_lea.vmem %s0, 2691
  %s7379 = smov 192
  %v7380 = vld [vmem:[%s7378] ss:$16 sm:%s7379]
  %vm7381 = vcmask 1047558
  %v7382 = vsel %vm7381, %v7380, %v7377
  %7383 = vrot.lane.b32.xlu0 %v7382, 12
  %v7384 = vpop.permute.xlu0 %7383
  %vm7385 = vcmask 130144
  %s7386 = scalar_lea.vmem %s1, 168
  %7387 = vst.msk [vmem:[%s7386] sm:$0xff] %vm7385, %v7384
  %s7388 = scalar_lea.vmem %s0, 259
  %s7389 = smov 3
  %v7390 = vld [vmem:[%s7388] ss:$16 sm:%s7389]
  %s7391 = scalar_lea.vmem %s0, 259
  %s7392 = smov 12
  %v7393 = vld [vmem:[%s7391] ss:$16 sm:%s7392]
  %vm7394 = vcmask 1043458
  %v7395 = vsel %vm7394, %v7393, %v7390
  %s7396 = scalar_lea.vmem %s0, 259
  %s7397 = smov 48
  %v7398 = vld [vmem:[%s7396] ss:$16 sm:%s7397]
  %vm7399 = vcmask 1045508
  %v7400 = vsel %vm7399, %v7398, %v7395
  %s7401 = scalar_lea.vmem %s0, 259
  %s7402 = smov 192
  %v7403 = vld [vmem:[%s7401] ss:$16 sm:%s7402]
  %vm7404 = vcmask 1047558
  %v7405 = vsel %vm7404, %v7403, %v7400
  %7406 = vrot.lane.b32.xlu0 %v7405, 12
  %v7407 = vpop.permute.xlu0 %7406
  %vm7408 = vcmask 130144
  %s7409 = scalar_lea.vmem %s1, 16
  %7410 = vst.msk [vmem:[%s7409] sm:$0xff] %vm7408, %v7407
  %s7411 = scalar_lea.vmem %s0, 771
  %s7412 = smov 3
  %v7413 = vld [vmem:[%s7411] ss:$16 sm:%s7412]
  %s7414 = scalar_lea.vmem %s0, 771
  %s7415 = smov 12
  %v7416 = vld [vmem:[%s7414] ss:$16 sm:%s7415]
  %vm7417 = vcmask 1043458
  %v7418 = vsel %vm7417, %v7416, %v7413
  %s7419 = scalar_lea.vmem %s0, 771
  %s7420 = smov 48
  %v7421 = vld [vmem:[%s7419] ss:$16 sm:%s7420]
  %vm7422 = vcmask 1045508
  %v7423 = vsel %vm7422, %v7421, %v7418
  %s7424 = scalar_lea.vmem %s0, 771
  %s7425 = smov 192
  %v7426 = vld [vmem:[%s7424] ss:$16 sm:%s7425]
  %vm7427 = vcmask 1047558
  %v7428 = vsel %vm7427, %v7426, %v7423
  %7429 = vrot.lane.b32.xlu0 %v7428, 12
  %v7430 = vpop.permute.xlu0 %7429
  %vm7431 = vcmask 130144
  %s7432 = scalar_lea.vmem %s1, 48
  %7433 = vst.msk [vmem:[%s7432] sm:$0xff] %vm7431, %v7430
  %s7434 = scalar_lea.vmem %s0, 1283
  %s7435 = smov 3
  %v7436 = vld [vmem:[%s7434] ss:$16 sm:%s7435]
  %s7437 = scalar_lea.vmem %s0, 1283
  %s7438 = smov 12
  %v7439 = vld [vmem:[%s7437] ss:$16 sm:%s7438]
  %vm7440 = vcmask 1043458
  %v7441 = vsel %vm7440, %v7439, %v7436
  %s7442 = scalar_lea.vmem %s0, 1283
  %s7443 = smov 48
  %v7444 = vld [vmem:[%s7442] ss:$16 sm:%s7443]
  %vm7445 = vcmask 1045508
  %v7446 = vsel %vm7445, %v7444, %v7441
  %s7447 = scalar_lea.vmem %s0, 1283
  %s7448 = smov 192
  %v7449 = vld [vmem:[%s7447] ss:$16 sm:%s7448]
  %vm7450 = vcmask 1047558
  %v7451 = vsel %vm7450, %v7449, %v7446
  %7452 = vrot.lane.b32.xlu0 %v7451, 12
  %v7453 = vpop.permute.xlu0 %7452
  %vm7454 = vcmask 130144
  %s7455 = scalar_lea.vmem %s1, 80
  %7456 = vst.msk [vmem:[%s7455] sm:$0xff] %vm7454, %v7453
  %s7457 = scalar_lea.vmem %s0, 1795
  %s7458 = smov 3
  %v7459 = vld [vmem:[%s7457] ss:$16 sm:%s7458]
  %s7460 = scalar_lea.vmem %s0, 1795
  %s7461 = smov 12
  %v7462 = vld [vmem:[%s7460] ss:$16 sm:%s7461]
  %vm7463 = vcmask 1043458
  %v7464 = vsel %vm7463, %v7462, %v7459
  %s7465 = scalar_lea.vmem %s0, 1795
  %s7466 = smov 48
  %v7467 = vld [vmem:[%s7465] ss:$16 sm:%s7466]
  %vm7468 = vcmask 1045508
  %v7469 = vsel %vm7468, %v7467, %v7464
  %s7470 = scalar_lea.vmem %s0, 1795
  %s7471 = smov 192
  %v7472 = vld [vmem:[%s7470] ss:$16 sm:%s7471]
  %vm7473 = vcmask 1047558
  %v7474 = vsel %vm7473, %v7472, %v7469
  %7475 = vrot.lane.b32.xlu0 %v7474, 12
  %v7476 = vpop.permute.xlu0 %7475
  %vm7477 = vcmask 130144
  %s7478 = scalar_lea.vmem %s1, 112
  %7479 = vst.msk [vmem:[%s7478] sm:$0xff] %vm7477, %v7476
  %s7480 = scalar_lea.vmem %s0, 2307
  %s7481 = smov 3
  %v7482 = vld [vmem:[%s7480] ss:$16 sm:%s7481]
  %s7483 = scalar_lea.vmem %s0, 2307
  %s7484 = smov 12
  %v7485 = vld [vmem:[%s7483] ss:$16 sm:%s7484]
  %vm7486 = vcmask 1043458
  %v7487 = vsel %vm7486, %v7485, %v7482
  %s7488 = scalar_lea.vmem %s0, 2307
  %s7489 = smov 48
  %v7490 = vld [vmem:[%s7488] ss:$16 sm:%s7489]
  %vm7491 = vcmask 1045508
  %v7492 = vsel %vm7491, %v7490, %v7487
  %s7493 = scalar_lea.vmem %s0, 2307
  %s7494 = smov 192
  %v7495 = vld [vmem:[%s7493] ss:$16 sm:%s7494]
  %vm7496 = vcmask 1047558
  %v7497 = vsel %vm7496, %v7495, %v7492
  %7498 = vrot.lane.b32.xlu0 %v7497, 12
  %v7499 = vpop.permute.xlu0 %7498
  %vm7500 = vcmask 130144
  %s7501 = scalar_lea.vmem %s1, 144
  %7502 = vst.msk [vmem:[%s7501] sm:$0xff] %vm7500, %v7499
  %s7503 = scalar_lea.vmem %s0, 2819
  %s7504 = smov 3
  %v7505 = vld [vmem:[%s7503] ss:$16 sm:%s7504]
  %s7506 = scalar_lea.vmem %s0, 2819
  %s7507 = smov 12
  %v7508 = vld [vmem:[%s7506] ss:$16 sm:%s7507]
  %vm7509 = vcmask 1043458
  %v7510 = vsel %vm7509, %v7508, %v7505
  %s7511 = scalar_lea.vmem %s0, 2819
  %s7512 = smov 48
  %v7513 = vld [vmem:[%s7511] ss:$16 sm:%s7512]
  %vm7514 = vcmask 1045508
  %v7515 = vsel %vm7514, %v7513, %v7510
  %s7516 = scalar_lea.vmem %s0, 2819
  %s7517 = smov 192
  %v7518 = vld [vmem:[%s7516] ss:$16 sm:%s7517]
  %vm7519 = vcmask 1047558
  %v7520 = vsel %vm7519, %v7518, %v7515
  %7521 = vrot.lane.b32.xlu0 %v7520, 12
  %v7522 = vpop.permute.xlu0 %7521
  %vm7523 = vcmask 130144
  %s7524 = scalar_lea.vmem %s1, 176
  %7525 = vst.msk [vmem:[%s7524] sm:$0xff] %vm7523, %v7522
  %s7526 = scalar_lea.vmem %s0, 387
  %s7527 = smov 3
  %v7528 = vld [vmem:[%s7526] ss:$16 sm:%s7527]
  %s7529 = scalar_lea.vmem %s0, 387
  %s7530 = smov 12
  %v7531 = vld [vmem:[%s7529] ss:$16 sm:%s7530]
  %vm7532 = vcmask 1043458
  %v7533 = vsel %vm7532, %v7531, %v7528
  %s7534 = scalar_lea.vmem %s0, 387
  %s7535 = smov 48
  %v7536 = vld [vmem:[%s7534] ss:$16 sm:%s7535]
  %vm7537 = vcmask 1045508
  %v7538 = vsel %vm7537, %v7536, %v7533
  %s7539 = scalar_lea.vmem %s0, 387
  %s7540 = smov 192
  %v7541 = vld [vmem:[%s7539] ss:$16 sm:%s7540]
  %vm7542 = vcmask 1047558
  %v7543 = vsel %vm7542, %v7541, %v7538
  %7544 = vrot.lane.b32.xlu0 %v7543, 12
  %v7545 = vpop.permute.xlu0 %7544
  %vm7546 = vcmask 130144
  %s7547 = scalar_lea.vmem %s1, 24
  %7548 = vst.msk [vmem:[%s7547] sm:$0xff] %vm7546, %v7545
  %s7549 = scalar_lea.vmem %s0, 899
  %s7550 = smov 3
  %v7551 = vld [vmem:[%s7549] ss:$16 sm:%s7550]
  %s7552 = scalar_lea.vmem %s0, 899
  %s7553 = smov 12
  %v7554 = vld [vmem:[%s7552] ss:$16 sm:%s7553]
  %vm7555 = vcmask 1043458
  %v7556 = vsel %vm7555, %v7554, %v7551
  %s7557 = scalar_lea.vmem %s0, 899
  %s7558 = smov 48
  %v7559 = vld [vmem:[%s7557] ss:$16 sm:%s7558]
  %vm7560 = vcmask 1045508
  %v7561 = vsel %vm7560, %v7559, %v7556
  %s7562 = scalar_lea.vmem %s0, 899
  %s7563 = smov 192
  %v7564 = vld [vmem:[%s7562] ss:$16 sm:%s7563]
  %vm7565 = vcmask 1047558
  %v7566 = vsel %vm7565, %v7564, %v7561
  %7567 = vrot.lane.b32.xlu0 %v7566, 12
  %v7568 = vpop.permute.xlu0 %7567
  %vm7569 = vcmask 130144
  %s7570 = scalar_lea.vmem %s1, 56
  %7571 = vst.msk [vmem:[%s7570] sm:$0xff] %vm7569, %v7568
  %s7572 = scalar_lea.vmem %s0, 1411
  %s7573 = smov 3
  %v7574 = vld [vmem:[%s7572] ss:$16 sm:%s7573]
  %s7575 = scalar_lea.vmem %s0, 1411
  %s7576 = smov 12
  %v7577 = vld [vmem:[%s7575] ss:$16 sm:%s7576]
  %vm7578 = vcmask 1043458
  %v7579 = vsel %vm7578, %v7577, %v7574
  %s7580 = scalar_lea.vmem %s0, 1411
  %s7581 = smov 48
  %v7582 = vld [vmem:[%s7580] ss:$16 sm:%s7581]
  %vm7583 = vcmask 1045508
  %v7584 = vsel %vm7583, %v7582, %v7579
  %s7585 = scalar_lea.vmem %s0, 1411
  %s7586 = smov 192
  %v7587 = vld [vmem:[%s7585] ss:$16 sm:%s7586]
  %vm7588 = vcmask 1047558
  %v7589 = vsel %vm7588, %v7587, %v7584
  %7590 = vrot.lane.b32.xlu0 %v7589, 12
  %v7591 = vpop.permute.xlu0 %7590
  %vm7592 = vcmask 130144
  %s7593 = scalar_lea.vmem %s1, 88
  %7594 = vst.msk [vmem:[%s7593] sm:$0xff] %vm7592, %v7591
  %s7595 = scalar_lea.vmem %s0, 1923
  %s7596 = smov 3
  %v7597 = vld [vmem:[%s7595] ss:$16 sm:%s7596]
  %s7598 = scalar_lea.vmem %s0, 1923
  %s7599 = smov 12
  %v7600 = vld [vmem:[%s7598] ss:$16 sm:%s7599]
  %vm7601 = vcmask 1043458
  %v7602 = vsel %vm7601, %v7600, %v7597
  %s7603 = scalar_lea.vmem %s0, 1923
  %s7604 = smov 48
  %v7605 = vld [vmem:[%s7603] ss:$16 sm:%s7604]
  %vm7606 = vcmask 1045508
  %v7607 = vsel %vm7606, %v7605, %v7602
  %s7608 = scalar_lea.vmem %s0, 1923
  %s7609 = smov 192
  %v7610 = vld [vmem:[%s7608] ss:$16 sm:%s7609]
  %vm7611 = vcmask 1047558
  %v7612 = vsel %vm7611, %v7610, %v7607
  %7613 = vrot.lane.b32.xlu0 %v7612, 12
  %v7614 = vpop.permute.xlu0 %7613
  %vm7615 = vcmask 130144
  %s7616 = scalar_lea.vmem %s1, 120
  %7617 = vst.msk [vmem:[%s7616] sm:$0xff] %vm7615, %v7614
  %s7618 = scalar_lea.vmem %s0, 2435
  %s7619 = smov 3
  %v7620 = vld [vmem:[%s7618] ss:$16 sm:%s7619]
  %s7621 = scalar_lea.vmem %s0, 2435
  %s7622 = smov 12
  %v7623 = vld [vmem:[%s7621] ss:$16 sm:%s7622]
  %vm7624 = vcmask 1043458
  %v7625 = vsel %vm7624, %v7623, %v7620
  %s7626 = scalar_lea.vmem %s0, 2435
  %s7627 = smov 48
  %v7628 = vld [vmem:[%s7626] ss:$16 sm:%s7627]
  %vm7629 = vcmask 1045508
  %v7630 = vsel %vm7629, %v7628, %v7625
  %s7631 = scalar_lea.vmem %s0, 2435
  %s7632 = smov 192
  %v7633 = vld [vmem:[%s7631] ss:$16 sm:%s7632]
  %vm7634 = vcmask 1047558
  %v7635 = vsel %vm7634, %v7633, %v7630
  %7636 = vrot.lane.b32.xlu0 %v7635, 12
  %v7637 = vpop.permute.xlu0 %7636
  %vm7638 = vcmask 130144
  %s7639 = scalar_lea.vmem %s1, 152
  %7640 = vst.msk [vmem:[%s7639] sm:$0xff] %vm7638, %v7637
  %s7641 = scalar_lea.vmem %s0, 2947
  %s7642 = smov 3
  %v7643 = vld [vmem:[%s7641] ss:$16 sm:%s7642]
  %s7644 = scalar_lea.vmem %s0, 2947
  %s7645 = smov 12
  %v7646 = vld [vmem:[%s7644] ss:$16 sm:%s7645]
  %vm7647 = vcmask 1043458
  %v7648 = vsel %vm7647, %v7646, %v7643
  %s7649 = scalar_lea.vmem %s0, 2947
  %s7650 = smov 48
  %v7651 = vld [vmem:[%s7649] ss:$16 sm:%s7650]
  %vm7652 = vcmask 1045508
  %v7653 = vsel %vm7652, %v7651, %v7648
  %s7654 = scalar_lea.vmem %s0, 2947
  %s7655 = smov 192
  %v7656 = vld [vmem:[%s7654] ss:$16 sm:%s7655]
  %vm7657 = vcmask 1047558
  %v7658 = vsel %vm7657, %v7656, %v7653
  %7659 = vrot.lane.b32.xlu0 %v7658, 12
  %v7660 = vpop.permute.xlu0 %7659
  %vm7661 = vcmask 130144
  %s7662 = scalar_lea.vmem %s1, 184
  %7663 = vst.msk [vmem:[%s7662] sm:$0xff] %vm7661, %v7660
  %s7664 = scalar_lea.vmem %s0, 2
  %s7665 = smov 3
  %v7666 = vld [vmem:[%s7664] ss:$16 sm:%s7665]
  %s7667 = scalar_lea.vmem %s0, 2
  %s7668 = smov 12
  %v7669 = vld [vmem:[%s7667] ss:$16 sm:%s7668]
  %vm7670 = vcmask 1043458
  %v7671 = vsel %vm7670, %v7669, %v7666
  %s7672 = scalar_lea.vmem %s0, 2
  %s7673 = smov 48
  %v7674 = vld [vmem:[%s7672] ss:$16 sm:%s7673]
  %vm7675 = vcmask 1045508
  %v7676 = vsel %vm7675, %v7674, %v7671
  %s7677 = scalar_lea.vmem %s0, 2
  %s7678 = smov 192
  %v7679 = vld [vmem:[%s7677] ss:$16 sm:%s7678]
  %vm7680 = vcmask 1047558
  %v7681 = vsel %vm7680, %v7679, %v7676
  %7682 = vrot.lane.b32.xlu0 %v7681, 8
  %v7683 = vpop.permute.xlu0 %7682
  %vm7684 = vcmask 97344
  %7685 = vst.msk [vmem:[%s1] sm:$0xff] %vm7684, %v7683
  %s7686 = scalar_lea.vmem %s0, 514
  %s7687 = smov 3
  %v7688 = vld [vmem:[%s7686] ss:$16 sm:%s7687]
  %s7689 = scalar_lea.vmem %s0, 514
  %s7690 = smov 12
  %v7691 = vld [vmem:[%s7689] ss:$16 sm:%s7690]
  %vm7692 = vcmask 1043458
  %v7693 = vsel %vm7692, %v7691, %v7688
  %s7694 = scalar_lea.vmem %s0, 514
  %s7695 = smov 48
  %v7696 = vld [vmem:[%s7694] ss:$16 sm:%s7695]
  %vm7697 = vcmask 1045508
  %v7698 = vsel %vm7697, %v7696, %v7693
  %s7699 = scalar_lea.vmem %s0, 514
  %s7700 = smov 192
  %v7701 = vld [vmem:[%s7699] ss:$16 sm:%s7700]
  %vm7702 = vcmask 1047558
  %v7703 = vsel %vm7702, %v7701, %v7698
  %7704 = vrot.lane.b32.xlu0 %v7703, 8
  %v7705 = vpop.permute.xlu0 %7704
  %vm7706 = vcmask 97344
  %s7707 = scalar_lea.vmem %s1, 32
  %7708 = vst.msk [vmem:[%s7707] sm:$0xff] %vm7706, %v7705
  %s7709 = scalar_lea.vmem %s0, 1026
  %s7710 = smov 3
  %v7711 = vld [vmem:[%s7709] ss:$16 sm:%s7710]
  %s7712 = scalar_lea.vmem %s0, 1026
  %s7713 = smov 12
  %v7714 = vld [vmem:[%s7712] ss:$16 sm:%s7713]
  %vm7715 = vcmask 1043458
  %v7716 = vsel %vm7715, %v7714, %v7711
  %s7717 = scalar_lea.vmem %s0, 1026
  %s7718 = smov 48
  %v7719 = vld [vmem:[%s7717] ss:$16 sm:%s7718]
  %vm7720 = vcmask 1045508
  %v7721 = vsel %vm7720, %v7719, %v7716
  %s7722 = scalar_lea.vmem %s0, 1026
  %s7723 = smov 192
  %v7724 = vld [vmem:[%s7722] ss:$16 sm:%s7723]
  %vm7725 = vcmask 1047558
  %v7726 = vsel %vm7725, %v7724, %v7721
  %7727 = vrot.lane.b32.xlu0 %v7726, 8
  %v7728 = vpop.permute.xlu0 %7727
  %vm7729 = vcmask 97344
  %s7730 = scalar_lea.vmem %s1, 64
  %7731 = vst.msk [vmem:[%s7730] sm:$0xff] %vm7729, %v7728
  %s7732 = scalar_lea.vmem %s0, 1538
  %s7733 = smov 3
  %v7734 = vld [vmem:[%s7732] ss:$16 sm:%s7733]
  %s7735 = scalar_lea.vmem %s0, 1538
  %s7736 = smov 12
  %v7737 = vld [vmem:[%s7735] ss:$16 sm:%s7736]
  %vm7738 = vcmask 1043458
  %v7739 = vsel %vm7738, %v7737, %v7734
  %s7740 = scalar_lea.vmem %s0, 1538
  %s7741 = smov 48
  %v7742 = vld [vmem:[%s7740] ss:$16 sm:%s7741]
  %vm7743 = vcmask 1045508
  %v7744 = vsel %vm7743, %v7742, %v7739
  %s7745 = scalar_lea.vmem %s0, 1538
  %s7746 = smov 192
  %v7747 = vld [vmem:[%s7745] ss:$16 sm:%s7746]
  %vm7748 = vcmask 1047558
  %v7749 = vsel %vm7748, %v7747, %v7744
  %7750 = vrot.lane.b32.xlu0 %v7749, 8
  %v7751 = vpop.permute.xlu0 %7750
  %vm7752 = vcmask 97344
  %s7753 = scalar_lea.vmem %s1, 96
  %7754 = vst.msk [vmem:[%s7753] sm:$0xff] %vm7752, %v7751
  %s7755 = scalar_lea.vmem %s0, 2050
  %s7756 = smov 3
  %v7757 = vld [vmem:[%s7755] ss:$16 sm:%s7756]
  %s7758 = scalar_lea.vmem %s0, 2050
  %s7759 = smov 12
  %v7760 = vld [vmem:[%s7758] ss:$16 sm:%s7759]
  %vm7761 = vcmask 1043458
  %v7762 = vsel %vm7761, %v7760, %v7757
  %s7763 = scalar_lea.vmem %s0, 2050
  %s7764 = smov 48
  %v7765 = vld [vmem:[%s7763] ss:$16 sm:%s7764]
  %vm7766 = vcmask 1045508
  %v7767 = vsel %vm7766, %v7765, %v7762
  %s7768 = scalar_lea.vmem %s0, 2050
  %s7769 = smov 192
  %v7770 = vld [vmem:[%s7768] ss:$16 sm:%s7769]
  %vm7771 = vcmask 1047558
  %v7772 = vsel %vm7771, %v7770, %v7767
  %7773 = vrot.lane.b32.xlu0 %v7772, 8
  %v7774 = vpop.permute.xlu0 %7773
  %vm7775 = vcmask 97344
  %s7776 = scalar_lea.vmem %s1, 128
  %7777 = vst.msk [vmem:[%s7776] sm:$0xff] %vm7775, %v7774
  %s7778 = scalar_lea.vmem %s0, 2562
  %s7779 = smov 3
  %v7780 = vld [vmem:[%s7778] ss:$16 sm:%s7779]
  %s7781 = scalar_lea.vmem %s0, 2562
  %s7782 = smov 12
  %v7783 = vld [vmem:[%s7781] ss:$16 sm:%s7782]
  %vm7784 = vcmask 1043458
  %v7785 = vsel %vm7784, %v7783, %v7780
  %s7786 = scalar_lea.vmem %s0, 2562
  %s7787 = smov 48
  %v7788 = vld [vmem:[%s7786] ss:$16 sm:%s7787]
  %vm7789 = vcmask 1045508
  %v7790 = vsel %vm7789, %v7788, %v7785
  %s7791 = scalar_lea.vmem %s0, 2562
  %s7792 = smov 192
  %v7793 = vld [vmem:[%s7791] ss:$16 sm:%s7792]
  %vm7794 = vcmask 1047558
  %v7795 = vsel %vm7794, %v7793, %v7790
  %7796 = vrot.lane.b32.xlu0 %v7795, 8
  %v7797 = vpop.permute.xlu0 %7796
  %vm7798 = vcmask 97344
  %s7799 = scalar_lea.vmem %s1, 160
  %7800 = vst.msk [vmem:[%s7799] sm:$0xff] %vm7798, %v7797
  %s7801 = scalar_lea.vmem %s0, 130
  %s7802 = smov 3
  %v7803 = vld [vmem:[%s7801] ss:$16 sm:%s7802]
  %s7804 = scalar_lea.vmem %s0, 130
  %s7805 = smov 12
  %v7806 = vld [vmem:[%s7804] ss:$16 sm:%s7805]
  %vm7807 = vcmask 1043458
  %v7808 = vsel %vm7807, %v7806, %v7803
  %s7809 = scalar_lea.vmem %s0, 130
  %s7810 = smov 48
  %v7811 = vld [vmem:[%s7809] ss:$16 sm:%s7810]
  %vm7812 = vcmask 1045508
  %v7813 = vsel %vm7812, %v7811, %v7808
  %s7814 = scalar_lea.vmem %s0, 130
  %s7815 = smov 192
  %v7816 = vld [vmem:[%s7814] ss:$16 sm:%s7815]
  %vm7817 = vcmask 1047558
  %v7818 = vsel %vm7817, %v7816, %v7813
  %7819 = vrot.lane.b32.xlu0 %v7818, 8
  %v7820 = vpop.permute.xlu0 %7819
  %vm7821 = vcmask 97344
  %s7822 = scalar_lea.vmem %s1, 8
  %7823 = vst.msk [vmem:[%s7822] sm:$0xff] %vm7821, %v7820
  %s7824 = scalar_lea.vmem %s0, 642
  %s7825 = smov 3
  %v7826 = vld [vmem:[%s7824] ss:$16 sm:%s7825]
  %s7827 = scalar_lea.vmem %s0, 642
  %s7828 = smov 12
  %v7829 = vld [vmem:[%s7827] ss:$16 sm:%s7828]
  %vm7830 = vcmask 1043458
  %v7831 = vsel %vm7830, %v7829, %v7826
  %s7832 = scalar_lea.vmem %s0, 642
  %s7833 = smov 48
  %v7834 = vld [vmem:[%s7832] ss:$16 sm:%s7833]
  %vm7835 = vcmask 1045508
  %v7836 = vsel %vm7835, %v7834, %v7831
  %s7837 = scalar_lea.vmem %s0, 642
  %s7838 = smov 192
  %v7839 = vld [vmem:[%s7837] ss:$16 sm:%s7838]
  %vm7840 = vcmask 1047558
  %v7841 = vsel %vm7840, %v7839, %v7836
  %7842 = vrot.lane.b32.xlu0 %v7841, 8
  %v7843 = vpop.permute.xlu0 %7842
  %vm7844 = vcmask 97344
  %s7845 = scalar_lea.vmem %s1, 40
  %7846 = vst.msk [vmem:[%s7845] sm:$0xff] %vm7844, %v7843
  %s7847 = scalar_lea.vmem %s0, 1154
  %s7848 = smov 3
  %v7849 = vld [vmem:[%s7847] ss:$16 sm:%s7848]
  %s7850 = scalar_lea.vmem %s0, 1154
  %s7851 = smov 12
  %v7852 = vld [vmem:[%s7850] ss:$16 sm:%s7851]
  %vm7853 = vcmask 1043458
  %v7854 = vsel %vm7853, %v7852, %v7849
  %s7855 = scalar_lea.vmem %s0, 1154
  %s7856 = smov 48
  %v7857 = vld [vmem:[%s7855] ss:$16 sm:%s7856]
  %vm7858 = vcmask 1045508
  %v7859 = vsel %vm7858, %v7857, %v7854
  %s7860 = scalar_lea.vmem %s0, 1154
  %s7861 = smov 192
  %v7862 = vld [vmem:[%s7860] ss:$16 sm:%s7861]
  %vm7863 = vcmask 1047558
  %v7864 = vsel %vm7863, %v7862, %v7859
  %7865 = vrot.lane.b32.xlu0 %v7864, 8
  %v7866 = vpop.permute.xlu0 %7865
  %vm7867 = vcmask 97344
  %s7868 = scalar_lea.vmem %s1, 72
  %7869 = vst.msk [vmem:[%s7868] sm:$0xff] %vm7867, %v7866
  %s7870 = scalar_lea.vmem %s0, 1666
  %s7871 = smov 3
  %v7872 = vld [vmem:[%s7870] ss:$16 sm:%s7871]
  %s7873 = scalar_lea.vmem %s0, 1666
  %s7874 = smov 12
  %v7875 = vld [vmem:[%s7873] ss:$16 sm:%s7874]
  %vm7876 = vcmask 1043458
  %v7877 = vsel %vm7876, %v7875, %v7872
  %s7878 = scalar_lea.vmem %s0, 1666
  %s7879 = smov 48
  %v7880 = vld [vmem:[%s7878] ss:$16 sm:%s7879]
  %vm7881 = vcmask 1045508
  %v7882 = vsel %vm7881, %v7880, %v7877
  %s7883 = scalar_lea.vmem %s0, 1666
  %s7884 = smov 192
  %v7885 = vld [vmem:[%s7883] ss:$16 sm:%s7884]
  %vm7886 = vcmask 1047558
  %v7887 = vsel %vm7886, %v7885, %v7882
  %7888 = vrot.lane.b32.xlu0 %v7887, 8
  %v7889 = vpop.permute.xlu0 %7888
  %vm7890 = vcmask 97344
  %s7891 = scalar_lea.vmem %s1, 104
  %7892 = vst.msk [vmem:[%s7891] sm:$0xff] %vm7890, %v7889
  %s7893 = scalar_lea.vmem %s0, 2178
  %s7894 = smov 3
  %v7895 = vld [vmem:[%s7893] ss:$16 sm:%s7894]
  %s7896 = scalar_lea.vmem %s0, 2178
  %s7897 = smov 12
  %v7898 = vld [vmem:[%s7896] ss:$16 sm:%s7897]
  %vm7899 = vcmask 1043458
  %v7900 = vsel %vm7899, %v7898, %v7895
  %s7901 = scalar_lea.vmem %s0, 2178
  %s7902 = smov 48
  %v7903 = vld [vmem:[%s7901] ss:$16 sm:%s7902]
  %vm7904 = vcmask 1045508
  %v7905 = vsel %vm7904, %v7903, %v7900
  %s7906 = scalar_lea.vmem %s0, 2178
  %s7907 = smov 192
  %v7908 = vld [vmem:[%s7906] ss:$16 sm:%s7907]
  %vm7909 = vcmask 1047558
  %v7910 = vsel %vm7909, %v7908, %v7905
  %7911 = vrot.lane.b32.xlu0 %v7910, 8
  %v7912 = vpop.permute.xlu0 %7911
  %vm7913 = vcmask 97344
  %s7914 = scalar_lea.vmem %s1, 136
  %7915 = vst.msk [vmem:[%s7914] sm:$0xff] %vm7913, %v7912
  %s7916 = scalar_lea.vmem %s0, 2690
  %s7917 = smov 3
  %v7918 = vld [vmem:[%s7916] ss:$16 sm:%s7917]
  %s7919 = scalar_lea.vmem %s0, 2690
  %s7920 = smov 12
  %v7921 = vld [vmem:[%s7919] ss:$16 sm:%s7920]
  %vm7922 = vcmask 1043458
  %v7923 = vsel %vm7922, %v7921, %v7918
  %s7924 = scalar_lea.vmem %s0, 2690
  %s7925 = smov 48
  %v7926 = vld [vmem:[%s7924] ss:$16 sm:%s7925]
  %vm7927 = vcmask 1045508
  %v7928 = vsel %vm7927, %v7926, %v7923
  %s7929 = scalar_lea.vmem %s0, 2690
  %s7930 = smov 192
  %v7931 = vld [vmem:[%s7929] ss:$16 sm:%s7930]
  %vm7932 = vcmask 1047558
  %v7933 = vsel %vm7932, %v7931, %v7928
  %7934 = vrot.lane.b32.xlu0 %v7933, 8
  %v7935 = vpop.permute.xlu0 %7934
  %vm7936 = vcmask 97344
  %s7937 = scalar_lea.vmem %s1, 168
  %7938 = vst.msk [vmem:[%s7937] sm:$0xff] %vm7936, %v7935
  %s7939 = scalar_lea.vmem %s0, 258
  %s7940 = smov 3
  %v7941 = vld [vmem:[%s7939] ss:$16 sm:%s7940]
  %s7942 = scalar_lea.vmem %s0, 258
  %s7943 = smov 12
  %v7944 = vld [vmem:[%s7942] ss:$16 sm:%s7943]
  %vm7945 = vcmask 1043458
  %v7946 = vsel %vm7945, %v7944, %v7941
  %s7947 = scalar_lea.vmem %s0, 258
  %s7948 = smov 48
  %v7949 = vld [vmem:[%s7947] ss:$16 sm:%s7948]
  %vm7950 = vcmask 1045508
  %v7951 = vsel %vm7950, %v7949, %v7946
  %s7952 = scalar_lea.vmem %s0, 258
  %s7953 = smov 192
  %v7954 = vld [vmem:[%s7952] ss:$16 sm:%s7953]
  %vm7955 = vcmask 1047558
  %v7956 = vsel %vm7955, %v7954, %v7951
  %7957 = vrot.lane.b32.xlu0 %v7956, 8
  %v7958 = vpop.permute.xlu0 %7957
  %vm7959 = vcmask 97344
  %s7960 = scalar_lea.vmem %s1, 16
  %7961 = vst.msk [vmem:[%s7960] sm:$0xff] %vm7959, %v7958
  %s7962 = scalar_lea.vmem %s0, 770
  %s7963 = smov 3
  %v7964 = vld [vmem:[%s7962] ss:$16 sm:%s7963]
  %s7965 = scalar_lea.vmem %s0, 770
  %s7966 = smov 12
  %v7967 = vld [vmem:[%s7965] ss:$16 sm:%s7966]
  %vm7968 = vcmask 1043458
  %v7969 = vsel %vm7968, %v7967, %v7964
  %s7970 = scalar_lea.vmem %s0, 770
  %s7971 = smov 48
  %v7972 = vld [vmem:[%s7970] ss:$16 sm:%s7971]
  %vm7973 = vcmask 1045508
  %v7974 = vsel %vm7973, %v7972, %v7969
  %s7975 = scalar_lea.vmem %s0, 770
  %s7976 = smov 192
  %v7977 = vld [vmem:[%s7975] ss:$16 sm:%s7976]
  %vm7978 = vcmask 1047558
  %v7979 = vsel %vm7978, %v7977, %v7974
  %7980 = vrot.lane.b32.xlu0 %v7979, 8
  %v7981 = vpop.permute.xlu0 %7980
  %vm7982 = vcmask 97344
  %s7983 = scalar_lea.vmem %s1, 48
  %7984 = vst.msk [vmem:[%s7983] sm:$0xff] %vm7982, %v7981
  %s7985 = scalar_lea.vmem %s0, 1282
  %s7986 = smov 3
  %v7987 = vld [vmem:[%s7985] ss:$16 sm:%s7986]
  %s7988 = scalar_lea.vmem %s0, 1282
  %s7989 = smov 12
  %v7990 = vld [vmem:[%s7988] ss:$16 sm:%s7989]
  %vm7991 = vcmask 1043458
  %v7992 = vsel %vm7991, %v7990, %v7987
  %s7993 = scalar_lea.vmem %s0, 1282
  %s7994 = smov 48
  %v7995 = vld [vmem:[%s7993] ss:$16 sm:%s7994]
  %vm7996 = vcmask 1045508
  %v7997 = vsel %vm7996, %v7995, %v7992
  %s7998 = scalar_lea.vmem %s0, 1282
  %s7999 = smov 192
  %v8000 = vld [vmem:[%s7998] ss:$16 sm:%s7999]
  %vm8001 = vcmask 1047558
  %v8002 = vsel %vm8001, %v8000, %v7997
  %8003 = vrot.lane.b32.xlu0 %v8002, 8
  %v8004 = vpop.permute.xlu0 %8003
  %vm8005 = vcmask 97344
  %s8006 = scalar_lea.vmem %s1, 80
  %8007 = vst.msk [vmem:[%s8006] sm:$0xff] %vm8005, %v8004
  %s8008 = scalar_lea.vmem %s0, 1794
  %s8009 = smov 3
  %v8010 = vld [vmem:[%s8008] ss:$16 sm:%s8009]
  %s8011 = scalar_lea.vmem %s0, 1794
  %s8012 = smov 12
  %v8013 = vld [vmem:[%s8011] ss:$16 sm:%s8012]
  %vm8014 = vcmask 1043458
  %v8015 = vsel %vm8014, %v8013, %v8010
  %s8016 = scalar_lea.vmem %s0, 1794
  %s8017 = smov 48
  %v8018 = vld [vmem:[%s8016] ss:$16 sm:%s8017]
  %vm8019 = vcmask 1045508
  %v8020 = vsel %vm8019, %v8018, %v8015
  %s8021 = scalar_lea.vmem %s0, 1794
  %s8022 = smov 192
  %v8023 = vld [vmem:[%s8021] ss:$16 sm:%s8022]
  %vm8024 = vcmask 1047558
  %v8025 = vsel %vm8024, %v8023, %v8020
  %8026 = vrot.lane.b32.xlu0 %v8025, 8
  %v8027 = vpop.permute.xlu0 %8026
  %vm8028 = vcmask 97344
  %s8029 = scalar_lea.vmem %s1, 112
  %8030 = vst.msk [vmem:[%s8029] sm:$0xff] %vm8028, %v8027
  %s8031 = scalar_lea.vmem %s0, 2306
  %s8032 = smov 3
  %v8033 = vld [vmem:[%s8031] ss:$16 sm:%s8032]
  %s8034 = scalar_lea.vmem %s0, 2306
  %s8035 = smov 12
  %v8036 = vld [vmem:[%s8034] ss:$16 sm:%s8035]
  %vm8037 = vcmask 1043458
  %v8038 = vsel %vm8037, %v8036, %v8033
  %s8039 = scalar_lea.vmem %s0, 2306
  %s8040 = smov 48
  %v8041 = vld [vmem:[%s8039] ss:$16 sm:%s8040]
  %vm8042 = vcmask 1045508
  %v8043 = vsel %vm8042, %v8041, %v8038
  %s8044 = scalar_lea.vmem %s0, 2306
  %s8045 = smov 192
  %v8046 = vld [vmem:[%s8044] ss:$16 sm:%s8045]
  %vm8047 = vcmask 1047558
  %v8048 = vsel %vm8047, %v8046, %v8043
  %8049 = vrot.lane.b32.xlu0 %v8048, 8
  %v8050 = vpop.permute.xlu0 %8049
  %vm8051 = vcmask 97344
  %s8052 = scalar_lea.vmem %s1, 144
  %8053 = vst.msk [vmem:[%s8052] sm:$0xff] %vm8051, %v8050
  %s8054 = scalar_lea.vmem %s0, 2818
  %s8055 = smov 3
  %v8056 = vld [vmem:[%s8054] ss:$16 sm:%s8055]
  %s8057 = scalar_lea.vmem %s0, 2818
  %s8058 = smov 12
  %v8059 = vld [vmem:[%s8057] ss:$16 sm:%s8058]
  %vm8060 = vcmask 1043458
  %v8061 = vsel %vm8060, %v8059, %v8056
  %s8062 = scalar_lea.vmem %s0, 2818
  %s8063 = smov 48
  %v8064 = vld [vmem:[%s8062] ss:$16 sm:%s8063]
  %vm8065 = vcmask 1045508
  %v8066 = vsel %vm8065, %v8064, %v8061
  %s8067 = scalar_lea.vmem %s0, 2818
  %s8068 = smov 192
  %v8069 = vld [vmem:[%s8067] ss:$16 sm:%s8068]
  %vm8070 = vcmask 1047558
  %v8071 = vsel %vm8070, %v8069, %v8066
  %8072 = vrot.lane.b32.xlu0 %v8071, 8
  %v8073 = vpop.permute.xlu0 %8072
  %vm8074 = vcmask 97344
  %s8075 = scalar_lea.vmem %s1, 176
  %8076 = vst.msk [vmem:[%s8075] sm:$0xff] %vm8074, %v8073
  %s8077 = scalar_lea.vmem %s0, 386
  %s8078 = smov 3
  %v8079 = vld [vmem:[%s8077] ss:$16 sm:%s8078]
  %s8080 = scalar_lea.vmem %s0, 386
  %s8081 = smov 12
  %v8082 = vld [vmem:[%s8080] ss:$16 sm:%s8081]
  %vm8083 = vcmask 1043458
  %v8084 = vsel %vm8083, %v8082, %v8079
  %s8085 = scalar_lea.vmem %s0, 386
  %s8086 = smov 48
  %v8087 = vld [vmem:[%s8085] ss:$16 sm:%s8086]
  %vm8088 = vcmask 1045508
  %v8089 = vsel %vm8088, %v8087, %v8084
  %s8090 = scalar_lea.vmem %s0, 386
  %s8091 = smov 192
  %v8092 = vld [vmem:[%s8090] ss:$16 sm:%s8091]
  %vm8093 = vcmask 1047558
  %v8094 = vsel %vm8093, %v8092, %v8089
  %8095 = vrot.lane.b32.xlu0 %v8094, 8
  %v8096 = vpop.permute.xlu0 %8095
  %vm8097 = vcmask 97344
  %s8098 = scalar_lea.vmem %s1, 24
  %8099 = vst.msk [vmem:[%s8098] sm:$0xff] %vm8097, %v8096
  %s8100 = scalar_lea.vmem %s0, 898
  %s8101 = smov 3
  %v8102 = vld [vmem:[%s8100] ss:$16 sm:%s8101]
  %s8103 = scalar_lea.vmem %s0, 898
  %s8104 = smov 12
  %v8105 = vld [vmem:[%s8103] ss:$16 sm:%s8104]
  %vm8106 = vcmask 1043458
  %v8107 = vsel %vm8106, %v8105, %v8102
  %s8108 = scalar_lea.vmem %s0, 898
  %s8109 = smov 48
  %v8110 = vld [vmem:[%s8108] ss:$16 sm:%s8109]
  %vm8111 = vcmask 1045508
  %v8112 = vsel %vm8111, %v8110, %v8107
  %s8113 = scalar_lea.vmem %s0, 898
  %s8114 = smov 192
  %v8115 = vld [vmem:[%s8113] ss:$16 sm:%s8114]
  %vm8116 = vcmask 1047558
  %v8117 = vsel %vm8116, %v8115, %v8112
  %8118 = vrot.lane.b32.xlu0 %v8117, 8
  %v8119 = vpop.permute.xlu0 %8118
  %vm8120 = vcmask 97344
  %s8121 = scalar_lea.vmem %s1, 56
  %8122 = vst.msk [vmem:[%s8121] sm:$0xff] %vm8120, %v8119
  %s8123 = scalar_lea.vmem %s0, 1410
  %s8124 = smov 3
  %v8125 = vld [vmem:[%s8123] ss:$16 sm:%s8124]
  %s8126 = scalar_lea.vmem %s0, 1410
  %s8127 = smov 12
  %v8128 = vld [vmem:[%s8126] ss:$16 sm:%s8127]
  %vm8129 = vcmask 1043458
  %v8130 = vsel %vm8129, %v8128, %v8125
  %s8131 = scalar_lea.vmem %s0, 1410
  %s8132 = smov 48
  %v8133 = vld [vmem:[%s8131] ss:$16 sm:%s8132]
  %vm8134 = vcmask 1045508
  %v8135 = vsel %vm8134, %v8133, %v8130
  %s8136 = scalar_lea.vmem %s0, 1410
  %s8137 = smov 192
  %v8138 = vld [vmem:[%s8136] ss:$16 sm:%s8137]
  %vm8139 = vcmask 1047558
  %v8140 = vsel %vm8139, %v8138, %v8135
  %8141 = vrot.lane.b32.xlu0 %v8140, 8
  %v8142 = vpop.permute.xlu0 %8141
  %vm8143 = vcmask 97344
  %s8144 = scalar_lea.vmem %s1, 88
  %8145 = vst.msk [vmem:[%s8144] sm:$0xff] %vm8143, %v8142
  %s8146 = scalar_lea.vmem %s0, 1922
  %s8147 = smov 3
  %v8148 = vld [vmem:[%s8146] ss:$16 sm:%s8147]
  %s8149 = scalar_lea.vmem %s0, 1922
  %s8150 = smov 12
  %v8151 = vld [vmem:[%s8149] ss:$16 sm:%s8150]
  %vm8152 = vcmask 1043458
  %v8153 = vsel %vm8152, %v8151, %v8148
  %s8154 = scalar_lea.vmem %s0, 1922
  %s8155 = smov 48
  %v8156 = vld [vmem:[%s8154] ss:$16 sm:%s8155]
  %vm8157 = vcmask 1045508
  %v8158 = vsel %vm8157, %v8156, %v8153
  %s8159 = scalar_lea.vmem %s0, 1922
  %s8160 = smov 192
  %v8161 = vld [vmem:[%s8159] ss:$16 sm:%s8160]
  %vm8162 = vcmask 1047558
  %v8163 = vsel %vm8162, %v8161, %v8158
  %8164 = vrot.lane.b32.xlu0 %v8163, 8
  %v8165 = vpop.permute.xlu0 %8164
  %vm8166 = vcmask 97344
  %s8167 = scalar_lea.vmem %s1, 120
  %8168 = vst.msk [vmem:[%s8167] sm:$0xff] %vm8166, %v8165
  %s8169 = scalar_lea.vmem %s0, 2434
  %s8170 = smov 3
  %v8171 = vld [vmem:[%s8169] ss:$16 sm:%s8170]
  %s8172 = scalar_lea.vmem %s0, 2434
  %s8173 = smov 12
  %v8174 = vld [vmem:[%s8172] ss:$16 sm:%s8173]
  %vm8175 = vcmask 1043458
  %v8176 = vsel %vm8175, %v8174, %v8171
  %s8177 = scalar_lea.vmem %s0, 2434
  %s8178 = smov 48
  %v8179 = vld [vmem:[%s8177] ss:$16 sm:%s8178]
  %vm8180 = vcmask 1045508
  %v8181 = vsel %vm8180, %v8179, %v8176
  %s8182 = scalar_lea.vmem %s0, 2434
  %s8183 = smov 192
  %v8184 = vld [vmem:[%s8182] ss:$16 sm:%s8183]
  %vm8185 = vcmask 1047558
  %v8186 = vsel %vm8185, %v8184, %v8181
  %8187 = vrot.lane.b32.xlu0 %v8186, 8
  %v8188 = vpop.permute.xlu0 %8187
  %vm8189 = vcmask 97344
  %s8190 = scalar_lea.vmem %s1, 152
  %8191 = vst.msk [vmem:[%s8190] sm:$0xff] %vm8189, %v8188
  %s8192 = scalar_lea.vmem %s0, 2946
  %s8193 = smov 3
  %v8194 = vld [vmem:[%s8192] ss:$16 sm:%s8193]
  %s8195 = scalar_lea.vmem %s0, 2946
  %s8196 = smov 12
  %v8197 = vld [vmem:[%s8195] ss:$16 sm:%s8196]
  %vm8198 = vcmask 1043458
  %v8199 = vsel %vm8198, %v8197, %v8194
  %s8200 = scalar_lea.vmem %s0, 2946
  %s8201 = smov 48
  %v8202 = vld [vmem:[%s8200] ss:$16 sm:%s8201]
  %vm8203 = vcmask 1045508
  %v8204 = vsel %vm8203, %v8202, %v8199
  %s8205 = scalar_lea.vmem %s0, 2946
  %s8206 = smov 192
  %v8207 = vld [vmem:[%s8205] ss:$16 sm:%s8206]
  %vm8208 = vcmask 1047558
  %v8209 = vsel %vm8208, %v8207, %v8204
  %8210 = vrot.lane.b32.xlu0 %v8209, 8
  %v8211 = vpop.permute.xlu0 %8210
  %vm8212 = vcmask 97344
  %s8213 = scalar_lea.vmem %s1, 184
  %8214 = vst.msk [vmem:[%s8213] sm:$0xff] %vm8212, %v8211
  %s8215 = scalar_lea.vmem %s0, 1
  %s8216 = smov 3
  %v8217 = vld [vmem:[%s8215] ss:$16 sm:%s8216]
  %s8218 = scalar_lea.vmem %s0, 1
  %s8219 = smov 12
  %v8220 = vld [vmem:[%s8218] ss:$16 sm:%s8219]
  %vm8221 = vcmask 1043458
  %v8222 = vsel %vm8221, %v8220, %v8217
  %s8223 = scalar_lea.vmem %s0, 1
  %s8224 = smov 48
  %v8225 = vld [vmem:[%s8223] ss:$16 sm:%s8224]
  %vm8226 = vcmask 1045508
  %v8227 = vsel %vm8226, %v8225, %v8222
  %s8228 = scalar_lea.vmem %s0, 1
  %s8229 = smov 192
  %v8230 = vld [vmem:[%s8228] ss:$16 sm:%s8229]
  %vm8231 = vcmask 1047558
  %v8232 = vsel %vm8231, %v8230, %v8227
  %8233 = vrot.lane.b32.xlu0 %v8232, 4
  %v8234 = vpop.permute.xlu0 %8233
  %vm8235 = vcmask 64544
  %8236 = vst.msk [vmem:[%s1] sm:$0xff] %vm8235, %v8234
  %s8237 = scalar_lea.vmem %s0, 513
  %s8238 = smov 3
  %v8239 = vld [vmem:[%s8237] ss:$16 sm:%s8238]
  %s8240 = scalar_lea.vmem %s0, 513
  %s8241 = smov 12
  %v8242 = vld [vmem:[%s8240] ss:$16 sm:%s8241]
  %vm8243 = vcmask 1043458
  %v8244 = vsel %vm8243, %v8242, %v8239
  %s8245 = scalar_lea.vmem %s0, 513
  %s8246 = smov 48
  %v8247 = vld [vmem:[%s8245] ss:$16 sm:%s8246]
  %vm8248 = vcmask 1045508
  %v8249 = vsel %vm8248, %v8247, %v8244
  %s8250 = scalar_lea.vmem %s0, 513
  %s8251 = smov 192
  %v8252 = vld [vmem:[%s8250] ss:$16 sm:%s8251]
  %vm8253 = vcmask 1047558
  %v8254 = vsel %vm8253, %v8252, %v8249
  %8255 = vrot.lane.b32.xlu0 %v8254, 4
  %v8256 = vpop.permute.xlu0 %8255
  %vm8257 = vcmask 64544
  %s8258 = scalar_lea.vmem %s1, 32
  %8259 = vst.msk [vmem:[%s8258] sm:$0xff] %vm8257, %v8256
  %s8260 = scalar_lea.vmem %s0, 1025
  %s8261 = smov 3
  %v8262 = vld [vmem:[%s8260] ss:$16 sm:%s8261]
  %s8263 = scalar_lea.vmem %s0, 1025
  %s8264 = smov 12
  %v8265 = vld [vmem:[%s8263] ss:$16 sm:%s8264]
  %vm8266 = vcmask 1043458
  %v8267 = vsel %vm8266, %v8265, %v8262
  %s8268 = scalar_lea.vmem %s0, 1025
  %s8269 = smov 48
  %v8270 = vld [vmem:[%s8268] ss:$16 sm:%s8269]
  %vm8271 = vcmask 1045508
  %v8272 = vsel %vm8271, %v8270, %v8267
  %s8273 = scalar_lea.vmem %s0, 1025
  %s8274 = smov 192
  %v8275 = vld [vmem:[%s8273] ss:$16 sm:%s8274]
  %vm8276 = vcmask 1047558
  %v8277 = vsel %vm8276, %v8275, %v8272
  %8278 = vrot.lane.b32.xlu0 %v8277, 4
  %v8279 = vpop.permute.xlu0 %8278
  %vm8280 = vcmask 64544
  %s8281 = scalar_lea.vmem %s1, 64
  %8282 = vst.msk [vmem:[%s8281] sm:$0xff] %vm8280, %v8279
  %s8283 = scalar_lea.vmem %s0, 1537
  %s8284 = smov 3
  %v8285 = vld [vmem:[%s8283] ss:$16 sm:%s8284]
  %s8286 = scalar_lea.vmem %s0, 1537
  %s8287 = smov 12
  %v8288 = vld [vmem:[%s8286] ss:$16 sm:%s8287]
  %vm8289 = vcmask 1043458
  %v8290 = vsel %vm8289, %v8288, %v8285
  %s8291 = scalar_lea.vmem %s0, 1537
  %s8292 = smov 48
  %v8293 = vld [vmem:[%s8291] ss:$16 sm:%s8292]
  %vm8294 = vcmask 1045508
  %v8295 = vsel %vm8294, %v8293, %v8290
  %s8296 = scalar_lea.vmem %s0, 1537
  %s8297 = smov 192
  %v8298 = vld [vmem:[%s8296] ss:$16 sm:%s8297]
  %vm8299 = vcmask 1047558
  %v8300 = vsel %vm8299, %v8298, %v8295
  %8301 = vrot.lane.b32.xlu0 %v8300, 4
  %v8302 = vpop.permute.xlu0 %8301
  %vm8303 = vcmask 64544
  %s8304 = scalar_lea.vmem %s1, 96
  %8305 = vst.msk [vmem:[%s8304] sm:$0xff] %vm8303, %v8302
  %s8306 = scalar_lea.vmem %s0, 2049
  %s8307 = smov 3
  %v8308 = vld [vmem:[%s8306] ss:$16 sm:%s8307]
  %s8309 = scalar_lea.vmem %s0, 2049
  %s8310 = smov 12
  %v8311 = vld [vmem:[%s8309] ss:$16 sm:%s8310]
  %vm8312 = vcmask 1043458
  %v8313 = vsel %vm8312, %v8311, %v8308
  %s8314 = scalar_lea.vmem %s0, 2049
  %s8315 = smov 48
  %v8316 = vld [vmem:[%s8314] ss:$16 sm:%s8315]
  %vm8317 = vcmask 1045508
  %v8318 = vsel %vm8317, %v8316, %v8313
  %s8319 = scalar_lea.vmem %s0, 2049
  %s8320 = smov 192
  %v8321 = vld [vmem:[%s8319] ss:$16 sm:%s8320]
  %vm8322 = vcmask 1047558
  %v8323 = vsel %vm8322, %v8321, %v8318
  %8324 = vrot.lane.b32.xlu0 %v8323, 4
  %v8325 = vpop.permute.xlu0 %8324
  %vm8326 = vcmask 64544
  %s8327 = scalar_lea.vmem %s1, 128
  %8328 = vst.msk [vmem:[%s8327] sm:$0xff] %vm8326, %v8325
  %s8329 = scalar_lea.vmem %s0, 2561
  %s8330 = smov 3
  %v8331 = vld [vmem:[%s8329] ss:$16 sm:%s8330]
  %s8332 = scalar_lea.vmem %s0, 2561
  %s8333 = smov 12
  %v8334 = vld [vmem:[%s8332] ss:$16 sm:%s8333]
  %vm8335 = vcmask 1043458
  %v8336 = vsel %vm8335, %v8334, %v8331
  %s8337 = scalar_lea.vmem %s0, 2561
  %s8338 = smov 48
  %v8339 = vld [vmem:[%s8337] ss:$16 sm:%s8338]
  %vm8340 = vcmask 1045508
  %v8341 = vsel %vm8340, %v8339, %v8336
  %s8342 = scalar_lea.vmem %s0, 2561
  %s8343 = smov 192
  %v8344 = vld [vmem:[%s8342] ss:$16 sm:%s8343]
  %vm8345 = vcmask 1047558
  %v8346 = vsel %vm8345, %v8344, %v8341
  %8347 = vrot.lane.b32.xlu0 %v8346, 4
  %v8348 = vpop.permute.xlu0 %8347
  %vm8349 = vcmask 64544
  %s8350 = scalar_lea.vmem %s1, 160
  %8351 = vst.msk [vmem:[%s8350] sm:$0xff] %vm8349, %v8348
  %s8352 = scalar_lea.vmem %s0, 129
  %s8353 = smov 3
  %v8354 = vld [vmem:[%s8352] ss:$16 sm:%s8353]
  %s8355 = scalar_lea.vmem %s0, 129
  %s8356 = smov 12
  %v8357 = vld [vmem:[%s8355] ss:$16 sm:%s8356]
  %vm8358 = vcmask 1043458
  %v8359 = vsel %vm8358, %v8357, %v8354
  %s8360 = scalar_lea.vmem %s0, 129
  %s8361 = smov 48
  %v8362 = vld [vmem:[%s8360] ss:$16 sm:%s8361]
  %vm8363 = vcmask 1045508
  %v8364 = vsel %vm8363, %v8362, %v8359
  %s8365 = scalar_lea.vmem %s0, 129
  %s8366 = smov 192
  %v8367 = vld [vmem:[%s8365] ss:$16 sm:%s8366]
  %vm8368 = vcmask 1047558
  %v8369 = vsel %vm8368, %v8367, %v8364
  %8370 = vrot.lane.b32.xlu0 %v8369, 4
  %v8371 = vpop.permute.xlu0 %8370
  %vm8372 = vcmask 64544
  %s8373 = scalar_lea.vmem %s1, 8
  %8374 = vst.msk [vmem:[%s8373] sm:$0xff] %vm8372, %v8371
  %s8375 = scalar_lea.vmem %s0, 641
  %s8376 = smov 3
  %v8377 = vld [vmem:[%s8375] ss:$16 sm:%s8376]
  %s8378 = scalar_lea.vmem %s0, 641
  %s8379 = smov 12
  %v8380 = vld [vmem:[%s8378] ss:$16 sm:%s8379]
  %vm8381 = vcmask 1043458
  %v8382 = vsel %vm8381, %v8380, %v8377
  %s8383 = scalar_lea.vmem %s0, 641
  %s8384 = smov 48
  %v8385 = vld [vmem:[%s8383] ss:$16 sm:%s8384]
  %vm8386 = vcmask 1045508
  %v8387 = vsel %vm8386, %v8385, %v8382
  %s8388 = scalar_lea.vmem %s0, 641
  %s8389 = smov 192
  %v8390 = vld [vmem:[%s8388] ss:$16 sm:%s8389]
  %vm8391 = vcmask 1047558
  %v8392 = vsel %vm8391, %v8390, %v8387
  %8393 = vrot.lane.b32.xlu0 %v8392, 4
  %v8394 = vpop.permute.xlu0 %8393
  %vm8395 = vcmask 64544
  %s8396 = scalar_lea.vmem %s1, 40
  %8397 = vst.msk [vmem:[%s8396] sm:$0xff] %vm8395, %v8394
  %s8398 = scalar_lea.vmem %s0, 1153
  %s8399 = smov 3
  %v8400 = vld [vmem:[%s8398] ss:$16 sm:%s8399]
  %s8401 = scalar_lea.vmem %s0, 1153
  %s8402 = smov 12
  %v8403 = vld [vmem:[%s8401] ss:$16 sm:%s8402]
  %vm8404 = vcmask 1043458
  %v8405 = vsel %vm8404, %v8403, %v8400
  %s8406 = scalar_lea.vmem %s0, 1153
  %s8407 = smov 48
  %v8408 = vld [vmem:[%s8406] ss:$16 sm:%s8407]
  %vm8409 = vcmask 1045508
  %v8410 = vsel %vm8409, %v8408, %v8405
  %s8411 = scalar_lea.vmem %s0, 1153
  %s8412 = smov 192
  %v8413 = vld [vmem:[%s8411] ss:$16 sm:%s8412]
  %vm8414 = vcmask 1047558
  %v8415 = vsel %vm8414, %v8413, %v8410
  %8416 = vrot.lane.b32.xlu0 %v8415, 4
  %v8417 = vpop.permute.xlu0 %8416
  %vm8418 = vcmask 64544
  %s8419 = scalar_lea.vmem %s1, 72
  %8420 = vst.msk [vmem:[%s8419] sm:$0xff] %vm8418, %v8417
  %s8421 = scalar_lea.vmem %s0, 1665
  %s8422 = smov 3
  %v8423 = vld [vmem:[%s8421] ss:$16 sm:%s8422]
  %s8424 = scalar_lea.vmem %s0, 1665
  %s8425 = smov 12
  %v8426 = vld [vmem:[%s8424] ss:$16 sm:%s8425]
  %vm8427 = vcmask 1043458
  %v8428 = vsel %vm8427, %v8426, %v8423
  %s8429 = scalar_lea.vmem %s0, 1665
  %s8430 = smov 48
  %v8431 = vld [vmem:[%s8429] ss:$16 sm:%s8430]
  %vm8432 = vcmask 1045508
  %v8433 = vsel %vm8432, %v8431, %v8428
  %s8434 = scalar_lea.vmem %s0, 1665
  %s8435 = smov 192
  %v8436 = vld [vmem:[%s8434] ss:$16 sm:%s8435]
  %vm8437 = vcmask 1047558
  %v8438 = vsel %vm8437, %v8436, %v8433
  %8439 = vrot.lane.b32.xlu0 %v8438, 4
  %v8440 = vpop.permute.xlu0 %8439
  %vm8441 = vcmask 64544
  %s8442 = scalar_lea.vmem %s1, 104
  %8443 = vst.msk [vmem:[%s8442] sm:$0xff] %vm8441, %v8440
  %s8444 = scalar_lea.vmem %s0, 2177
  %s8445 = smov 3
  %v8446 = vld [vmem:[%s8444] ss:$16 sm:%s8445]
  %s8447 = scalar_lea.vmem %s0, 2177
  %s8448 = smov 12
  %v8449 = vld [vmem:[%s8447] ss:$16 sm:%s8448]
  %vm8450 = vcmask 1043458
  %v8451 = vsel %vm8450, %v8449, %v8446
  %s8452 = scalar_lea.vmem %s0, 2177
  %s8453 = smov 48
  %v8454 = vld [vmem:[%s8452] ss:$16 sm:%s8453]
  %vm8455 = vcmask 1045508
  %v8456 = vsel %vm8455, %v8454, %v8451
  %s8457 = scalar_lea.vmem %s0, 2177
  %s8458 = smov 192
  %v8459 = vld [vmem:[%s8457] ss:$16 sm:%s8458]
  %vm8460 = vcmask 1047558
  %v8461 = vsel %vm8460, %v8459, %v8456
  %8462 = vrot.lane.b32.xlu0 %v8461, 4
  %v8463 = vpop.permute.xlu0 %8462
  %vm8464 = vcmask 64544
  %s8465 = scalar_lea.vmem %s1, 136
  %8466 = vst.msk [vmem:[%s8465] sm:$0xff] %vm8464, %v8463
  %s8467 = scalar_lea.vmem %s0, 2689
  %s8468 = smov 3
  %v8469 = vld [vmem:[%s8467] ss:$16 sm:%s8468]
  %s8470 = scalar_lea.vmem %s0, 2689
  %s8471 = smov 12
  %v8472 = vld [vmem:[%s8470] ss:$16 sm:%s8471]
  %vm8473 = vcmask 1043458
  %v8474 = vsel %vm8473, %v8472, %v8469
  %s8475 = scalar_lea.vmem %s0, 2689
  %s8476 = smov 48
  %v8477 = vld [vmem:[%s8475] ss:$16 sm:%s8476]
  %vm8478 = vcmask 1045508
  %v8479 = vsel %vm8478, %v8477, %v8474
  %s8480 = scalar_lea.vmem %s0, 2689
  %s8481 = smov 192
  %v8482 = vld [vmem:[%s8480] ss:$16 sm:%s8481]
  %vm8483 = vcmask 1047558
  %v8484 = vsel %vm8483, %v8482, %v8479
  %8485 = vrot.lane.b32.xlu0 %v8484, 4
  %v8486 = vpop.permute.xlu0 %8485
  %vm8487 = vcmask 64544
  %s8488 = scalar_lea.vmem %s1, 168
  %8489 = vst.msk [vmem:[%s8488] sm:$0xff] %vm8487, %v8486
  %s8490 = scalar_lea.vmem %s0, 257
  %s8491 = smov 3
  %v8492 = vld [vmem:[%s8490] ss:$16 sm:%s8491]
  %s8493 = scalar_lea.vmem %s0, 257
  %s8494 = smov 12
  %v8495 = vld [vmem:[%s8493] ss:$16 sm:%s8494]
  %vm8496 = vcmask 1043458
  %v8497 = vsel %vm8496, %v8495, %v8492
  %s8498 = scalar_lea.vmem %s0, 257
  %s8499 = smov 48
  %v8500 = vld [vmem:[%s8498] ss:$16 sm:%s8499]
  %vm8501 = vcmask 1045508
  %v8502 = vsel %vm8501, %v8500, %v8497
  %s8503 = scalar_lea.vmem %s0, 257
  %s8504 = smov 192
  %v8505 = vld [vmem:[%s8503] ss:$16 sm:%s8504]
  %vm8506 = vcmask 1047558
  %v8507 = vsel %vm8506, %v8505, %v8502
  %8508 = vrot.lane.b32.xlu0 %v8507, 4
  %v8509 = vpop.permute.xlu0 %8508
  %vm8510 = vcmask 64544
  %s8511 = scalar_lea.vmem %s1, 16
  %8512 = vst.msk [vmem:[%s8511] sm:$0xff] %vm8510, %v8509
  %s8513 = scalar_lea.vmem %s0, 769
  %s8514 = smov 3
  %v8515 = vld [vmem:[%s8513] ss:$16 sm:%s8514]
  %s8516 = scalar_lea.vmem %s0, 769
  %s8517 = smov 12
  %v8518 = vld [vmem:[%s8516] ss:$16 sm:%s8517]
  %vm8519 = vcmask 1043458
  %v8520 = vsel %vm8519, %v8518, %v8515
  %s8521 = scalar_lea.vmem %s0, 769
  %s8522 = smov 48
  %v8523 = vld [vmem:[%s8521] ss:$16 sm:%s8522]
  %vm8524 = vcmask 1045508
  %v8525 = vsel %vm8524, %v8523, %v8520
  %s8526 = scalar_lea.vmem %s0, 769
  %s8527 = smov 192
  %v8528 = vld [vmem:[%s8526] ss:$16 sm:%s8527]
  %vm8529 = vcmask 1047558
  %v8530 = vsel %vm8529, %v8528, %v8525
  %8531 = vrot.lane.b32.xlu0 %v8530, 4
  %v8532 = vpop.permute.xlu0 %8531
  %vm8533 = vcmask 64544
  %s8534 = scalar_lea.vmem %s1, 48
  %8535 = vst.msk [vmem:[%s8534] sm:$0xff] %vm8533, %v8532
  %s8536 = scalar_lea.vmem %s0, 1281
  %s8537 = smov 3
  %v8538 = vld [vmem:[%s8536] ss:$16 sm:%s8537]
  %s8539 = scalar_lea.vmem %s0, 1281
  %s8540 = smov 12
  %v8541 = vld [vmem:[%s8539] ss:$16 sm:%s8540]
  %vm8542 = vcmask 1043458
  %v8543 = vsel %vm8542, %v8541, %v8538
  %s8544 = scalar_lea.vmem %s0, 1281
  %s8545 = smov 48
  %v8546 = vld [vmem:[%s8544] ss:$16 sm:%s8545]
  %vm8547 = vcmask 1045508
  %v8548 = vsel %vm8547, %v8546, %v8543
  %s8549 = scalar_lea.vmem %s0, 1281
  %s8550 = smov 192
  %v8551 = vld [vmem:[%s8549] ss:$16 sm:%s8550]
  %vm8552 = vcmask 1047558
  %v8553 = vsel %vm8552, %v8551, %v8548
  %8554 = vrot.lane.b32.xlu0 %v8553, 4
  %v8555 = vpop.permute.xlu0 %8554
  %vm8556 = vcmask 64544
  %s8557 = scalar_lea.vmem %s1, 80
  %8558 = vst.msk [vmem:[%s8557] sm:$0xff] %vm8556, %v8555
  %s8559 = scalar_lea.vmem %s0, 1793
  %s8560 = smov 3
  %v8561 = vld [vmem:[%s8559] ss:$16 sm:%s8560]
  %s8562 = scalar_lea.vmem %s0, 1793
  %s8563 = smov 12
  %v8564 = vld [vmem:[%s8562] ss:$16 sm:%s8563]
  %vm8565 = vcmask 1043458
  %v8566 = vsel %vm8565, %v8564, %v8561
  %s8567 = scalar_lea.vmem %s0, 1793
  %s8568 = smov 48
  %v8569 = vld [vmem:[%s8567] ss:$16 sm:%s8568]
  %vm8570 = vcmask 1045508
  %v8571 = vsel %vm8570, %v8569, %v8566
  %s8572 = scalar_lea.vmem %s0, 1793
  %s8573 = smov 192
  %v8574 = vld [vmem:[%s8572] ss:$16 sm:%s8573]
  %vm8575 = vcmask 1047558
  %v8576 = vsel %vm8575, %v8574, %v8571
  %8577 = vrot.lane.b32.xlu0 %v8576, 4
  %v8578 = vpop.permute.xlu0 %8577
  %vm8579 = vcmask 64544
  %s8580 = scalar_lea.vmem %s1, 112
  %8581 = vst.msk [vmem:[%s8580] sm:$0xff] %vm8579, %v8578
  %s8582 = scalar_lea.vmem %s0, 2305
  %s8583 = smov 3
  %v8584 = vld [vmem:[%s8582] ss:$16 sm:%s8583]
  %s8585 = scalar_lea.vmem %s0, 2305
  %s8586 = smov 12
  %v8587 = vld [vmem:[%s8585] ss:$16 sm:%s8586]
  %vm8588 = vcmask 1043458
  %v8589 = vsel %vm8588, %v8587, %v8584
  %s8590 = scalar_lea.vmem %s0, 2305
  %s8591 = smov 48
  %v8592 = vld [vmem:[%s8590] ss:$16 sm:%s8591]
  %vm8593 = vcmask 1045508
  %v8594 = vsel %vm8593, %v8592, %v8589
  %s8595 = scalar_lea.vmem %s0, 2305
  %s8596 = smov 192
  %v8597 = vld [vmem:[%s8595] ss:$16 sm:%s8596]
  %vm8598 = vcmask 1047558
  %v8599 = vsel %vm8598, %v8597, %v8594
  %8600 = vrot.lane.b32.xlu0 %v8599, 4
  %v8601 = vpop.permute.xlu0 %8600
  %vm8602 = vcmask 64544
  %s8603 = scalar_lea.vmem %s1, 144
  %8604 = vst.msk [vmem:[%s8603] sm:$0xff] %vm8602, %v8601
  %s8605 = scalar_lea.vmem %s0, 2817
  %s8606 = smov 3
  %v8607 = vld [vmem:[%s8605] ss:$16 sm:%s8606]
  %s8608 = scalar_lea.vmem %s0, 2817
  %s8609 = smov 12
  %v8610 = vld [vmem:[%s8608] ss:$16 sm:%s8609]
  %vm8611 = vcmask 1043458
  %v8612 = vsel %vm8611, %v8610, %v8607
  %s8613 = scalar_lea.vmem %s0, 2817
  %s8614 = smov 48
  %v8615 = vld [vmem:[%s8613] ss:$16 sm:%s8614]
  %vm8616 = vcmask 1045508
  %v8617 = vsel %vm8616, %v8615, %v8612
  %s8618 = scalar_lea.vmem %s0, 2817
  %s8619 = smov 192
  %v8620 = vld [vmem:[%s8618] ss:$16 sm:%s8619]
  %vm8621 = vcmask 1047558
  %v8622 = vsel %vm8621, %v8620, %v8617
  %8623 = vrot.lane.b32.xlu0 %v8622, 4
  %v8624 = vpop.permute.xlu0 %8623
  %vm8625 = vcmask 64544
  %s8626 = scalar_lea.vmem %s1, 176
  %8627 = vst.msk [vmem:[%s8626] sm:$0xff] %vm8625, %v8624
  %s8628 = scalar_lea.vmem %s0, 385
  %s8629 = smov 3
  %v8630 = vld [vmem:[%s8628] ss:$16 sm:%s8629]
  %s8631 = scalar_lea.vmem %s0, 385
  %s8632 = smov 12
  %v8633 = vld [vmem:[%s8631] ss:$16 sm:%s8632]
  %vm8634 = vcmask 1043458
  %v8635 = vsel %vm8634, %v8633, %v8630
  %s8636 = scalar_lea.vmem %s0, 385
  %s8637 = smov 48
  %v8638 = vld [vmem:[%s8636] ss:$16 sm:%s8637]
  %vm8639 = vcmask 1045508
  %v8640 = vsel %vm8639, %v8638, %v8635
  %s8641 = scalar_lea.vmem %s0, 385
  %s8642 = smov 192
  %v8643 = vld [vmem:[%s8641] ss:$16 sm:%s8642]
  %vm8644 = vcmask 1047558
  %v8645 = vsel %vm8644, %v8643, %v8640
  %8646 = vrot.lane.b32.xlu0 %v8645, 4
  %v8647 = vpop.permute.xlu0 %8646
  %vm8648 = vcmask 64544
  %s8649 = scalar_lea.vmem %s1, 24
  %8650 = vst.msk [vmem:[%s8649] sm:$0xff] %vm8648, %v8647
  %s8651 = scalar_lea.vmem %s0, 897
  %s8652 = smov 3
  %v8653 = vld [vmem:[%s8651] ss:$16 sm:%s8652]
  %s8654 = scalar_lea.vmem %s0, 897
  %s8655 = smov 12
  %v8656 = vld [vmem:[%s8654] ss:$16 sm:%s8655]
  %vm8657 = vcmask 1043458
  %v8658 = vsel %vm8657, %v8656, %v8653
  %s8659 = scalar_lea.vmem %s0, 897
  %s8660 = smov 48
  %v8661 = vld [vmem:[%s8659] ss:$16 sm:%s8660]
  %vm8662 = vcmask 1045508
  %v8663 = vsel %vm8662, %v8661, %v8658
  %s8664 = scalar_lea.vmem %s0, 897
  %s8665 = smov 192
  %v8666 = vld [vmem:[%s8664] ss:$16 sm:%s8665]
  %vm8667 = vcmask 1047558
  %v8668 = vsel %vm8667, %v8666, %v8663
  %8669 = vrot.lane.b32.xlu0 %v8668, 4
  %v8670 = vpop.permute.xlu0 %8669
  %vm8671 = vcmask 64544
  %s8672 = scalar_lea.vmem %s1, 56
  %8673 = vst.msk [vmem:[%s8672] sm:$0xff] %vm8671, %v8670
  %s8674 = scalar_lea.vmem %s0, 1409
  %s8675 = smov 3
  %v8676 = vld [vmem:[%s8674] ss:$16 sm:%s8675]
  %s8677 = scalar_lea.vmem %s0, 1409
  %s8678 = smov 12
  %v8679 = vld [vmem:[%s8677] ss:$16 sm:%s8678]
  %vm8680 = vcmask 1043458
  %v8681 = vsel %vm8680, %v8679, %v8676
  %s8682 = scalar_lea.vmem %s0, 1409
  %s8683 = smov 48
  %v8684 = vld [vmem:[%s8682] ss:$16 sm:%s8683]
  %vm8685 = vcmask 1045508
  %v8686 = vsel %vm8685, %v8684, %v8681
  %s8687 = scalar_lea.vmem %s0, 1409
  %s8688 = smov 192
  %v8689 = vld [vmem:[%s8687] ss:$16 sm:%s8688]
  %vm8690 = vcmask 1047558
  %v8691 = vsel %vm8690, %v8689, %v8686
  %8692 = vrot.lane.b32.xlu0 %v8691, 4
  %v8693 = vpop.permute.xlu0 %8692
  %vm8694 = vcmask 64544
  %s8695 = scalar_lea.vmem %s1, 88
  %8696 = vst.msk [vmem:[%s8695] sm:$0xff] %vm8694, %v8693
  %s8697 = scalar_lea.vmem %s0, 1921
  %s8698 = smov 3
  %v8699 = vld [vmem:[%s8697] ss:$16 sm:%s8698]
  %s8700 = scalar_lea.vmem %s0, 1921
  %s8701 = smov 12
  %v8702 = vld [vmem:[%s8700] ss:$16 sm:%s8701]
  %vm8703 = vcmask 1043458
  %v8704 = vsel %vm8703, %v8702, %v8699
  %s8705 = scalar_lea.vmem %s0, 1921
  %s8706 = smov 48
  %v8707 = vld [vmem:[%s8705] ss:$16 sm:%s8706]
  %vm8708 = vcmask 1045508
  %v8709 = vsel %vm8708, %v8707, %v8704
  %s8710 = scalar_lea.vmem %s0, 1921
  %s8711 = smov 192
  %v8712 = vld [vmem:[%s8710] ss:$16 sm:%s8711]
  %vm8713 = vcmask 1047558
  %v8714 = vsel %vm8713, %v8712, %v8709
  %8715 = vrot.lane.b32.xlu0 %v8714, 4
  %v8716 = vpop.permute.xlu0 %8715
  %vm8717 = vcmask 64544
  %s8718 = scalar_lea.vmem %s1, 120
  %8719 = vst.msk [vmem:[%s8718] sm:$0xff] %vm8717, %v8716
  %s8720 = scalar_lea.vmem %s0, 2433
  %s8721 = smov 3
  %v8722 = vld [vmem:[%s8720] ss:$16 sm:%s8721]
  %s8723 = scalar_lea.vmem %s0, 2433
  %s8724 = smov 12
  %v8725 = vld [vmem:[%s8723] ss:$16 sm:%s8724]
  %vm8726 = vcmask 1043458
  %v8727 = vsel %vm8726, %v8725, %v8722
  %s8728 = scalar_lea.vmem %s0, 2433
  %s8729 = smov 48
  %v8730 = vld [vmem:[%s8728] ss:$16 sm:%s8729]
  %vm8731 = vcmask 1045508
  %v8732 = vsel %vm8731, %v8730, %v8727
  %s8733 = scalar_lea.vmem %s0, 2433
  %s8734 = smov 192
  %v8735 = vld [vmem:[%s8733] ss:$16 sm:%s8734]
  %vm8736 = vcmask 1047558
  %v8737 = vsel %vm8736, %v8735, %v8732
  %8738 = vrot.lane.b32.xlu0 %v8737, 4
  %v8739 = vpop.permute.xlu0 %8738
  %vm8740 = vcmask 64544
  %s8741 = scalar_lea.vmem %s1, 152
  %8742 = vst.msk [vmem:[%s8741] sm:$0xff] %vm8740, %v8739
  %s8743 = scalar_lea.vmem %s0, 2945
  %s8744 = smov 3
  %v8745 = vld [vmem:[%s8743] ss:$16 sm:%s8744]
  %s8746 = scalar_lea.vmem %s0, 2945
  %s8747 = smov 12
  %v8748 = vld [vmem:[%s8746] ss:$16 sm:%s8747]
  %vm8749 = vcmask 1043458
  %v8750 = vsel %vm8749, %v8748, %v8745
  %s8751 = scalar_lea.vmem %s0, 2945
  %s8752 = smov 48
  %v8753 = vld [vmem:[%s8751] ss:$16 sm:%s8752]
  %vm8754 = vcmask 1045508
  %v8755 = vsel %vm8754, %v8753, %v8750
  %s8756 = scalar_lea.vmem %s0, 2945
  %s8757 = smov 192
  %v8758 = vld [vmem:[%s8756] ss:$16 sm:%s8757]
  %vm8759 = vcmask 1047558
  %v8760 = vsel %vm8759, %v8758, %v8755
  %8761 = vrot.lane.b32.xlu0 %v8760, 4
  %v8762 = vpop.permute.xlu0 %8761
  %vm8763 = vcmask 64544
  %s8764 = scalar_lea.vmem %s1, 184
  %8765 = vst.msk [vmem:[%s8764] sm:$0xff] %vm8763, %v8762

// kernel: tile.8
$region0: #{tile.8}
  #allocation0 [shape = 's32[1]{0}', space=sflag, size = 0x4, scoped, tag = 'scoped memory for tile.8']
  %s0 = inlined_call_operand.vmem [shape: f32[4], index: 0, kind: input, shape index: {}]
  %s1 = inlined_call_operand.vmem [shape: f32[32,4], index: 1, kind: output, shape index: {}]
  // Predicated region
  $region2: #{tile.8} parent=0 // pred_check
    _
  $region3: #{tile.8} parent=0 // pred_check_branch
    %3 = sbr.rel (0) target = $region5
  $region4: #{tile.8} parent=0 // pred_region
    _
  $region5: #{tile.8} parent=0 // pred_fallthru
    _
  %v4 = vld [vmem:[%s0] ss:$0 sm:$0xff]
  %5 = vst [vmem:[%s1] sm:$0xff] %v4
  %s6 = scalar_lea.vmem %s1, 8
  %7 = vst [vmem:[%s6] sm:$0xff] %v4
  %s8 = scalar_lea.vmem %s1, 16
  %9 = vst [vmem:[%s8] sm:$0xff] %v4
  %s10 = scalar_lea.vmem %s1, 24
  %11 = vst [vmem:[%s10] sm:$0xff] %v4

// kernel: tile.9
$region0: #{tile.9}
  %s0 = inlined_call_operand.vmem [shape: f32[32,4], index: 0, kind: input, shape index: {}]
  %s1 = inlined_call_operand.vmem [shape: f32[1,128], index: 1, kind: output, shape index: {}]
  $region1: #{tile.9} parent=0
    #allocation0 [shape = 'u8[4096]{0}', space=vmem, size = 0x1000, scoped, tag = 'scoped mem for output reshape']
    %v2 = vld [vmem:[%s0] sm:$0x1]
    %vm3 = vcmask 31744
    %4 = vst.msk [vmem:[#allocation0] sm:$0x1] %vm3, %v2
    %s5 = scalar_lea.vmem %s0, 31
    %v6 = vld [vmem:[%s5] sm:$0x1]
    %7 = vrot.lane.b32.xlu0 %v6, 124
    %v8 = vpop.permute.xlu0 %7
    %vm9 = vcmask 1048544
    %10 = vst.msk [vmem:[#allocation0] sm:$0x1] %vm9, %v8
    %s11 = scalar_lea.vmem %s0, 30
    %v12 = vld [vmem:[%s11] sm:$0x1]
    %13 = vrot.lane.b32.xlu0 %v12, 120
    %v14 = vpop.permute.xlu0 %13
    %vm15 = vcmask 1015744
    %16 = vst.msk [vmem:[#allocation0] sm:$0x1] %vm15, %v14
    %s17 = scalar_lea.vmem %s0, 29
    %v18 = vld [vmem:[%s17] sm:$0x1]
    %19 = vrot.lane.b32.xlu0 %v18, 116
    %v20 = vpop.permute.xlu0 %19
    %vm21 = vcmask 982944
    %22 = vst.msk [vmem:[#allocation0] sm:$0x1] %vm21, %v20
    %s23 = scalar_lea.vmem %s0, 28
    %v24 = vld [vmem:[%s23] sm:$0x1]
    %25 = vrot.lane.b32.xlu0 %v24, 112
    %v26 = vpop.permute.xlu0 %25
    %vm27 = vcmask 950144
    %28 = vst.msk [vmem:[#allocation0] sm:$0x1] %vm27, %v26
    %s29 = scalar_lea.vmem %s0, 27
    %v30 = vld [vmem:[%s29] sm:$0x1]
    %31 = vrot.lane.b32.xlu0 %v30, 108
    %v32 = vpop.permute.xlu0 %31
    %vm33 = vcmask 917344
    %34 = vst.msk [vmem:[#allocation0] sm:$0x1] %vm33, %v32
    %s35 = scalar_lea.vmem %s0, 26
    %v36 = vld [vmem:[%s35] sm:$0x1]
    %37 = vrot.lane.b32.xlu0 %v36, 104
    %v38 = vpop.permute.xlu0 %37
    %vm39 = vcmask 884544
    %40 = vst.msk [vmem:[#allocation0] sm:$0x1] %vm39, %v38
    %s41 = scalar_lea.vmem %s0, 25
    %v42 = vld [vmem:[%s41] sm:$0x1]
    %43 = vrot.lane.b32.xlu0 %v42, 100
    %v44 = vpop.permute.xlu0 %43
    %vm45 = vcmask 851744
    %46 = vst.msk [vmem:[#allocation0] sm:$0x1] %vm45, %v44
    %s47 = scalar_lea.vmem %s0, 24
    %v48 = vld [vmem:[%s47] sm:$0x1]
    %49 = vrot.lane.b32.xlu0 %v48, 96
    %v50 = vpop.permute.xlu0 %49
    %vm51 = vcmask 818944
    %52 = vst.msk [vmem:[#allocation0] sm:$0x1] %vm51, %v50
    %s53 = scalar_lea.vmem %s0, 23
    %v54 = vld [vmem:[%s53] sm:$0x1]
    %55 = vrot.lane.b32.xlu0 %v54, 92
    %v56 = vpop.permute.xlu0 %55
    %vm57 = vcmask 786144
    %58 = vst.msk [vmem:[#allocation0] sm:$0x1] %vm57, %v56
    %s59 = scalar_lea.vmem %s0, 22
    %v60 = vld [vmem:[%s59] sm:$0x1]
    %61 = vrot.lane.b32.xlu0 %v60, 88
    %v62 = vpop.permute.xlu0 %61
    %vm63 = vcmask 753344
    %64 = vst.msk [vmem:[#allocation0] sm:$0x1] %vm63, %v62
    %s65 = scalar_lea.vmem %s0, 21
    %v66 = vld [vmem:[%s65] sm:$0x1]
    %67 = vrot.lane.b32.xlu0 %v66, 84
    %v68 = vpop.permute.xlu0 %67
    %vm69 = vcmask 720544
    %70 = vst.msk [vmem:[#allocation0] sm:$0x1] %vm69, %v68
    %s71 = scalar_lea.vmem %s0, 20
    %v72 = vld [vmem:[%s71] sm:$0x1]
    %73 = vrot.lane.b32.xlu0 %v72, 80
    %v74 = vpop.permute.xlu0 %73
    %vm75 = vcmask 687744
    %76 = vst.msk [vmem:[#allocation0] sm:$0x1] %vm75, %v74
    %s77 = scalar_lea.vmem %s0, 19
    %v78 = vld [vmem:[%s77] sm:$0x1]
    %79 = vrot.lane.b32.xlu0 %v78, 76
    %v80 = vpop.permute.xlu0 %79
    %vm81 = vcmask 654944
    %82 = vst.msk [vmem:[#allocation0] sm:$0x1] %vm81, %v80
    %s83 = scalar_lea.vmem %s0, 18
    %v84 = vld [vmem:[%s83] sm:$0x1]
    %85 = vrot.lane.b32.xlu0 %v84, 72
    %v86 = vpop.permute.xlu0 %85
    %vm87 = vcmask 622144
    %88 = vst.msk [vmem:[#allocation0] sm:$0x1] %vm87, %v86
    %s89 = scalar_lea.vmem %s0, 17
    %v90 = vld [vmem:[%s89] sm:$0x1]
    %91 = vrot.lane.b32.xlu0 %v90, 68
    %v92 = vpop.permute.xlu0 %91
    %vm93 = vcmask 589344
    %94 = vst.msk [vmem:[#allocation0] sm:$0x1] %vm93, %v92
    %s95 = scalar_lea.vmem %s0, 16
    %v96 = vld [vmem:[%s95] sm:$0x1]
    %97 = vrot.lane.b32.xlu0 %v96, 64
    %v98 = vpop.permute.xlu0 %97
    %vm99 = vcmask 556544
    %100 = vst.msk [vmem:[#allocation0] sm:$0x1] %vm99, %v98
    %s101 = scalar_lea.vmem %s0, 15
    %v102 = vld [vmem:[%s101] sm:$0x1]
    %103 = vrot.lane.b32.xlu0 %v102, 60
    %v104 = vpop.permute.xlu0 %103
    %vm105 = vcmask 523744
    %106 = vst.msk [vmem:[#allocation0] sm:$0x1] %vm105, %v104
    %s107 = scalar_lea.vmem %s0, 14
    %v108 = vld [vmem:[%s107] sm:$0x1]
    %109 = vrot.lane.b32.xlu0 %v108, 56
    %v110 = vpop.permute.xlu0 %109
    %vm111 = vcmask 490944
    %112 = vst.msk [vmem:[#allocation0] sm:$0x1] %vm111, %v110
    %s113 = scalar_lea.vmem %s0, 13
    %v114 = vld [vmem:[%s113] sm:$0x1]
    %115 = vrot.lane.b32.xlu0 %v114, 52
    %v116 = vpop.permute.xlu0 %115
    %vm117 = vcmask 458144
    %118 = vst.msk [vmem:[#allocation0] sm:$0x1] %vm117, %v116
    %s119 = scalar_lea.vmem %s0, 12
    %v120 = vld [vmem:[%s119] sm:$0x1]
    %121 = vrot.lane.b32.xlu0 %v120, 48
    %v122 = vpop.permute.xlu0 %121
    %vm123 = vcmask 425344
    %124 = vst.msk [vmem:[#allocation0] sm:$0x1] %vm123, %v122
    %s125 = scalar_lea.vmem %s0, 11
    %v126 = vld [vmem:[%s125] sm:$0x1]
    %127 = vrot.lane.b32.xlu0 %v126, 44
    %v128 = vpop.permute.xlu0 %127
    %vm129 = vcmask 392544
    %130 = vst.msk [vmem:[#allocation0] sm:$0x1] %vm129, %v128
    %s131 = scalar_lea.vmem %s0, 10
    %v132 = vld [vmem:[%s131] sm:$0x1]
    %133 = vrot.lane.b32.xlu0 %v132, 40
    %v134 = vpop.permute.xlu0 %133
    %vm135 = vcmask 359744
    %136 = vst.msk [vmem:[#allocation0] sm:$0x1] %vm135, %v134
    %s137 = scalar_lea.vmem %s0, 9
    %v138 = vld [vmem:[%s137] sm:$0x1]
    %139 = vrot.lane.b32.xlu0 %v138, 36
    %v140 = vpop.permute.xlu0 %139
    %vm141 = vcmask 326944
    %142 = vst.msk [vmem:[#allocation0] sm:$0x1] %vm141, %v140
    %s143 = scalar_lea.vmem %s0, 8
    %v144 = vld [vmem:[%s143] sm:$0x1]
    %145 = vrot.lane.b32.xlu0 %v144, 32
    %v146 = vpop.permute.xlu0 %145
    %vm147 = vcmask 294144
    %148 = vst.msk [vmem:[#allocation0] sm:$0x1] %vm147, %v146
    %s149 = scalar_lea.vmem %s0, 7
    %v150 = vld [vmem:[%s149] sm:$0x1]
    %151 = vrot.lane.b32.xlu0 %v150, 28
    %v152 = vpop.permute.xlu0 %151
    %vm153 = vcmask 261344
    %154 = vst.msk [vmem:[#allocation0] sm:$0x1] %vm153, %v152
    %s155 = scalar_lea.vmem %s0, 6
    %v156 = vld [vmem:[%s155] sm:$0x1]
    %157 = vrot.lane.b32.xlu0 %v156, 24
    %v158 = vpop.permute.xlu0 %157
    %vm159 = vcmask 228544
    %160 = vst.msk [vmem:[#allocation0] sm:$0x1] %vm159, %v158
    %s161 = scalar_lea.vmem %s0, 5
    %v162 = vld [vmem:[%s161] sm:$0x1]
    %163 = vrot.lane.b32.xlu0 %v162, 20
    %v164 = vpop.permute.xlu0 %163
    %vm165 = vcmask 195744
    %166 = vst.msk [vmem:[#allocation0] sm:$0x1] %vm165, %v164
    %s167 = scalar_lea.vmem %s0, 4
    %v168 = vld [vmem:[%s167] sm:$0x1]
    %169 = vrot.lane.b32.xlu0 %v168, 16
    %v170 = vpop.permute.xlu0 %169
    %vm171 = vcmask 162944
    %172 = vst.msk [vmem:[#allocation0] sm:$0x1] %vm171, %v170
    %s173 = scalar_lea.vmem %s0, 3
    %v174 = vld [vmem:[%s173] sm:$0x1]
    %175 = vrot.lane.b32.xlu0 %v174, 12
    %v176 = vpop.permute.xlu0 %175
    %vm177 = vcmask 130144
    %178 = vst.msk [vmem:[#allocation0] sm:$0x1] %vm177, %v176
    %s179 = scalar_lea.vmem %s0, 2
    %v180 = vld [vmem:[%s179] sm:$0x1]
    %181 = vrot.lane.b32.xlu0 %v180, 8
    %v182 = vpop.permute.xlu0 %181
    %vm183 = vcmask 97344
    %184 = vst.msk [vmem:[#allocation0] sm:$0x1] %vm183, %v182
    %s185 = scalar_lea.vmem %s0, 1
    %v186 = vld [vmem:[%s185] sm:$0x1]
    %187 = vrot.lane.b32.xlu0 %v186, 4
    %v188 = vpop.permute.xlu0 %187
    %vm189 = vcmask 64544
    %190 = vst.msk [vmem:[#allocation0] sm:$0x1] %vm189, %v188
    %s192 = ssub.s32 2, 1
    %v193 = vld [vmem:[#allocation0] sm:%s192]
    %s195 = ssub.s32 2, 1
    %196 = vst [vmem:[%s1] sm:%s195] %v193

// kernel: residual_block.1
$region0: #{residual_block.1}
  #allocation0 [shape = 'u32[]', space=smem, size = 0x4, offset = 0x4, fixed_abs, tag = 'smem constant byte address 0x4 - core index']
  #allocation1 [shape = 'u32[72,128]{1,0:T(1,128)}', space=vmem, size = 0x9000, scoped, tag = 'internal scratch']
  %s0 = inlined_call_operand.vmem [shape: f32[1,18,128], index: 0, kind: input, shape index: {}]
  %s1 = inlined_call_operand.vmem [shape: f32[3,128,128], index: 1, kind: input, shape index: {}]
  %s2 = inlined_call_operand.vmem [shape: f32[1,128], index: 2, kind: input, shape index: {}]
  %s3 = inlined_call_operand.vmem [shape: f32[1,16,128], index: 3, kind: output, shape index: {}]
  %s4 = sld [smem:[#allocation0]]
  $region22: #{residual_block.1} parent=0
    _
  %s6 = ssub.s32 1, %s4
  %s7 = scalar_select 0, %s6, %s4
  // Predicated region
  $region2: #{residual_block.1} parent=0 // pred_check
    _
  $region3: #{residual_block.1} parent=0 // pred_check_branch
    %9 = sbr.rel (0) target = $region5
  $region4: #{residual_block.1} parent=0 // pred_region
    _
  $region5: #{residual_block.1} parent=0 // pred_fallthru
    _
  // Predicated region
  $region6: #{residual_block.1} parent=0 // pred_check
    _
  $region7: #{residual_block.1} parent=0 // pred_check_branch
    %11 = sbr.rel (0) target = $region9
  $region8: #{residual_block.1} parent=0 // pred_region
    _
  $region9: #{residual_block.1} parent=0 // pred_fallthru
    _
  // Predicated region
  $region10: #{residual_block.1} parent=0 // pred_check
    _
  $region11: #{residual_block.1} parent=0 // pred_check_branch
    %13 = sbr.rel (0) target = $region13
  $region12: #{residual_block.1} parent=0 // pred_region
    _
  $region13: #{residual_block.1} parent=0 // pred_fallthru
    _
  %v14 = vld [vmem:[%s2] sm:$0x1]
  %v16 = vperm.slane %v14, 0
  %v18 = vld [vmem:[%s0] sm:$0xff]
  %v19 = vld [vmem:[%s0 + $0x8] sm:$0xff]
  %v20 = vld [vmem:[%s1] sm:$0xff]
  %v21 = vld [vmem:[%s1 + $0x8] sm:$0xff]
  %v22 = vld [vmem:[%s1 + $0x10] sm:$0xff]
  %v23 = vld [vmem:[%s1 + $0x18] sm:$0xff]
  %v24 = vld [vmem:[%s1 + $0x20] sm:$0xff]
  %v25 = vld [vmem:[%s1 + $0x28] sm:$0xff]
  %v26 = vld [vmem:[%s1 + $0x30] sm:$0xff]
  %v27 = vld [vmem:[%s1 + $0x38] sm:$0xff]
  %v28 = vld [vmem:[%s1 + $0x40] sm:$0xff]
  %v29 = vld [vmem:[%s1 + $0x48] sm:$0xff]
  %v30 = vld [vmem:[%s1 + $0x50] sm:$0xff]
  %v31 = vld [vmem:[%s1 + $0x58] sm:$0xff]
  %v32 = vld [vmem:[%s1 + $0x60] sm:$0xff]
  %v33 = vld [vmem:[%s1 + $0x68] sm:$0xff]
  %v34 = vld [vmem:[%s1 + $0x70] sm:$0xff]
  %v35 = vld [vmem:[%s1 + $0x78] sm:$0xff]
  %36 = vmatpush.msra.mxu0 %v35
  %37 = vmatpush.msra.mxu0 %v34
  %38 = vmatpush.msra.mxu0 %v33
  %39 = vmatpush.msra.mxu0 %v32
  %40 = vmatpush.msra.mxu0 %v31
  %41 = vmatpush.msra.mxu0 %v30
  %42 = vmatpush.msra.mxu0 %v29
  %43 = vmatpush.msra.mxu0 %v28
  %44 = vmatpush.msra.mxu0 %v27
  %45 = vmatpush.msra.mxu0 %v26
  %46 = vmatpush.msra.mxu0 %v25
  %47 = vmatpush.msra.mxu0 %v24
  %48 = vmatpush.msra.mxu0 %v23
  %49 = vmatpush.msra.mxu0 %v22
  %50 = vmatpush.msra.mxu0 %v21
  %51 = vmatpush.msra.mxu0 %v20
  %52 = vmatmul.f32.gmra.mxu0 %v18
  %v53 = vpop.f32.mrf.mxu0
  %v54 = vadd.f32 0.0, %v53
  %55 = vmatmul.f32.gmra.mxu0 %v19
  %v56 = vpop.f32.mrf.mxu0
  %v57 = vadd.f32 0.0, %v56
  %58 = vdwg.mxu0
  %v59 = vadd.f32 %v16, %v54
  %v60 = vadd.f32 %v16, %v57
  %v61 = vld [vmem:[%s0 + $0x1] sm:$0xff]
  %v62 = vld [vmem:[%s0 + $0x9] sm:$0xff]
  %s63 = scalar_lea.vmem %s1, 128
  %v64 = vld [vmem:[%s63] sm:$0xff]
  %v65 = vld [vmem:[%s63 + $0x8] sm:$0xff]
  %v66 = vld [vmem:[%s63 + $0x10] sm:$0xff]
  %v67 = vld [vmem:[%s63 + $0x18] sm:$0xff]
  %v68 = vld [vmem:[%s63 + $0x20] sm:$0xff]
  %v69 = vld [vmem:[%s63 + $0x28] sm:$0xff]
  %v70 = vld [vmem:[%s63 + $0x30] sm:$0xff]
  %v71 = vld [vmem:[%s63 + $0x38] sm:$0xff]
  %v72 = vld [vmem:[%s63 + $0x40] sm:$0xff]
  %v73 = vld [vmem:[%s63 + $0x48] sm:$0xff]
  %v74 = vld [vmem:[%s63 + $0x50] sm:$0xff]
  %v75 = vld [vmem:[%s63 + $0x58] sm:$0xff]
  %v76 = vld [vmem:[%s63 + $0x60] sm:$0xff]
  %v77 = vld [vmem:[%s63 + $0x68] sm:$0xff]
  %v78 = vld [vmem:[%s63 + $0x70] sm:$0xff]
  %v79 = vld [vmem:[%s63 + $0x78] sm:$0xff]
  %80 = vmatpush.msra.mxu0 %v79
  %81 = vmatpush.msra.mxu0 %v78
  %82 = vmatpush.msra.mxu0 %v77
  %83 = vmatpush.msra.mxu0 %v76
  %84 = vmatpush.msra.mxu0 %v75
  %85 = vmatpush.msra.mxu0 %v74
  %86 = vmatpush.msra.mxu0 %v73
  %87 = vmatpush.msra.mxu0 %v72
  %88 = vmatpush.msra.mxu0 %v71
  %89 = vmatpush.msra.mxu0 %v70
  %90 = vmatpush.msra.mxu0 %v69
  %91 = vmatpush.msra.mxu0 %v68
  %92 = vmatpush.msra.mxu0 %v67
  %93 = vmatpush.msra.mxu0 %v66
  %94 = vmatpush.msra.mxu0 %v65
  %95 = vmatpush.msra.mxu0 %v64
  %96 = vmatmul.f32.gmra.mxu0 %v61
  %v97 = vpop.f32.mrf.mxu0
  %v98 = vadd.f32 0.0, %v97
  %99 = vmatmul.f32.gmra.mxu0 %v62
  %v100 = vpop.f32.mrf.mxu0
  %v101 = vadd.f32 0.0, %v100
  %102 = vdwg.mxu0
  %v103 = vadd.f32 %v59, %v98
  %v104 = vadd.f32 %v60, %v101
  %v105 = vld [vmem:[%s0 + $0x2] sm:$0xff]
  %v106 = vld [vmem:[%s0 + $0xa] sm:$0xff]
  %s107 = scalar_lea.vmem %s1, 256
  %v108 = vld [vmem:[%s107] sm:$0xff]
  %v109 = vld [vmem:[%s107 + $0x8] sm:$0xff]
  %v110 = vld [vmem:[%s107 + $0x10] sm:$0xff]
  %v111 = vld [vmem:[%s107 + $0x18] sm:$0xff]
  %v112 = vld [vmem:[%s107 + $0x20] sm:$0xff]
  %v113 = vld [vmem:[%s107 + $0x28] sm:$0xff]
  %v114 = vld [vmem:[%s107 + $0x30] sm:$0xff]
  %v115 = vld [vmem:[%s107 + $0x38] sm:$0xff]
  %v116 = vld [vmem:[%s107 + $0x40] sm:$0xff]
  %v117 = vld [vmem:[%s107 + $0x48] sm:$0xff]
  %v118 = vld [vmem:[%s107 + $0x50] sm:$0xff]
  %v119 = vld [vmem:[%s107 + $0x58] sm:$0xff]
  %v120 = vld [vmem:[%s107 + $0x60] sm:$0xff]
  %v121 = vld [vmem:[%s107 + $0x68] sm:$0xff]
  %v122 = vld [vmem:[%s107 + $0x70] sm:$0xff]
  %v123 = vld [vmem:[%s107 + $0x78] sm:$0xff]
  %124 = vmatpush.msra.mxu0 %v123
  %125 = vmatpush.msra.mxu0 %v122
  %126 = vmatpush.msra.mxu0 %v121
  %127 = vmatpush.msra.mxu0 %v120
  %128 = vmatpush.msra.mxu0 %v119
  %129 = vmatpush.msra.mxu0 %v118
  %130 = vmatpush.msra.mxu0 %v117
  %131 = vmatpush.msra.mxu0 %v116
  %132 = vmatpush.msra.mxu0 %v115
  %133 = vmatpush.msra.mxu0 %v114
  %134 = vmatpush.msra.mxu0 %v113
  %135 = vmatpush.msra.mxu0 %v112
  %136 = vmatpush.msra.mxu0 %v111
  %137 = vmatpush.msra.mxu0 %v110
  %138 = vmatpush.msra.mxu0 %v109
  %139 = vmatpush.msra.mxu0 %v108
  %140 = vmatmul.f32.gmra.mxu0 %v105
  %v141 = vpop.f32.mrf.mxu0
  %v142 = vadd.f32 0.0, %v141
  %143 = vmatmul.f32.gmra.mxu0 %v106
  %v144 = vpop.f32.mrf.mxu0
  %v145 = vadd.f32 0.0, %v144
  %146 = vdwg.mxu0
  %v147 = vadd.f32 %v103, %v142
  %v148 = vadd.f32 %v104, %v145
  %149 = vst [vmem:[%s3] sm:$0xff] %v147
  %150 = vst [vmem:[%s3 + $0x8] sm:$0xff] %v148
  // Predicated region
  $region14: #{residual_block.1} parent=0 // pred_check
    _
  $region15: #{residual_block.1} parent=0 // pred_check_branch
    %152 = sbr.rel (0) target = $region17
  $region16: #{residual_block.1} parent=0 // pred_region
    _
  $region17: #{residual_block.1} parent=0 // pred_fallthru
    _
  // Predicated region
  $region18: #{residual_block.1} parent=0 // pred_check
    _
  $region19: #{residual_block.1} parent=0 // pred_check_branch
    %154 = sbr.rel (0) target = $region21
  $region20: #{residual_block.1} parent=0 // pred_region
    _
  $region21: #{residual_block.1} parent=0 // pred_fallthru
    _

</llo_original>
